<compile_context>
chip_gen: v5e
topology: v5e:2x2
jax: 0.10.0
libtpu: 0.0.40
codegen_flags: <defaults>
</compile_context>

<pallas_src>
import numpy as np

import jax
import jax.numpy as jnp
from jax import lax
from jax.experimental import pallas as pl
from jax.experimental.pallas import tpu as pltpu

IMG = 28
BAND = 32                  # lanes per sample
GROUP = 4                  # samples per 128-lane group
LANES = GROUP * BAND       # 128
NG_MAX = 4                 # max 128-lane groups processed per grid step
NUM_ITER = 2
MLP_OUT = 9 * 5 + 1 * 5 + 32 * 16 + 32   # 594
STRIDES = (1, 1, 2, 2, 2)
_HI = lax.Precision.HIGHEST
_DN = ("NCHW", "OIHW", "NCHW")


# ----------------------- host-side constants (built once) --------------------------

def _make_selectors():
    """Exact 0/1 selection matrices for the three stride-2 stages (rows & lanes)."""
    r14 = np.zeros((14, 28), np.float32); r14[np.arange(14), 2 * np.arange(14)] = 1.0
    r7 = np.zeros((7, 14), np.float32);   r7[np.arange(7), 2 * np.arange(7)] = 1.0
    r4 = np.zeros((4, 7), np.float32);    r4[np.arange(4), 2 * np.arange(4)] = 1.0

    def colsel(n_out):
        c = np.zeros((LANES, LANES), np.float32)
        for b in range(GROUP):
            for j in range(n_out):
                # full-conv output column 2j (lane band+1+2j) -> next stage lane band+1+j
                c[b * BAND + 1 + 2 * j, b * BAND + 1 + j] = 1.0
        return c

    return r14, colsel(14), r7, colsel(7), r4, colsel(4)


_R14, _C14, _R7, _C7, _R4, _C4 = _make_selectors()


# ----------------------------------- kernel ----------------------------------------

def _tower_kernel(x_ref, coef_ref, r14_ref, c14_ref, r7_ref, c7_ref, r4_ref, c4_ref,
                  o_ref, pa_ref, pa2_ref, pb_ref, pc_ref, l_ref, r_ref):
    """5 depthwise 3x3 convs (stride 1,1,2,2,2, pad 1, ReLU) for NG lane-packed groups.

    x_ref:    (32, NG*128)  zero-padded images, sample n at rows 1..28 / lanes n*32+1..n*32+28
    coef_ref: (50, NG*128)  per-layer [9 taps + bias] broadcast across each sample's band
    o_ref:    (4, NG*128)   4x4 feature maps at rows 0..3 / lanes n*32+1..n*32+4
    """
    ng = x_ref.shape[1] // LANES

    lane = lax.broadcasted_iota(jnp.int32, (1, LANES), 1) % BAND
    mask28 = jnp.logical_and(lane >= 1, lane <= IMG)        # data lanes of 28-wide stages

    # Clear only the zero-padding border rows of the reused scratch planes.  Interiors are
    # fully overwritten for every group; done per step (not under pl.when(pid==0)) so the
    # kernel stays correct under v7x megacore grid sharding.
    zrow = jnp.zeros((1, LANES), jnp.float32)
    for ref, rows in ((pa_ref, (0, 29)), (pa2_ref, (0, 29)),
                      (pb_ref, (0, 15)), (pc_ref, (0, 8))):
        for r0 in rows:
            ref[r0:r0 + 1, :] = zrow

    def conv3x3(center, h, layer, base):
        """center(r0, n) loads (n, 128) rows of the padded source plane for this group."""
        hp = h + 2
        # Pre-roll the whole padded source once per layer (2 XLU rolls instead of 6); the
        # nine taps then read row slices of {left, center, right} refs via spare vld slots.
        full = center(0, hp)
        l_ref[0:hp, :] = pltpu.roll(full, 1, 1)              # value at column-1
        r_ref[0:hp, :] = pltpu.roll(full, LANES - 1, 1)      # value at column+1
        acc = None
        for dy in range(3):
            planes = (l_ref[dy:dy + h, :], center(dy, h), r_ref[dy:dy + h, :])
            for dx in range(3):
                idx = layer * 10 + dy * 3 + dx
                term = coef_ref[idx:idx + 1, base:base + LANES] * planes[dx]
                acc = term if acc is None else acc + term
        bias = coef_ref[layer * 10 + 9:layer * 10 + 10, base:base + LANES]
        return jnp.maximum(acc + bias, 0.0)

    def downsample(full, rsel_ref, csel_ref):
        # exact 0/1 selection: stride-2 rows, then stride-2 columns mapped into the next
        # stage's lane layout (also re-zeroes every padding lane).  HIGHEST keeps it exact.
        half = jnp.dot(rsel_ref[...], full, precision=_HI,
                       preferred_element_type=jnp.float32)
        return jnp.dot(half, csel_ref[...], precision=_HI,
                       preferred_element_type=jnp.float32)

    for g in range(ng):                                      # unrolled: NG groups / step
        base = g * LANES

        def x_center(r0, n, base=base):
            return x_ref[r0:r0 + n, base:base + LANES]

        # conv1 / conv2 (stride 1): mask keeps each band's padding lanes exactly zero,
        # which the next layer's lane rolls rely on.
        pa_ref[1:29, :] = jnp.where(mask28, conv3x3(x_center, 28, 0, base), 0.0)
        pa2_ref[1:29, :] = jnp.where(
            mask28, conv3x3(lambda r0, n: pa_ref[r0:r0 + n, :], 28, 1, base), 0.0)
        # conv3/4/5 (stride 2): full conv then exact selection downsample.
        pb_ref[1:15, :] = downsample(
            conv3x3(lambda r0, n: pa2_ref[r0:r0 + n, :], 28, 2, base), r14_ref, c14_ref)
        pc_ref[1:8, :] = downsample(
            conv3x3(lambda r0, n: pb_ref[r0:r0 + n, :], 14, 3, base), r7_ref, c7_ref)
        o_ref[:, base:base + LANES] = downsample(
            conv3x3(lambda r0, n: pc_ref[r0:r0 + n, :], 7, 4, base), r4_ref, c4_ref)


def tower(xpad, coef, *, ng, shared_coef):
    """xpad (32, Bp*32), coef (50, ng*128) shared or (50, Bp*32) per-sample -> (4, Bp*32)."""
    total = xpad.shape[1]
    steps = total // (ng * LANES)
    sel = tuple(jnp.asarray(m) for m in (_R14, _C14, _R7, _C7, _R4, _C4))
    coef_idx = (lambda i: (0, 0)) if shared_coef else (lambda i: (0, i))
    return pl.pallas_call(
        _tower_kernel,
        grid=(steps,),
        in_specs=[
            pl.BlockSpec((32, ng * LANES), lambda i: (0, i)),
            pl.BlockSpec((50, ng * LANES), coef_idx),
            pl.BlockSpec((14, 28), lambda i: (0, 0)),
            pl.BlockSpec((LANES, LANES), lambda i: (0, 0)),
            pl.BlockSpec((7, 14), lambda i: (0, 0)),
            pl.BlockSpec((LANES, LANES), lambda i: (0, 0)),
            pl.BlockSpec((4, 7), lambda i: (0, 0)),
            pl.BlockSpec((LANES, LANES), lambda i: (0, 0)),
        ],
        out_specs=pl.BlockSpec((4, ng * LANES), lambda i: (0, i)),
        out_shape=jax.ShapeDtypeStruct((4, total), jnp.float32),
        scratch_shapes=[
            pltpu.VMEM((32, LANES), jnp.float32),   # conv1 output plane (padded 28x28)
            pltpu.VMEM((32, LANES), jnp.float32),   # conv2 output plane (padded 28x28)
            pltpu.VMEM((16, LANES), jnp.float32),   # padded 14x14 plane
            pltpu.VMEM((16, LANES), jnp.float32),   # padded 7x7 plane
            pltpu.VMEM((32, LANES), jnp.float32),   # pre-rolled plane (col-1)
            pltpu.VMEM((32, LANES), jnp.float32),   # pre-rolled plane (col+1)
        ],
        compiler_params=pltpu.CompilerParams(dimension_semantics=("parallel",)),
    )(xpad, coef, *sel)


# ----------------------------- wrapper-side plumbing --------------------------------

def _choose_tiling(b):
    """Pick (groups-per-step, grid length) so per-step overhead is amortized and the grid
    stays >= 2 whenever possible (both v7x TensorCores get work)."""
    groups = -(-b // GROUP)
    if groups <= 1:
        return 1, 1
    ng = min(NG_MAX, -(-groups // 2))
    steps = -(-groups // ng)
    return ng, steps


def _pack_images(imgs, bp):
    """(B, 28, 28) -> (32, Bp*32) lane-packed, zero-padded planes."""
    b = imgs.shape[0]
    xp = jnp.zeros((bp, 32, BAND), jnp.float32)
    xp = xp.at[:b, 1:IMG + 1, 1:IMG + 1].set(imgs)
    return xp.transpose(1, 0, 2).reshape(32, bp * BAND)


def _band_coef(t50, bp):
    """(B, 50) per-sample [w(9), b] x 5 -> (50, Bp*32), value broadcast across each band."""
    b = t50.shape[0]
    t50p = jnp.zeros((bp, 50), jnp.float32).at[:b].set(t50)
    return jnp.repeat(t50p.T, BAND, axis=1)


def _extract_flat(slab, b):
    """(4, Bp*32) feature slab -> (B, 16) row-major flattened 4x4 features."""
    n = slab.shape[1] // BAND
    s = slab.reshape(4, n, BAND)[:, :, 1:5]                  # (row, sample, col)
    return s.transpose(1, 0, 2).reshape(n, 16)[:b]


def _layernorm(x, gamma, beta):
    mu = jnp.mean(x, axis=-1, keepdims=True)
    xc = x - mu
    var = jnp.mean(xc * xc, axis=-1, keepdims=True)
    return xc * lax.rsqrt(var + 1e-5) * gamma[None, :] + beta[None, :]


# ----------------------------- model (Pallas path) ----------------------------------

def forward(x, params):
    b = x.shape[0]
    imgs = x.reshape(b, IMG, IMG)
    ng, steps = _choose_tiling(b)
    bp = steps * ng * GROUP
    xpad = _pack_images(imgs, bp)

    # stem: shared weights -> one (50, ng*128) coef block reused by every step
    stem_row = jnp.concatenate(
        [params["stem_w3"], params["stem_b3"][:, None]], axis=1).reshape(50)
    stem_coef = jnp.broadcast_to(stem_row[:, None], (50, ng * LANES))
    flat = _extract_flat(tower(xpad, stem_coef, ng=ng, shared_coef=True), b)
    v = jnp.dot(flat, params["stem_w6"].T, precision=_HI) + params["stem_b6"][None, :]
    v = _layernorm(v, params["ln_g"], params["ln_b"])

    for it in range(NUM_ITER):
        p = params["fs"][it]
        h = jnp.maximum(jnp.dot(v, p["w1"], precision=_HI) + p["b1"], 0.0)
        h = jnp.maximum(jnp.dot(h, p["w2"], precision=_HI) + p["b2"], 0.0)
        t = jnp.dot(h, p["w3"], precision=_HI) + p["b3"]            # (B, 594)
        coef = _band_coef(t[:, :50], bp)                            # dynamic conv params
        flat = _extract_flat(tower(xpad, coef, ng=ng, shared_coef=False), b)
        w6 = t[:, 50:562].reshape(b, 32, 16)                        # per-sample 4x4 -> 32
        cnn = jnp.einsum("bk,bnk->bn", flat, w6, precision=_HI) + t[:, 562:594]
        v = _layernorm(cnn + v, params["ln_g"], params["ln_b"])

    return jnp.dot(v, params["cls_w"], precision=_HI) + params["cls_b"][None, :]


# ----------------------------- pure-JAX reference ------------------------------------

def _stem_ref(imgs, params):
    b = imgs.shape[0]
    h = imgs[:, None]                                               # (B,1,28,28)
    for t in range(5):
        w = params["stem_w3"][t].reshape(1, 1, 3, 3)
        h = lax.conv_general_dilated(h, w, (STRIDES[t],) * 2, ((1, 1), (1, 1)),
                                     dimension_numbers=_DN, precision=_HI)
        h = jnp.maximum(h + params["stem_b3"][t], 0.0)
    w6 = params["stem_w6"].reshape(32, 1, 4, 4)
    h = lax.conv_general_dilated(h, w6, (1, 1), "VALID",
                                 dimension_numbers=_DN, precision=_HI)
    return h.reshape(b, 32) + params["stem_b6"][None, :]


def _depthwise_tower_ref(imgs, wconv, bconv, w6, b6):
    b = imgs.shape[0]
    g = imgs[None]                                                  # (1,B,28,28)
    for t in range(5):
        w = wconv[:, t * 9:(t + 1) * 9].reshape(b, 1, 3, 3)
        g = lax.conv_general_dilated(g, w, (STRIDES[t],) * 2, ((1, 1), (1, 1)),
                                     feature_group_count=b,
                                     dimension_numbers=_DN, precision=_HI)
        g = jnp.maximum(g + bconv[:, t][None, :, None, None], 0.0)
    w6r = w6.reshape(b * 32, 1, 4, 4)
    g = lax.conv_general_dilated(g, w6r, (1, 1), "VALID", feature_group_count=b,
                                 dimension_numbers=_DN, precision=_HI)
    return g.reshape(b, 32) + b6.reshape(b, 32)


def forward_ref(x, params):
    b = x.shape[0]
    imgs = x.reshape(b, IMG, IMG)
    v = _layernorm(_stem_ref(imgs, params), params["ln_g"], params["ln_b"])
    for it in range(NUM_ITER):
        p = params["fs"][it]
        h = jnp.maximum(jnp.dot(v, p["w1"], precision=_HI) + p["b1"], 0.0)
        h = jnp.maximum(jnp.dot(h, p["w2"], precision=_HI) + p["b2"], 0.0)
        t = jnp.dot(h, p["w3"], precision=_HI) + p["b3"]
        wconv = jnp.concatenate([t[:, i * 10:i * 10 + 9] for i in range(5)], axis=1)
        bconv = jnp.concatenate([t[:, i * 10 + 9:i * 10 + 10] for i in range(5)], axis=1)
        cnn = _depthwise_tower_ref(imgs, wconv, bconv, t[:, 50:562], t[:, 562:594])
        v = _layernorm(cnn + v, params["ln_g"], params["ln_b"])
    return jnp.dot(v, params["cls_w"], precision=_HI) + params["cls_b"][None, :]


# ----------------------------- parameter init ----------------------------------------

def _uniform(key, shape, fan_in):
    bound = float(fan_in) ** -0.5
    return jax.random.uniform(key, shape, jnp.float32, -bound, bound)


def init_params(key):
    ks = iter(jax.random.split(key, 32))
    params = {
        "stem_w3": _uniform(next(ks), (5, 9), 9),      # 5 shared 3x3 stem convs
        "stem_b3": _uniform(next(ks), (5,), 9),
        "stem_w6": _uniform(next(ks), (32, 16), 16),   # Conv2d(1,32,4) flattened
        "stem_b6": _uniform(next(ks), (32,), 16),
        "ln_g": 1.0 + 0.1 * jax.random.normal(next(ks), (32,), jnp.float32),
        "ln_b": 0.1 * jax.random.normal(next(ks), (32,), jnp.float32),
        "cls_w": None, "cls_b": None, "fs": [],
    }
    for _ in range(NUM_ITER):
        params["fs"].append({
            "w1": _uniform(next(ks), (32, 64), 32),
            "b1": _uniform(next(ks), (64,), 32),
            "w2": _uniform(next(ks), (64, 64), 64),
            "b2": _uniform(next(ks), (64,), 64),
            "w3": _uniform(next(ks), (64, MLP_OUT), 64),
            "b3": _uniform(next(ks), (MLP_OUT,), 64),
        })
    params["cls_w"] = _uniform(next(ks), (32, 10), 32)
    params["cls_b"] = _uniform(next(ks), (10,), 32)
    return params


# ----------------------------------- main ---------------------------------------------

if __name__ == "__main__":
    key = jax.random.PRNGKey(0)
    k_params, k_x, k_x2 = jax.random.split(key, 3)
    params = init_params(k_params)
    fwd = jax.jit(forward)

    # Small primary check (single group per step).
    B = 4
    x = jax.random.normal(k_x, (B, 1, IMG, IMG), jnp.float32)
    out = jax.block_until_ready(fwd(x, params))
    ref = forward_ref(x, params)
    err = float(jnp.max(jnp.abs(out - ref)))
    assert out.shape == (B, 10), out.shape
    assert err < 1e-3, f"B=4 mismatch vs pure-JAX reference: max abs diff = {err}"

    # Exercise the widened multi-group / multi-step path (ng>1, grid>=2, batch padding).
    B2 = 20
    x2 = jax.random.normal(k_x2, (B2, 1, IMG, IMG), jnp.float32)
    out2 = jax.block_until_ready(fwd(x2, params))
    ref2 = forward_ref(x2, params)
    err2 = float(jnp.max(jnp.abs(out2 - ref2)))
    assert out2.shape == (B2, 10), out2.shape
    assert err2 < 1e-3, f"B=20 mismatch vs pure-JAX reference: max abs diff = {err2}"

    print("KERNEL_OK")
</pallas_src>

<mosaic_0001>
module attributes {stable_mosaic.version = 11 : i64} {
  func.func @_tower_kernel(%arg0: i32, %arg1: memref<32x128xf32, #tpu.memory_space<vmem>>, %arg2: memref<50x128xf32, #tpu.memory_space<vmem>>, %arg3: memref<14x28xf32, #tpu.memory_space<vmem>>, %arg4: memref<128x128xf32, #tpu.memory_space<vmem>>, %arg5: memref<7x14xf32, #tpu.memory_space<vmem>>, %arg6: memref<128x128xf32, #tpu.memory_space<vmem>>, %arg7: memref<4x7xf32, #tpu.memory_space<vmem>>, %arg8: memref<128x128xf32, #tpu.memory_space<vmem>>, %arg9: memref<4x128xf32, #tpu.memory_space<vmem>>, %arg10: memref<32x128xf32, #tpu.memory_space<vmem>>, %arg11: memref<32x128xf32, #tpu.memory_space<vmem>>, %arg12: memref<16x128xf32, #tpu.memory_space<vmem>>, %arg13: memref<16x128xf32, #tpu.memory_space<vmem>>, %arg14: memref<32x128xf32, #tpu.memory_space<vmem>>, %arg15: memref<32x128xf32, #tpu.memory_space<vmem>>) attributes {dimension_semantics = [#tpu.dimension_semantics<parallel>], iteration_bounds = array<i64: 1>, scalar_prefetch = 0 : i64, scratch_operands = 6 : i64, tpu.core_type = #tpu.core_type<tc>, window_params = [{transform_indices = @transform_0, window_bounds = array<i64: 32, 128>}, {pipeline_mode = #tpu.pipeline_mode<synchronous>, transform_indices = @transform_1, window_bounds = array<i64: 50, 128>}, {pipeline_mode = #tpu.pipeline_mode<synchronous>, transform_indices = @transform_2, window_bounds = array<i64: 14, 28>}, {pipeline_mode = #tpu.pipeline_mode<synchronous>, transform_indices = @transform_3, window_bounds = array<i64: 128, 128>}, {pipeline_mode = #tpu.pipeline_mode<synchronous>, transform_indices = @transform_4, window_bounds = array<i64: 7, 14>}, {pipeline_mode = #tpu.pipeline_mode<synchronous>, transform_indices = @transform_5, window_bounds = array<i64: 128, 128>}, {pipeline_mode = #tpu.pipeline_mode<synchronous>, transform_indices = @transform_6, window_bounds = array<i64: 4, 7>}, {pipeline_mode = #tpu.pipeline_mode<synchronous>, transform_indices = @transform_7, window_bounds = array<i64: 128, 128>}, {transform_indices = @transform_8, window_bounds = array<i64: 4, 128>}]} {
    %0 = tpu.iota {dimensions = array<i32: 1>} : vector<1x128xi32>
    %c32_i32 = arith.constant 32 : i32
    %c0_i32 = arith.constant 0 : i32
    %1 = arith.cmpi eq, %c32_i32, %c0_i32 : i32
    %c1_i32 = arith.constant 1 : i32
    %2 = arith.select %1, %c1_i32, %c32_i32 : i32
    %3 = vector.broadcast %2 : i32 to vector<1x128xi32>
    %4 = arith.remsi %0, %3 : vector<1x128xi32>
    %c0_i32_0 = arith.constant 0 : i32
    %5 = vector.broadcast %c0_i32_0 : i32 to vector<1x128xi32>
    %6 = arith.cmpi ne, %4, %5 : vector<1x128xi32>
    %c0_i32_1 = arith.constant 0 : i32
    %7 = vector.broadcast %c0_i32_1 : i32 to vector<1x128xi32>
    %8 = arith.cmpi slt, %4, %7 : vector<1x128xi32>
    %c0_i32_2 = arith.constant 0 : i32
    %9 = arith.cmpi slt, %2, %c0_i32_2 : i32
    %10 = vector.broadcast %9 : i1 to vector<1x128xi1>
    %11 = vector.broadcast %10 : vector<1x128xi1> to vector<1x128xi1>
    %12 = arith.xori %8, %11 : vector<1x128xi1>
    %13 = arith.andi %12, %6 : vector<1x128xi1>
    %14 = vector.broadcast %2 : i32 to vector<1x128xi32>
    %15 = arith.addi %4, %14 : vector<1x128xi32>
    %16 = arith.select %13, %15, %4 : vector<1x128xi1>, vector<1x128xi32>
    %c1_i32_3 = arith.constant 1 : i32
    %17 = vector.broadcast %c1_i32_3 : i32 to vector<1x128xi32>
    %18 = arith.cmpi sge, %16, %17 : vector<1x128xi32>
    %c28_i32 = arith.constant 28 : i32
    %19 = vector.broadcast %c28_i32 : i32 to vector<1x128xi32>
    %20 = arith.cmpi sle, %16, %19 : vector<1x128xi32>
    %21 = arith.andi %18, %20 : vector<1x128xi1>
    %cst = arith.constant 0.000000e+00 : f32
    %22 = vector.broadcast %cst : f32 to vector<1x128xf32>
    %c0 = arith.constant 0 : index
    %c0_4 = arith.constant 0 : index
    %23 = vector.load %arg10[%c0, %c0_4] : memref<32x128xf32, #tpu.memory_space<vmem>>, vector<1x128xf32>
    tpu.vector_store %arg10[%c0, %c0_4], %22 {strides = array<i32>} : memref<32x128xf32, #tpu.memory_space<vmem>>, vector<1x128xf32>,
    %c29 = arith.constant 29 : index
    %c0_5 = arith.constant 0 : index
    %24 = vector.load %arg10[%c29, %c0_5] : memref<32x128xf32, #tpu.memory_space<vmem>>, vector<1x128xf32>
    tpu.vector_store %arg10[%c29, %c0_5], %22 {strides = array<i32>} : memref<32x128xf32, #tpu.memory_space<vmem>>, vector<1x128xf32>,
    %c0_6 = arith.constant 0 : index
    %c0_7 = arith.constant 0 : index
    %25 = vector.load %arg11[%c0_6, %c0_7] : memref<32x128xf32, #tpu.memory_space<vmem>>, vector<1x128xf32>
    tpu.vector_store %arg11[%c0_6, %c0_7], %22 {strides = array<i32>} : memref<32x128xf32, #tpu.memory_space<vmem>>, vector<1x128xf32>,
    %c29_8 = arith.constant 29 : index
    %c0_9 = arith.constant 0 : index
    %26 = vector.load %arg11[%c29_8, %c0_9] : memref<32x128xf32, #tpu.memory_space<vmem>>, vector<1x128xf32>
    tpu.vector_store %arg11[%c29_8, %c0_9], %22 {strides = array<i32>} : memref<32x128xf32, #tpu.memory_space<vmem>>, vector<1x128xf32>,
    %c0_10 = arith.constant 0 : index
    %c0_11 = arith.constant 0 : index
    %27 = vector.load %arg12[%c0_10, %c0_11] : memref<16x128xf32, #tpu.memory_space<vmem>>, vector<1x128xf32>
    tpu.vector_store %arg12[%c0_10, %c0_11], %22 {strides = array<i32>} : memref<16x128xf32, #tpu.memory_space<vmem>>, vector<1x128xf32>,
    %c15 = arith.constant 15 : index
    %c0_12 = arith.constant 0 : index
    %28 = vector.load %arg12[%c15, %c0_12] : memref<16x128xf32, #tpu.memory_space<vmem>>, vector<1x128xf32>
    tpu.vector_store %arg12[%c15, %c0_12], %22 {strides = array<i32>} : memref<16x128xf32, #tpu.memory_space<vmem>>, vector<1x128xf32>,
    %c0_13 = arith.constant 0 : index
    %c0_14 = arith.constant 0 : index
    %29 = vector.load %arg13[%c0_13, %c0_14] : memref<16x128xf32, #tpu.memory_space<vmem>>, vector<1x128xf32>
    tpu.vector_store %arg13[%c0_13, %c0_14], %22 {strides = array<i32>} : memref<16x128xf32, #tpu.memory_space<vmem>>, vector<1x128xf32>,
    %c8 = arith.constant 8 : index
    %c0_15 = arith.constant 0 : index
    %30 = vector.load %arg13[%c8, %c0_15] : memref<16x128xf32, #tpu.memory_space<vmem>>, vector<1x128xf32>
    tpu.vector_store %arg13[%c8, %c0_15], %22 {strides = array<i32>} : memref<16x128xf32, #tpu.memory_space<vmem>>, vector<1x128xf32>,
    %c0_16 = arith.constant 0 : index
    %c0_17 = arith.constant 0 : index
    %31 = vector.load %arg1[%c0_16, %c0_17] : memref<32x128xf32, #tpu.memory_space<vmem>>, vector<30x128xf32>
    %c1_i32_18 = arith.constant 1 : i32
    %32 = tpu.dynamic_rotate %31 by %c1_i32_18 dim 1 : vector<30x128xf32>, i32 -> vector<30x128xf32>
    %c0_19 = arith.constant 0 : index
    %c0_20 = arith.constant 0 : index
    %33 = vector.load %arg14[%c0_19, %c0_20] : memref<32x128xf32, #tpu.memory_space<vmem>>, vector<30x128xf32>
    tpu.vector_store %arg14[%c0_19, %c0_20], %32 {strides = array<i32>} : memref<32x128xf32, #tpu.memory_space<vmem>>, vector<30x128xf32>,
    %c127_i32 = arith.constant 127 : i32
    %34 = tpu.dynamic_rotate %31 by %c127_i32 dim 1 : vector<30x128xf32>, i32 -> vector<30x128xf32>
    %c0_21 = arith.constant 0 : index
    %c0_22 = arith.constant 0 : index
    %35 = vector.load %arg15[%c0_21, %c0_22] : memref<32x128xf32, #tpu.memory_space<vmem>>, vector<30x128xf32>
    tpu.vector_store %arg15[%c0_21, %c0_22], %34 {strides = array<i32>} : memref<32x128xf32, #tpu.memory_space<vmem>>, vector<30x128xf32>,
    %c0_23 = arith.constant 0 : index
    %c0_24 = arith.constant 0 : index
    %36 = vector.load %arg14[%c0_23, %c0_24] : memref<32x128xf32, #tpu.memory_space<vmem>>, vector<28x128xf32>
    %c0_25 = arith.constant 0 : index
    %c0_26 = arith.constant 0 : index
    %37 = vector.load %arg1[%c0_25, %c0_26] : memref<32x128xf32, #tpu.memory_space<vmem>>, vector<28x128xf32>
    %c0_27 = arith.constant 0 : index
    %c0_28 = arith.constant 0 : index
    %38 = vector.load %arg15[%c0_27, %c0_28] : memref<32x128xf32, #tpu.memory_space<vmem>>, vector<28x128xf32>
    %c0_29 = arith.constant 0 : index
    %c0_30 = arith.constant 0 : index
    %39 = vector.load %arg2[%c0_29, %c0_30] : memref<50x128xf32, #tpu.memory_space<vmem>>, vector<1x128xf32>
    %40 = vector.broadcast %39 : vector<1x128xf32> to vector<28x128xf32>
    %41 = arith.mulf %40, %36 : vector<28x128xf32>
    %c1 = arith.constant 1 : index
    %c0_31 = arith.constant 0 : index
    %42 = vector.load %arg2[%c1, %c0_31] : memref<50x128xf32, #tpu.memory_space<vmem>>, vector<1x128xf32>
    %43 = vector.broadcast %42 : vector<1x128xf32> to vector<28x128xf32>
    %44 = arith.mulf %43, %37 : vector<28x128xf32>
    %45 = arith.addf %41, %44 : vector<28x128xf32>
    %c2 = arith.constant 2 : index
    %c0_32 = arith.constant 0 : index
    %46 = vector.load %arg2[%c2, %c0_32] : memref<50x128xf32, #tpu.memory_space<vmem>>, vector<1x128xf32>
    %47 = vector.broadcast %46 : vector<1x128xf32> to vector<28x128xf32>
    %48 = arith.mulf %47, %38 : vector<28x128xf32>
    %49 = arith.addf %45, %48 : vector<28x128xf32>
    %c1_33 = arith.constant 1 : index
    %c0_34 = arith.constant 0 : index
    %50 = vector.load %arg14[%c1_33, %c0_34] : memref<32x128xf32, #tpu.memory_space<vmem>>, vector<28x128xf32>
    %c1_35 = arith.constant 1 : index
    %c0_36 = arith.constant 0 : index
    %51 = vector.load %arg1[%c1_35, %c0_36] : memref<32x128xf32, #tpu.memory_space<vmem>>, vector<28x128xf32>
    %c1_37 = arith.constant 1 : index
    %c0_38 = arith.constant 0 : index
    %52 = vector.load %arg15[%c1_37, %c0_38] : memref<32x128xf32, #tpu.memory_space<vmem>>, vector<28x128xf32>
    %c3 = arith.constant 3 : index
    %c0_39 = arith.constant 0 : index
    %53 = vector.load %arg2[%c3, %c0_39] : memref<50x128xf32, #tpu.memory_space<vmem>>, vector<1x128xf32>
    %54 = vector.broadcast %53 : vector<1x128xf32> to vector<28x128xf32>
    %55 = arith.mulf %54, %50 : vector<28x128xf32>
    %56 = arith.addf %49, %55 : vector<28x128xf32>
    %c4 = arith.constant 4 : index
    %c0_40 = arith.constant 0 : index
    %57 = vector.load %arg2[%c4, %c0_40] : memref<50x128xf32, #tpu.memory_space<vmem>>, vector<1x128xf32>
    %58 = vector.broadcast %57 : vector<1x128xf32> to vector<28x128xf32>
    %59 = arith.mulf %58, %51 : vector<28x128xf32>
    %60 = arith.addf %56, %59 : vector<28x128xf32>
    %c5 = arith.constant 5 : index
    %c0_41 = arith.constant 0 : index
    %61 = vector.load %arg2[%c5, %c0_41] : memref<50x128xf32, #tpu.memory_space<vmem>>, vector<1x128xf32>
    %62 = vector.broadcast %61 : vector<1x128xf32> to vector<28x128xf32>
    %63 = arith.mulf %62, %52 : vector<28x128xf32>
    %64 = arith.addf %60, %63 : vector<28x128xf32>
    %c2_42 = arith.constant 2 : index
    %c0_43 = arith.constant 0 : index
    %65 = vector.load %arg14[%c2_42, %c0_43] : memref<32x128xf32, #tpu.memory_space<vmem>>, vector<28x128xf32>
    %c2_44 = arith.constant 2 : index
    %c0_45 = arith.constant 0 : index
    %66 = vector.load %arg1[%c2_44, %c0_45] : memref<32x128xf32, #tpu.memory_space<vmem>>, vector<28x128xf32>
    %c2_46 = arith.constant 2 : index
    %c0_47 = arith.constant 0 : index
    %67 = vector.load %arg15[%c2_46, %c0_47] : memref<32x128xf32, #tpu.memory_space<vmem>>, vector<28x128xf32>
    %c6 = arith.constant 6 : index
    %c0_48 = arith.constant 0 : index
    %68 = vector.load %arg2[%c6, %c0_48] : memref<50x128xf32, #tpu.memory_space<vmem>>, vector<1x128xf32>
    %69 = vector.broadcast %68 : vector<1x128xf32> to vector<28x128xf32>
    %70 = arith.mulf %69, %65 : vector<28x128xf32>
    %71 = arith.addf %64, %70 : vector<28x128xf32>
    %c7 = arith.constant 7 : index
    %c0_49 = arith.constant 0 : index
    %72 = vector.load %arg2[%c7, %c0_49] : memref<50x128xf32, #tpu.memory_space<vmem>>, vector<1x128xf32>
    %73 = vector.broadcast %72 : vector<1x128xf32> to vector<28x128xf32>
    %74 = arith.mulf %73, %66 : vector<28x128xf32>
    %75 = arith.addf %71, %74 : vector<28x128xf32>
    %c8_50 = arith.constant 8 : index
    %c0_51 = arith.constant 0 : index
    %76 = vector.load %arg2[%c8_50, %c0_51] : memref<50x128xf32, #tpu.memory_space<vmem>>, vector<1x128xf32>
    %77 = vector.broadcast %76 : vector<1x128xf32> to vector<28x128xf32>
    %78 = arith.mulf %77, %67 : vector<28x128xf32>
    %79 = arith.addf %75, %78 : vector<28x128xf32>
    %c9 = arith.constant 9 : index
    %c0_52 = arith.constant 0 : index
    %80 = vector.load %arg2[%c9, %c0_52] : memref<50x128xf32, #tpu.memory_space<vmem>>, vector<1x128xf32>
    %81 = vector.broadcast %80 : vector<1x128xf32> to vector<28x128xf32>
    %82 = arith.addf %79, %81 : vector<28x128xf32>
    %cst_53 = arith.constant 0.000000e+00 : f32
    %83 = vector.broadcast %cst_53 : f32 to vector<28x128xf32>
    %84 = arith.maximumf %82, %83 : vector<28x128xf32>
    %cst_54 = arith.constant 0.000000e+00 : f32
    %85 = vector.shape_cast %21 : vector<1x128xi1> to vector<1x128xi1>
    %86 = vector.broadcast %85 : vector<1x128xi1> to vector<28x128xi1>
    %87 = vector.broadcast %cst_54 : f32 to vector<28x128xf32>
    %88 = arith.select %86, %84, %87 : vector<28x128xi1>, vector<28x128xf32>
    %c1_55 = arith.constant 1 : index
    %c0_56 = arith.constant 0 : index
    %89 = vector.load %arg10[%c1_55, %c0_56] : memref<32x128xf32, #tpu.memory_space<vmem>>, vector<28x128xf32>
    tpu.vector_store %arg10[%c1_55, %c0_56], %88 {strides = array<i32>} : memref<32x128xf32, #tpu.memory_space<vmem>>, vector<28x128xf32>,
    %c0_57 = arith.constant 0 : index
    %c0_58 = arith.constant 0 : index
    %90 = vector.load %arg10[%c0_57, %c0_58] : memref<32x128xf32, #tpu.memory_space<vmem>>, vector<30x128xf32>
    %c1_i32_59 = arith.constant 1 : i32
    %91 = tpu.dynamic_rotate %90 by %c1_i32_59 dim 1 : vector<30x128xf32>, i32 -> vector<30x128xf32>
    %c0_60 = arith.constant 0 : index
    %c0_61 = arith.constant 0 : index
    %92 = vector.load %arg14[%c0_60, %c0_61] : memref<32x128xf32, #tpu.memory_space<vmem>>, vector<30x128xf32>
    tpu.vector_store %arg14[%c0_60, %c0_61], %91 {strides = array<i32>} : memref<32x128xf32, #tpu.memory_space<vmem>>, vector<30x128xf32>,
    %c127_i32_62 = arith.constant 127 : i32
    %93 = tpu.dynamic_rotate %90 by %c127_i32_62 dim 1 : vector<30x128xf32>, i32 -> vector<30x128xf32>
    %c0_63 = arith.constant 0 : index
    %c0_64 = arith.constant 0 : index
    %94 = vector.load %arg15[%c0_63, %c0_64] : memref<32x128xf32, #tpu.memory_space<vmem>>, vector<30x128xf32>
    tpu.vector_store %arg15[%c0_63, %c0_64], %93 {strides = array<i32>} : memref<32x128xf32, #tpu.memory_space<vmem>>, vector<30x128xf32>,
    %c0_65 = arith.constant 0 : index
    %c0_66 = arith.constant 0 : index
    %95 = vector.load %arg14[%c0_65, %c0_66] : memref<32x128xf32, #tpu.memory_space<vmem>>, vector<28x128xf32>
    %c0_67 = arith.constant 0 : index
    %c0_68 = arith.constant 0 : index
    %96 = vector.load %arg10[%c0_67, %c0_68] : memref<32x128xf32, #tpu.memory_space<vmem>>, vector<28x128xf32>
    %c0_69 = arith.constant 0 : index
    %c0_70 = arith.constant 0 : index
    %97 = vector.load %arg15[%c0_69, %c0_70] : memref<32x128xf32, #tpu.memory_space<vmem>>, vector<28x128xf32>
    %c10 = arith.constant 10 : index
    %c0_71 = arith.constant 0 : index
    %98 = vector.load %arg2[%c10, %c0_71] : memref<50x128xf32, #tpu.memory_space<vmem>>, vector<1x128xf32>
    %99 = vector.broadcast %98 : vector<1x128xf32> to vector<28x128xf32>
    %100 = arith.mulf %99, %95 : vector<28x128xf32>
    %c11 = arith.constant 11 : index
    %c0_72 = arith.constant 0 : index
    %101 = vector.load %arg2[%c11, %c0_72] : memref<50x128xf32, #tpu.memory_space<vmem>>, vector<1x128xf32>
    %102 = vector.broadcast %101 : vector<1x128xf32> to vector<28x128xf32>
    %103 = arith.mulf %102, %96 : vector<28x128xf32>
    %104 = arith.addf %100, %103 : vector<28x128xf32>
    %c12 = arith.constant 12 : index
    %c0_73 = arith.constant 0 : index
    %105 = vector.load %arg2[%c12, %c0_73] : memref<50x128xf32, #tpu.memory_space<vmem>>, vector<1x128xf32>
    %106 = vector.broadcast %105 : vector<1x128xf32> to vector<28x128xf32>
    %107 = arith.mulf %106, %97 : vector<28x128xf32>
    %108 = arith.addf %104, %107 : vector<28x128xf32>
    %c1_74 = arith.constant 1 : index
    %c0_75 = arith.constant 0 : index
    %109 = vector.load %arg14[%c1_74, %c0_75] : memref<32x128xf32, #tpu.memory_space<vmem>>, vector<28x128xf32>
    %c1_76 = arith.constant 1 : index
    %c0_77 = arith.constant 0 : index
    %110 = vector.load %arg10[%c1_76, %c0_77] : memref<32x128xf32, #tpu.memory_space<vmem>>, vector<28x128xf32>
    %c1_78 = arith.constant 1 : index
    %c0_79 = arith.constant 0 : index
    %111 = vector.load %arg15[%c1_78, %c0_79] : memref<32x128xf32, #tpu.memory_space<vmem>>, vector<28x128xf32>
    %c13 = arith.constant 13 : index
    %c0_80 = arith.constant 0 : index
    %112 = vector.load %arg2[%c13, %c0_80] : memref<50x128xf32, #tpu.memory_space<vmem>>, vector<1x128xf32>
    %113 = vector.broadcast %112 : vector<1x128xf32> to vector<28x128xf32>
    %114 = arith.mulf %113, %109 : vector<28x128xf32>
    %115 = arith.addf %108, %114 : vector<28x128xf32>
    %c14 = arith.constant 14 : index
    %c0_81 = arith.constant 0 : index
    %116 = vector.load %arg2[%c14, %c0_81] : memref<50x128xf32, #tpu.memory_space<vmem>>, vector<1x128xf32>
    %117 = vector.broadcast %116 : vector<1x128xf32> to vector<28x128xf32>
    %118 = arith.mulf %117, %110 : vector<28x128xf32>
    %119 = arith.addf %115, %118 : vector<28x128xf32>
    %c15_82 = arith.constant 15 : index
    %c0_83 = arith.constant 0 : index
    %120 = vector.load %arg2[%c15_82, %c0_83] : memref<50x128xf32, #tpu.memory_space<vmem>>, vector<1x128xf32>
    %121 = vector.broadcast %120 : vector<1x128xf32> to vector<28x128xf32>
    %122 = arith.mulf %121, %111 : vector<28x128xf32>
    %123 = arith.addf %119, %122 : vector<28x128xf32>
    %c2_84 = arith.constant 2 : index
    %c0_85 = arith.constant 0 : index
    %124 = vector.load %arg14[%c2_84, %c0_85] : memref<32x128xf32, #tpu.memory_space<vmem>>, vector<28x128xf32>
    %c2_86 = arith.constant 2 : index
    %c0_87 = arith.constant 0 : index
    %125 = vector.load %arg10[%c2_86, %c0_87] : memref<32x128xf32, #tpu.memory_space<vmem>>, vector<28x128xf32>
    %c2_88 = arith.constant 2 : index
    %c0_89 = arith.constant 0 : index
    %126 = vector.load %arg15[%c2_88, %c0_89] : memref<32x128xf32, #tpu.memory_space<vmem>>, vector<28x128xf32>
    %c16 = arith.constant 16 : index
    %c0_90 = arith.constant 0 : index
    %127 = vector.load %arg2[%c16, %c0_90] : memref<50x128xf32, #tpu.memory_space<vmem>>, vector<1x128xf32>
    %128 = vector.broadcast %127 : vector<1x128xf32> to vector<28x128xf32>
    %129 = arith.mulf %128, %124 : vector<28x128xf32>
    %130 = arith.addf %123, %129 : vector<28x128xf32>
    %c17 = arith.constant 17 : index
    %c0_91 = arith.constant 0 : index
    %131 = vector.load %arg2[%c17, %c0_91] : memref<50x128xf32, #tpu.memory_space<vmem>>, vector<1x128xf32>
    %132 = vector.broadcast %131 : vector<1x128xf32> to vector<28x128xf32>
    %133 = arith.mulf %132, %125 : vector<28x128xf32>
    %134 = arith.addf %130, %133 : vector<28x128xf32>
    %c18 = arith.constant 18 : index
    %c0_92 = arith.constant 0 : index
    %135 = vector.load %arg2[%c18, %c0_92] : memref<50x128xf32, #tpu.memory_space<vmem>>, vector<1x128xf32>
    %136 = vector.broadcast %135 : vector<1x128xf32> to vector<28x128xf32>
    %137 = arith.mulf %136, %126 : vector<28x128xf32>
    %138 = arith.addf %134, %137 : vector<28x128xf32>
    %c19 = arith.constant 19 : index
    %c0_93 = arith.constant 0 : index
    %139 = vector.load %arg2[%c19, %c0_93] : memref<50x128xf32, #tpu.memory_space<vmem>>, vector<1x128xf32>
    %140 = vector.broadcast %139 : vector<1x128xf32> to vector<28x128xf32>
    %141 = arith.addf %138, %140 : vector<28x128xf32>
    %cst_94 = arith.constant 0.000000e+00 : f32
    %142 = vector.broadcast %cst_94 : f32 to vector<28x128xf32>
    %143 = arith.maximumf %141, %142 : vector<28x128xf32>
    %cst_95 = arith.constant 0.000000e+00 : f32
    %144 = vector.shape_cast %21 : vector<1x128xi1> to vector<1x128xi1>
    %145 = vector.broadcast %144 : vector<1x128xi1> to vector<28x128xi1>
    %146 = vector.broadcast %cst_95 : f32 to vector<28x128xf32>
    %147 = arith.select %145, %143, %146 : vector<28x128xi1>, vector<28x128xf32>
    %c1_96 = arith.constant 1 : index
    %c0_97 = arith.constant 0 : index
    %148 = vector.load %arg11[%c1_96, %c0_97] : memref<32x128xf32, #tpu.memory_space<vmem>>, vector<28x128xf32>
    tpu.vector_store %arg11[%c1_96, %c0_97], %147 {strides = array<i32>} : memref<32x128xf32, #tpu.memory_space<vmem>>, vector<28x128xf32>,
    %c0_98 = arith.constant 0 : index
    %c0_99 = arith.constant 0 : index
    %149 = vector.load %arg11[%c0_98, %c0_99] : memref<32x128xf32, #tpu.memory_space<vmem>>, vector<30x128xf32>
    %c1_i32_100 = arith.constant 1 : i32
    %150 = tpu.dynamic_rotate %149 by %c1_i32_100 dim 1 : vector<30x128xf32>, i32 -> vector<30x128xf32>
    %c0_101 = arith.constant 0 : index
    %c0_102 = arith.constant 0 : index
    %151 = vector.load %arg14[%c0_101, %c0_102] : memref<32x128xf32, #tpu.memory_space<vmem>>, vector<30x128xf32>
    tpu.vector_store %arg14[%c0_101, %c0_102], %150 {strides = array<i32>} : memref<32x128xf32, #tpu.memory_space<vmem>>, vector<30x128xf32>,
    %c127_i32_103 = arith.constant 127 : i32
    %152 = tpu.dynamic_rotate %149 by %c127_i32_103 dim 1 : vector<30x128xf32>, i32 -> vector<30x128xf32>
    %c0_104 = arith.constant 0 : index
    %c0_105 = arith.constant 0 : index
    %153 = vector.load %arg15[%c0_104, %c0_105] : memref<32x128xf32, #tpu.memory_space<vmem>>, vector<30x128xf32>
    tpu.vector_store %arg15[%c0_104, %c0_105], %152 {strides = array<i32>} : memref<32x128xf32, #tpu.memory_space<vmem>>, vector<30x128xf32>,
    %c0_106 = arith.constant 0 : index
    %c0_107 = arith.constant 0 : index
    %154 = vector.load %arg14[%c0_106, %c0_107] : memref<32x128xf32, #tpu.memory_space<vmem>>, vector<28x128xf32>
    %c0_108 = arith.constant 0 : index
    %c0_109 = arith.constant 0 : index
    %155 = vector.load %arg11[%c0_108, %c0_109] : memref<32x128xf32, #tpu.memory_space<vmem>>, vector<28x128xf32>
    %c0_110 = arith.constant 0 : index
    %c0_111 = arith.constant 0 : index
    %156 = vector.load %arg15[%c0_110, %c0_111] : memref<32x128xf32, #tpu.memory_space<vmem>>, vector<28x128xf32>
    %c20 = arith.constant 20 : index
    %c0_112 = arith.constant 0 : index
    %157 = vector.load %arg2[%c20, %c0_112] : memref<50x128xf32, #tpu.memory_space<vmem>>, vector<1x128xf32>
    %158 = vector.broadcast %157 : vector<1x128xf32> to vector<28x128xf32>
    %159 = arith.mulf %158, %154 : vector<28x128xf32>
    %c21 = arith.constant 21 : index
    %c0_113 = arith.constant 0 : index
    %160 = vector.load %arg2[%c21, %c0_113] : memref<50x128xf32, #tpu.memory_space<vmem>>, vector<1x128xf32>
    %161 = vector.broadcast %160 : vector<1x128xf32> to vector<28x128xf32>
    %162 = arith.mulf %161, %155 : vector<28x128xf32>
    %163 = arith.addf %159, %162 : vector<28x128xf32>
    %c22 = arith.constant 22 : index
    %c0_114 = arith.constant 0 : index
    %164 = vector.load %arg2[%c22, %c0_114] : memref<50x128xf32, #tpu.memory_space<vmem>>, vector<1x128xf32>
    %165 = vector.broadcast %164 : vector<1x128xf32> to vector<28x128xf32>
    %166 = arith.mulf %165, %156 : vector<28x128xf32>
    %167 = arith.addf %163, %166 : vector<28x128xf32>
    %c1_115 = arith.constant 1 : index
    %c0_116 = arith.constant 0 : index
    %168 = vector.load %arg14[%c1_115, %c0_116] : memref<32x128xf32, #tpu.memory_space<vmem>>, vector<28x128xf32>
    %c1_117 = arith.constant 1 : index
    %c0_118 = arith.constant 0 : index
    %169 = vector.load %arg11[%c1_117, %c0_118] : memref<32x128xf32, #tpu.memory_space<vmem>>, vector<28x128xf32>
    %c1_119 = arith.constant 1 : index
    %c0_120 = arith.constant 0 : index
    %170 = vector.load %arg15[%c1_119, %c0_120] : memref<32x128xf32, #tpu.memory_space<vmem>>, vector<28x128xf32>
    %c23 = arith.constant 23 : index
    %c0_121 = arith.constant 0 : index
    %171 = vector.load %arg2[%c23, %c0_121] : memref<50x128xf32, #tpu.memory_space<vmem>>, vector<1x128xf32>
    %172 = vector.broadcast %171 : vector<1x128xf32> to vector<28x128xf32>
    %173 = arith.mulf %172, %168 : vector<28x128xf32>
    %174 = arith.addf %167, %173 : vector<28x128xf32>
    %c24 = arith.constant 24 : index
    %c0_122 = arith.constant 0 : index
    %175 = vector.load %arg2[%c24, %c0_122] : memref<50x128xf32, #tpu.memory_space<vmem>>, vector<1x128xf32>
    %176 = vector.broadcast %175 : vector<1x128xf32> to vector<28x128xf32>
    %177 = arith.mulf %176, %169 : vector<28x128xf32>
    %178 = arith.addf %174, %177 : vector<28x128xf32>
    %c25 = arith.constant 25 : index
    %c0_123 = arith.constant 0 : index
    %179 = vector.load %arg2[%c25, %c0_123] : memref<50x128xf32, #tpu.memory_space<vmem>>, vector<1x128xf32>
    %180 = vector.broadcast %179 : vector<1x128xf32> to vector<28x128xf32>
    %181 = arith.mulf %180, %170 : vector<28x128xf32>
    %182 = arith.addf %178, %181 : vector<28x128xf32>
    %c2_124 = arith.constant 2 : index
    %c0_125 = arith.constant 0 : index
    %183 = vector.load %arg14[%c2_124, %c0_125] : memref<32x128xf32, #tpu.memory_space<vmem>>, vector<28x128xf32>
    %c2_126 = arith.constant 2 : index
    %c0_127 = arith.constant 0 : index
    %184 = vector.load %arg11[%c2_126, %c0_127] : memref<32x128xf32, #tpu.memory_space<vmem>>, vector<28x128xf32>
    %c2_128 = arith.constant 2 : index
    %c0_129 = arith.constant 0 : index
    %185 = vector.load %arg15[%c2_128, %c0_129] : memref<32x128xf32, #tpu.memory_space<vmem>>, vector<28x128xf32>
    %c26 = arith.constant 26 : index
    %c0_130 = arith.constant 0 : index
    %186 = vector.load %arg2[%c26, %c0_130] : memref<50x128xf32, #tpu.memory_space<vmem>>, vector<1x128xf32>
    %187 = vector.broadcast %186 : vector<1x128xf32> to vector<28x128xf32>
    %188 = arith.mulf %187, %183 : vector<28x128xf32>
    %189 = arith.addf %182, %188 : vector<28x128xf32>
    %c27 = arith.constant 27 : index
    %c0_131 = arith.constant 0 : index
    %190 = vector.load %arg2[%c27, %c0_131] : memref<50x128xf32, #tpu.memory_space<vmem>>, vector<1x128xf32>
    %191 = vector.broadcast %190 : vector<1x128xf32> to vector<28x128xf32>
    %192 = arith.mulf %191, %184 : vector<28x128xf32>
    %193 = arith.addf %189, %192 : vector<28x128xf32>
    %c28 = arith.constant 28 : index
    %c0_132 = arith.constant 0 : index
    %194 = vector.load %arg2[%c28, %c0_132] : memref<50x128xf32, #tpu.memory_space<vmem>>, vector<1x128xf32>
    %195 = vector.broadcast %194 : vector<1x128xf32> to vector<28x128xf32>
    %196 = arith.mulf %195, %185 : vector<28x128xf32>
    %197 = arith.addf %193, %196 : vector<28x128xf32>
    %c29_133 = arith.constant 29 : index
    %c0_134 = arith.constant 0 : index
    %198 = vector.load %arg2[%c29_133, %c0_134] : memref<50x128xf32, #tpu.memory_space<vmem>>, vector<1x128xf32>
    %199 = vector.broadcast %198 : vector<1x128xf32> to vector<28x128xf32>
    %200 = arith.addf %197, %199 : vector<28x128xf32>
    %cst_135 = arith.constant 0.000000e+00 : f32
    %201 = vector.broadcast %cst_135 : f32 to vector<28x128xf32>
    %202 = arith.maximumf %200, %201 : vector<28x128xf32>
    %c0_136 = arith.constant 0 : index
    %c0_137 = arith.constant 0 : index
    %203 = vector.load %arg3[%c0_136, %c0_137] : memref<14x28xf32, #tpu.memory_space<vmem>>, vector<14x28xf32>
    %cst_138 = arith.constant dense<0.000000e+00> : vector<14x128xf32>
    %204 = tpu.matmul %203, %202, %cst_138 {dimension_numbers = #tpu.dot_dimension_numbers<[1], [0], [0], [1], [0, 0, 1, 1], [], []>, precision = #tpu.contract_precision<fp32>} : vector<14x28xf32>, vector<28x128xf32>, vector<14x128xf32> -> vector<14x128xf32>
    %c0_139 = arith.constant 0 : index
    %c0_140 = arith.constant 0 : index
    %205 = vector.load %arg4[%c0_139, %c0_140] : memref<128x128xf32, #tpu.memory_space<vmem>>, vector<128x128xf32>
    %cst_141 = arith.constant dense<0.000000e+00> : vector<14x128xf32>
    %206 = tpu.matmul %204, %205, %cst_141 {dimension_numbers = #tpu.dot_dimension_numbers<[1], [0], [0], [1], [0, 0, 1, 1], [], []>, precision = #tpu.contract_precision<fp32>} : vector<14x128xf32>, vector<128x128xf32>, vector<14x128xf32> -> vector<14x128xf32>
    %c1_142 = arith.constant 1 : index
    %c0_143 = arith.constant 0 : index
    %207 = vector.load %arg12[%c1_142, %c0_143] : memref<16x128xf32, #tpu.memory_space<vmem>>, vector<14x128xf32>
    tpu.vector_store %arg12[%c1_142, %c0_143], %206 {strides = array<i32>} : memref<16x128xf32, #tpu.memory_space<vmem>>, vector<14x128xf32>,
    %c0_144 = arith.constant 0 : index
    %c0_145 = arith.constant 0 : index
    %208 = vector.load %arg12[%c0_144, %c0_145] : memref<16x128xf32, #tpu.memory_space<vmem>>, vector<16x128xf32>
    %c1_i32_146 = arith.constant 1 : i32
    %209 = tpu.dynamic_rotate %208 by %c1_i32_146 dim 1 : vector<16x128xf32>, i32 -> vector<16x128xf32>
    %c0_147 = arith.constant 0 : index
    %c0_148 = arith.constant 0 : index
    %210 = vector.load %arg14[%c0_147, %c0_148] : memref<32x128xf32, #tpu.memory_space<vmem>>, vector<16x128xf32>
    tpu.vector_store %arg14[%c0_147, %c0_148], %209 {strides = array<i32>} : memref<32x128xf32, #tpu.memory_space<vmem>>, vector<16x128xf32>,
    %c127_i32_149 = arith.constant 127 : i32
    %211 = tpu.dynamic_rotate %208 by %c127_i32_149 dim 1 : vector<16x128xf32>, i32 -> vector<16x128xf32>
    %c0_150 = arith.constant 0 : index
    %c0_151 = arith.constant 0 : index
    %212 = vector.load %arg15[%c0_150, %c0_151] : memref<32x128xf32, #tpu.memory_space<vmem>>, vector<16x128xf32>
    tpu.vector_store %arg15[%c0_150, %c0_151], %211 {strides = array<i32>} : memref<32x128xf32, #tpu.memory_space<vmem>>, vector<16x128xf32>,
    %c0_152 = arith.constant 0 : index
    %c0_153 = arith.constant 0 : index
    %213 = vector.load %arg14[%c0_152, %c0_153] : memref<32x128xf32, #tpu.memory_space<vmem>>, vector<14x128xf32>
    %c0_154 = arith.constant 0 : index
    %c0_155 = arith.constant 0 : index
    %214 = vector.load %arg12[%c0_154, %c0_155] : memref<16x128xf32, #tpu.memory_space<vmem>>, vector<14x128xf32>
    %c0_156 = arith.constant 0 : index
    %c0_157 = arith.constant 0 : index
    %215 = vector.load %arg15[%c0_156, %c0_157] : memref<32x128xf32, #tpu.memory_space<vmem>>, vector<14x128xf32>
    %c30 = arith.constant 30 : index
    %c0_158 = arith.constant 0 : index
    %216 = vector.load %arg2[%c30, %c0_158] : memref<50x128xf32, #tpu.memory_space<vmem>>, vector<1x128xf32>
    %217 = vector.broadcast %216 : vector<1x128xf32> to vector<14x128xf32>
    %218 = arith.mulf %217, %213 : vector<14x128xf32>
    %c31 = arith.constant 31 : index
    %c0_159 = arith.constant 0 : index
    %219 = vector.load %arg2[%c31, %c0_159] : memref<50x128xf32, #tpu.memory_space<vmem>>, vector<1x128xf32>
    %220 = vector.broadcast %219 : vector<1x128xf32> to vector<14x128xf32>
    %221 = arith.mulf %220, %214 : vector<14x128xf32>
    %222 = arith.addf %218, %221 : vector<14x128xf32>
    %c32 = arith.constant 32 : index
    %c0_160 = arith.constant 0 : index
    %223 = vector.load %arg2[%c32, %c0_160] : memref<50x128xf32, #tpu.memory_space<vmem>>, vector<1x128xf32>
    %224 = vector.broadcast %223 : vector<1x128xf32> to vector<14x128xf32>
    %225 = arith.mulf %224, %215 : vector<14x128xf32>
    %226 = arith.addf %222, %225 : vector<14x128xf32>
    %c1_161 = arith.constant 1 : index
    %c0_162 = arith.constant 0 : index
    %227 = vector.load %arg14[%c1_161, %c0_162] : memref<32x128xf32, #tpu.memory_space<vmem>>, vector<14x128xf32>
    %c1_163 = arith.constant 1 : index
    %c0_164 = arith.constant 0 : index
    %228 = vector.load %arg12[%c1_163, %c0_164] : memref<16x128xf32, #tpu.memory_space<vmem>>, vector<14x128xf32>
    %c1_165 = arith.constant 1 : index
    %c0_166 = arith.constant 0 : index
    %229 = vector.load %arg15[%c1_165, %c0_166] : memref<32x128xf32, #tpu.memory_space<vmem>>, vector<14x128xf32>
    %c33 = arith.constant 33 : index
    %c0_167 = arith.constant 0 : index
    %230 = vector.load %arg2[%c33, %c0_167] : memref<50x128xf32, #tpu.memory_space<vmem>>, vector<1x128xf32>
    %231 = vector.broadcast %230 : vector<1x128xf32> to vector<14x128xf32>
    %232 = arith.mulf %231, %227 : vector<14x128xf32>
    %233 = arith.addf %226, %232 : vector<14x128xf32>
    %c34 = arith.constant 34 : index
    %c0_168 = arith.constant 0 : index
    %234 = vector.load %arg2[%c34, %c0_168] : memref<50x128xf32, #tpu.memory_space<vmem>>, vector<1x128xf32>
    %235 = vector.broadcast %234 : vector<1x128xf32> to vector<14x128xf32>
    %236 = arith.mulf %235, %228 : vector<14x128xf32>
    %237 = arith.addf %233, %236 : vector<14x128xf32>
    %c35 = arith.constant 35 : index
    %c0_169 = arith.constant 0 : index
    %238 = vector.load %arg2[%c35, %c0_169] : memref<50x128xf32, #tpu.memory_space<vmem>>, vector<1x128xf32>
    %239 = vector.broadcast %238 : vector<1x128xf32> to vector<14x128xf32>
    %240 = arith.mulf %239, %229 : vector<14x128xf32>
    %241 = arith.addf %237, %240 : vector<14x128xf32>
    %c2_170 = arith.constant 2 : index
    %c0_171 = arith.constant 0 : index
    %242 = vector.load %arg14[%c2_170, %c0_171] : memref<32x128xf32, #tpu.memory_space<vmem>>, vector<14x128xf32>
    %c2_172 = arith.constant 2 : index
    %c0_173 = arith.constant 0 : index
    %243 = vector.load %arg12[%c2_172, %c0_173] : memref<16x128xf32, #tpu.memory_space<vmem>>, vector<14x128xf32>
    %c2_174 = arith.constant 2 : index
    %c0_175 = arith.constant 0 : index
    %244 = vector.load %arg15[%c2_174, %c0_175] : memref<32x128xf32, #tpu.memory_space<vmem>>, vector<14x128xf32>
    %c36 = arith.constant 36 : index
    %c0_176 = arith.constant 0 : index
    %245 = vector.load %arg2[%c36, %c0_176] : memref<50x128xf32, #tpu.memory_space<vmem>>, vector<1x128xf32>
    %246 = vector.broadcast %245 : vector<1x128xf32> to vector<14x128xf32>
    %247 = arith.mulf %246, %242 : vector<14x128xf32>
    %248 = arith.addf %241, %247 : vector<14x128xf32>
    %c37 = arith.constant 37 : index
    %c0_177 = arith.constant 0 : index
    %249 = vector.load %arg2[%c37, %c0_177] : memref<50x128xf32, #tpu.memory_space<vmem>>, vector<1x128xf32>
    %250 = vector.broadcast %249 : vector<1x128xf32> to vector<14x128xf32>
    %251 = arith.mulf %250, %243 : vector<14x128xf32>
    %252 = arith.addf %248, %251 : vector<14x128xf32>
    %c38 = arith.constant 38 : index
    %c0_178 = arith.constant 0 : index
    %253 = vector.load %arg2[%c38, %c0_178] : memref<50x128xf32, #tpu.memory_space<vmem>>, vector<1x128xf32>
    %254 = vector.broadcast %253 : vector<1x128xf32> to vector<14x128xf32>
    %255 = arith.mulf %254, %244 : vector<14x128xf32>
    %256 = arith.addf %252, %255 : vector<14x128xf32>
    %c39 = arith.constant 39 : index
    %c0_179 = arith.constant 0 : index
    %257 = vector.load %arg2[%c39, %c0_179] : memref<50x128xf32, #tpu.memory_space<vmem>>, vector<1x128xf32>
    %258 = vector.broadcast %257 : vector<1x128xf32> to vector<14x128xf32>
    %259 = arith.addf %256, %258 : vector<14x128xf32>
    %cst_180 = arith.constant 0.000000e+00 : f32
    %260 = vector.broadcast %cst_180 : f32 to vector<14x128xf32>
    %261 = arith.maximumf %259, %260 : vector<14x128xf32>
    %c0_181 = arith.constant 0 : index
    %c0_182 = arith.constant 0 : index
    %262 = vector.load %arg5[%c0_181, %c0_182] : memref<7x14xf32, #tpu.memory_space<vmem>>, vector<7x14xf32>
    %cst_183 = arith.constant dense<0.000000e+00> : vector<7x128xf32>
    %263 = tpu.matmul %262, %261, %cst_183 {dimension_numbers = #tpu.dot_dimension_numbers<[1], [0], [0], [1], [0, 0, 1, 1], [], []>, precision = #tpu.contract_precision<fp32>} : vector<7x14xf32>, vector<14x128xf32>, vector<7x128xf32> -> vector<7x128xf32>
    %c0_184 = arith.constant 0 : index
    %c0_185 = arith.constant 0 : index
    %264 = vector.load %arg6[%c0_184, %c0_185] : memref<128x128xf32, #tpu.memory_space<vmem>>, vector<128x128xf32>
    %cst_186 = arith.constant dense<0.000000e+00> : vector<7x128xf32>
    %265 = tpu.matmul %263, %264, %cst_186 {dimension_numbers = #tpu.dot_dimension_numbers<[1], [0], [0], [1], [0, 0, 1, 1], [], []>, precision = #tpu.contract_precision<fp32>} : vector<7x128xf32>, vector<128x128xf32>, vector<7x128xf32> -> vector<7x128xf32>
    %c1_187 = arith.constant 1 : index
    %c0_188 = arith.constant 0 : index
    %266 = vector.load %arg13[%c1_187, %c0_188] : memref<16x128xf32, #tpu.memory_space<vmem>>, vector<7x128xf32>
    tpu.vector_store %arg13[%c1_187, %c0_188], %265 {strides = array<i32>} : memref<16x128xf32, #tpu.memory_space<vmem>>, vector<7x128xf32>,
    %c0_189 = arith.constant 0 : index
    %c0_190 = arith.constant 0 : index
    %267 = vector.load %arg13[%c0_189, %c0_190] : memref<16x128xf32, #tpu.memory_space<vmem>>, vector<9x128xf32>
    %c1_i32_191 = arith.constant 1 : i32
    %268 = tpu.dynamic_rotate %267 by %c1_i32_191 dim 1 : vector<9x128xf32>, i32 -> vector<9x128xf32>
    %c0_192 = arith.constant 0 : index
    %c0_193 = arith.constant 0 : index
    %269 = vector.load %arg14[%c0_192, %c0_193] : memref<32x128xf32, #tpu.memory_space<vmem>>, vector<9x128xf32>
    tpu.vector_store %arg14[%c0_192, %c0_193], %268 {strides = array<i32>} : memref<32x128xf32, #tpu.memory_space<vmem>>, vector<9x128xf32>,
    %c127_i32_194 = arith.constant 127 : i32
    %270 = tpu.dynamic_rotate %267 by %c127_i32_194 dim 1 : vector<9x128xf32>, i32 -> vector<9x128xf32>
    %c0_195 = arith.constant 0 : index
    %c0_196 = arith.constant 0 : index
    %271 = vector.load %arg15[%c0_195, %c0_196] : memref<32x128xf32, #tpu.memory_space<vmem>>, vector<9x128xf32>
    tpu.vector_store %arg15[%c0_195, %c0_196], %270 {strides = array<i32>} : memref<32x128xf32, #tpu.memory_space<vmem>>, vector<9x128xf32>,
    %c0_197 = arith.constant 0 : index
    %c0_198 = arith.constant 0 : index
    %272 = vector.load %arg14[%c0_197, %c0_198] : memref<32x128xf32, #tpu.memory_space<vmem>>, vector<7x128xf32>
    %c0_199 = arith.constant 0 : index
    %c0_200 = arith.constant 0 : index
    %273 = vector.load %arg13[%c0_199, %c0_200] : memref<16x128xf32, #tpu.memory_space<vmem>>, vector<7x128xf32>
    %c0_201 = arith.constant 0 : index
    %c0_202 = arith.constant 0 : index
    %274 = vector.load %arg15[%c0_201, %c0_202] : memref<32x128xf32, #tpu.memory_space<vmem>>, vector<7x128xf32>
    %c40 = arith.constant 40 : index
    %c0_203 = arith.constant 0 : index
    %275 = vector.load %arg2[%c40, %c0_203] : memref<50x128xf32, #tpu.memory_space<vmem>>, vector<1x128xf32>
    %276 = vector.broadcast %275 : vector<1x128xf32> to vector<7x128xf32>
    %277 = arith.mulf %276, %272 : vector<7x128xf32>
    %c41 = arith.constant 41 : index
    %c0_204 = arith.constant 0 : index
    %278 = vector.load %arg2[%c41, %c0_204] : memref<50x128xf32, #tpu.memory_space<vmem>>, vector<1x128xf32>
    %279 = vector.broadcast %278 : vector<1x128xf32> to vector<7x128xf32>
    %280 = arith.mulf %279, %273 : vector<7x128xf32>
    %281 = arith.addf %277, %280 : vector<7x128xf32>
    %c42 = arith.constant 42 : index
    %c0_205 = arith.constant 0 : index
    %282 = vector.load %arg2[%c42, %c0_205] : memref<50x128xf32, #tpu.memory_space<vmem>>, vector<1x128xf32>
    %283 = vector.broadcast %282 : vector<1x128xf32> to vector<7x128xf32>
    %284 = arith.mulf %283, %274 : vector<7x128xf32>
    %285 = arith.addf %281, %284 : vector<7x128xf32>
    %c1_206 = arith.constant 1 : index
    %c0_207 = arith.constant 0 : index
    %286 = vector.load %arg14[%c1_206, %c0_207] : memref<32x128xf32, #tpu.memory_space<vmem>>, vector<7x128xf32>
    %c1_208 = arith.constant 1 : index
    %c0_209 = arith.constant 0 : index
    %287 = vector.load %arg13[%c1_208, %c0_209] : memref<16x128xf32, #tpu.memory_space<vmem>>, vector<7x128xf32>
    %c1_210 = arith.constant 1 : index
    %c0_211 = arith.constant 0 : index
    %288 = vector.load %arg15[%c1_210, %c0_211] : memref<32x128xf32, #tpu.memory_space<vmem>>, vector<7x128xf32>
    %c43 = arith.constant 43 : index
    %c0_212 = arith.constant 0 : index
    %289 = vector.load %arg2[%c43, %c0_212] : memref<50x128xf32, #tpu.memory_space<vmem>>, vector<1x128xf32>
    %290 = vector.broadcast %289 : vector<1x128xf32> to vector<7x128xf32>
    %291 = arith.mulf %290, %286 : vector<7x128xf32>
    %292 = arith.addf %285, %291 : vector<7x128xf32>
    %c44 = arith.constant 44 : index
    %c0_213 = arith.constant 0 : index
    %293 = vector.load %arg2[%c44, %c0_213] : memref<50x128xf32, #tpu.memory_space<vmem>>, vector<1x128xf32>
    %294 = vector.broadcast %293 : vector<1x128xf32> to vector<7x128xf32>
    %295 = arith.mulf %294, %287 : vector<7x128xf32>
    %296 = arith.addf %292, %295 : vector<7x128xf32>
    %c45 = arith.constant 45 : index
    %c0_214 = arith.constant 0 : index
    %297 = vector.load %arg2[%c45, %c0_214] : memref<50x128xf32, #tpu.memory_space<vmem>>, vector<1x128xf32>
    %298 = vector.broadcast %297 : vector<1x128xf32> to vector<7x128xf32>
    %299 = arith.mulf %298, %288 : vector<7x128xf32>
    %300 = arith.addf %296, %299 : vector<7x128xf32>
    %c2_215 = arith.constant 2 : index
    %c0_216 = arith.constant 0 : index
    %301 = vector.load %arg14[%c2_215, %c0_216] : memref<32x128xf32, #tpu.memory_space<vmem>>, vector<7x128xf32>
    %c2_217 = arith.constant 2 : index
    %c0_218 = arith.constant 0 : index
    %302 = vector.load %arg13[%c2_217, %c0_218] : memref<16x128xf32, #tpu.memory_space<vmem>>, vector<7x128xf32>
    %c2_219 = arith.constant 2 : index
    %c0_220 = arith.constant 0 : index
    %303 = vector.load %arg15[%c2_219, %c0_220] : memref<32x128xf32, #tpu.memory_space<vmem>>, vector<7x128xf32>
    %c46 = arith.constant 46 : index
    %c0_221 = arith.constant 0 : index
    %304 = vector.load %arg2[%c46, %c0_221] : memref<50x128xf32, #tpu.memory_space<vmem>>, vector<1x128xf32>
    %305 = vector.broadcast %304 : vector<1x128xf32> to vector<7x128xf32>
    %306 = arith.mulf %305, %301 : vector<7x128xf32>
    %307 = arith.addf %300, %306 : vector<7x128xf32>
    %c47 = arith.constant 47 : index
    %c0_222 = arith.constant 0 : index
    %308 = vector.load %arg2[%c47, %c0_222] : memref<50x128xf32, #tpu.memory_space<vmem>>, vector<1x128xf32>
    %309 = vector.broadcast %308 : vector<1x128xf32> to vector<7x128xf32>
    %310 = arith.mulf %309, %302 : vector<7x128xf32>
    %311 = arith.addf %307, %310 : vector<7x128xf32>
    %c48 = arith.constant 48 : index
    %c0_223 = arith.constant 0 : index
    %312 = vector.load %arg2[%c48, %c0_223] : memref<50x128xf32, #tpu.memory_space<vmem>>, vector<1x128xf32>
    %313 = vector.broadcast %312 : vector<1x128xf32> to vector<7x128xf32>
    %314 = arith.mulf %313, %303 : vector<7x128xf32>
    %315 = arith.addf %311, %314 : vector<7x128xf32>
    %c49 = arith.constant 49 : index
    %c0_224 = arith.constant 0 : index
    %316 = vector.load %arg2[%c49, %c0_224] : memref<50x128xf32, #tpu.memory_space<vmem>>, vector<1x128xf32>
    %317 = vector.broadcast %316 : vector<1x128xf32> to vector<7x128xf32>
    %318 = arith.addf %315, %317 : vector<7x128xf32>
    %cst_225 = arith.constant 0.000000e+00 : f32
    %319 = vector.broadcast %cst_225 : f32 to vector<7x128xf32>
    %320 = arith.maximumf %318, %319 : vector<7x128xf32>
    %c0_226 = arith.constant 0 : index
    %c0_227 = arith.constant 0 : index
    %321 = vector.load %arg7[%c0_226, %c0_227] : memref<4x7xf32, #tpu.memory_space<vmem>>, vector<4x7xf32>
    %cst_228 = arith.constant dense<0.000000e+00> : vector<4x128xf32>
    %322 = tpu.matmul %321, %320, %cst_228 {dimension_numbers = #tpu.dot_dimension_numbers<[1], [0], [0], [1], [0, 0, 1, 1], [], []>, precision = #tpu.contract_precision<fp32>} : vector<4x7xf32>, vector<7x128xf32>, vector<4x128xf32> -> vector<4x128xf32>
    %c0_229 = arith.constant 0 : index
    %c0_230 = arith.constant 0 : index
    %323 = vector.load %arg8[%c0_229, %c0_230] : memref<128x128xf32, #tpu.memory_space<vmem>>, vector<128x128xf32>
    %cst_231 = arith.constant dense<0.000000e+00> : vector<4x128xf32>
    %324 = tpu.matmul %322, %323, %cst_231 {dimension_numbers = #tpu.dot_dimension_numbers<[1], [0], [0], [1], [0, 0, 1, 1], [], []>, precision = #tpu.contract_precision<fp32>} : vector<4x128xf32>, vector<128x128xf32>, vector<4x128xf32> -> vector<4x128xf32>
    %c0_232 = arith.constant 0 : index
    %c0_233 = arith.constant 0 : index
    %325 = vector.load %arg9[%c0_232, %c0_233] : memref<4x128xf32, #tpu.memory_space<vmem>>, vector<4x128xf32>
    tpu.vector_store %arg9[%c0_232, %c0_233], %324 {strides = array<i32>} : memref<4x128xf32, #tpu.memory_space<vmem>>, vector<4x128xf32>,
    return
  }
  func.func @transform_0(%arg0: i32) -> (i32, i32) {
    %c0_i32 = arith.constant 0 : i32
    %c0_i32_0 = arith.constant 0 : i32
    return %c0_i32, %arg0 : i32, i32
  }
  func.func @transform_1(%arg0: i32) -> (i32, i32) {
    %c0_i32 = arith.constant 0 : i32
    %c0_i32_0 = arith.constant 0 : i32
    %c0_i32_1 = arith.constant 0 : i32
    return %c0_i32, %c0_i32_0 : i32, i32
  }
  func.func @transform_2(%arg0: i32) -> (i32, i32) {
    %c0_i32 = arith.constant 0 : i32
    %c0_i32_0 = arith.constant 0 : i32
    %c0_i32_1 = arith.constant 0 : i32
    return %c0_i32, %c0_i32_0 : i32, i32
  }
  func.func @transform_3(%arg0: i32) -> (i32, i32) {
    %c0_i32 = arith.constant 0 : i32
    %c0_i32_0 = arith.constant 0 : i32
    %c0_i32_1 = arith.constant 0 : i32
    return %c0_i32, %c0_i32_0 : i32, i32
  }
  func.func @transform_4(%arg0: i32) -> (i32, i32) {
    %c0_i32 = arith.constant 0 : i32
    %c0_i32_0 = arith.constant 0 : i32
    %c0_i32_1 = arith.constant 0 : i32
    return %c0_i32, %c0_i32_0 : i32, i32
  }
  func.func @transform_5(%arg0: i32) -> (i32, i32) {
    %c0_i32 = arith.constant 0 : i32
    %c0_i32_0 = arith.constant 0 : i32
    %c0_i32_1 = arith.constant 0 : i32
    return %c0_i32, %c0_i32_0 : i32, i32
  }
  func.func @transform_6(%arg0: i32) -> (i32, i32) {
    %c0_i32 = arith.constant 0 : i32
    %c0_i32_0 = arith.constant 0 : i32
    %c0_i32_1 = arith.constant 0 : i32
    return %c0_i32, %c0_i32_0 : i32, i32
  }
  func.func @transform_7(%arg0: i32) -> (i32, i32) {
    %c0_i32 = arith.constant 0 : i32
    %c0_i32_0 = arith.constant 0 : i32
    %c0_i32_1 = arith.constant 0 : i32
    return %c0_i32, %c0_i32_0 : i32, i32
  }
  func.func @transform_8(%arg0: i32) -> (i32, i32) {
    %c0_i32 = arith.constant 0 : i32
    %c0_i32_0 = arith.constant 0 : i32
    return %c0_i32, %arg0 : i32, i32
  }
}

module attributes {stable_mosaic.version = 11 : i64} {
  func.func @_tower_kernel(%arg0: i32, %arg1: memref<32x128xf32, #tpu.memory_space<vmem>>, %arg2: memref<50x128xf32, #tpu.memory_space<vmem>>, %arg3: memref<14x28xf32, #tpu.memory_space<vmem>>, %arg4: memref<128x128xf32, #tpu.memory_space<vmem>>, %arg5: memref<7x14xf32, #tpu.memory_space<vmem>>, %arg6: memref<128x128xf32, #tpu.memory_space<vmem>>, %arg7: memref<4x7xf32, #tpu.memory_space<vmem>>, %arg8: memref<128x128xf32, #tpu.memory_space<vmem>>, %arg9: memref<4x128xf32, #tpu.memory_space<vmem>>, %arg10: memref<32x128xf32, #tpu.memory_space<vmem>>, %arg11: memref<32x128xf32, #tpu.memory_space<vmem>>, %arg12: memref<16x128xf32, #tpu.memory_space<vmem>>, %arg13: memref<16x128xf32, #tpu.memory_space<vmem>>, %arg14: memref<32x128xf32, #tpu.memory_space<vmem>>, %arg15: memref<32x128xf32, #tpu.memory_space<vmem>>) attributes {dimension_semantics = [#tpu.dimension_semantics<parallel>], iteration_bounds = array<i64: 1>, scalar_prefetch = 0 : i64, scratch_operands = 6 : i64, tpu.core_type = #tpu.core_type<tc>, window_params = [{transform_indices = @transform_0, window_bounds = array<i64: 32, 128>}, {transform_indices = @transform_1, window_bounds = array<i64: 50, 128>}, {pipeline_mode = #tpu.pipeline_mode<synchronous>, transform_indices = @transform_2, window_bounds = array<i64: 14, 28>}, {pipeline_mode = #tpu.pipeline_mode<synchronous>, transform_indices = @transform_3, window_bounds = array<i64: 128, 128>}, {pipeline_mode = #tpu.pipeline_mode<synchronous>, transform_indices = @transform_4, window_bounds = array<i64: 7, 14>}, {pipeline_mode = #tpu.pipeline_mode<synchronous>, transform_indices = @transform_5, window_bounds = array<i64: 128, 128>}, {pipeline_mode = #tpu.pipeline_mode<synchronous>, transform_indices = @transform_6, window_bounds = array<i64: 4, 7>}, {pipeline_mode = #tpu.pipeline_mode<synchronous>, transform_indices = @transform_7, window_bounds = array<i64: 128, 128>}, {transform_indices = @transform_8, window_bounds = array<i64: 4, 128>}]} {
    %0 = tpu.iota {dimensions = array<i32: 1>} : vector<1x128xi32>
    %c32_i32 = arith.constant 32 : i32
    %c0_i32 = arith.constant 0 : i32
    %1 = arith.cmpi eq, %c32_i32, %c0_i32 : i32
    %c1_i32 = arith.constant 1 : i32
    %2 = arith.select %1, %c1_i32, %c32_i32 : i32
    %3 = vector.broadcast %2 : i32 to vector<1x128xi32>
    %4 = arith.remsi %0, %3 : vector<1x128xi32>
    %c0_i32_0 = arith.constant 0 : i32
    %5 = vector.broadcast %c0_i32_0 : i32 to vector<1x128xi32>
    %6 = arith.cmpi ne, %4, %5 : vector<1x128xi32>
    %c0_i32_1 = arith.constant 0 : i32
    %7 = vector.broadcast %c0_i32_1 : i32 to vector<1x128xi32>
    %8 = arith.cmpi slt, %4, %7 : vector<1x128xi32>
    %c0_i32_2 = arith.constant 0 : i32
    %9 = arith.cmpi slt, %2, %c0_i32_2 : i32
    %10 = vector.broadcast %9 : i1 to vector<1x128xi1>
    %11 = vector.broadcast %10 : vector<1x128xi1> to vector<1x128xi1>
    %12 = arith.xori %8, %11 : vector<1x128xi1>
    %13 = arith.andi %12, %6 : vector<1x128xi1>
    %14 = vector.broadcast %2 : i32 to vector<1x128xi32>
    %15 = arith.addi %4, %14 : vector<1x128xi32>
    %16 = arith.select %13, %15, %4 : vector<1x128xi1>, vector<1x128xi32>
    %c1_i32_3 = arith.constant 1 : i32
    %17 = vector.broadcast %c1_i32_3 : i32 to vector<1x128xi32>
    %18 = arith.cmpi sge, %16, %17 : vector<1x128xi32>
    %c28_i32 = arith.constant 28 : i32
    %19 = vector.broadcast %c28_i32 : i32 to vector<1x128xi32>
    %20 = arith.cmpi sle, %16, %19 : vector<1x128xi32>
    %21 = arith.andi %18, %20 : vector<1x128xi1>
    %cst = arith.constant 0.000000e+00 : f32
    %22 = vector.broadcast %cst : f32 to vector<1x128xf32>
    %c0 = arith.constant 0 : index
    %c0_4 = arith.constant 0 : index
    %23 = vector.load %arg10[%c0, %c0_4] : memref<32x128xf32, #tpu.memory_space<vmem>>, vector<1x128xf32>
    tpu.vector_store %arg10[%c0, %c0_4], %22 {strides = array<i32>} : memref<32x128xf32, #tpu.memory_space<vmem>>, vector<1x128xf32>,
    %c29 = arith.constant 29 : index
    %c0_5 = arith.constant 0 : index
    %24 = vector.load %arg10[%c29, %c0_5] : memref<32x128xf32, #tpu.memory_space<vmem>>, vector<1x128xf32>
    tpu.vector_store %arg10[%c29, %c0_5], %22 {strides = array<i32>} : memref<32x128xf32, #tpu.memory_space<vmem>>, vector<1x128xf32>,
    %c0_6 = arith.constant 0 : index
    %c0_7 = arith.constant 0 : index
    %25 = vector.load %arg11[%c0_6, %c0_7] : memref<32x128xf32, #tpu.memory_space<vmem>>, vector<1x128xf32>
    tpu.vector_store %arg11[%c0_6, %c0_7], %22 {strides = array<i32>} : memref<32x128xf32, #tpu.memory_space<vmem>>, vector<1x128xf32>,
    %c29_8 = arith.constant 29 : index
    %c0_9 = arith.constant 0 : index
    %26 = vector.load %arg11[%c29_8, %c0_9] : memref<32x128xf32, #tpu.memory_space<vmem>>, vector<1x128xf32>
    tpu.vector_store %arg11[%c29_8, %c0_9], %22 {strides = array<i32>} : memref<32x128xf32, #tpu.memory_space<vmem>>, vector<1x128xf32>,
    %c0_10 = arith.constant 0 : index
    %c0_11 = arith.constant 0 : index
    %27 = vector.load %arg12[%c0_10, %c0_11] : memref<16x128xf32, #tpu.memory_space<vmem>>, vector<1x128xf32>
    tpu.vector_store %arg12[%c0_10, %c0_11], %22 {strides = array<i32>} : memref<16x128xf32, #tpu.memory_space<vmem>>, vector<1x128xf32>,
    %c15 = arith.constant 15 : index
    %c0_12 = arith.constant 0 : index
    %28 = vector.load %arg12[%c15, %c0_12] : memref<16x128xf32, #tpu.memory_space<vmem>>, vector<1x128xf32>
    tpu.vector_store %arg12[%c15, %c0_12], %22 {strides = array<i32>} : memref<16x128xf32, #tpu.memory_space<vmem>>, vector<1x128xf32>,
    %c0_13 = arith.constant 0 : index
    %c0_14 = arith.constant 0 : index
    %29 = vector.load %arg13[%c0_13, %c0_14] : memref<16x128xf32, #tpu.memory_space<vmem>>, vector<1x128xf32>
    tpu.vector_store %arg13[%c0_13, %c0_14], %22 {strides = array<i32>} : memref<16x128xf32, #tpu.memory_space<vmem>>, vector<1x128xf32>,
    %c8 = arith.constant 8 : index
    %c0_15 = arith.constant 0 : index
    %30 = vector.load %arg13[%c8, %c0_15] : memref<16x128xf32, #tpu.memory_space<vmem>>, vector<1x128xf32>
    tpu.vector_store %arg13[%c8, %c0_15], %22 {strides = array<i32>} : memref<16x128xf32, #tpu.memory_space<vmem>>, vector<1x128xf32>,
    %c0_16 = arith.constant 0 : index
    %c0_17 = arith.constant 0 : index
    %31 = vector.load %arg1[%c0_16, %c0_17] : memref<32x128xf32, #tpu.memory_space<vmem>>, vector<30x128xf32>
    %c1_i32_18 = arith.constant 1 : i32
    %32 = tpu.dynamic_rotate %31 by %c1_i32_18 dim 1 : vector<30x128xf32>, i32 -> vector<30x128xf32>
    %c0_19 = arith.constant 0 : index
    %c0_20 = arith.constant 0 : index
    %33 = vector.load %arg14[%c0_19, %c0_20] : memref<32x128xf32, #tpu.memory_space<vmem>>, vector<30x128xf32>
    tpu.vector_store %arg14[%c0_19, %c0_20], %32 {strides = array<i32>} : memref<32x128xf32, #tpu.memory_space<vmem>>, vector<30x128xf32>,
    %c127_i32 = arith.constant 127 : i32
    %34 = tpu.dynamic_rotate %31 by %c127_i32 dim 1 : vector<30x128xf32>, i32 -> vector<30x128xf32>
    %c0_21 = arith.constant 0 : index
    %c0_22 = arith.constant 0 : index
    %35 = vector.load %arg15[%c0_21, %c0_22] : memref<32x128xf32, #tpu.memory_space<vmem>>, vector<30x128xf32>
    tpu.vector_store %arg15[%c0_21, %c0_22], %34 {strides = array<i32>} : memref<32x128xf32, #tpu.memory_space<vmem>>, vector<30x128xf32>,
    %c0_23 = arith.constant 0 : index
    %c0_24 = arith.constant 0 : index
    %36 = vector.load %arg14[%c0_23, %c0_24] : memref<32x128xf32, #tpu.memory_space<vmem>>, vector<28x128xf32>
    %c0_25 = arith.constant 0 : index
    %c0_26 = arith.constant 0 : index
    %37 = vector.load %arg1[%c0_25, %c0_26] : memref<32x128xf32, #tpu.memory_space<vmem>>, vector<28x128xf32>
    %c0_27 = arith.constant 0 : index
    %c0_28 = arith.constant 0 : index
    %38 = vector.load %arg15[%c0_27, %c0_28] : memref<32x128xf32, #tpu.memory_space<vmem>>, vector<28x128xf32>
    %c0_29 = arith.constant 0 : index
    %c0_30 = arith.constant 0 : index
    %39 = vector.load %arg2[%c0_29, %c0_30] : memref<50x128xf32, #tpu.memory_space<vmem>>, vector<1x128xf32>
    %40 = vector.broadcast %39 : vector<1x128xf32> to vector<28x128xf32>
    %41 = arith.mulf %40, %36 : vector<28x128xf32>
    %c1 = arith.constant 1 : index
    %c0_31 = arith.constant 0 : index
    %42 = vector.load %arg2[%c1, %c0_31] : memref<50x128xf32, #tpu.memory_space<vmem>>, vector<1x128xf32>
    %43 = vector.broadcast %42 : vector<1x128xf32> to vector<28x128xf32>
    %44 = arith.mulf %43, %37 : vector<28x128xf32>
    %45 = arith.addf %41, %44 : vector<28x128xf32>
    %c2 = arith.constant 2 : index
    %c0_32 = arith.constant 0 : index
    %46 = vector.load %arg2[%c2, %c0_32] : memref<50x128xf32, #tpu.memory_space<vmem>>, vector<1x128xf32>
    %47 = vector.broadcast %46 : vector<1x128xf32> to vector<28x128xf32>
    %48 = arith.mulf %47, %38 : vector<28x128xf32>
    %49 = arith.addf %45, %48 : vector<28x128xf32>
    %c1_33 = arith.constant 1 : index
    %c0_34 = arith.constant 0 : index
    %50 = vector.load %arg14[%c1_33, %c0_34] : memref<32x128xf32, #tpu.memory_space<vmem>>, vector<28x128xf32>
    %c1_35 = arith.constant 1 : index
    %c0_36 = arith.constant 0 : index
    %51 = vector.load %arg1[%c1_35, %c0_36] : memref<32x128xf32, #tpu.memory_space<vmem>>, vector<28x128xf32>
    %c1_37 = arith.constant 1 : index
    %c0_38 = arith.constant 0 : index
    %52 = vector.load %arg15[%c1_37, %c0_38] : memref<32x128xf32, #tpu.memory_space<vmem>>, vector<28x128xf32>
    %c3 = arith.constant 3 : index
    %c0_39 = arith.constant 0 : index
    %53 = vector.load %arg2[%c3, %c0_39] : memref<50x128xf32, #tpu.memory_space<vmem>>, vector<1x128xf32>
    %54 = vector.broadcast %53 : vector<1x128xf32> to vector<28x128xf32>
    %55 = arith.mulf %54, %50 : vector<28x128xf32>
    %56 = arith.addf %49, %55 : vector<28x128xf32>
    %c4 = arith.constant 4 : index
    %c0_40 = arith.constant 0 : index
    %57 = vector.load %arg2[%c4, %c0_40] : memref<50x128xf32, #tpu.memory_space<vmem>>, vector<1x128xf32>
    %58 = vector.broadcast %57 : vector<1x128xf32> to vector<28x128xf32>
    %59 = arith.mulf %58, %51 : vector<28x128xf32>
    %60 = arith.addf %56, %59 : vector<28x128xf32>
    %c5 = arith.constant 5 : index
    %c0_41 = arith.constant 0 : index
    %61 = vector.load %arg2[%c5, %c0_41] : memref<50x128xf32, #tpu.memory_space<vmem>>, vector<1x128xf32>
    %62 = vector.broadcast %61 : vector<1x128xf32> to vector<28x128xf32>
    %63 = arith.mulf %62, %52 : vector<28x128xf32>
    %64 = arith.addf %60, %63 : vector<28x128xf32>
    %c2_42 = arith.constant 2 : index
    %c0_43 = arith.constant 0 : index
    %65 = vector.load %arg14[%c2_42, %c0_43] : memref<32x128xf32, #tpu.memory_space<vmem>>, vector<28x128xf32>
    %c2_44 = arith.constant 2 : index
    %c0_45 = arith.constant 0 : index
    %66 = vector.load %arg1[%c2_44, %c0_45] : memref<32x128xf32, #tpu.memory_space<vmem>>, vector<28x128xf32>
    %c2_46 = arith.constant 2 : index
    %c0_47 = arith.constant 0 : index
    %67 = vector.load %arg15[%c2_46, %c0_47] : memref<32x128xf32, #tpu.memory_space<vmem>>, vector<28x128xf32>
    %c6 = arith.constant 6 : index
    %c0_48 = arith.constant 0 : index
    %68 = vector.load %arg2[%c6, %c0_48] : memref<50x128xf32, #tpu.memory_space<vmem>>, vector<1x128xf32>
    %69 = vector.broadcast %68 : vector<1x128xf32> to vector<28x128xf32>
    %70 = arith.mulf %69, %65 : vector<28x128xf32>
    %71 = arith.addf %64, %70 : vector<28x128xf32>
    %c7 = arith.constant 7 : index
    %c0_49 = arith.constant 0 : index
    %72 = vector.load %arg2[%c7, %c0_49] : memref<50x128xf32, #tpu.memory_space<vmem>>, vector<1x128xf32>
    %73 = vector.broadcast %72 : vector<1x128xf32> to vector<28x128xf32>
    %74 = arith.mulf %73, %66 : vector<28x128xf32>
    %75 = arith.addf %71, %74 : vector<28x128xf32>
    %c8_50 = arith.constant 8 : index
    %c0_51 = arith.constant 0 : index
    %76 = vector.load %arg2[%c8_50, %c0_51] : memref<50x128xf32, #tpu.memory_space<vmem>>, vector<1x128xf32>
    %77 = vector.broadcast %76 : vector<1x128xf32> to vector<28x128xf32>
    %78 = arith.mulf %77, %67 : vector<28x128xf32>
    %79 = arith.addf %75, %78 : vector<28x128xf32>
    %c9 = arith.constant 9 : index
    %c0_52 = arith.constant 0 : index
    %80 = vector.load %arg2[%c9, %c0_52] : memref<50x128xf32, #tpu.memory_space<vmem>>, vector<1x128xf32>
    %81 = vector.broadcast %80 : vector<1x128xf32> to vector<28x128xf32>
    %82 = arith.addf %79, %81 : vector<28x128xf32>
    %cst_53 = arith.constant 0.000000e+00 : f32
    %83 = vector.broadcast %cst_53 : f32 to vector<28x128xf32>
    %84 = arith.maximumf %82, %83 : vector<28x128xf32>
    %cst_54 = arith.constant 0.000000e+00 : f32
    %85 = vector.shape_cast %21 : vector<1x128xi1> to vector<1x128xi1>
    %86 = vector.broadcast %85 : vector<1x128xi1> to vector<28x128xi1>
    %87 = vector.broadcast %cst_54 : f32 to vector<28x128xf32>
    %88 = arith.select %86, %84, %87 : vector<28x128xi1>, vector<28x128xf32>
    %c1_55 = arith.constant 1 : index
    %c0_56 = arith.constant 0 : index
    %89 = vector.load %arg10[%c1_55, %c0_56] : memref<32x128xf32, #tpu.memory_space<vmem>>, vector<28x128xf32>
    tpu.vector_store %arg10[%c1_55, %c0_56], %88 {strides = array<i32>} : memref<32x128xf32, #tpu.memory_space<vmem>>, vector<28x128xf32>,
    %c0_57 = arith.constant 0 : index
    %c0_58 = arith.constant 0 : index
    %90 = vector.load %arg10[%c0_57, %c0_58] : memref<32x128xf32, #tpu.memory_space<vmem>>, vector<30x128xf32>
    %c1_i32_59 = arith.constant 1 : i32
    %91 = tpu.dynamic_rotate %90 by %c1_i32_59 dim 1 : vector<30x128xf32>, i32 -> vector<30x128xf32>
    %c0_60 = arith.constant 0 : index
    %c0_61 = arith.constant 0 : index
    %92 = vector.load %arg14[%c0_60, %c0_61] : memref<32x128xf32, #tpu.memory_space<vmem>>, vector<30x128xf32>
    tpu.vector_store %arg14[%c0_60, %c0_61], %91 {strides = array<i32>} : memref<32x128xf32, #tpu.memory_space<vmem>>, vector<30x128xf32>,
    %c127_i32_62 = arith.constant 127 : i32
    %93 = tpu.dynamic_rotate %90 by %c127_i32_62 dim 1 : vector<30x128xf32>, i32 -> vector<30x128xf32>
    %c0_63 = arith.constant 0 : index
    %c0_64 = arith.constant 0 : index
    %94 = vector.load %arg15[%c0_63, %c0_64] : memref<32x128xf32, #tpu.memory_space<vmem>>, vector<30x128xf32>
    tpu.vector_store %arg15[%c0_63, %c0_64], %93 {strides = array<i32>} : memref<32x128xf32, #tpu.memory_space<vmem>>, vector<30x128xf32>,
    %c0_65 = arith.constant 0 : index
    %c0_66 = arith.constant 0 : index
    %95 = vector.load %arg14[%c0_65, %c0_66] : memref<32x128xf32, #tpu.memory_space<vmem>>, vector<28x128xf32>
    %c0_67 = arith.constant 0 : index
    %c0_68 = arith.constant 0 : index
    %96 = vector.load %arg10[%c0_67, %c0_68] : memref<32x128xf32, #tpu.memory_space<vmem>>, vector<28x128xf32>
    %c0_69 = arith.constant 0 : index
    %c0_70 = arith.constant 0 : index
    %97 = vector.load %arg15[%c0_69, %c0_70] : memref<32x128xf32, #tpu.memory_space<vmem>>, vector<28x128xf32>
    %c10 = arith.constant 10 : index
    %c0_71 = arith.constant 0 : index
    %98 = vector.load %arg2[%c10, %c0_71] : memref<50x128xf32, #tpu.memory_space<vmem>>, vector<1x128xf32>
    %99 = vector.broadcast %98 : vector<1x128xf32> to vector<28x128xf32>
    %100 = arith.mulf %99, %95 : vector<28x128xf32>
    %c11 = arith.constant 11 : index
    %c0_72 = arith.constant 0 : index
    %101 = vector.load %arg2[%c11, %c0_72] : memref<50x128xf32, #tpu.memory_space<vmem>>, vector<1x128xf32>
    %102 = vector.broadcast %101 : vector<1x128xf32> to vector<28x128xf32>
    %103 = arith.mulf %102, %96 : vector<28x128xf32>
    %104 = arith.addf %100, %103 : vector<28x128xf32>
    %c12 = arith.constant 12 : index
    %c0_73 = arith.constant 0 : index
    %105 = vector.load %arg2[%c12, %c0_73] : memref<50x128xf32, #tpu.memory_space<vmem>>, vector<1x128xf32>
    %106 = vector.broadcast %105 : vector<1x128xf32> to vector<28x128xf32>
    %107 = arith.mulf %106, %97 : vector<28x128xf32>
    %108 = arith.addf %104, %107 : vector<28x128xf32>
    %c1_74 = arith.constant 1 : index
    %c0_75 = arith.constant 0 : index
    %109 = vector.load %arg14[%c1_74, %c0_75] : memref<32x128xf32, #tpu.memory_space<vmem>>, vector<28x128xf32>
    %c1_76 = arith.constant 1 : index
    %c0_77 = arith.constant 0 : index
    %110 = vector.load %arg10[%c1_76, %c0_77] : memref<32x128xf32, #tpu.memory_space<vmem>>, vector<28x128xf32>
    %c1_78 = arith.constant 1 : index
    %c0_79 = arith.constant 0 : index
    %111 = vector.load %arg15[%c1_78, %c0_79] : memref<32x128xf32, #tpu.memory_space<vmem>>, vector<28x128xf32>
    %c13 = arith.constant 13 : index
    %c0_80 = arith.constant 0 : index
    %112 = vector.load %arg2[%c13, %c0_80] : memref<50x128xf32, #tpu.memory_space<vmem>>, vector<1x128xf32>
    %113 = vector.broadcast %112 : vector<1x128xf32> to vector<28x128xf32>
    %114 = arith.mulf %113, %109 : vector<28x128xf32>
    %115 = arith.addf %108, %114 : vector<28x128xf32>
    %c14 = arith.constant 14 : index
    %c0_81 = arith.constant 0 : index
    %116 = vector.load %arg2[%c14, %c0_81] : memref<50x128xf32, #tpu.memory_space<vmem>>, vector<1x128xf32>
    %117 = vector.broadcast %116 : vector<1x128xf32> to vector<28x128xf32>
    %118 = arith.mulf %117, %110 : vector<28x128xf32>
    %119 = arith.addf %115, %118 : vector<28x128xf32>
    %c15_82 = arith.constant 15 : index
    %c0_83 = arith.constant 0 : index
    %120 = vector.load %arg2[%c15_82, %c0_83] : memref<50x128xf32, #tpu.memory_space<vmem>>, vector<1x128xf32>
    %121 = vector.broadcast %120 : vector<1x128xf32> to vector<28x128xf32>
    %122 = arith.mulf %121, %111 : vector<28x128xf32>
    %123 = arith.addf %119, %122 : vector<28x128xf32>
    %c2_84 = arith.constant 2 : index
    %c0_85 = arith.constant 0 : index
    %124 = vector.load %arg14[%c2_84, %c0_85] : memref<32x128xf32, #tpu.memory_space<vmem>>, vector<28x128xf32>
    %c2_86 = arith.constant 2 : index
    %c0_87 = arith.constant 0 : index
    %125 = vector.load %arg10[%c2_86, %c0_87] : memref<32x128xf32, #tpu.memory_space<vmem>>, vector<28x128xf32>
    %c2_88 = arith.constant 2 : index
    %c0_89 = arith.constant 0 : index
    %126 = vector.load %arg15[%c2_88, %c0_89] : memref<32x128xf32, #tpu.memory_space<vmem>>, vector<28x128xf32>
    %c16 = arith.constant 16 : index
    %c0_90 = arith.constant 0 : index
    %127 = vector.load %arg2[%c16, %c0_90] : memref<50x128xf32, #tpu.memory_space<vmem>>, vector<1x128xf32>
    %128 = vector.broadcast %127 : vector<1x128xf32> to vector<28x128xf32>
    %129 = arith.mulf %128, %124 : vector<28x128xf32>
    %130 = arith.addf %123, %129 : vector<28x128xf32>
    %c17 = arith.constant 17 : index
    %c0_91 = arith.constant 0 : index
    %131 = vector.load %arg2[%c17, %c0_91] : memref<50x128xf32, #tpu.memory_space<vmem>>, vector<1x128xf32>
    %132 = vector.broadcast %131 : vector<1x128xf32> to vector<28x128xf32>
    %133 = arith.mulf %132, %125 : vector<28x128xf32>
    %134 = arith.addf %130, %133 : vector<28x128xf32>
    %c18 = arith.constant 18 : index
    %c0_92 = arith.constant 0 : index
    %135 = vector.load %arg2[%c18, %c0_92] : memref<50x128xf32, #tpu.memory_space<vmem>>, vector<1x128xf32>
    %136 = vector.broadcast %135 : vector<1x128xf32> to vector<28x128xf32>
    %137 = arith.mulf %136, %126 : vector<28x128xf32>
    %138 = arith.addf %134, %137 : vector<28x128xf32>
    %c19 = arith.constant 19 : index
    %c0_93 = arith.constant 0 : index
    %139 = vector.load %arg2[%c19, %c0_93] : memref<50x128xf32, #tpu.memory_space<vmem>>, vector<1x128xf32>
    %140 = vector.broadcast %139 : vector<1x128xf32> to vector<28x128xf32>
    %141 = arith.addf %138, %140 : vector<28x128xf32>
    %cst_94 = arith.constant 0.000000e+00 : f32
    %142 = vector.broadcast %cst_94 : f32 to vector<28x128xf32>
    %143 = arith.maximumf %141, %142 : vector<28x128xf32>
    %cst_95 = arith.constant 0.000000e+00 : f32
    %144 = vector.shape_cast %21 : vector<1x128xi1> to vector<1x128xi1>
    %145 = vector.broadcast %144 : vector<1x128xi1> to vector<28x128xi1>
    %146 = vector.broadcast %cst_95 : f32 to vector<28x128xf32>
    %147 = arith.select %145, %143, %146 : vector<28x128xi1>, vector<28x128xf32>
    %c1_96 = arith.constant 1 : index
    %c0_97 = arith.constant 0 : index
    %148 = vector.load %arg11[%c1_96, %c0_97] : memref<32x128xf32, #tpu.memory_space<vmem>>, vector<28x128xf32>
    tpu.vector_store %arg11[%c1_96, %c0_97], %147 {strides = array<i32>} : memref<32x128xf32, #tpu.memory_space<vmem>>, vector<28x128xf32>,
    %c0_98 = arith.constant 0 : index
    %c0_99 = arith.constant 0 : index
    %149 = vector.load %arg11[%c0_98, %c0_99] : memref<32x128xf32, #tpu.memory_space<vmem>>, vector<30x128xf32>
    %c1_i32_100 = arith.constant 1 : i32
    %150 = tpu.dynamic_rotate %149 by %c1_i32_100 dim 1 : vector<30x128xf32>, i32 -> vector<30x128xf32>
    %c0_101 = arith.constant 0 : index
    %c0_102 = arith.constant 0 : index
    %151 = vector.load %arg14[%c0_101, %c0_102] : memref<32x128xf32, #tpu.memory_space<vmem>>, vector<30x128xf32>
    tpu.vector_store %arg14[%c0_101, %c0_102], %150 {strides = array<i32>} : memref<32x128xf32, #tpu.memory_space<vmem>>, vector<30x128xf32>,
    %c127_i32_103 = arith.constant 127 : i32
    %152 = tpu.dynamic_rotate %149 by %c127_i32_103 dim 1 : vector<30x128xf32>, i32 -> vector<30x128xf32>
    %c0_104 = arith.constant 0 : index
    %c0_105 = arith.constant 0 : index
    %153 = vector.load %arg15[%c0_104, %c0_105] : memref<32x128xf32, #tpu.memory_space<vmem>>, vector<30x128xf32>
    tpu.vector_store %arg15[%c0_104, %c0_105], %152 {strides = array<i32>} : memref<32x128xf32, #tpu.memory_space<vmem>>, vector<30x128xf32>,
    %c0_106 = arith.constant 0 : index
    %c0_107 = arith.constant 0 : index
    %154 = vector.load %arg14[%c0_106, %c0_107] : memref<32x128xf32, #tpu.memory_space<vmem>>, vector<28x128xf32>
    %c0_108 = arith.constant 0 : index
    %c0_109 = arith.constant 0 : index
    %155 = vector.load %arg11[%c0_108, %c0_109] : memref<32x128xf32, #tpu.memory_space<vmem>>, vector<28x128xf32>
    %c0_110 = arith.constant 0 : index
    %c0_111 = arith.constant 0 : index
    %156 = vector.load %arg15[%c0_110, %c0_111] : memref<32x128xf32, #tpu.memory_space<vmem>>, vector<28x128xf32>
    %c20 = arith.constant 20 : index
    %c0_112 = arith.constant 0 : index
    %157 = vector.load %arg2[%c20, %c0_112] : memref<50x128xf32, #tpu.memory_space<vmem>>, vector<1x128xf32>
    %158 = vector.broadcast %157 : vector<1x128xf32> to vector<28x128xf32>
    %159 = arith.mulf %158, %154 : vector<28x128xf32>
    %c21 = arith.constant 21 : index
    %c0_113 = arith.constant 0 : index
    %160 = vector.load %arg2[%c21, %c0_113] : memref<50x128xf32, #tpu.memory_space<vmem>>, vector<1x128xf32>
    %161 = vector.broadcast %160 : vector<1x128xf32> to vector<28x128xf32>
    %162 = arith.mulf %161, %155 : vector<28x128xf32>
    %163 = arith.addf %159, %162 : vector<28x128xf32>
    %c22 = arith.constant 22 : index
    %c0_114 = arith.constant 0 : index
    %164 = vector.load %arg2[%c22, %c0_114] : memref<50x128xf32, #tpu.memory_space<vmem>>, vector<1x128xf32>
    %165 = vector.broadcast %164 : vector<1x128xf32> to vector<28x128xf32>
    %166 = arith.mulf %165, %156 : vector<28x128xf32>
    %167 = arith.addf %163, %166 : vector<28x128xf32>
    %c1_115 = arith.constant 1 : index
    %c0_116 = arith.constant 0 : index
    %168 = vector.load %arg14[%c1_115, %c0_116] : memref<32x128xf32, #tpu.memory_space<vmem>>, vector<28x128xf32>
    %c1_117 = arith.constant 1 : index
    %c0_118 = arith.constant 0 : index
    %169 = vector.load %arg11[%c1_117, %c0_118] : memref<32x128xf32, #tpu.memory_space<vmem>>, vector<28x128xf32>
    %c1_119 = arith.constant 1 : index
    %c0_120 = arith.constant 0 : index
    %170 = vector.load %arg15[%c1_119, %c0_120] : memref<32x128xf32, #tpu.memory_space<vmem>>, vector<28x128xf32>
    %c23 = arith.constant 23 : index
    %c0_121 = arith.constant 0 : index
    %171 = vector.load %arg2[%c23, %c0_121] : memref<50x128xf32, #tpu.memory_space<vmem>>, vector<1x128xf32>
    %172 = vector.broadcast %171 : vector<1x128xf32> to vector<28x128xf32>
    %173 = arith.mulf %172, %168 : vector<28x128xf32>
    %174 = arith.addf %167, %173 : vector<28x128xf32>
    %c24 = arith.constant 24 : index
    %c0_122 = arith.constant 0 : index
    %175 = vector.load %arg2[%c24, %c0_122] : memref<50x128xf32, #tpu.memory_space<vmem>>, vector<1x128xf32>
    %176 = vector.broadcast %175 : vector<1x128xf32> to vector<28x128xf32>
    %177 = arith.mulf %176, %169 : vector<28x128xf32>
    %178 = arith.addf %174, %177 : vector<28x128xf32>
    %c25 = arith.constant 25 : index
    %c0_123 = arith.constant 0 : index
    %179 = vector.load %arg2[%c25, %c0_123] : memref<50x128xf32, #tpu.memory_space<vmem>>, vector<1x128xf32>
    %180 = vector.broadcast %179 : vector<1x128xf32> to vector<28x128xf32>
    %181 = arith.mulf %180, %170 : vector<28x128xf32>
    %182 = arith.addf %178, %181 : vector<28x128xf32>
    %c2_124 = arith.constant 2 : index
    %c0_125 = arith.constant 0 : index
    %183 = vector.load %arg14[%c2_124, %c0_125] : memref<32x128xf32, #tpu.memory_space<vmem>>, vector<28x128xf32>
    %c2_126 = arith.constant 2 : index
    %c0_127 = arith.constant 0 : index
    %184 = vector.load %arg11[%c2_126, %c0_127] : memref<32x128xf32, #tpu.memory_space<vmem>>, vector<28x128xf32>
    %c2_128 = arith.constant 2 : index
    %c0_129 = arith.constant 0 : index
    %185 = vector.load %arg15[%c2_128, %c0_129] : memref<32x128xf32, #tpu.memory_space<vmem>>, vector<28x128xf32>
    %c26 = arith.constant 26 : index
    %c0_130 = arith.constant 0 : index
    %186 = vector.load %arg2[%c26, %c0_130] : memref<50x128xf32, #tpu.memory_space<vmem>>, vector<1x128xf32>
    %187 = vector.broadcast %186 : vector<1x128xf32> to vector<28x128xf32>
    %188 = arith.mulf %187, %183 : vector<28x128xf32>
    %189 = arith.addf %182, %188 : vector<28x128xf32>
    %c27 = arith.constant 27 : index
    %c0_131 = arith.constant 0 : index
    %190 = vector.load %arg2[%c27, %c0_131] : memref<50x128xf32, #tpu.memory_space<vmem>>, vector<1x128xf32>
    %191 = vector.broadcast %190 : vector<1x128xf32> to vector<28x128xf32>
    %192 = arith.mulf %191, %184 : vector<28x128xf32>
    %193 = arith.addf %189, %192 : vector<28x128xf32>
    %c28 = arith.constant 28 : index
    %c0_132 = arith.constant 0 : index
    %194 = vector.load %arg2[%c28, %c0_132] : memref<50x128xf32, #tpu.memory_space<vmem>>, vector<1x128xf32>
    %195 = vector.broadcast %194 : vector<1x128xf32> to vector<28x128xf32>
    %196 = arith.mulf %195, %185 : vector<28x128xf32>
    %197 = arith.addf %193, %196 : vector<28x128xf32>
    %c29_133 = arith.constant 29 : index
    %c0_134 = arith.constant 0 : index
    %198 = vector.load %arg2[%c29_133, %c0_134] : memref<50x128xf32, #tpu.memory_space<vmem>>, vector<1x128xf32>
    %199 = vector.broadcast %198 : vector<1x128xf32> to vector<28x128xf32>
    %200 = arith.addf %197, %199 : vector<28x128xf32>
    %cst_135 = arith.constant 0.000000e+00 : f32
    %201 = vector.broadcast %cst_135 : f32 to vector<28x128xf32>
    %202 = arith.maximumf %200, %201 : vector<28x128xf32>
    %c0_136 = arith.constant 0 : index
    %c0_137 = arith.constant 0 : index
    %203 = vector.load %arg3[%c0_136, %c0_137] : memref<14x28xf32, #tpu.memory_space<vmem>>, vector<14x28xf32>
    %cst_138 = arith.constant dense<0.000000e+00> : vector<14x128xf32>
    %204 = tpu.matmul %203, %202, %cst_138 {dimension_numbers = #tpu.dot_dimension_numbers<[1], [0], [0], [1], [0, 0, 1, 1], [], []>, precision = #tpu.contract_precision<fp32>} : vector<14x28xf32>, vector<28x128xf32>, vector<14x128xf32> -> vector<14x128xf32>
    %c0_139 = arith.constant 0 : index
    %c0_140 = arith.constant 0 : index
    %205 = vector.load %arg4[%c0_139, %c0_140] : memref<128x128xf32, #tpu.memory_space<vmem>>, vector<128x128xf32>
    %cst_141 = arith.constant dense<0.000000e+00> : vector<14x128xf32>
    %206 = tpu.matmul %204, %205, %cst_141 {dimension_numbers = #tpu.dot_dimension_numbers<[1], [0], [0], [1], [0, 0, 1, 1], [], []>, precision = #tpu.contract_precision<fp32>} : vector<14x128xf32>, vector<128x128xf32>, vector<14x128xf32> -> vector<14x128xf32>
    %c1_142 = arith.constant 1 : index
    %c0_143 = arith.constant 0 : index
    %207 = vector.load %arg12[%c1_142, %c0_143] : memref<16x128xf32, #tpu.memory_space<vmem>>, vector<14x128xf32>
    tpu.vector_store %arg12[%c1_142, %c0_143], %206 {strides = array<i32>} : memref<16x128xf32, #tpu.memory_space<vmem>>, vector<14x128xf32>,
    %c0_144 = arith.constant 0 : index
    %c0_145 = arith.constant 0 : index
    %208 = vector.load %arg12[%c0_144, %c0_145] : memref<16x128xf32, #tpu.memory_space<vmem>>, vector<16x128xf32>
    %c1_i32_146 = arith.constant 1 : i32
    %209 = tpu.dynamic_rotate %208 by %c1_i32_146 dim 1 : vector<16x128xf32>, i32 -> vector<16x128xf32>
    %c0_147 = arith.constant 0 : index
    %c0_148 = arith.constant 0 : index
    %210 = vector.load %arg14[%c0_147, %c0_148] : memref<32x128xf32, #tpu.memory_space<vmem>>, vector<16x128xf32>
    tpu.vector_store %arg14[%c0_147, %c0_148], %209 {strides = array<i32>} : memref<32x128xf32, #tpu.memory_space<vmem>>, vector<16x128xf32>,
    %c127_i32_149 = arith.constant 127 : i32
    %211 = tpu.dynamic_rotate %208 by %c127_i32_149 dim 1 : vector<16x128xf32>, i32 -> vector<16x128xf32>
    %c0_150 = arith.constant 0 : index
    %c0_151 = arith.constant 0 : index
    %212 = vector.load %arg15[%c0_150, %c0_151] : memref<32x128xf32, #tpu.memory_space<vmem>>, vector<16x128xf32>
    tpu.vector_store %arg15[%c0_150, %c0_151], %211 {strides = array<i32>} : memref<32x128xf32, #tpu.memory_space<vmem>>, vector<16x128xf32>,
    %c0_152 = arith.constant 0 : index
    %c0_153 = arith.constant 0 : index
    %213 = vector.load %arg14[%c0_152, %c0_153] : memref<32x128xf32, #tpu.memory_space<vmem>>, vector<14x128xf32>
    %c0_154 = arith.constant 0 : index
    %c0_155 = arith.constant 0 : index
    %214 = vector.load %arg12[%c0_154, %c0_155] : memref<16x128xf32, #tpu.memory_space<vmem>>, vector<14x128xf32>
    %c0_156 = arith.constant 0 : index
    %c0_157 = arith.constant 0 : index
    %215 = vector.load %arg15[%c0_156, %c0_157] : memref<32x128xf32, #tpu.memory_space<vmem>>, vector<14x128xf32>
    %c30 = arith.constant 30 : index
    %c0_158 = arith.constant 0 : index
    %216 = vector.load %arg2[%c30, %c0_158] : memref<50x128xf32, #tpu.memory_space<vmem>>, vector<1x128xf32>
    %217 = vector.broadcast %216 : vector<1x128xf32> to vector<14x128xf32>
    %218 = arith.mulf %217, %213 : vector<14x128xf32>
    %c31 = arith.constant 31 : index
    %c0_159 = arith.constant 0 : index
    %219 = vector.load %arg2[%c31, %c0_159] : memref<50x128xf32, #tpu.memory_space<vmem>>, vector<1x128xf32>
    %220 = vector.broadcast %219 : vector<1x128xf32> to vector<14x128xf32>
    %221 = arith.mulf %220, %214 : vector<14x128xf32>
    %222 = arith.addf %218, %221 : vector<14x128xf32>
    %c32 = arith.constant 32 : index
    %c0_160 = arith.constant 0 : index
    %223 = vector.load %arg2[%c32, %c0_160] : memref<50x128xf32, #tpu.memory_space<vmem>>, vector<1x128xf32>
    %224 = vector.broadcast %223 : vector<1x128xf32> to vector<14x128xf32>
    %225 = arith.mulf %224, %215 : vector<14x128xf32>
    %226 = arith.addf %222, %225 : vector<14x128xf32>
    %c1_161 = arith.constant 1 : index
    %c0_162 = arith.constant 0 : index
    %227 = vector.load %arg14[%c1_161, %c0_162] : memref<32x128xf32, #tpu.memory_space<vmem>>, vector<14x128xf32>
    %c1_163 = arith.constant 1 : index
    %c0_164 = arith.constant 0 : index
    %228 = vector.load %arg12[%c1_163, %c0_164] : memref<16x128xf32, #tpu.memory_space<vmem>>, vector<14x128xf32>
    %c1_165 = arith.constant 1 : index
    %c0_166 = arith.constant 0 : index
    %229 = vector.load %arg15[%c1_165, %c0_166] : memref<32x128xf32, #tpu.memory_space<vmem>>, vector<14x128xf32>
    %c33 = arith.constant 33 : index
    %c0_167 = arith.constant 0 : index
    %230 = vector.load %arg2[%c33, %c0_167] : memref<50x128xf32, #tpu.memory_space<vmem>>, vector<1x128xf32>
    %231 = vector.broadcast %230 : vector<1x128xf32> to vector<14x128xf32>
    %232 = arith.mulf %231, %227 : vector<14x128xf32>
    %233 = arith.addf %226, %232 : vector<14x128xf32>
    %c34 = arith.constant 34 : index
    %c0_168 = arith.constant 0 : index
    %234 = vector.load %arg2[%c34, %c0_168] : memref<50x128xf32, #tpu.memory_space<vmem>>, vector<1x128xf32>
    %235 = vector.broadcast %234 : vector<1x128xf32> to vector<14x128xf32>
    %236 = arith.mulf %235, %228 : vector<14x128xf32>
    %237 = arith.addf %233, %236 : vector<14x128xf32>
    %c35 = arith.constant 35 : index
    %c0_169 = arith.constant 0 : index
    %238 = vector.load %arg2[%c35, %c0_169] : memref<50x128xf32, #tpu.memory_space<vmem>>, vector<1x128xf32>
    %239 = vector.broadcast %238 : vector<1x128xf32> to vector<14x128xf32>
    %240 = arith.mulf %239, %229 : vector<14x128xf32>
    %241 = arith.addf %237, %240 : vector<14x128xf32>
    %c2_170 = arith.constant 2 : index
    %c0_171 = arith.constant 0 : index
    %242 = vector.load %arg14[%c2_170, %c0_171] : memref<32x128xf32, #tpu.memory_space<vmem>>, vector<14x128xf32>
    %c2_172 = arith.constant 2 : index
    %c0_173 = arith.constant 0 : index
    %243 = vector.load %arg12[%c2_172, %c0_173] : memref<16x128xf32, #tpu.memory_space<vmem>>, vector<14x128xf32>
    %c2_174 = arith.constant 2 : index
    %c0_175 = arith.constant 0 : index
    %244 = vector.load %arg15[%c2_174, %c0_175] : memref<32x128xf32, #tpu.memory_space<vmem>>, vector<14x128xf32>
    %c36 = arith.constant 36 : index
    %c0_176 = arith.constant 0 : index
    %245 = vector.load %arg2[%c36, %c0_176] : memref<50x128xf32, #tpu.memory_space<vmem>>, vector<1x128xf32>
    %246 = vector.broadcast %245 : vector<1x128xf32> to vector<14x128xf32>
    %247 = arith.mulf %246, %242 : vector<14x128xf32>
    %248 = arith.addf %241, %247 : vector<14x128xf32>
    %c37 = arith.constant 37 : index
    %c0_177 = arith.constant 0 : index
    %249 = vector.load %arg2[%c37, %c0_177] : memref<50x128xf32, #tpu.memory_space<vmem>>, vector<1x128xf32>
    %250 = vector.broadcast %249 : vector<1x128xf32> to vector<14x128xf32>
    %251 = arith.mulf %250, %243 : vector<14x128xf32>
    %252 = arith.addf %248, %251 : vector<14x128xf32>
    %c38 = arith.constant 38 : index
    %c0_178 = arith.constant 0 : index
    %253 = vector.load %arg2[%c38, %c0_178] : memref<50x128xf32, #tpu.memory_space<vmem>>, vector<1x128xf32>
    %254 = vector.broadcast %253 : vector<1x128xf32> to vector<14x128xf32>
    %255 = arith.mulf %254, %244 : vector<14x128xf32>
    %256 = arith.addf %252, %255 : vector<14x128xf32>
    %c39 = arith.constant 39 : index
    %c0_179 = arith.constant 0 : index
    %257 = vector.load %arg2[%c39, %c0_179] : memref<50x128xf32, #tpu.memory_space<vmem>>, vector<1x128xf32>
    %258 = vector.broadcast %257 : vector<1x128xf32> to vector<14x128xf32>
    %259 = arith.addf %256, %258 : vector<14x128xf32>
    %cst_180 = arith.constant 0.000000e+00 : f32
    %260 = vector.broadcast %cst_180 : f32 to vector<14x128xf32>
    %261 = arith.maximumf %259, %260 : vector<14x128xf32>
    %c0_181 = arith.constant 0 : index
    %c0_182 = arith.constant 0 : index
    %262 = vector.load %arg5[%c0_181, %c0_182] : memref<7x14xf32, #tpu.memory_space<vmem>>, vector<7x14xf32>
    %cst_183 = arith.constant dense<0.000000e+00> : vector<7x128xf32>
    %263 = tpu.matmul %262, %261, %cst_183 {dimension_numbers = #tpu.dot_dimension_numbers<[1], [0], [0], [1], [0, 0, 1, 1], [], []>, precision = #tpu.contract_precision<fp32>} : vector<7x14xf32>, vector<14x128xf32>, vector<7x128xf32> -> vector<7x128xf32>
    %c0_184 = arith.constant 0 : index
    %c0_185 = arith.constant 0 : index
    %264 = vector.load %arg6[%c0_184, %c0_185] : memref<128x128xf32, #tpu.memory_space<vmem>>, vector<128x128xf32>
    %cst_186 = arith.constant dense<0.000000e+00> : vector<7x128xf32>
    %265 = tpu.matmul %263, %264, %cst_186 {dimension_numbers = #tpu.dot_dimension_numbers<[1], [0], [0], [1], [0, 0, 1, 1], [], []>, precision = #tpu.contract_precision<fp32>} : vector<7x128xf32>, vector<128x128xf32>, vector<7x128xf32> -> vector<7x128xf32>
    %c1_187 = arith.constant 1 : index
    %c0_188 = arith.constant 0 : index
    %266 = vector.load %arg13[%c1_187, %c0_188] : memref<16x128xf32, #tpu.memory_space<vmem>>, vector<7x128xf32>
    tpu.vector_store %arg13[%c1_187, %c0_188], %265 {strides = array<i32>} : memref<16x128xf32, #tpu.memory_space<vmem>>, vector<7x128xf32>,
    %c0_189 = arith.constant 0 : index
    %c0_190 = arith.constant 0 : index
    %267 = vector.load %arg13[%c0_189, %c0_190] : memref<16x128xf32, #tpu.memory_space<vmem>>, vector<9x128xf32>
    %c1_i32_191 = arith.constant 1 : i32
    %268 = tpu.dynamic_rotate %267 by %c1_i32_191 dim 1 : vector<9x128xf32>, i32 -> vector<9x128xf32>
    %c0_192 = arith.constant 0 : index
    %c0_193 = arith.constant 0 : index
    %269 = vector.load %arg14[%c0_192, %c0_193] : memref<32x128xf32, #tpu.memory_space<vmem>>, vector<9x128xf32>
    tpu.vector_store %arg14[%c0_192, %c0_193], %268 {strides = array<i32>} : memref<32x128xf32, #tpu.memory_space<vmem>>, vector<9x128xf32>,
    %c127_i32_194 = arith.constant 127 : i32
    %270 = tpu.dynamic_rotate %267 by %c127_i32_194 dim 1 : vector<9x128xf32>, i32 -> vector<9x128xf32>
    %c0_195 = arith.constant 0 : index
    %c0_196 = arith.constant 0 : index
    %271 = vector.load %arg15[%c0_195, %c0_196] : memref<32x128xf32, #tpu.memory_space<vmem>>, vector<9x128xf32>
    tpu.vector_store %arg15[%c0_195, %c0_196], %270 {strides = array<i32>} : memref<32x128xf32, #tpu.memory_space<vmem>>, vector<9x128xf32>,
    %c0_197 = arith.constant 0 : index
    %c0_198 = arith.constant 0 : index
    %272 = vector.load %arg14[%c0_197, %c0_198] : memref<32x128xf32, #tpu.memory_space<vmem>>, vector<7x128xf32>
    %c0_199 = arith.constant 0 : index
    %c0_200 = arith.constant 0 : index
    %273 = vector.load %arg13[%c0_199, %c0_200] : memref<16x128xf32, #tpu.memory_space<vmem>>, vector<7x128xf32>
    %c0_201 = arith.constant 0 : index
    %c0_202 = arith.constant 0 : index
    %274 = vector.load %arg15[%c0_201, %c0_202] : memref<32x128xf32, #tpu.memory_space<vmem>>, vector<7x128xf32>
    %c40 = arith.constant 40 : index
    %c0_203 = arith.constant 0 : index
    %275 = vector.load %arg2[%c40, %c0_203] : memref<50x128xf32, #tpu.memory_space<vmem>>, vector<1x128xf32>
    %276 = vector.broadcast %275 : vector<1x128xf32> to vector<7x128xf32>
    %277 = arith.mulf %276, %272 : vector<7x128xf32>
    %c41 = arith.constant 41 : index
    %c0_204 = arith.constant 0 : index
    %278 = vector.load %arg2[%c41, %c0_204] : memref<50x128xf32, #tpu.memory_space<vmem>>, vector<1x128xf32>
    %279 = vector.broadcast %278 : vector<1x128xf32> to vector<7x128xf32>
    %280 = arith.mulf %279, %273 : vector<7x128xf32>
    %281 = arith.addf %277, %280 : vector<7x128xf32>
    %c42 = arith.constant 42 : index
    %c0_205 = arith.constant 0 : index
    %282 = vector.load %arg2[%c42, %c0_205] : memref<50x128xf32, #tpu.memory_space<vmem>>, vector<1x128xf32>
    %283 = vector.broadcast %282 : vector<1x128xf32> to vector<7x128xf32>
    %284 = arith.mulf %283, %274 : vector<7x128xf32>
    %285 = arith.addf %281, %284 : vector<7x128xf32>
    %c1_206 = arith.constant 1 : index
    %c0_207 = arith.constant 0 : index
    %286 = vector.load %arg14[%c1_206, %c0_207] : memref<32x128xf32, #tpu.memory_space<vmem>>, vector<7x128xf32>
    %c1_208 = arith.constant 1 : index
    %c0_209 = arith.constant 0 : index
    %287 = vector.load %arg13[%c1_208, %c0_209] : memref<16x128xf32, #tpu.memory_space<vmem>>, vector<7x128xf32>
    %c1_210 = arith.constant 1 : index
    %c0_211 = arith.constant 0 : index
    %288 = vector.load %arg15[%c1_210, %c0_211] : memref<32x128xf32, #tpu.memory_space<vmem>>, vector<7x128xf32>
    %c43 = arith.constant 43 : index
    %c0_212 = arith.constant 0 : index
    %289 = vector.load %arg2[%c43, %c0_212] : memref<50x128xf32, #tpu.memory_space<vmem>>, vector<1x128xf32>
    %290 = vector.broadcast %289 : vector<1x128xf32> to vector<7x128xf32>
    %291 = arith.mulf %290, %286 : vector<7x128xf32>
    %292 = arith.addf %285, %291 : vector<7x128xf32>
    %c44 = arith.constant 44 : index
    %c0_213 = arith.constant 0 : index
    %293 = vector.load %arg2[%c44, %c0_213] : memref<50x128xf32, #tpu.memory_space<vmem>>, vector<1x128xf32>
    %294 = vector.broadcast %293 : vector<1x128xf32> to vector<7x128xf32>
    %295 = arith.mulf %294, %287 : vector<7x128xf32>
    %296 = arith.addf %292, %295 : vector<7x128xf32>
    %c45 = arith.constant 45 : index
    %c0_214 = arith.constant 0 : index
    %297 = vector.load %arg2[%c45, %c0_214] : memref<50x128xf32, #tpu.memory_space<vmem>>, vector<1x128xf32>
    %298 = vector.broadcast %297 : vector<1x128xf32> to vector<7x128xf32>
    %299 = arith.mulf %298, %288 : vector<7x128xf32>
    %300 = arith.addf %296, %299 : vector<7x128xf32>
    %c2_215 = arith.constant 2 : index
    %c0_216 = arith.constant 0 : index
    %301 = vector.load %arg14[%c2_215, %c0_216] : memref<32x128xf32, #tpu.memory_space<vmem>>, vector<7x128xf32>
    %c2_217 = arith.constant 2 : index
    %c0_218 = arith.constant 0 : index
    %302 = vector.load %arg13[%c2_217, %c0_218] : memref<16x128xf32, #tpu.memory_space<vmem>>, vector<7x128xf32>
    %c2_219 = arith.constant 2 : index
    %c0_220 = arith.constant 0 : index
    %303 = vector.load %arg15[%c2_219, %c0_220] : memref<32x128xf32, #tpu.memory_space<vmem>>, vector<7x128xf32>
    %c46 = arith.constant 46 : index
    %c0_221 = arith.constant 0 : index
    %304 = vector.load %arg2[%c46, %c0_221] : memref<50x128xf32, #tpu.memory_space<vmem>>, vector<1x128xf32>
    %305 = vector.broadcast %304 : vector<1x128xf32> to vector<7x128xf32>
    %306 = arith.mulf %305, %301 : vector<7x128xf32>
    %307 = arith.addf %300, %306 : vector<7x128xf32>
    %c47 = arith.constant 47 : index
    %c0_222 = arith.constant 0 : index
    %308 = vector.load %arg2[%c47, %c0_222] : memref<50x128xf32, #tpu.memory_space<vmem>>, vector<1x128xf32>
    %309 = vector.broadcast %308 : vector<1x128xf32> to vector<7x128xf32>
    %310 = arith.mulf %309, %302 : vector<7x128xf32>
    %311 = arith.addf %307, %310 : vector<7x128xf32>
    %c48 = arith.constant 48 : index
    %c0_223 = arith.constant 0 : index
    %312 = vector.load %arg2[%c48, %c0_223] : memref<50x128xf32, #tpu.memory_space<vmem>>, vector<1x128xf32>
    %313 = vector.broadcast %312 : vector<1x128xf32> to vector<7x128xf32>
    %314 = arith.mulf %313, %303 : vector<7x128xf32>
    %315 = arith.addf %311, %314 : vector<7x128xf32>
    %c49 = arith.constant 49 : index
    %c0_224 = arith.constant 0 : index
    %316 = vector.load %arg2[%c49, %c0_224] : memref<50x128xf32, #tpu.memory_space<vmem>>, vector<1x128xf32>
    %317 = vector.broadcast %316 : vector<1x128xf32> to vector<7x128xf32>
    %318 = arith.addf %315, %317 : vector<7x128xf32>
    %cst_225 = arith.constant 0.000000e+00 : f32
    %319 = vector.broadcast %cst_225 : f32 to vector<7x128xf32>
    %320 = arith.maximumf %318, %319 : vector<7x128xf32>
    %c0_226 = arith.constant 0 : index
    %c0_227 = arith.constant 0 : index
    %321 = vector.load %arg7[%c0_226, %c0_227] : memref<4x7xf32, #tpu.memory_space<vmem>>, vector<4x7xf32>
    %cst_228 = arith.constant dense<0.000000e+00> : vector<4x128xf32>
    %322 = tpu.matmul %321, %320, %cst_228 {dimension_numbers = #tpu.dot_dimension_numbers<[1], [0], [0], [1], [0, 0, 1, 1], [], []>, precision = #tpu.contract_precision<fp32>} : vector<4x7xf32>, vector<7x128xf32>, vector<4x128xf32> -> vector<4x128xf32>
    %c0_229 = arith.constant 0 : index
    %c0_230 = arith.constant 0 : index
    %323 = vector.load %arg8[%c0_229, %c0_230] : memref<128x128xf32, #tpu.memory_space<vmem>>, vector<128x128xf32>
    %cst_231 = arith.constant dense<0.000000e+00> : vector<4x128xf32>
    %324 = tpu.matmul %322, %323, %cst_231 {dimension_numbers = #tpu.dot_dimension_numbers<[1], [0], [0], [1], [0, 0, 1, 1], [], []>, precision = #tpu.contract_precision<fp32>} : vector<4x128xf32>, vector<128x128xf32>, vector<4x128xf32> -> vector<4x128xf32>
    %c0_232 = arith.constant 0 : index
    %c0_233 = arith.constant 0 : index
    %325 = vector.load %arg9[%c0_232, %c0_233] : memref<4x128xf32, #tpu.memory_space<vmem>>, vector<4x128xf32>
    tpu.vector_store %arg9[%c0_232, %c0_233], %324 {strides = array<i32>} : memref<4x128xf32, #tpu.memory_space<vmem>>, vector<4x128xf32>,
    return
  }
  func.func @transform_0(%arg0: i32) -> (i32, i32) {
    %c0_i32 = arith.constant 0 : i32
    %c0_i32_0 = arith.constant 0 : i32
    return %c0_i32, %arg0 : i32, i32
  }
  func.func @transform_1(%arg0: i32) -> (i32, i32) {
    %c0_i32 = arith.constant 0 : i32
    %c0_i32_0 = arith.constant 0 : i32
    return %c0_i32, %arg0 : i32, i32
  }
  func.func @transform_2(%arg0: i32) -> (i32, i32) {
    %c0_i32 = arith.constant 0 : i32
    %c0_i32_0 = arith.constant 0 : i32
    %c0_i32_1 = arith.constant 0 : i32
    return %c0_i32, %c0_i32_0 : i32, i32
  }
  func.func @transform_3(%arg0: i32) -> (i32, i32) {
    %c0_i32 = arith.constant 0 : i32
    %c0_i32_0 = arith.constant 0 : i32
    %c0_i32_1 = arith.constant 0 : i32
    return %c0_i32, %c0_i32_0 : i32, i32
  }
  func.func @transform_4(%arg0: i32) -> (i32, i32) {
    %c0_i32 = arith.constant 0 : i32
    %c0_i32_0 = arith.constant 0 : i32
    %c0_i32_1 = arith.constant 0 : i32
    return %c0_i32, %c0_i32_0 : i32, i32
  }
  func.func @transform_5(%arg0: i32) -> (i32, i32) {
    %c0_i32 = arith.constant 0 : i32
    %c0_i32_0 = arith.constant 0 : i32
    %c0_i32_1 = arith.constant 0 : i32
    return %c0_i32, %c0_i32_0 : i32, i32
  }
  func.func @transform_6(%arg0: i32) -> (i32, i32) {
    %c0_i32 = arith.constant 0 : i32
    %c0_i32_0 = arith.constant 0 : i32
    %c0_i32_1 = arith.constant 0 : i32
    return %c0_i32, %c0_i32_0 : i32, i32
  }
  func.func @transform_7(%arg0: i32) -> (i32, i32) {
    %c0_i32 = arith.constant 0 : i32
    %c0_i32_0 = arith.constant 0 : i32
    %c0_i32_1 = arith.constant 0 : i32
    return %c0_i32, %c0_i32_0 : i32, i32
  }
  func.func @transform_8(%arg0: i32) -> (i32, i32) {
    %c0_i32 = arith.constant 0 : i32
    %c0_i32_0 = arith.constant 0 : i32
    return %c0_i32, %arg0 : i32, i32
  }
}

</mosaic_0001>

<llo_original>
// kernel: forward.4
$region0: #{forward.4}
  #allocation0 [shape = 'u32[]', space=smem, size = 0x4, offset = 0x4, fixed_abs, tag = 'smem constant byte address 0x4 - core index']
  #allocation1 [shape = 'u32[72,128]{1,0:T(1,128)}', space=vmem, size = 0x9000, scoped, tag = 'internal scratch']
  #allocation2 [shape = 'f32[32,128]{1,0:T(8,128)}', space=vmem, size = 0x4000, scoped, tag = 'scratch operand']
  #allocation3 [shape = 'f32[32,128]{1,0:T(8,128)}', space=vmem, size = 0x4000, scoped, tag = 'scratch operand']
  #allocation4 [shape = 'f32[16,128]{1,0:T(8,128)}', space=vmem, size = 0x2000, scoped, tag = 'scratch operand']
  #allocation5 [shape = 'f32[16,128]{1,0:T(8,128)}', space=vmem, size = 0x2000, scoped, tag = 'scratch operand']
  #allocation6 [shape = 'f32[32,128]{1,0:T(8,128)}', space=vmem, size = 0x4000, scoped, tag = 'scratch operand']
  #allocation7 [shape = 'f32[32,128]{1,0:T(8,128)}', space=vmem, size = 0x4000, scoped, tag = 'scratch operand']
  %s0 = inlined_call_operand.vmem [shape: f32[32,128], index: 0, kind: input, shape index: {}]
  %s1 = inlined_call_operand.vmem [shape: f32[50,128], index: 1, kind: input, shape index: {}]
  %s2 = inlined_call_operand.vmem [shape: f32[14,28], index: 2, kind: input, shape index: {}]
  %s3 = inlined_call_operand.vmem [shape: f32[128,128], index: 3, kind: input, shape index: {}]
  %s4 = inlined_call_operand.vmem [shape: f32[7,14], index: 4, kind: input, shape index: {}]
  %s5 = inlined_call_operand.vmem [shape: f32[128,128], index: 5, kind: input, shape index: {}]
  %s6 = inlined_call_operand.vmem [shape: f32[4,7], index: 6, kind: input, shape index: {}]
  %s7 = inlined_call_operand.vmem [shape: f32[128,128], index: 7, kind: input, shape index: {}]
  %s8 = inlined_call_operand.vmem [shape: f32[4,128], index: 8, kind: output, shape index: {}]
  %s9 = sld [smem:[#allocation0]]
  $region42: #{forward.4} parent=0
    _
  %s11 = ssub.s32 1, %s9
  %s12 = scalar_select 0, %s11, %s9
  // Predicated region
  $region2: #{forward.4} parent=0 // pred_check
    _
  $region3: #{forward.4} parent=0 // pred_check_branch
    %14 = sbr.rel (0) target = $region5
  $region4: #{forward.4} parent=0 // pred_region
    _
  $region5: #{forward.4} parent=0 // pred_fallthru
    _
  // Predicated region
  $region6: #{forward.4} parent=0 // pred_check
    _
  $region7: #{forward.4} parent=0 // pred_check_branch
    %16 = sbr.rel (0) target = $region9
  $region8: #{forward.4} parent=0 // pred_region
    _
  $region9: #{forward.4} parent=0 // pred_fallthru
    _
  // Predicated region
  $region10: #{forward.4} parent=0 // pred_check
    _
  $region11: #{forward.4} parent=0 // pred_check_branch
    %18 = sbr.rel (0) target = $region13
  $region12: #{forward.4} parent=0 // pred_region
    _
  $region13: #{forward.4} parent=0 // pred_fallthru
    _
  // Predicated region
  $region14: #{forward.4} parent=0 // pred_check
    _
  $region15: #{forward.4} parent=0 // pred_check_branch
    %20 = sbr.rel (0) target = $region17
  $region16: #{forward.4} parent=0 // pred_region
    _
  $region17: #{forward.4} parent=0 // pred_fallthru
    _
  // Predicated region
  $region18: #{forward.4} parent=0 // pred_check
    _
  $region19: #{forward.4} parent=0 // pred_check_branch
    %22 = sbr.rel (0) target = $region21
  $region20: #{forward.4} parent=0 // pred_region
    _
  $region21: #{forward.4} parent=0 // pred_fallthru
    _
  // Predicated region
  $region22: #{forward.4} parent=0 // pred_check
    _
  $region23: #{forward.4} parent=0 // pred_check_branch
    %24 = sbr.rel (0) target = $region25
  $region24: #{forward.4} parent=0 // pred_region
    _
  $region25: #{forward.4} parent=0 // pred_fallthru
    _
  // Predicated region
  $region26: #{forward.4} parent=0 // pred_check
    _
  $region27: #{forward.4} parent=0 // pred_check_branch
    %26 = sbr.rel (0) target = $region29
  $region28: #{forward.4} parent=0 // pred_region
    _
  $region29: #{forward.4} parent=0 // pred_fallthru
    _
  // Predicated region
  $region30: #{forward.4} parent=0 // pred_check
    _
  $region31: #{forward.4} parent=0 // pred_check_branch
    %28 = sbr.rel (0) target = $region33
  $region32: #{forward.4} parent=0 // pred_region
    _
  $region33: #{forward.4} parent=0 // pred_fallthru
    _
  %v29 = vlaneseq
  %v30 = vand.u32 %v29, 127
  %vm31 = vcmp.lt.s32.totalorder %v30, 0
  %v32 = vsub.s32 0, %v30
  %v33 = vsel %vm31, %v32, %v30
  %v34 = vshrl.u32 %v33, 5
  %v35 = vand.u32 %v33, 31
  %v36 = vsub.s32 0, %v35
  %v37 = vsel %vm31, %v36, %v35
  %vm38 = vcmp.ne.s32.totalorder %v37, 0
  %vm39 = vcmp.lt.s32.totalorder %v37, 0
  %vm40 = vmand %vm39, %vm38
  %v41 = vadd.s32 %v37, 32
  %v42 = vsel %vm40, %v41, %v37
  %vm43 = vcmp.ge.s32.totalorder %v42, 1
  %vm44 = vcmp.le.s32.totalorder %v42, 28
  %vm45 = vmand %vm43, %vm44
  %46 = vst [vmem:[#allocation2] sm:$0x1] 0.0
  %47 = vst [vmem:[#allocation2 + $0x1d] sm:$0x1] 0.0
  %48 = vst [vmem:[#allocation3] sm:$0x1] 0.0
  %49 = vst [vmem:[#allocation3 + $0x1d] sm:$0x1] 0.0
  %50 = vst [vmem:[#allocation4] sm:$0x1] 0.0
  %51 = vst [vmem:[#allocation4 + $0xf] sm:$0x1] 0.0
  %52 = vst [vmem:[#allocation5] sm:$0x1] 0.0
  %53 = vst [vmem:[#allocation5 + $0x8] sm:$0x1] 0.0
  %v54 = vld [vmem:[%s0] sm:$0xff]
  %v55 = vld [vmem:[%s0 + $0x8] sm:$0xff]
  %v56 = vld [vmem:[%s0 + $0x10] sm:$0xff]
  %v57 = vld [vmem:[%s0 + $0x18] sm:$0x3f]
  %58 = vrot.lane.b32.xlu0 %v54, 1
  %v59 = vpop.permute.xlu0 %58
  %60 = vrot.lane.b32.xlu0 %v55, 1
  %v61 = vpop.permute.xlu0 %60
  %62 = vrot.lane.b32.xlu0 %v56, 1
  %v63 = vpop.permute.xlu0 %62
  %64 = vrot.lane.b32.xlu0 %v57, 1
  %v65 = vpop.permute.xlu0 %64
  %66 = vst [vmem:[#allocation6] sm:$0xff] %v59
  %67 = vst [vmem:[#allocation6 + $0x8] sm:$0xff] %v61
  %68 = vst [vmem:[#allocation6 + $0x10] sm:$0xff] %v63
  %69 = vst [vmem:[#allocation6 + $0x18] sm:$0x3f] %v65
  %70 = vrot.lane.b32.xlu0 %v54, 127
  %v71 = vpop.permute.xlu0 %70
  %72 = vrot.lane.b32.xlu0 %v55, 127
  %v73 = vpop.permute.xlu0 %72
  %74 = vrot.lane.b32.xlu0 %v56, 127
  %v75 = vpop.permute.xlu0 %74
  %76 = vrot.lane.b32.xlu0 %v57, 127
  %v77 = vpop.permute.xlu0 %76
  %78 = vst [vmem:[#allocation7] sm:$0xff] %v71
  %79 = vst [vmem:[#allocation7 + $0x8] sm:$0xff] %v73
  %80 = vst [vmem:[#allocation7 + $0x10] sm:$0xff] %v75
  %81 = vst [vmem:[#allocation7 + $0x18] sm:$0x3f] %v77
  %v82 = vld [vmem:[#allocation6] sm:$0xff]
  %v83 = vld [vmem:[#allocation6 + $0x8] sm:$0xff]
  %v84 = vld [vmem:[#allocation6 + $0x10] sm:$0xff]
  %v85 = vld [vmem:[#allocation6 + $0x18] sm:$0xf]
  %v86 = vld [vmem:[%s0] sm:$0xff]
  %v87 = vld [vmem:[%s0 + $0x8] sm:$0xff]
  %v88 = vld [vmem:[%s0 + $0x10] sm:$0xff]
  %v89 = vld [vmem:[%s0 + $0x18] sm:$0xf]
  %v90 = vld [vmem:[#allocation7] sm:$0xff]
  %v91 = vld [vmem:[#allocation7 + $0x8] sm:$0xff]
  %v92 = vld [vmem:[#allocation7 + $0x10] sm:$0xff]
  %v93 = vld [vmem:[#allocation7 + $0x18] sm:$0xf]
  %v94 = vld [vmem:[%s1] sm:$0x1]
  %v95 = vperm.slane %v94, 0
  %v96 = vmul.f32 %v95, %v82
  %v97 = vmul.f32 %v95, %v83
  %v98 = vmul.f32 %v95, %v84
  %v99 = vmul.f32 %v95, %v85
  %v100 = vld [vmem:[%s1 + $0x1] sm:$0x1]
  %v101 = vperm.slane %v100, 0
  %v102 = vmul.f32 %v101, %v86
  %v103 = vmul.f32 %v101, %v87
  %v104 = vmul.f32 %v101, %v88
  %v105 = vmul.f32 %v101, %v89
  %v106 = vadd.f32 %v96, %v102
  %v107 = vadd.f32 %v97, %v103
  %v108 = vadd.f32 %v98, %v104
  %v109 = vadd.f32 %v99, %v105
  %v110 = vld [vmem:[%s1 + $0x2] sm:$0x1]
  %v111 = vperm.slane %v110, 0
  %v112 = vmul.f32 %v111, %v90
  %v113 = vmul.f32 %v111, %v91
  %v114 = vmul.f32 %v111, %v92
  %v115 = vmul.f32 %v111, %v93
  %v116 = vadd.f32 %v106, %v112
  %v117 = vadd.f32 %v107, %v113
  %v118 = vadd.f32 %v108, %v114
  %v119 = vadd.f32 %v109, %v115
  %v120 = vld [vmem:[#allocation6 + $0x1] sm:$0xff]
  %v121 = vld [vmem:[#allocation6 + $0x9] sm:$0xff]
  %v122 = vld [vmem:[#allocation6 + $0x11] sm:$0xff]
  %v123 = vld [vmem:[#allocation6 + $0x19] sm:$0xf]
  %v124 = vld [vmem:[%s0 + $0x1] sm:$0xff]
  %v125 = vld [vmem:[%s0 + $0x9] sm:$0xff]
  %v126 = vld [vmem:[%s0 + $0x11] sm:$0xff]
  %v127 = vld [vmem:[%s0 + $0x19] sm:$0xf]
  %v128 = vld [vmem:[#allocation7 + $0x1] sm:$0xff]
  %v129 = vld [vmem:[#allocation7 + $0x9] sm:$0xff]
  %v130 = vld [vmem:[#allocation7 + $0x11] sm:$0xff]
  %v131 = vld [vmem:[#allocation7 + $0x19] sm:$0xf]
  %v132 = vld [vmem:[%s1 + $0x3] sm:$0x1]
  %v133 = vperm.slane %v132, 0
  %v134 = vmul.f32 %v133, %v120
  %v135 = vmul.f32 %v133, %v121
  %v136 = vmul.f32 %v133, %v122
  %v137 = vmul.f32 %v133, %v123
  %v138 = vadd.f32 %v116, %v134
  %v139 = vadd.f32 %v117, %v135
  %v140 = vadd.f32 %v118, %v136
  %v141 = vadd.f32 %v119, %v137
  %v142 = vld [vmem:[%s1 + $0x4] sm:$0x1]
  %v143 = vperm.slane %v142, 0
  %v144 = vmul.f32 %v143, %v124
  %v145 = vmul.f32 %v143, %v125
  %v146 = vmul.f32 %v143, %v126
  %v147 = vmul.f32 %v143, %v127
  %v148 = vadd.f32 %v138, %v144
  %v149 = vadd.f32 %v139, %v145
  %v150 = vadd.f32 %v140, %v146
  %v151 = vadd.f32 %v141, %v147
  %v152 = vld [vmem:[%s1 + $0x5] sm:$0x1]
  %v153 = vperm.slane %v152, 0
  %v154 = vmul.f32 %v153, %v128
  %v155 = vmul.f32 %v153, %v129
  %v156 = vmul.f32 %v153, %v130
  %v157 = vmul.f32 %v153, %v131
  %v158 = vadd.f32 %v148, %v154
  %v159 = vadd.f32 %v149, %v155
  %v160 = vadd.f32 %v150, %v156
  %v161 = vadd.f32 %v151, %v157
  %v162 = vld [vmem:[#allocation6 + $0x2] sm:$0xff]
  %v163 = vld [vmem:[#allocation6 + $0xa] sm:$0xff]
  %v164 = vld [vmem:[#allocation6 + $0x12] sm:$0xff]
  %v165 = vld [vmem:[#allocation6 + $0x1a] sm:$0xf]
  %v166 = vld [vmem:[%s0 + $0x2] sm:$0xff]
  %v167 = vld [vmem:[%s0 + $0xa] sm:$0xff]
  %v168 = vld [vmem:[%s0 + $0x12] sm:$0xff]
  %v169 = vld [vmem:[%s0 + $0x1a] sm:$0xf]
  %v170 = vld [vmem:[#allocation7 + $0x2] sm:$0xff]
  %v171 = vld [vmem:[#allocation7 + $0xa] sm:$0xff]
  %v172 = vld [vmem:[#allocation7 + $0x12] sm:$0xff]
  %v173 = vld [vmem:[#allocation7 + $0x1a] sm:$0xf]
  %v174 = vld [vmem:[%s1 + $0x6] sm:$0x1]
  %v175 = vperm.slane %v174, 0
  %v176 = vmul.f32 %v175, %v162
  %v177 = vmul.f32 %v175, %v163
  %v178 = vmul.f32 %v175, %v164
  %v179 = vmul.f32 %v175, %v165
  %v180 = vadd.f32 %v158, %v176
  %v181 = vadd.f32 %v159, %v177
  %v182 = vadd.f32 %v160, %v178
  %v183 = vadd.f32 %v161, %v179
  %v184 = vld [vmem:[%s1 + $0x7] sm:$0x1]
  %v185 = vperm.slane %v184, 0
  %v186 = vmul.f32 %v185, %v166
  %v187 = vmul.f32 %v185, %v167
  %v188 = vmul.f32 %v185, %v168
  %v189 = vmul.f32 %v185, %v169
  %v190 = vadd.f32 %v180, %v186
  %v191 = vadd.f32 %v181, %v187
  %v192 = vadd.f32 %v182, %v188
  %v193 = vadd.f32 %v183, %v189
  %v194 = vld [vmem:[%s1 + $0x8] sm:$0x1]
  %v195 = vperm.slane %v194, 0
  %v196 = vmul.f32 %v195, %v170
  %v197 = vmul.f32 %v195, %v171
  %v198 = vmul.f32 %v195, %v172
  %v199 = vmul.f32 %v195, %v173
  %v200 = vadd.f32 %v190, %v196
  %v201 = vadd.f32 %v191, %v197
  %v202 = vadd.f32 %v192, %v198
  %v203 = vadd.f32 %v193, %v199
  %v204 = vld [vmem:[%s1 + $0x9] sm:$0x1]
  %v205 = vperm.slane %v204, 0
  %v206 = vadd.f32 %v200, %v205
  %v207 = vadd.f32 %v201, %v205
  %v208 = vadd.f32 %v202, %v205
  %v209 = vadd.f32 %v203, %v205
  %v210 = vmax.f32 %v206, 0.0
  %v211 = vmax.f32 %v207, 0.0
  %v212 = vmax.f32 %v208, 0.0
  %v213 = vmax.f32 %v209, 0.0
  %v214 = vsel %vm45, 1, 0
  %vm215 = vcmp.eq.s32.totalorder %v214, 1
  %v216 = vsel %vm215, %v210, 0.0
  %v217 = vsel %vm215, %v211, 0.0
  %v218 = vsel %vm215, %v212, 0.0
  %v219 = vsel %vm215, %v213, 0.0
  %220 = vst [vmem:[#allocation2 + $0x1] sm:$0xff] %v216
  %221 = vst [vmem:[#allocation2 + $0x9] sm:$0xff] %v217
  %222 = vst [vmem:[#allocation2 + $0x11] sm:$0xff] %v218
  %223 = vst [vmem:[#allocation2 + $0x19] sm:$0xf] %v219
  %v224 = vld [vmem:[#allocation2] sm:$0xff]
  %v225 = vld [vmem:[#allocation2 + $0x8] sm:$0xff]
  %v226 = vld [vmem:[#allocation2 + $0x10] sm:$0xff]
  %v227 = vld [vmem:[#allocation2 + $0x18] sm:$0x3f]
  %228 = vrot.lane.b32.xlu0 %v224, 1
  %v229 = vpop.permute.xlu0 %228
  %230 = vrot.lane.b32.xlu0 %v225, 1
  %v231 = vpop.permute.xlu0 %230
  %232 = vrot.lane.b32.xlu0 %v226, 1
  %v233 = vpop.permute.xlu0 %232
  %234 = vrot.lane.b32.xlu0 %v227, 1
  %v235 = vpop.permute.xlu0 %234
  %236 = vst [vmem:[#allocation6] sm:$0xff] %v229
  %237 = vst [vmem:[#allocation6 + $0x8] sm:$0xff] %v231
  %238 = vst [vmem:[#allocation6 + $0x10] sm:$0xff] %v233
  %239 = vst [vmem:[#allocation6 + $0x18] sm:$0x3f] %v235
  %240 = vrot.lane.b32.xlu0 %v224, 127
  %v241 = vpop.permute.xlu0 %240
  %242 = vrot.lane.b32.xlu0 %v225, 127
  %v243 = vpop.permute.xlu0 %242
  %244 = vrot.lane.b32.xlu0 %v226, 127
  %v245 = vpop.permute.xlu0 %244
  %246 = vrot.lane.b32.xlu0 %v227, 127
  %v247 = vpop.permute.xlu0 %246
  %248 = vst [vmem:[#allocation7] sm:$0xff] %v241
  %249 = vst [vmem:[#allocation7 + $0x8] sm:$0xff] %v243
  %250 = vst [vmem:[#allocation7 + $0x10] sm:$0xff] %v245
  %251 = vst [vmem:[#allocation7 + $0x18] sm:$0x3f] %v247
  %v252 = vld [vmem:[#allocation6] sm:$0xff]
  %v253 = vld [vmem:[#allocation6 + $0x8] sm:$0xff]
  %v254 = vld [vmem:[#allocation6 + $0x10] sm:$0xff]
  %v255 = vld [vmem:[#allocation6 + $0x18] sm:$0xf]
  %v256 = vld [vmem:[#allocation2] sm:$0xff]
  %v257 = vld [vmem:[#allocation2 + $0x8] sm:$0xff]
  %v258 = vld [vmem:[#allocation2 + $0x10] sm:$0xff]
  %v259 = vld [vmem:[#allocation2 + $0x18] sm:$0xf]
  %v260 = vld [vmem:[#allocation7] sm:$0xff]
  %v261 = vld [vmem:[#allocation7 + $0x8] sm:$0xff]
  %v262 = vld [vmem:[#allocation7 + $0x10] sm:$0xff]
  %v263 = vld [vmem:[#allocation7 + $0x18] sm:$0xf]
  %v264 = vld [vmem:[%s1 + $0xa] sm:$0x1]
  %v265 = vperm.slane %v264, 0
  %v266 = vmul.f32 %v265, %v252
  %v267 = vmul.f32 %v265, %v253
  %v268 = vmul.f32 %v265, %v254
  %v269 = vmul.f32 %v265, %v255
  %v270 = vld [vmem:[%s1 + $0xb] sm:$0x1]
  %v271 = vperm.slane %v270, 0
  %v272 = vmul.f32 %v271, %v256
  %v273 = vmul.f32 %v271, %v257
  %v274 = vmul.f32 %v271, %v258
  %v275 = vmul.f32 %v271, %v259
  %v276 = vadd.f32 %v266, %v272
  %v277 = vadd.f32 %v267, %v273
  %v278 = vadd.f32 %v268, %v274
  %v279 = vadd.f32 %v269, %v275
  %v280 = vld [vmem:[%s1 + $0xc] sm:$0x1]
  %v281 = vperm.slane %v280, 0
  %v282 = vmul.f32 %v281, %v260
  %v283 = vmul.f32 %v281, %v261
  %v284 = vmul.f32 %v281, %v262
  %v285 = vmul.f32 %v281, %v263
  %v286 = vadd.f32 %v276, %v282
  %v287 = vadd.f32 %v277, %v283
  %v288 = vadd.f32 %v278, %v284
  %v289 = vadd.f32 %v279, %v285
  %v290 = vld [vmem:[#allocation6 + $0x1] sm:$0xff]
  %v291 = vld [vmem:[#allocation6 + $0x9] sm:$0xff]
  %v292 = vld [vmem:[#allocation6 + $0x11] sm:$0xff]
  %v293 = vld [vmem:[#allocation6 + $0x19] sm:$0xf]
  %v294 = vld [vmem:[#allocation2 + $0x1] sm:$0xff]
  %v295 = vld [vmem:[#allocation2 + $0x9] sm:$0xff]
  %v296 = vld [vmem:[#allocation2 + $0x11] sm:$0xff]
  %v297 = vld [vmem:[#allocation2 + $0x19] sm:$0xf]
  %v298 = vld [vmem:[#allocation7 + $0x1] sm:$0xff]
  %v299 = vld [vmem:[#allocation7 + $0x9] sm:$0xff]
  %v300 = vld [vmem:[#allocation7 + $0x11] sm:$0xff]
  %v301 = vld [vmem:[#allocation7 + $0x19] sm:$0xf]
  %v302 = vld [vmem:[%s1 + $0xd] sm:$0x1]
  %v303 = vperm.slane %v302, 0
  %v304 = vmul.f32 %v303, %v290
  %v305 = vmul.f32 %v303, %v291
  %v306 = vmul.f32 %v303, %v292
  %v307 = vmul.f32 %v303, %v293
  %v308 = vadd.f32 %v286, %v304
  %v309 = vadd.f32 %v287, %v305
  %v310 = vadd.f32 %v288, %v306
  %v311 = vadd.f32 %v289, %v307
  %v312 = vld [vmem:[%s1 + $0xe] sm:$0x1]
  %v313 = vperm.slane %v312, 0
  %v314 = vmul.f32 %v313, %v294
  %v315 = vmul.f32 %v313, %v295
  %v316 = vmul.f32 %v313, %v296
  %v317 = vmul.f32 %v313, %v297
  %v318 = vadd.f32 %v308, %v314
  %v319 = vadd.f32 %v309, %v315
  %v320 = vadd.f32 %v310, %v316
  %v321 = vadd.f32 %v311, %v317
  %v322 = vld [vmem:[%s1 + $0xf] sm:$0x1]
  %v323 = vperm.slane %v322, 0
  %v324 = vmul.f32 %v323, %v298
  %v325 = vmul.f32 %v323, %v299
  %v326 = vmul.f32 %v323, %v300
  %v327 = vmul.f32 %v323, %v301
  %v328 = vadd.f32 %v318, %v324
  %v329 = vadd.f32 %v319, %v325
  %v330 = vadd.f32 %v320, %v326
  %v331 = vadd.f32 %v321, %v327
  %v332 = vld [vmem:[#allocation6 + $0x2] sm:$0xff]
  %v333 = vld [vmem:[#allocation6 + $0xa] sm:$0xff]
  %v334 = vld [vmem:[#allocation6 + $0x12] sm:$0xff]
  %v335 = vld [vmem:[#allocation6 + $0x1a] sm:$0xf]
  %v336 = vld [vmem:[#allocation2 + $0x2] sm:$0xff]
  %v337 = vld [vmem:[#allocation2 + $0xa] sm:$0xff]
  %v338 = vld [vmem:[#allocation2 + $0x12] sm:$0xff]
  %v339 = vld [vmem:[#allocation2 + $0x1a] sm:$0xf]
  %v340 = vld [vmem:[#allocation7 + $0x2] sm:$0xff]
  %v341 = vld [vmem:[#allocation7 + $0xa] sm:$0xff]
  %v342 = vld [vmem:[#allocation7 + $0x12] sm:$0xff]
  %v343 = vld [vmem:[#allocation7 + $0x1a] sm:$0xf]
  %v344 = vld [vmem:[%s1 + $0x10] sm:$0x1]
  %v345 = vperm.slane %v344, 0
  %v346 = vmul.f32 %v345, %v332
  %v347 = vmul.f32 %v345, %v333
  %v348 = vmul.f32 %v345, %v334
  %v349 = vmul.f32 %v345, %v335
  %v350 = vadd.f32 %v328, %v346
  %v351 = vadd.f32 %v329, %v347
  %v352 = vadd.f32 %v330, %v348
  %v353 = vadd.f32 %v331, %v349
  %v354 = vld [vmem:[%s1 + $0x11] sm:$0x1]
  %v355 = vperm.slane %v354, 0
  %v356 = vmul.f32 %v355, %v336
  %v357 = vmul.f32 %v355, %v337
  %v358 = vmul.f32 %v355, %v338
  %v359 = vmul.f32 %v355, %v339
  %v360 = vadd.f32 %v350, %v356
  %v361 = vadd.f32 %v351, %v357
  %v362 = vadd.f32 %v352, %v358
  %v363 = vadd.f32 %v353, %v359
  %v364 = vld [vmem:[%s1 + $0x12] sm:$0x1]
  %v365 = vperm.slane %v364, 0
  %v366 = vmul.f32 %v365, %v340
  %v367 = vmul.f32 %v365, %v341
  %v368 = vmul.f32 %v365, %v342
  %v369 = vmul.f32 %v365, %v343
  %v370 = vadd.f32 %v360, %v366
  %v371 = vadd.f32 %v361, %v367
  %v372 = vadd.f32 %v362, %v368
  %v373 = vadd.f32 %v363, %v369
  %v374 = vld [vmem:[%s1 + $0x13] sm:$0x1]
  %v375 = vperm.slane %v374, 0
  %v376 = vadd.f32 %v370, %v375
  %v377 = vadd.f32 %v371, %v375
  %v378 = vadd.f32 %v372, %v375
  %v379 = vadd.f32 %v373, %v375
  %v380 = vmax.f32 %v376, 0.0
  %v381 = vmax.f32 %v377, 0.0
  %v382 = vmax.f32 %v378, 0.0
  %v383 = vmax.f32 %v379, 0.0
  %v384 = vsel %vm215, %v380, 0.0
  %v385 = vsel %vm215, %v381, 0.0
  %v386 = vsel %vm215, %v382, 0.0
  %v387 = vsel %vm215, %v383, 0.0
  %388 = vst [vmem:[#allocation3 + $0x1] sm:$0xff] %v384
  %389 = vst [vmem:[#allocation3 + $0x9] sm:$0xff] %v385
  %390 = vst [vmem:[#allocation3 + $0x11] sm:$0xff] %v386
  %391 = vst [vmem:[#allocation3 + $0x19] sm:$0xf] %v387
  %v392 = vld [vmem:[#allocation3] sm:$0xff]
  %v393 = vld [vmem:[#allocation3 + $0x8] sm:$0xff]
  %v394 = vld [vmem:[#allocation3 + $0x10] sm:$0xff]
  %v395 = vld [vmem:[#allocation3 + $0x18] sm:$0x3f]
  %396 = vrot.lane.b32.xlu0 %v392, 1
  %v397 = vpop.permute.xlu0 %396
  %398 = vrot.lane.b32.xlu0 %v393, 1
  %v399 = vpop.permute.xlu0 %398
  %400 = vrot.lane.b32.xlu0 %v394, 1
  %v401 = vpop.permute.xlu0 %400
  %402 = vrot.lane.b32.xlu0 %v395, 1
  %v403 = vpop.permute.xlu0 %402
  %404 = vst [vmem:[#allocation6] sm:$0xff] %v397
  %405 = vst [vmem:[#allocation6 + $0x8] sm:$0xff] %v399
  %406 = vst [vmem:[#allocation6 + $0x10] sm:$0xff] %v401
  %407 = vst [vmem:[#allocation6 + $0x18] sm:$0x3f] %v403
  %408 = vrot.lane.b32.xlu0 %v392, 127
  %v409 = vpop.permute.xlu0 %408
  %410 = vrot.lane.b32.xlu0 %v393, 127
  %v411 = vpop.permute.xlu0 %410
  %412 = vrot.lane.b32.xlu0 %v394, 127
  %v413 = vpop.permute.xlu0 %412
  %414 = vrot.lane.b32.xlu0 %v395, 127
  %v415 = vpop.permute.xlu0 %414
  %416 = vst [vmem:[#allocation7] sm:$0xff] %v409
  %417 = vst [vmem:[#allocation7 + $0x8] sm:$0xff] %v411
  %418 = vst [vmem:[#allocation7 + $0x10] sm:$0xff] %v413
  %419 = vst [vmem:[#allocation7 + $0x18] sm:$0x3f] %v415
  %v420 = vld [vmem:[#allocation6] sm:$0xff]
  %v421 = vld [vmem:[#allocation6 + $0x8] sm:$0xff]
  %v422 = vld [vmem:[#allocation6 + $0x10] sm:$0xff]
  %v423 = vld [vmem:[#allocation6 + $0x18] sm:$0xf]
  %v424 = vld [vmem:[#allocation3] sm:$0xff]
  %v425 = vld [vmem:[#allocation3 + $0x8] sm:$0xff]
  %v426 = vld [vmem:[#allocation3 + $0x10] sm:$0xff]
  %v427 = vld [vmem:[#allocation3 + $0x18] sm:$0xf]
  %v428 = vld [vmem:[#allocation7] sm:$0xff]
  %v429 = vld [vmem:[#allocation7 + $0x8] sm:$0xff]
  %v430 = vld [vmem:[#allocation7 + $0x10] sm:$0xff]
  %v431 = vld [vmem:[#allocation7 + $0x18] sm:$0xf]
  %v432 = vld [vmem:[%s1 + $0x14] sm:$0x1]
  %v433 = vperm.slane %v432, 0
  %v434 = vmul.f32 %v433, %v420
  %v435 = vmul.f32 %v433, %v421
  %v436 = vmul.f32 %v433, %v422
  %v437 = vmul.f32 %v433, %v423
  %v438 = vld [vmem:[%s1 + $0x15] sm:$0x1]
  %v439 = vperm.slane %v438, 0
  %v440 = vmul.f32 %v439, %v424
  %v441 = vmul.f32 %v439, %v425
  %v442 = vmul.f32 %v439, %v426
  %v443 = vmul.f32 %v439, %v427
  %v444 = vadd.f32 %v434, %v440
  %v445 = vadd.f32 %v435, %v441
  %v446 = vadd.f32 %v436, %v442
  %v447 = vadd.f32 %v437, %v443
  %v448 = vld [vmem:[%s1 + $0x16] sm:$0x1]
  %v449 = vperm.slane %v448, 0
  %v450 = vmul.f32 %v449, %v428
  %v451 = vmul.f32 %v449, %v429
  %v452 = vmul.f32 %v449, %v430
  %v453 = vmul.f32 %v449, %v431
  %v454 = vadd.f32 %v444, %v450
  %v455 = vadd.f32 %v445, %v451
  %v456 = vadd.f32 %v446, %v452
  %v457 = vadd.f32 %v447, %v453
  %v458 = vld [vmem:[#allocation6 + $0x1] sm:$0xff]
  %v459 = vld [vmem:[#allocation6 + $0x9] sm:$0xff]
  %v460 = vld [vmem:[#allocation6 + $0x11] sm:$0xff]
  %v461 = vld [vmem:[#allocation6 + $0x19] sm:$0xf]
  %v462 = vld [vmem:[#allocation3 + $0x1] sm:$0xff]
  %v463 = vld [vmem:[#allocation3 + $0x9] sm:$0xff]
  %v464 = vld [vmem:[#allocation3 + $0x11] sm:$0xff]
  %v465 = vld [vmem:[#allocation3 + $0x19] sm:$0xf]
  %v466 = vld [vmem:[#allocation7 + $0x1] sm:$0xff]
  %v467 = vld [vmem:[#allocation7 + $0x9] sm:$0xff]
  %v468 = vld [vmem:[#allocation7 + $0x11] sm:$0xff]
  %v469 = vld [vmem:[#allocation7 + $0x19] sm:$0xf]
  %v470 = vld [vmem:[%s1 + $0x17] sm:$0x1]
  %v471 = vperm.slane %v470, 0
  %v472 = vmul.f32 %v471, %v458
  %v473 = vmul.f32 %v471, %v459
  %v474 = vmul.f32 %v471, %v460
  %v475 = vmul.f32 %v471, %v461
  %v476 = vadd.f32 %v454, %v472
  %v477 = vadd.f32 %v455, %v473
  %v478 = vadd.f32 %v456, %v474
  %v479 = vadd.f32 %v457, %v475
  %v480 = vld [vmem:[%s1 + $0x18] sm:$0x1]
  %v481 = vperm.slane %v480, 0
  %v482 = vmul.f32 %v481, %v462
  %v483 = vmul.f32 %v481, %v463
  %v484 = vmul.f32 %v481, %v464
  %v485 = vmul.f32 %v481, %v465
  %v486 = vadd.f32 %v476, %v482
  %v487 = vadd.f32 %v477, %v483
  %v488 = vadd.f32 %v478, %v484
  %v489 = vadd.f32 %v479, %v485
  %v490 = vld [vmem:[%s1 + $0x19] sm:$0x1]
  %v491 = vperm.slane %v490, 0
  %v492 = vmul.f32 %v491, %v466
  %v493 = vmul.f32 %v491, %v467
  %v494 = vmul.f32 %v491, %v468
  %v495 = vmul.f32 %v491, %v469
  %v496 = vadd.f32 %v486, %v492
  %v497 = vadd.f32 %v487, %v493
  %v498 = vadd.f32 %v488, %v494
  %v499 = vadd.f32 %v489, %v495
  %v500 = vld [vmem:[#allocation6 + $0x2] sm:$0xff]
  %v501 = vld [vmem:[#allocation6 + $0xa] sm:$0xff]
  %v502 = vld [vmem:[#allocation6 + $0x12] sm:$0xff]
  %v503 = vld [vmem:[#allocation6 + $0x1a] sm:$0xf]
  %v504 = vld [vmem:[#allocation3 + $0x2] sm:$0xff]
  %v505 = vld [vmem:[#allocation3 + $0xa] sm:$0xff]
  %v506 = vld [vmem:[#allocation3 + $0x12] sm:$0xff]
  %v507 = vld [vmem:[#allocation3 + $0x1a] sm:$0xf]
  %v508 = vld [vmem:[#allocation7 + $0x2] sm:$0xff]
  %v509 = vld [vmem:[#allocation7 + $0xa] sm:$0xff]
  %v510 = vld [vmem:[#allocation7 + $0x12] sm:$0xff]
  %v511 = vld [vmem:[#allocation7 + $0x1a] sm:$0xf]
  %v512 = vld [vmem:[%s1 + $0x1a] sm:$0x1]
  %v513 = vperm.slane %v512, 0
  %v514 = vmul.f32 %v513, %v500
  %v515 = vmul.f32 %v513, %v501
  %v516 = vmul.f32 %v513, %v502
  %v517 = vmul.f32 %v513, %v503
  %v518 = vadd.f32 %v496, %v514
  %v519 = vadd.f32 %v497, %v515
  %v520 = vadd.f32 %v498, %v516
  %v521 = vadd.f32 %v499, %v517
  %v522 = vld [vmem:[%s1 + $0x1b] sm:$0x1]
  %v523 = vperm.slane %v522, 0
  %v524 = vmul.f32 %v523, %v504
  %v525 = vmul.f32 %v523, %v505
  %v526 = vmul.f32 %v523, %v506
  %v527 = vmul.f32 %v523, %v507
  %v528 = vadd.f32 %v518, %v524
  %v529 = vadd.f32 %v519, %v525
  %v530 = vadd.f32 %v520, %v526
  %v531 = vadd.f32 %v521, %v527
  %v532 = vld [vmem:[%s1 + $0x1c] sm:$0x1]
  %v533 = vperm.slane %v532, 0
  %v534 = vmul.f32 %v533, %v508
  %v535 = vmul.f32 %v533, %v509
  %v536 = vmul.f32 %v533, %v510
  %v537 = vmul.f32 %v533, %v511
  %v538 = vadd.f32 %v528, %v534
  %v539 = vadd.f32 %v529, %v535
  %v540 = vadd.f32 %v530, %v536
  %v541 = vadd.f32 %v531, %v537
  %v542 = vld [vmem:[%s1 + $0x1d] sm:$0x1]
  %v543 = vperm.slane %v542, 0
  %v544 = vadd.f32 %v538, %v543
  %v545 = vadd.f32 %v539, %v543
  %v546 = vadd.f32 %v540, %v543
  %v547 = vadd.f32 %v541, %v543
  %v548 = vmax.f32 %v544, 0.0
  %v549 = vmax.f32 %v545, 0.0
  %v550 = vmax.f32 %v546, 0.0
  %v551 = vmax.f32 %v547, 0.0
  %v552 = vld [vmem:[%s2] sm:$0xff]
  %v553 = vld [vmem:[%s2 + $0x8] sm:$0x3f]
  %vm554 = vcmask 228352
  %v556 = vsel %vm554, %v552, 0
  %v559 = vsel %vm554, %v553, 0
  %vm561 = vcmask 1043456
  %v563 = vsel %vm561, %v551, 0
  %565 = vmatpush.msra.mxu0 0.0
  %566 = vmatpush.msra.mxu0 0.0
  %567 = vmatpush.msra.mxu0 0.0
  %568 = vmatpush.msra.mxu0 0.0
  %569 = vmatpush.msra.mxu0 0.0
  %570 = vmatpush.msra.mxu0 0.0
  %571 = vmatpush.msra.mxu0 0.0
  %572 = vmatpush.msra.mxu0 0.0
  %573 = vmatpush.msra.mxu0 0.0
  %574 = vmatpush.msra.mxu0 0.0
  %575 = vmatpush.msra.mxu0 0.0
  %576 = vmatpush.msra.mxu0 0.0
  %v577 = vand.u32 %v563, 4294901760
  %578 = vmatpush.msra.mxu0 %v577
  %v579 = vand.u32 %v550, 4294901760
  %580 = vmatpush.msra.mxu0 %v579
  %v581 = vand.u32 %v549, 4294901760
  %582 = vmatpush.msra.mxu0 %v581
  %v583 = vand.u32 %v548, 4294901760
  %584 = vmatpush.msra.mxu0 %v583
  %v585 = vand.u32 %v556, 4294901760
  %v586 = vsub.f32 %v556, %v585
  %v587 = vand.u32 %v586, 4294901760
  %v588 = vsub.f32 %v586, %v587
  %v589 = vand.u32 %v588, 4294901760
  %590 = vmatmul.f32.gmra.mxu0 %v589
  %v591 = vpop.f32.mrf.mxu0
  %v592 = vadd.f32 0.0, %v591
  %v593 = vand.u32 %v559, 4294901760
  %v594 = vsub.f32 %v559, %v593
  %v595 = vand.u32 %v594, 4294901760
  %v596 = vsub.f32 %v594, %v595
  %v597 = vand.u32 %v596, 4294901760
  %598 = vmatmul.f32.gmra.mxu0 %v597
  %v599 = vpop.f32.mrf.mxu0
  %v600 = vadd.f32 0.0, %v599
  %601 = vdwg.mxu0
  %602 = vmatpush.msra.mxu0 0.0
  %603 = vmatpush.msra.mxu0 0.0
  %604 = vmatpush.msra.mxu0 0.0
  %605 = vmatpush.msra.mxu0 0.0
  %606 = vmatpush.msra.mxu0 0.0
  %607 = vmatpush.msra.mxu0 0.0
  %608 = vmatpush.msra.mxu0 0.0
  %609 = vmatpush.msra.mxu0 0.0
  %610 = vmatpush.msra.mxu0 0.0
  %611 = vmatpush.msra.mxu0 0.0
  %612 = vmatpush.msra.mxu0 0.0
  %613 = vmatpush.msra.mxu0 0.0
  %v614 = vand.u32 %v563, 4294901760
  %v615 = vsub.f32 %v563, %v614
  %v616 = vand.u32 %v615, 4294901760
  %v617 = vsub.f32 %v615, %v616
  %v618 = vand.u32 %v617, 4294901760
  %619 = vmatpush.msra.mxu0 %v618
  %v620 = vand.u32 %v550, 4294901760
  %v621 = vsub.f32 %v550, %v620
  %v622 = vand.u32 %v621, 4294901760
  %v623 = vsub.f32 %v621, %v622
  %v624 = vand.u32 %v623, 4294901760
  %625 = vmatpush.msra.mxu0 %v624
  %v626 = vand.u32 %v549, 4294901760
  %v627 = vsub.f32 %v549, %v626
  %v628 = vand.u32 %v627, 4294901760
  %v629 = vsub.f32 %v627, %v628
  %v630 = vand.u32 %v629, 4294901760
  %631 = vmatpush.msra.mxu0 %v630
  %v632 = vand.u32 %v548, 4294901760
  %v633 = vsub.f32 %v548, %v632
  %v634 = vand.u32 %v633, 4294901760
  %v635 = vsub.f32 %v633, %v634
  %v636 = vand.u32 %v635, 4294901760
  %637 = vmatpush.msra.mxu0 %v636
  %v638 = vand.u32 %v556, 4294901760
  %639 = vmatmul.f32.gmra.mxu0 %v638
  %v640 = vpop.f32.mrf.mxu0
  %v641 = vadd.f32 %v592, %v640
  %v642 = vand.u32 %v559, 4294901760
  %643 = vmatmul.f32.gmra.mxu0 %v642
  %v644 = vpop.f32.mrf.mxu0
  %v645 = vadd.f32 %v600, %v644
  %646 = vdwg.mxu0
  %647 = vmatpush.msra.mxu0 0.0
  %648 = vmatpush.msra.mxu0 0.0
  %649 = vmatpush.msra.mxu0 0.0
  %650 = vmatpush.msra.mxu0 0.0
  %651 = vmatpush.msra.mxu0 0.0
  %652 = vmatpush.msra.mxu0 0.0
  %653 = vmatpush.msra.mxu0 0.0
  %654 = vmatpush.msra.mxu0 0.0
  %655 = vmatpush.msra.mxu0 0.0
  %656 = vmatpush.msra.mxu0 0.0
  %657 = vmatpush.msra.mxu0 0.0
  %658 = vmatpush.msra.mxu0 0.0
  %v659 = vand.u32 %v563, 4294901760
  %v660 = vsub.f32 %v563, %v659
  %661 = vmatpush.msra.mxu0 %v660
  %v662 = vand.u32 %v550, 4294901760
  %v663 = vsub.f32 %v550, %v662
  %664 = vmatpush.msra.mxu0 %v663
  %v665 = vand.u32 %v549, 4294901760
  %v666 = vsub.f32 %v549, %v665
  %667 = vmatpush.msra.mxu0 %v666
  %v668 = vand.u32 %v548, 4294901760
  %v669 = vsub.f32 %v548, %v668
  %670 = vmatpush.msra.mxu0 %v669
  %v671 = vand.u32 %v556, 4294901760
  %v672 = vsub.f32 %v556, %v671
  %673 = vmatmul.f32.gmra.mxu0 %v672
  %v674 = vpop.f32.mrf.mxu0
  %v675 = vadd.f32 %v641, %v674
  %v676 = vand.u32 %v559, 4294901760
  %v677 = vsub.f32 %v559, %v676
  %678 = vmatmul.f32.gmra.mxu0 %v677
  %v679 = vpop.f32.mrf.mxu0
  %v680 = vadd.f32 %v645, %v679
  %681 = vdwg.mxu0
  %682 = vmatpush.msra.mxu0 0.0
  %683 = vmatpush.msra.mxu0 0.0
  %684 = vmatpush.msra.mxu0 0.0
  %685 = vmatpush.msra.mxu0 0.0
  %686 = vmatpush.msra.mxu0 0.0
  %687 = vmatpush.msra.mxu0 0.0
  %688 = vmatpush.msra.mxu0 0.0
  %689 = vmatpush.msra.mxu0 0.0
  %690 = vmatpush.msra.mxu0 0.0
  %691 = vmatpush.msra.mxu0 0.0
  %692 = vmatpush.msra.mxu0 0.0
  %693 = vmatpush.msra.mxu0 0.0
  %v694 = vand.u32 %v563, 4294901760
  %695 = vmatpush.msra.mxu0 %v694
  %v696 = vand.u32 %v550, 4294901760
  %697 = vmatpush.msra.mxu0 %v696
  %v698 = vand.u32 %v549, 4294901760
  %699 = vmatpush.msra.mxu0 %v698
  %v700 = vand.u32 %v548, 4294901760
  %701 = vmatpush.msra.mxu0 %v700
  %v702 = vand.u32 %v556, 4294901760
  %v703 = vsub.f32 %v556, %v702
  %v704 = vand.u32 %v703, 4294901760
  %705 = vmatmul.f32.gmra.mxu0 %v704
  %v706 = vpop.f32.mrf.mxu0
  %v707 = vadd.f32 %v675, %v706
  %v708 = vand.u32 %v559, 4294901760
  %v709 = vsub.f32 %v559, %v708
  %v710 = vand.u32 %v709, 4294901760
  %711 = vmatmul.f32.gmra.mxu0 %v710
  %v712 = vpop.f32.mrf.mxu0
  %v713 = vadd.f32 %v680, %v712
  %714 = vdwg.mxu0
  %715 = vmatpush.msra.mxu0 0.0
  %716 = vmatpush.msra.mxu0 0.0
  %717 = vmatpush.msra.mxu0 0.0
  %718 = vmatpush.msra.mxu0 0.0
  %719 = vmatpush.msra.mxu0 0.0
  %720 = vmatpush.msra.mxu0 0.0
  %721 = vmatpush.msra.mxu0 0.0
  %722 = vmatpush.msra.mxu0 0.0
  %723 = vmatpush.msra.mxu0 0.0
  %724 = vmatpush.msra.mxu0 0.0
  %725 = vmatpush.msra.mxu0 0.0
  %726 = vmatpush.msra.mxu0 0.0
  %v727 = vand.u32 %v563, 4294901760
  %v728 = vsub.f32 %v563, %v727
  %v729 = vand.u32 %v728, 4294901760
  %730 = vmatpush.msra.mxu0 %v729
  %v731 = vand.u32 %v550, 4294901760
  %v732 = vsub.f32 %v550, %v731
  %v733 = vand.u32 %v732, 4294901760
  %734 = vmatpush.msra.mxu0 %v733
  %v735 = vand.u32 %v549, 4294901760
  %v736 = vsub.f32 %v549, %v735
  %v737 = vand.u32 %v736, 4294901760
  %738 = vmatpush.msra.mxu0 %v737
  %v739 = vand.u32 %v548, 4294901760
  %v740 = vsub.f32 %v548, %v739
  %v741 = vand.u32 %v740, 4294901760
  %742 = vmatpush.msra.mxu0 %v741
  %v743 = vand.u32 %v556, 4294901760
  %744 = vmatmul.f32.gmra.mxu0 %v743
  %v745 = vpop.f32.mrf.mxu0
  %v746 = vadd.f32 %v707, %v745
  %v747 = vand.u32 %v559, 4294901760
  %748 = vmatmul.f32.gmra.mxu0 %v747
  %v749 = vpop.f32.mrf.mxu0
  %v750 = vadd.f32 %v713, %v749
  %751 = vdwg.mxu0
  %752 = vmatpush.msra.mxu0 0.0
  %753 = vmatpush.msra.mxu0 0.0
  %754 = vmatpush.msra.mxu0 0.0
  %755 = vmatpush.msra.mxu0 0.0
  %756 = vmatpush.msra.mxu0 0.0
  %757 = vmatpush.msra.mxu0 0.0
  %758 = vmatpush.msra.mxu0 0.0
  %759 = vmatpush.msra.mxu0 0.0
  %760 = vmatpush.msra.mxu0 0.0
  %761 = vmatpush.msra.mxu0 0.0
  %762 = vmatpush.msra.mxu0 0.0
  %763 = vmatpush.msra.mxu0 0.0
  %v764 = vand.u32 %v563, 4294901760
  %765 = vmatpush.msra.mxu0 %v764
  %v766 = vand.u32 %v550, 4294901760
  %767 = vmatpush.msra.mxu0 %v766
  %v768 = vand.u32 %v549, 4294901760
  %769 = vmatpush.msra.mxu0 %v768
  %v770 = vand.u32 %v548, 4294901760
  %771 = vmatpush.msra.mxu0 %v770
  %v772 = vand.u32 %v556, 4294901760
  %773 = vmatmul.f32.gmra.mxu0 %v772
  %v774 = vpop.f32.mrf.mxu0
  %v775 = vadd.f32 %v746, %v774
  %v776 = vand.u32 %v559, 4294901760
  %777 = vmatmul.f32.gmra.mxu0 %v776
  %v778 = vpop.f32.mrf.mxu0
  %v779 = vadd.f32 %v750, %v778
  %780 = vdwg.mxu0
  %v781 = vld [vmem:[%s3] sm:$0xff]
  %v782 = vld [vmem:[%s3 + $0x8] sm:$0xff]
  %v783 = vld [vmem:[%s3 + $0x10] sm:$0xff]
  %v784 = vld [vmem:[%s3 + $0x18] sm:$0xff]
  %v785 = vld [vmem:[%s3 + $0x20] sm:$0xff]
  %v786 = vld [vmem:[%s3 + $0x28] sm:$0xff]
  %v787 = vld [vmem:[%s3 + $0x30] sm:$0xff]
  %v788 = vld [vmem:[%s3 + $0x38] sm:$0xff]
  %v789 = vld [vmem:[%s3 + $0x40] sm:$0xff]
  %v790 = vld [vmem:[%s3 + $0x48] sm:$0xff]
  %v791 = vld [vmem:[%s3 + $0x50] sm:$0xff]
  %v792 = vld [vmem:[%s3 + $0x58] sm:$0xff]
  %v793 = vld [vmem:[%s3 + $0x60] sm:$0xff]
  %v794 = vld [vmem:[%s3 + $0x68] sm:$0xff]
  %v795 = vld [vmem:[%s3 + $0x70] sm:$0xff]
  %v796 = vld [vmem:[%s3 + $0x78] sm:$0xff]
  %v797 = vand.u32 %v796, 4294901760
  %798 = vmatpush.msra.mxu0 %v797
  %v799 = vand.u32 %v795, 4294901760
  %800 = vmatpush.msra.mxu0 %v799
  %v801 = vand.u32 %v794, 4294901760
  %802 = vmatpush.msra.mxu0 %v801
  %v803 = vand.u32 %v793, 4294901760
  %804 = vmatpush.msra.mxu0 %v803
  %v805 = vand.u32 %v792, 4294901760
  %806 = vmatpush.msra.mxu0 %v805
  %v807 = vand.u32 %v791, 4294901760
  %808 = vmatpush.msra.mxu0 %v807
  %v809 = vand.u32 %v790, 4294901760
  %810 = vmatpush.msra.mxu0 %v809
  %v811 = vand.u32 %v789, 4294901760
  %812 = vmatpush.msra.mxu0 %v811
  %v813 = vand.u32 %v788, 4294901760
  %814 = vmatpush.msra.mxu0 %v813
  %v815 = vand.u32 %v787, 4294901760
  %816 = vmatpush.msra.mxu0 %v815
  %v817 = vand.u32 %v786, 4294901760
  %818 = vmatpush.msra.mxu0 %v817
  %v819 = vand.u32 %v785, 4294901760
  %820 = vmatpush.msra.mxu0 %v819
  %v821 = vand.u32 %v784, 4294901760
  %822 = vmatpush.msra.mxu0 %v821
  %v823 = vand.u32 %v783, 4294901760
  %824 = vmatpush.msra.mxu0 %v823
  %v825 = vand.u32 %v782, 4294901760
  %826 = vmatpush.msra.mxu0 %v825
  %v827 = vand.u32 %v781, 4294901760
  %828 = vmatpush.msra.mxu0 %v827
  %v829 = vand.u32 %v775, 4294901760
  %v830 = vsub.f32 %v775, %v829
  %v831 = vand.u32 %v830, 4294901760
  %v832 = vsub.f32 %v830, %v831
  %v833 = vand.u32 %v832, 4294901760
  %834 = vmatmul.f32.gmra.mxu0 %v833
  %v835 = vpop.f32.mrf.mxu0
  %v836 = vadd.f32 0.0, %v835
  %v837 = vand.u32 %v779, 4294901760
  %v838 = vsub.f32 %v779, %v837
  %v839 = vand.u32 %v838, 4294901760
  %v840 = vsub.f32 %v838, %v839
  %v841 = vand.u32 %v840, 4294901760
  %842 = vmatmul.f32.gmra.mxu0 %v841
  %v843 = vpop.f32.mrf.mxu0
  %v844 = vadd.f32 0.0, %v843
  %845 = vdwg.mxu0
  %v846 = vand.u32 %v796, 4294901760
  %v847 = vsub.f32 %v796, %v846
  %v848 = vand.u32 %v847, 4294901760
  %v849 = vsub.f32 %v847, %v848
  %v850 = vand.u32 %v849, 4294901760
  %851 = vmatpush.msra.mxu0 %v850
  %v852 = vand.u32 %v795, 4294901760
  %v853 = vsub.f32 %v795, %v852
  %v854 = vand.u32 %v853, 4294901760
  %v855 = vsub.f32 %v853, %v854
  %v856 = vand.u32 %v855, 4294901760
  %857 = vmatpush.msra.mxu0 %v856
  %v858 = vand.u32 %v794, 4294901760
  %v859 = vsub.f32 %v794, %v858
  %v860 = vand.u32 %v859, 4294901760
  %v861 = vsub.f32 %v859, %v860
  %v862 = vand.u32 %v861, 4294901760
  %863 = vmatpush.msra.mxu0 %v862
  %v864 = vand.u32 %v793, 4294901760
  %v865 = vsub.f32 %v793, %v864
  %v866 = vand.u32 %v865, 4294901760
  %v867 = vsub.f32 %v865, %v866
  %v868 = vand.u32 %v867, 4294901760
  %869 = vmatpush.msra.mxu0 %v868
  %v870 = vand.u32 %v792, 4294901760
  %v871 = vsub.f32 %v792, %v870
  %v872 = vand.u32 %v871, 4294901760
  %v873 = vsub.f32 %v871, %v872
  %v874 = vand.u32 %v873, 4294901760
  %875 = vmatpush.msra.mxu0 %v874
  %v876 = vand.u32 %v791, 4294901760
  %v877 = vsub.f32 %v791, %v876
  %v878 = vand.u32 %v877, 4294901760
  %v879 = vsub.f32 %v877, %v878
  %v880 = vand.u32 %v879, 4294901760
  %881 = vmatpush.msra.mxu0 %v880
  %v882 = vand.u32 %v790, 4294901760
  %v883 = vsub.f32 %v790, %v882
  %v884 = vand.u32 %v883, 4294901760
  %v885 = vsub.f32 %v883, %v884
  %v886 = vand.u32 %v885, 4294901760
  %887 = vmatpush.msra.mxu0 %v886
  %v888 = vand.u32 %v789, 4294901760
  %v889 = vsub.f32 %v789, %v888
  %v890 = vand.u32 %v889, 4294901760
  %v891 = vsub.f32 %v889, %v890
  %v892 = vand.u32 %v891, 4294901760
  %893 = vmatpush.msra.mxu0 %v892
  %v894 = vand.u32 %v788, 4294901760
  %v895 = vsub.f32 %v788, %v894
  %v896 = vand.u32 %v895, 4294901760
  %v897 = vsub.f32 %v895, %v896
  %v898 = vand.u32 %v897, 4294901760
  %899 = vmatpush.msra.mxu0 %v898
  %v900 = vand.u32 %v787, 4294901760
  %v901 = vsub.f32 %v787, %v900
  %v902 = vand.u32 %v901, 4294901760
  %v903 = vsub.f32 %v901, %v902
  %v904 = vand.u32 %v903, 4294901760
  %905 = vmatpush.msra.mxu0 %v904
  %v906 = vand.u32 %v786, 4294901760
  %v907 = vsub.f32 %v786, %v906
  %v908 = vand.u32 %v907, 4294901760
  %v909 = vsub.f32 %v907, %v908
  %v910 = vand.u32 %v909, 4294901760
  %911 = vmatpush.msra.mxu0 %v910
  %v912 = vand.u32 %v785, 4294901760
  %v913 = vsub.f32 %v785, %v912
  %v914 = vand.u32 %v913, 4294901760
  %v915 = vsub.f32 %v913, %v914
  %v916 = vand.u32 %v915, 4294901760
  %917 = vmatpush.msra.mxu0 %v916
  %v918 = vand.u32 %v784, 4294901760
  %v919 = vsub.f32 %v784, %v918
  %v920 = vand.u32 %v919, 4294901760
  %v921 = vsub.f32 %v919, %v920
  %v922 = vand.u32 %v921, 4294901760
  %923 = vmatpush.msra.mxu0 %v922
  %v924 = vand.u32 %v783, 4294901760
  %v925 = vsub.f32 %v783, %v924
  %v926 = vand.u32 %v925, 4294901760
  %v927 = vsub.f32 %v925, %v926
  %v928 = vand.u32 %v927, 4294901760
  %929 = vmatpush.msra.mxu0 %v928
  %v930 = vand.u32 %v782, 4294901760
  %v931 = vsub.f32 %v782, %v930
  %v932 = vand.u32 %v931, 4294901760
  %v933 = vsub.f32 %v931, %v932
  %v934 = vand.u32 %v933, 4294901760
  %935 = vmatpush.msra.mxu0 %v934
  %v936 = vand.u32 %v781, 4294901760
  %v937 = vsub.f32 %v781, %v936
  %v938 = vand.u32 %v937, 4294901760
  %v939 = vsub.f32 %v937, %v938
  %v940 = vand.u32 %v939, 4294901760
  %941 = vmatpush.msra.mxu0 %v940
  %v942 = vand.u32 %v775, 4294901760
  %943 = vmatmul.f32.gmra.mxu0 %v942
  %v944 = vpop.f32.mrf.mxu0
  %v945 = vadd.f32 %v836, %v944
  %v946 = vand.u32 %v779, 4294901760
  %947 = vmatmul.f32.gmra.mxu0 %v946
  %v948 = vpop.f32.mrf.mxu0
  %v949 = vadd.f32 %v844, %v948
  %950 = vdwg.mxu0
  %v951 = vand.u32 %v796, 4294901760
  %v952 = vsub.f32 %v796, %v951
  %953 = vmatpush.msra.mxu0 %v952
  %v954 = vand.u32 %v795, 4294901760
  %v955 = vsub.f32 %v795, %v954
  %956 = vmatpush.msra.mxu0 %v955
  %v957 = vand.u32 %v794, 4294901760
  %v958 = vsub.f32 %v794, %v957
  %959 = vmatpush.msra.mxu0 %v958
  %v960 = vand.u32 %v793, 4294901760
  %v961 = vsub.f32 %v793, %v960
  %962 = vmatpush.msra.mxu0 %v961
  %v963 = vand.u32 %v792, 4294901760
  %v964 = vsub.f32 %v792, %v963
  %965 = vmatpush.msra.mxu0 %v964
  %v966 = vand.u32 %v791, 4294901760
  %v967 = vsub.f32 %v791, %v966
  %968 = vmatpush.msra.mxu0 %v967
  %v969 = vand.u32 %v790, 4294901760
  %v970 = vsub.f32 %v790, %v969
  %971 = vmatpush.msra.mxu0 %v970
  %v972 = vand.u32 %v789, 4294901760
  %v973 = vsub.f32 %v789, %v972
  %974 = vmatpush.msra.mxu0 %v973
  %v975 = vand.u32 %v788, 4294901760
  %v976 = vsub.f32 %v788, %v975
  %977 = vmatpush.msra.mxu0 %v976
  %v978 = vand.u32 %v787, 4294901760
  %v979 = vsub.f32 %v787, %v978
  %980 = vmatpush.msra.mxu0 %v979
  %v981 = vand.u32 %v786, 4294901760
  %v982 = vsub.f32 %v786, %v981
  %983 = vmatpush.msra.mxu0 %v982
  %v984 = vand.u32 %v785, 4294901760
  %v985 = vsub.f32 %v785, %v984
  %986 = vmatpush.msra.mxu0 %v985
  %v987 = vand.u32 %v784, 4294901760
  %v988 = vsub.f32 %v784, %v987
  %989 = vmatpush.msra.mxu0 %v988
  %v990 = vand.u32 %v783, 4294901760
  %v991 = vsub.f32 %v783, %v990
  %992 = vmatpush.msra.mxu0 %v991
  %v993 = vand.u32 %v782, 4294901760
  %v994 = vsub.f32 %v782, %v993
  %995 = vmatpush.msra.mxu0 %v994
  %v996 = vand.u32 %v781, 4294901760
  %v997 = vsub.f32 %v781, %v996
  %998 = vmatpush.msra.mxu0 %v997
  %v999 = vand.u32 %v775, 4294901760
  %v1000 = vsub.f32 %v775, %v999
  %1001 = vmatmul.f32.gmra.mxu0 %v1000
  %v1002 = vpop.f32.mrf.mxu0
  %v1003 = vadd.f32 %v945, %v1002
  %v1004 = vand.u32 %v779, 4294901760
  %v1005 = vsub.f32 %v779, %v1004
  %1006 = vmatmul.f32.gmra.mxu0 %v1005
  %v1007 = vpop.f32.mrf.mxu0
  %v1008 = vadd.f32 %v949, %v1007
  %1009 = vdwg.mxu0
  %v1010 = vand.u32 %v796, 4294901760
  %1011 = vmatpush.msra.mxu0 %v1010
  %v1012 = vand.u32 %v795, 4294901760
  %1013 = vmatpush.msra.mxu0 %v1012
  %v1014 = vand.u32 %v794, 4294901760
  %1015 = vmatpush.msra.mxu0 %v1014
  %v1016 = vand.u32 %v793, 4294901760
  %1017 = vmatpush.msra.mxu0 %v1016
  %v1018 = vand.u32 %v792, 4294901760
  %1019 = vmatpush.msra.mxu0 %v1018
  %v1020 = vand.u32 %v791, 4294901760
  %1021 = vmatpush.msra.mxu0 %v1020
  %v1022 = vand.u32 %v790, 4294901760
  %1023 = vmatpush.msra.mxu0 %v1022
  %v1024 = vand.u32 %v789, 4294901760
  %1025 = vmatpush.msra.mxu0 %v1024
  %v1026 = vand.u32 %v788, 4294901760
  %1027 = vmatpush.msra.mxu0 %v1026
  %v1028 = vand.u32 %v787, 4294901760
  %1029 = vmatpush.msra.mxu0 %v1028
  %v1030 = vand.u32 %v786, 4294901760
  %1031 = vmatpush.msra.mxu0 %v1030
  %v1032 = vand.u32 %v785, 4294901760
  %1033 = vmatpush.msra.mxu0 %v1032
  %v1034 = vand.u32 %v784, 4294901760
  %1035 = vmatpush.msra.mxu0 %v1034
  %v1036 = vand.u32 %v783, 4294901760
  %1037 = vmatpush.msra.mxu0 %v1036
  %v1038 = vand.u32 %v782, 4294901760
  %1039 = vmatpush.msra.mxu0 %v1038
  %v1040 = vand.u32 %v781, 4294901760
  %1041 = vmatpush.msra.mxu0 %v1040
  %v1042 = vand.u32 %v775, 4294901760
  %v1043 = vsub.f32 %v775, %v1042
  %v1044 = vand.u32 %v1043, 4294901760
  %1045 = vmatmul.f32.gmra.mxu0 %v1044
  %v1046 = vpop.f32.mrf.mxu0
  %v1047 = vadd.f32 %v1003, %v1046
  %v1048 = vand.u32 %v779, 4294901760
  %v1049 = vsub.f32 %v779, %v1048
  %v1050 = vand.u32 %v1049, 4294901760
  %1051 = vmatmul.f32.gmra.mxu0 %v1050
  %v1052 = vpop.f32.mrf.mxu0
  %v1053 = vadd.f32 %v1008, %v1052
  %1054 = vdwg.mxu0
  %v1055 = vand.u32 %v796, 4294901760
  %v1056 = vsub.f32 %v796, %v1055
  %v1057 = vand.u32 %v1056, 4294901760
  %1058 = vmatpush.msra.mxu0 %v1057
  %v1059 = vand.u32 %v795, 4294901760
  %v1060 = vsub.f32 %v795, %v1059
  %v1061 = vand.u32 %v1060, 4294901760
  %1062 = vmatpush.msra.mxu0 %v1061
  %v1063 = vand.u32 %v794, 4294901760
  %v1064 = vsub.f32 %v794, %v1063
  %v1065 = vand.u32 %v1064, 4294901760
  %1066 = vmatpush.msra.mxu0 %v1065
  %v1067 = vand.u32 %v793, 4294901760
  %v1068 = vsub.f32 %v793, %v1067
  %v1069 = vand.u32 %v1068, 4294901760
  %1070 = vmatpush.msra.mxu0 %v1069
  %v1071 = vand.u32 %v792, 4294901760
  %v1072 = vsub.f32 %v792, %v1071
  %v1073 = vand.u32 %v1072, 4294901760
  %1074 = vmatpush.msra.mxu0 %v1073
  %v1075 = vand.u32 %v791, 4294901760
  %v1076 = vsub.f32 %v791, %v1075
  %v1077 = vand.u32 %v1076, 4294901760
  %1078 = vmatpush.msra.mxu0 %v1077
  %v1079 = vand.u32 %v790, 4294901760
  %v1080 = vsub.f32 %v790, %v1079
  %v1081 = vand.u32 %v1080, 4294901760
  %1082 = vmatpush.msra.mxu0 %v1081
  %v1083 = vand.u32 %v789, 4294901760
  %v1084 = vsub.f32 %v789, %v1083
  %v1085 = vand.u32 %v1084, 4294901760
  %1086 = vmatpush.msra.mxu0 %v1085
  %v1087 = vand.u32 %v788, 4294901760
  %v1088 = vsub.f32 %v788, %v1087
  %v1089 = vand.u32 %v1088, 4294901760
  %1090 = vmatpush.msra.mxu0 %v1089
  %v1091 = vand.u32 %v787, 4294901760
  %v1092 = vsub.f32 %v787, %v1091
  %v1093 = vand.u32 %v1092, 4294901760
  %1094 = vmatpush.msra.mxu0 %v1093
  %v1095 = vand.u32 %v786, 4294901760
  %v1096 = vsub.f32 %v786, %v1095
  %v1097 = vand.u32 %v1096, 4294901760
  %1098 = vmatpush.msra.mxu0 %v1097
  %v1099 = vand.u32 %v785, 4294901760
  %v1100 = vsub.f32 %v785, %v1099
  %v1101 = vand.u32 %v1100, 4294901760
  %1102 = vmatpush.msra.mxu0 %v1101
  %v1103 = vand.u32 %v784, 4294901760
  %v1104 = vsub.f32 %v784, %v1103
  %v1105 = vand.u32 %v1104, 4294901760
  %1106 = vmatpush.msra.mxu0 %v1105
  %v1107 = vand.u32 %v783, 4294901760
  %v1108 = vsub.f32 %v783, %v1107
  %v1109 = vand.u32 %v1108, 4294901760
  %1110 = vmatpush.msra.mxu0 %v1109
  %v1111 = vand.u32 %v782, 4294901760
  %v1112 = vsub.f32 %v782, %v1111
  %v1113 = vand.u32 %v1112, 4294901760
  %1114 = vmatpush.msra.mxu0 %v1113
  %v1115 = vand.u32 %v781, 4294901760
  %v1116 = vsub.f32 %v781, %v1115
  %v1117 = vand.u32 %v1116, 4294901760
  %1118 = vmatpush.msra.mxu0 %v1117
  %v1119 = vand.u32 %v775, 4294901760
  %1120 = vmatmul.f32.gmra.mxu0 %v1119
  %v1121 = vpop.f32.mrf.mxu0
  %v1122 = vadd.f32 %v1047, %v1121
  %v1123 = vand.u32 %v779, 4294901760
  %1124 = vmatmul.f32.gmra.mxu0 %v1123
  %v1125 = vpop.f32.mrf.mxu0
  %v1126 = vadd.f32 %v1053, %v1125
  %1127 = vdwg.mxu0
  %v1128 = vand.u32 %v796, 4294901760
  %1129 = vmatpush.msra.mxu0 %v1128
  %v1130 = vand.u32 %v795, 4294901760
  %1131 = vmatpush.msra.mxu0 %v1130
  %v1132 = vand.u32 %v794, 4294901760
  %1133 = vmatpush.msra.mxu0 %v1132
  %v1134 = vand.u32 %v793, 4294901760
  %1135 = vmatpush.msra.mxu0 %v1134
  %v1136 = vand.u32 %v792, 4294901760
  %1137 = vmatpush.msra.mxu0 %v1136
  %v1138 = vand.u32 %v791, 4294901760
  %1139 = vmatpush.msra.mxu0 %v1138
  %v1140 = vand.u32 %v790, 4294901760
  %1141 = vmatpush.msra.mxu0 %v1140
  %v1142 = vand.u32 %v789, 4294901760
  %1143 = vmatpush.msra.mxu0 %v1142
  %v1144 = vand.u32 %v788, 4294901760
  %1145 = vmatpush.msra.mxu0 %v1144
  %v1146 = vand.u32 %v787, 4294901760
  %1147 = vmatpush.msra.mxu0 %v1146
  %v1148 = vand.u32 %v786, 4294901760
  %1149 = vmatpush.msra.mxu0 %v1148
  %v1150 = vand.u32 %v785, 4294901760
  %1151 = vmatpush.msra.mxu0 %v1150
  %v1152 = vand.u32 %v784, 4294901760
  %1153 = vmatpush.msra.mxu0 %v1152
  %v1154 = vand.u32 %v783, 4294901760
  %1155 = vmatpush.msra.mxu0 %v1154
  %v1156 = vand.u32 %v782, 4294901760
  %1157 = vmatpush.msra.mxu0 %v1156
  %v1158 = vand.u32 %v781, 4294901760
  %1159 = vmatpush.msra.mxu0 %v1158
  %v1160 = vand.u32 %v775, 4294901760
  %1161 = vmatmul.f32.gmra.mxu0 %v1160
  %v1162 = vpop.f32.mrf.mxu0
  %v1163 = vadd.f32 %v1122, %v1162
  %v1164 = vand.u32 %v779, 4294901760
  %1165 = vmatmul.f32.gmra.mxu0 %v1164
  %v1166 = vpop.f32.mrf.mxu0
  %v1167 = vadd.f32 %v1126, %v1166
  %1168 = vdwg.mxu0
  %1169 = vst [vmem:[#allocation4 + $0x1] sm:$0xff] %v1163
  %1170 = vst [vmem:[#allocation4 + $0x9] sm:$0x3f] %v1167
  %v1171 = vld [vmem:[#allocation4] sm:$0xff]
  %v1172 = vld [vmem:[#allocation4 + $0x8] sm:$0xff]
  %1173 = vrot.lane.b32.xlu0 %v1171, 1
  %v1174 = vpop.permute.xlu0 %1173
  %1175 = vrot.lane.b32.xlu0 %v1172, 1
  %v1176 = vpop.permute.xlu0 %1175
  %1177 = vst [vmem:[#allocation6] sm:$0xff] %v1174
  %1178 = vst [vmem:[#allocation6 + $0x8] sm:$0xff] %v1176
  %1179 = vrot.lane.b32.xlu0 %v1171, 127
  %v1180 = vpop.permute.xlu0 %1179
  %1181 = vrot.lane.b32.xlu0 %v1172, 127
  %v1182 = vpop.permute.xlu0 %1181
  %1183 = vst [vmem:[#allocation7] sm:$0xff] %v1180
  %1184 = vst [vmem:[#allocation7 + $0x8] sm:$0xff] %v1182
  %v1185 = vld [vmem:[#allocation6] sm:$0xff]
  %v1186 = vld [vmem:[#allocation6 + $0x8] sm:$0x3f]
  %v1187 = vld [vmem:[#allocation4] sm:$0xff]
  %v1188 = vld [vmem:[#allocation4 + $0x8] sm:$0x3f]
  %v1189 = vld [vmem:[#allocation7] sm:$0xff]
  %v1190 = vld [vmem:[#allocation7 + $0x8] sm:$0x3f]
  %v1191 = vld [vmem:[%s1 + $0x1e] sm:$0x1]
  %v1192 = vperm.slane %v1191, 0
  %v1193 = vmul.f32 %v1192, %v1185
  %v1194 = vmul.f32 %v1192, %v1186
  %v1195 = vld [vmem:[%s1 + $0x1f] sm:$0x1]
  %v1196 = vperm.slane %v1195, 0
  %v1197 = vmul.f32 %v1196, %v1187
  %v1198 = vmul.f32 %v1196, %v1188
  %v1199 = vadd.f32 %v1193, %v1197
  %v1200 = vadd.f32 %v1194, %v1198
  %v1201 = vld [vmem:[%s1 + $0x20] sm:$0x1]
  %v1202 = vperm.slane %v1201, 0
  %v1203 = vmul.f32 %v1202, %v1189
  %v1204 = vmul.f32 %v1202, %v1190
  %v1205 = vadd.f32 %v1199, %v1203
  %v1206 = vadd.f32 %v1200, %v1204
  %v1207 = vld [vmem:[#allocation6 + $0x1] sm:$0xff]
  %v1208 = vld [vmem:[#allocation6 + $0x9] sm:$0x3f]
  %v1209 = vld [vmem:[#allocation4 + $0x1] sm:$0xff]
  %v1210 = vld [vmem:[#allocation4 + $0x9] sm:$0x3f]
  %v1211 = vld [vmem:[#allocation7 + $0x1] sm:$0xff]
  %v1212 = vld [vmem:[#allocation7 + $0x9] sm:$0x3f]
  %v1213 = vld [vmem:[%s1 + $0x21] sm:$0x1]
  %v1214 = vperm.slane %v1213, 0
  %v1215 = vmul.f32 %v1214, %v1207
  %v1216 = vmul.f32 %v1214, %v1208
  %v1217 = vadd.f32 %v1205, %v1215
  %v1218 = vadd.f32 %v1206, %v1216
  %v1219 = vld [vmem:[%s1 + $0x22] sm:$0x1]
  %v1220 = vperm.slane %v1219, 0
  %v1221 = vmul.f32 %v1220, %v1209
  %v1222 = vmul.f32 %v1220, %v1210
  %v1223 = vadd.f32 %v1217, %v1221
  %v1224 = vadd.f32 %v1218, %v1222
  %v1225 = vld [vmem:[%s1 + $0x23] sm:$0x1]
  %v1226 = vperm.slane %v1225, 0
  %v1227 = vmul.f32 %v1226, %v1211
  %v1228 = vmul.f32 %v1226, %v1212
  %v1229 = vadd.f32 %v1223, %v1227
  %v1230 = vadd.f32 %v1224, %v1228
  %v1231 = vld [vmem:[#allocation6 + $0x2] sm:$0xff]
  %v1232 = vld [vmem:[#allocation6 + $0xa] sm:$0x3f]
  %v1233 = vld [vmem:[#allocation4 + $0x2] sm:$0xff]
  %v1234 = vld [vmem:[#allocation4 + $0xa] sm:$0x3f]
  %v1235 = vld [vmem:[#allocation7 + $0x2] sm:$0xff]
  %v1236 = vld [vmem:[#allocation7 + $0xa] sm:$0x3f]
  %v1237 = vld [vmem:[%s1 + $0x24] sm:$0x1]
  %v1238 = vperm.slane %v1237, 0
  %v1239 = vmul.f32 %v1238, %v1231
  %v1240 = vmul.f32 %v1238, %v1232
  %v1241 = vadd.f32 %v1229, %v1239
  %v1242 = vadd.f32 %v1230, %v1240
  %v1243 = vld [vmem:[%s1 + $0x25] sm:$0x1]
  %v1244 = vperm.slane %v1243, 0
  %v1245 = vmul.f32 %v1244, %v1233
  %v1246 = vmul.f32 %v1244, %v1234
  %v1247 = vadd.f32 %v1241, %v1245
  %v1248 = vadd.f32 %v1242, %v1246
  %v1249 = vld [vmem:[%s1 + $0x26] sm:$0x1]
  %v1250 = vperm.slane %v1249, 0
  %v1251 = vmul.f32 %v1250, %v1235
  %v1252 = vmul.f32 %v1250, %v1236
  %v1253 = vadd.f32 %v1247, %v1251
  %v1254 = vadd.f32 %v1248, %v1252
  %v1255 = vld [vmem:[%s1 + $0x27] sm:$0x1]
  %v1256 = vperm.slane %v1255, 0
  %v1257 = vadd.f32 %v1253, %v1256
  %v1258 = vadd.f32 %v1254, %v1256
  %v1259 = vmax.f32 %v1257, 0.0
  %v1260 = vmax.f32 %v1258, 0.0
  %v1261 = vld [vmem:[%s4] sm:$0x7f]
  %vm1262 = vcmask 113664
  %v1264 = vsel %vm1262, %v1261, 0
  %vm1266 = vcmask 1045504
  %v1268 = vsel %vm1266, %v1260, 0
  %1270 = vmatpush.msra.mxu0 0.0
  %1271 = vmatpush.msra.mxu0 0.0
  %1272 = vmatpush.msra.mxu0 0.0
  %1273 = vmatpush.msra.mxu0 0.0
  %1274 = vmatpush.msra.mxu0 0.0
  %1275 = vmatpush.msra.mxu0 0.0
  %1276 = vmatpush.msra.mxu0 0.0
  %1277 = vmatpush.msra.mxu0 0.0
  %1278 = vmatpush.msra.mxu0 0.0
  %1279 = vmatpush.msra.mxu0 0.0
  %1280 = vmatpush.msra.mxu0 0.0
  %1281 = vmatpush.msra.mxu0 0.0
  %1282 = vmatpush.msra.mxu0 0.0
  %1283 = vmatpush.msra.mxu0 0.0
  %v1284 = vand.u32 %v1268, 4294901760
  %1285 = vmatpush.msra.mxu0 %v1284
  %v1286 = vand.u32 %v1259, 4294901760
  %1287 = vmatpush.msra.mxu0 %v1286
  %v1288 = vand.u32 %v1264, 4294901760
  %v1289 = vsub.f32 %v1264, %v1288
  %v1290 = vand.u32 %v1289, 4294901760
  %v1291 = vsub.f32 %v1289, %v1290
  %v1292 = vand.u32 %v1291, 4294901760
  %1293 = vmatmul.f32.gmra.mxu0 %v1292
  %v1294 = vpop.f32.mrf.mxu0
  %v1295 = vadd.f32 0.0, %v1294
  %1296 = vdwg.mxu0
  %1297 = vmatpush.msra.mxu0 0.0
  %1298 = vmatpush.msra.mxu0 0.0
  %1299 = vmatpush.msra.mxu0 0.0
  %1300 = vmatpush.msra.mxu0 0.0
  %1301 = vmatpush.msra.mxu0 0.0
  %1302 = vmatpush.msra.mxu0 0.0
  %1303 = vmatpush.msra.mxu0 0.0
  %1304 = vmatpush.msra.mxu0 0.0
  %1305 = vmatpush.msra.mxu0 0.0
  %1306 = vmatpush.msra.mxu0 0.0
  %1307 = vmatpush.msra.mxu0 0.0
  %1308 = vmatpush.msra.mxu0 0.0
  %1309 = vmatpush.msra.mxu0 0.0
  %1310 = vmatpush.msra.mxu0 0.0
  %v1311 = vand.u32 %v1268, 4294901760
  %v1312 = vsub.f32 %v1268, %v1311
  %v1313 = vand.u32 %v1312, 4294901760
  %v1314 = vsub.f32 %v1312, %v1313
  %v1315 = vand.u32 %v1314, 4294901760
  %1316 = vmatpush.msra.mxu0 %v1315
  %v1317 = vand.u32 %v1259, 4294901760
  %v1318 = vsub.f32 %v1259, %v1317
  %v1319 = vand.u32 %v1318, 4294901760
  %v1320 = vsub.f32 %v1318, %v1319
  %v1321 = vand.u32 %v1320, 4294901760
  %1322 = vmatpush.msra.mxu0 %v1321
  %v1323 = vand.u32 %v1264, 4294901760
  %1324 = vmatmul.f32.gmra.mxu0 %v1323
  %v1325 = vpop.f32.mrf.mxu0
  %v1326 = vadd.f32 %v1295, %v1325
  %1327 = vdwg.mxu0
  %1328 = vmatpush.msra.mxu0 0.0
  %1329 = vmatpush.msra.mxu0 0.0
  %1330 = vmatpush.msra.mxu0 0.0
  %1331 = vmatpush.msra.mxu0 0.0
  %1332 = vmatpush.msra.mxu0 0.0
  %1333 = vmatpush.msra.mxu0 0.0
  %1334 = vmatpush.msra.mxu0 0.0
  %1335 = vmatpush.msra.mxu0 0.0
  %1336 = vmatpush.msra.mxu0 0.0
  %1337 = vmatpush.msra.mxu0 0.0
  %1338 = vmatpush.msra.mxu0 0.0
  %1339 = vmatpush.msra.mxu0 0.0
  %1340 = vmatpush.msra.mxu0 0.0
  %1341 = vmatpush.msra.mxu0 0.0
  %v1342 = vand.u32 %v1268, 4294901760
  %v1343 = vsub.f32 %v1268, %v1342
  %1344 = vmatpush.msra.mxu0 %v1343
  %v1345 = vand.u32 %v1259, 4294901760
  %v1346 = vsub.f32 %v1259, %v1345
  %1347 = vmatpush.msra.mxu0 %v1346
  %v1348 = vand.u32 %v1264, 4294901760
  %v1349 = vsub.f32 %v1264, %v1348
  %1350 = vmatmul.f32.gmra.mxu0 %v1349
  %v1351 = vpop.f32.mrf.mxu0
  %v1352 = vadd.f32 %v1326, %v1351
  %1353 = vdwg.mxu0
  %1354 = vmatpush.msra.mxu0 0.0
  %1355 = vmatpush.msra.mxu0 0.0
  %1356 = vmatpush.msra.mxu0 0.0
  %1357 = vmatpush.msra.mxu0 0.0
  %1358 = vmatpush.msra.mxu0 0.0
  %1359 = vmatpush.msra.mxu0 0.0
  %1360 = vmatpush.msra.mxu0 0.0
  %1361 = vmatpush.msra.mxu0 0.0
  %1362 = vmatpush.msra.mxu0 0.0
  %1363 = vmatpush.msra.mxu0 0.0
  %1364 = vmatpush.msra.mxu0 0.0
  %1365 = vmatpush.msra.mxu0 0.0
  %1366 = vmatpush.msra.mxu0 0.0
  %1367 = vmatpush.msra.mxu0 0.0
  %v1368 = vand.u32 %v1268, 4294901760
  %1369 = vmatpush.msra.mxu0 %v1368
  %v1370 = vand.u32 %v1259, 4294901760
  %1371 = vmatpush.msra.mxu0 %v1370
  %v1372 = vand.u32 %v1264, 4294901760
  %v1373 = vsub.f32 %v1264, %v1372
  %v1374 = vand.u32 %v1373, 4294901760
  %1375 = vmatmul.f32.gmra.mxu0 %v1374
  %v1376 = vpop.f32.mrf.mxu0
  %v1377 = vadd.f32 %v1352, %v1376
  %1378 = vdwg.mxu0
  %1379 = vmatpush.msra.mxu0 0.0
  %1380 = vmatpush.msra.mxu0 0.0
  %1381 = vmatpush.msra.mxu0 0.0
  %1382 = vmatpush.msra.mxu0 0.0
  %1383 = vmatpush.msra.mxu0 0.0
  %1384 = vmatpush.msra.mxu0 0.0
  %1385 = vmatpush.msra.mxu0 0.0
  %1386 = vmatpush.msra.mxu0 0.0
  %1387 = vmatpush.msra.mxu0 0.0
  %1388 = vmatpush.msra.mxu0 0.0
  %1389 = vmatpush.msra.mxu0 0.0
  %1390 = vmatpush.msra.mxu0 0.0
  %1391 = vmatpush.msra.mxu0 0.0
  %1392 = vmatpush.msra.mxu0 0.0
  %v1393 = vand.u32 %v1268, 4294901760
  %v1394 = vsub.f32 %v1268, %v1393
  %v1395 = vand.u32 %v1394, 4294901760
  %1396 = vmatpush.msra.mxu0 %v1395
  %v1397 = vand.u32 %v1259, 4294901760
  %v1398 = vsub.f32 %v1259, %v1397
  %v1399 = vand.u32 %v1398, 4294901760
  %1400 = vmatpush.msra.mxu0 %v1399
  %v1401 = vand.u32 %v1264, 4294901760
  %1402 = vmatmul.f32.gmra.mxu0 %v1401
  %v1403 = vpop.f32.mrf.mxu0
  %v1404 = vadd.f32 %v1377, %v1403
  %1405 = vdwg.mxu0
  %1406 = vmatpush.msra.mxu0 0.0
  %1407 = vmatpush.msra.mxu0 0.0
  %1408 = vmatpush.msra.mxu0 0.0
  %1409 = vmatpush.msra.mxu0 0.0
  %1410 = vmatpush.msra.mxu0 0.0
  %1411 = vmatpush.msra.mxu0 0.0
  %1412 = vmatpush.msra.mxu0 0.0
  %1413 = vmatpush.msra.mxu0 0.0
  %1414 = vmatpush.msra.mxu0 0.0
  %1415 = vmatpush.msra.mxu0 0.0
  %1416 = vmatpush.msra.mxu0 0.0
  %1417 = vmatpush.msra.mxu0 0.0
  %1418 = vmatpush.msra.mxu0 0.0
  %1419 = vmatpush.msra.mxu0 0.0
  %v1420 = vand.u32 %v1268, 4294901760
  %1421 = vmatpush.msra.mxu0 %v1420
  %v1422 = vand.u32 %v1259, 4294901760
  %1423 = vmatpush.msra.mxu0 %v1422
  %v1424 = vand.u32 %v1264, 4294901760
  %1425 = vmatmul.f32.gmra.mxu0 %v1424
  %v1426 = vpop.f32.mrf.mxu0
  %v1427 = vadd.f32 %v1404, %v1426
  %1428 = vdwg.mxu0
  %v1429 = vld [vmem:[%s5] sm:$0xff]
  %v1430 = vld [vmem:[%s5 + $0x8] sm:$0xff]
  %v1431 = vld [vmem:[%s5 + $0x10] sm:$0xff]
  %v1432 = vld [vmem:[%s5 + $0x18] sm:$0xff]
  %v1433 = vld [vmem:[%s5 + $0x20] sm:$0xff]
  %v1434 = vld [vmem:[%s5 + $0x28] sm:$0xff]
  %v1435 = vld [vmem:[%s5 + $0x30] sm:$0xff]
  %v1436 = vld [vmem:[%s5 + $0x38] sm:$0xff]
  %v1437 = vld [vmem:[%s5 + $0x40] sm:$0xff]
  %v1438 = vld [vmem:[%s5 + $0x48] sm:$0xff]
  %v1439 = vld [vmem:[%s5 + $0x50] sm:$0xff]
  %v1440 = vld [vmem:[%s5 + $0x58] sm:$0xff]
  %v1441 = vld [vmem:[%s5 + $0x60] sm:$0xff]
  %v1442 = vld [vmem:[%s5 + $0x68] sm:$0xff]
  %v1443 = vld [vmem:[%s5 + $0x70] sm:$0xff]
  %v1444 = vld [vmem:[%s5 + $0x78] sm:$0xff]
  %v1445 = vand.u32 %v1444, 4294901760
  %1446 = vmatpush.msra.mxu0 %v1445
  %v1447 = vand.u32 %v1443, 4294901760
  %1448 = vmatpush.msra.mxu0 %v1447
  %v1449 = vand.u32 %v1442, 4294901760
  %1450 = vmatpush.msra.mxu0 %v1449
  %v1451 = vand.u32 %v1441, 4294901760
  %1452 = vmatpush.msra.mxu0 %v1451
  %v1453 = vand.u32 %v1440, 4294901760
  %1454 = vmatpush.msra.mxu0 %v1453
  %v1455 = vand.u32 %v1439, 4294901760
  %1456 = vmatpush.msra.mxu0 %v1455
  %v1457 = vand.u32 %v1438, 4294901760
  %1458 = vmatpush.msra.mxu0 %v1457
  %v1459 = vand.u32 %v1437, 4294901760
  %1460 = vmatpush.msra.mxu0 %v1459
  %v1461 = vand.u32 %v1436, 4294901760
  %1462 = vmatpush.msra.mxu0 %v1461
  %v1463 = vand.u32 %v1435, 4294901760
  %1464 = vmatpush.msra.mxu0 %v1463
  %v1465 = vand.u32 %v1434, 4294901760
  %1466 = vmatpush.msra.mxu0 %v1465
  %v1467 = vand.u32 %v1433, 4294901760
  %1468 = vmatpush.msra.mxu0 %v1467
  %v1469 = vand.u32 %v1432, 4294901760
  %1470 = vmatpush.msra.mxu0 %v1469
  %v1471 = vand.u32 %v1431, 4294901760
  %1472 = vmatpush.msra.mxu0 %v1471
  %v1473 = vand.u32 %v1430, 4294901760
  %1474 = vmatpush.msra.mxu0 %v1473
  %v1475 = vand.u32 %v1429, 4294901760
  %1476 = vmatpush.msra.mxu0 %v1475
  %v1477 = vand.u32 %v1427, 4294901760
  %v1478 = vsub.f32 %v1427, %v1477
  %v1479 = vand.u32 %v1478, 4294901760
  %v1480 = vsub.f32 %v1478, %v1479
  %v1481 = vand.u32 %v1480, 4294901760
  %1482 = vmatmul.f32.gmra.mxu0 %v1481
  %v1483 = vpop.f32.mrf.mxu0
  %v1484 = vadd.f32 0.0, %v1483
  %1485 = vdwg.mxu0
  %v1486 = vand.u32 %v1444, 4294901760
  %v1487 = vsub.f32 %v1444, %v1486
  %v1488 = vand.u32 %v1487, 4294901760
  %v1489 = vsub.f32 %v1487, %v1488
  %v1490 = vand.u32 %v1489, 4294901760
  %1491 = vmatpush.msra.mxu0 %v1490
  %v1492 = vand.u32 %v1443, 4294901760
  %v1493 = vsub.f32 %v1443, %v1492
  %v1494 = vand.u32 %v1493, 4294901760
  %v1495 = vsub.f32 %v1493, %v1494
  %v1496 = vand.u32 %v1495, 4294901760
  %1497 = vmatpush.msra.mxu0 %v1496
  %v1498 = vand.u32 %v1442, 4294901760
  %v1499 = vsub.f32 %v1442, %v1498
  %v1500 = vand.u32 %v1499, 4294901760
  %v1501 = vsub.f32 %v1499, %v1500
  %v1502 = vand.u32 %v1501, 4294901760
  %1503 = vmatpush.msra.mxu0 %v1502
  %v1504 = vand.u32 %v1441, 4294901760
  %v1505 = vsub.f32 %v1441, %v1504
  %v1506 = vand.u32 %v1505, 4294901760
  %v1507 = vsub.f32 %v1505, %v1506
  %v1508 = vand.u32 %v1507, 4294901760
  %1509 = vmatpush.msra.mxu0 %v1508
  %v1510 = vand.u32 %v1440, 4294901760
  %v1511 = vsub.f32 %v1440, %v1510
  %v1512 = vand.u32 %v1511, 4294901760
  %v1513 = vsub.f32 %v1511, %v1512
  %v1514 = vand.u32 %v1513, 4294901760
  %1515 = vmatpush.msra.mxu0 %v1514
  %v1516 = vand.u32 %v1439, 4294901760
  %v1517 = vsub.f32 %v1439, %v1516
  %v1518 = vand.u32 %v1517, 4294901760
  %v1519 = vsub.f32 %v1517, %v1518
  %v1520 = vand.u32 %v1519, 4294901760
  %1521 = vmatpush.msra.mxu0 %v1520
  %v1522 = vand.u32 %v1438, 4294901760
  %v1523 = vsub.f32 %v1438, %v1522
  %v1524 = vand.u32 %v1523, 4294901760
  %v1525 = vsub.f32 %v1523, %v1524
  %v1526 = vand.u32 %v1525, 4294901760
  %1527 = vmatpush.msra.mxu0 %v1526
  %v1528 = vand.u32 %v1437, 4294901760
  %v1529 = vsub.f32 %v1437, %v1528
  %v1530 = vand.u32 %v1529, 4294901760
  %v1531 = vsub.f32 %v1529, %v1530
  %v1532 = vand.u32 %v1531, 4294901760
  %1533 = vmatpush.msra.mxu0 %v1532
  %v1534 = vand.u32 %v1436, 4294901760
  %v1535 = vsub.f32 %v1436, %v1534
  %v1536 = vand.u32 %v1535, 4294901760
  %v1537 = vsub.f32 %v1535, %v1536
  %v1538 = vand.u32 %v1537, 4294901760
  %1539 = vmatpush.msra.mxu0 %v1538
  %v1540 = vand.u32 %v1435, 4294901760
  %v1541 = vsub.f32 %v1435, %v1540
  %v1542 = vand.u32 %v1541, 4294901760
  %v1543 = vsub.f32 %v1541, %v1542
  %v1544 = vand.u32 %v1543, 4294901760
  %1545 = vmatpush.msra.mxu0 %v1544
  %v1546 = vand.u32 %v1434, 4294901760
  %v1547 = vsub.f32 %v1434, %v1546
  %v1548 = vand.u32 %v1547, 4294901760
  %v1549 = vsub.f32 %v1547, %v1548
  %v1550 = vand.u32 %v1549, 4294901760
  %1551 = vmatpush.msra.mxu0 %v1550
  %v1552 = vand.u32 %v1433, 4294901760
  %v1553 = vsub.f32 %v1433, %v1552
  %v1554 = vand.u32 %v1553, 4294901760
  %v1555 = vsub.f32 %v1553, %v1554
  %v1556 = vand.u32 %v1555, 4294901760
  %1557 = vmatpush.msra.mxu0 %v1556
  %v1558 = vand.u32 %v1432, 4294901760
  %v1559 = vsub.f32 %v1432, %v1558
  %v1560 = vand.u32 %v1559, 4294901760
  %v1561 = vsub.f32 %v1559, %v1560
  %v1562 = vand.u32 %v1561, 4294901760
  %1563 = vmatpush.msra.mxu0 %v1562
  %v1564 = vand.u32 %v1431, 4294901760
  %v1565 = vsub.f32 %v1431, %v1564
  %v1566 = vand.u32 %v1565, 4294901760
  %v1567 = vsub.f32 %v1565, %v1566
  %v1568 = vand.u32 %v1567, 4294901760
  %1569 = vmatpush.msra.mxu0 %v1568
  %v1570 = vand.u32 %v1430, 4294901760
  %v1571 = vsub.f32 %v1430, %v1570
  %v1572 = vand.u32 %v1571, 4294901760
  %v1573 = vsub.f32 %v1571, %v1572
  %v1574 = vand.u32 %v1573, 4294901760
  %1575 = vmatpush.msra.mxu0 %v1574
  %v1576 = vand.u32 %v1429, 4294901760
  %v1577 = vsub.f32 %v1429, %v1576
  %v1578 = vand.u32 %v1577, 4294901760
  %v1579 = vsub.f32 %v1577, %v1578
  %v1580 = vand.u32 %v1579, 4294901760
  %1581 = vmatpush.msra.mxu0 %v1580
  %v1582 = vand.u32 %v1427, 4294901760
  %1583 = vmatmul.f32.gmra.mxu0 %v1582
  %v1584 = vpop.f32.mrf.mxu0
  %v1585 = vadd.f32 %v1484, %v1584
  %1586 = vdwg.mxu0
  %v1587 = vand.u32 %v1444, 4294901760
  %v1588 = vsub.f32 %v1444, %v1587
  %1589 = vmatpush.msra.mxu0 %v1588
  %v1590 = vand.u32 %v1443, 4294901760
  %v1591 = vsub.f32 %v1443, %v1590
  %1592 = vmatpush.msra.mxu0 %v1591
  %v1593 = vand.u32 %v1442, 4294901760
  %v1594 = vsub.f32 %v1442, %v1593
  %1595 = vmatpush.msra.mxu0 %v1594
  %v1596 = vand.u32 %v1441, 4294901760
  %v1597 = vsub.f32 %v1441, %v1596
  %1598 = vmatpush.msra.mxu0 %v1597
  %v1599 = vand.u32 %v1440, 4294901760
  %v1600 = vsub.f32 %v1440, %v1599
  %1601 = vmatpush.msra.mxu0 %v1600
  %v1602 = vand.u32 %v1439, 4294901760
  %v1603 = vsub.f32 %v1439, %v1602
  %1604 = vmatpush.msra.mxu0 %v1603
  %v1605 = vand.u32 %v1438, 4294901760
  %v1606 = vsub.f32 %v1438, %v1605
  %1607 = vmatpush.msra.mxu0 %v1606
  %v1608 = vand.u32 %v1437, 4294901760
  %v1609 = vsub.f32 %v1437, %v1608
  %1610 = vmatpush.msra.mxu0 %v1609
  %v1611 = vand.u32 %v1436, 4294901760
  %v1612 = vsub.f32 %v1436, %v1611
  %1613 = vmatpush.msra.mxu0 %v1612
  %v1614 = vand.u32 %v1435, 4294901760
  %v1615 = vsub.f32 %v1435, %v1614
  %1616 = vmatpush.msra.mxu0 %v1615
  %v1617 = vand.u32 %v1434, 4294901760
  %v1618 = vsub.f32 %v1434, %v1617
  %1619 = vmatpush.msra.mxu0 %v1618
  %v1620 = vand.u32 %v1433, 4294901760
  %v1621 = vsub.f32 %v1433, %v1620
  %1622 = vmatpush.msra.mxu0 %v1621
  %v1623 = vand.u32 %v1432, 4294901760
  %v1624 = vsub.f32 %v1432, %v1623
  %1625 = vmatpush.msra.mxu0 %v1624
  %v1626 = vand.u32 %v1431, 4294901760
  %v1627 = vsub.f32 %v1431, %v1626
  %1628 = vmatpush.msra.mxu0 %v1627
  %v1629 = vand.u32 %v1430, 4294901760
  %v1630 = vsub.f32 %v1430, %v1629
  %1631 = vmatpush.msra.mxu0 %v1630
  %v1632 = vand.u32 %v1429, 4294901760
  %v1633 = vsub.f32 %v1429, %v1632
  %1634 = vmatpush.msra.mxu0 %v1633
  %v1635 = vand.u32 %v1427, 4294901760
  %v1636 = vsub.f32 %v1427, %v1635
  %1637 = vmatmul.f32.gmra.mxu0 %v1636
  %v1638 = vpop.f32.mrf.mxu0
  %v1639 = vadd.f32 %v1585, %v1638
  %1640 = vdwg.mxu0
  %v1641 = vand.u32 %v1444, 4294901760
  %1642 = vmatpush.msra.mxu0 %v1641
  %v1643 = vand.u32 %v1443, 4294901760
  %1644 = vmatpush.msra.mxu0 %v1643
  %v1645 = vand.u32 %v1442, 4294901760
  %1646 = vmatpush.msra.mxu0 %v1645
  %v1647 = vand.u32 %v1441, 4294901760
  %1648 = vmatpush.msra.mxu0 %v1647
  %v1649 = vand.u32 %v1440, 4294901760
  %1650 = vmatpush.msra.mxu0 %v1649
  %v1651 = vand.u32 %v1439, 4294901760
  %1652 = vmatpush.msra.mxu0 %v1651
  %v1653 = vand.u32 %v1438, 4294901760
  %1654 = vmatpush.msra.mxu0 %v1653
  %v1655 = vand.u32 %v1437, 4294901760
  %1656 = vmatpush.msra.mxu0 %v1655
  %v1657 = vand.u32 %v1436, 4294901760
  %1658 = vmatpush.msra.mxu0 %v1657
  %v1659 = vand.u32 %v1435, 4294901760
  %1660 = vmatpush.msra.mxu0 %v1659
  %v1661 = vand.u32 %v1434, 4294901760
  %1662 = vmatpush.msra.mxu0 %v1661
  %v1663 = vand.u32 %v1433, 4294901760
  %1664 = vmatpush.msra.mxu0 %v1663
  %v1665 = vand.u32 %v1432, 4294901760
  %1666 = vmatpush.msra.mxu0 %v1665
  %v1667 = vand.u32 %v1431, 4294901760
  %1668 = vmatpush.msra.mxu0 %v1667
  %v1669 = vand.u32 %v1430, 4294901760
  %1670 = vmatpush.msra.mxu0 %v1669
  %v1671 = vand.u32 %v1429, 4294901760
  %1672 = vmatpush.msra.mxu0 %v1671
  %v1673 = vand.u32 %v1427, 4294901760
  %v1674 = vsub.f32 %v1427, %v1673
  %v1675 = vand.u32 %v1674, 4294901760
  %1676 = vmatmul.f32.gmra.mxu0 %v1675
  %v1677 = vpop.f32.mrf.mxu0
  %v1678 = vadd.f32 %v1639, %v1677
  %1679 = vdwg.mxu0
  %v1680 = vand.u32 %v1444, 4294901760
  %v1681 = vsub.f32 %v1444, %v1680
  %v1682 = vand.u32 %v1681, 4294901760
  %1683 = vmatpush.msra.mxu0 %v1682
  %v1684 = vand.u32 %v1443, 4294901760
  %v1685 = vsub.f32 %v1443, %v1684
  %v1686 = vand.u32 %v1685, 4294901760
  %1687 = vmatpush.msra.mxu0 %v1686
  %v1688 = vand.u32 %v1442, 4294901760
  %v1689 = vsub.f32 %v1442, %v1688
  %v1690 = vand.u32 %v1689, 4294901760
  %1691 = vmatpush.msra.mxu0 %v1690
  %v1692 = vand.u32 %v1441, 4294901760
  %v1693 = vsub.f32 %v1441, %v1692
  %v1694 = vand.u32 %v1693, 4294901760
  %1695 = vmatpush.msra.mxu0 %v1694
  %v1696 = vand.u32 %v1440, 4294901760
  %v1697 = vsub.f32 %v1440, %v1696
  %v1698 = vand.u32 %v1697, 4294901760
  %1699 = vmatpush.msra.mxu0 %v1698
  %v1700 = vand.u32 %v1439, 4294901760
  %v1701 = vsub.f32 %v1439, %v1700
  %v1702 = vand.u32 %v1701, 4294901760
  %1703 = vmatpush.msra.mxu0 %v1702
  %v1704 = vand.u32 %v1438, 4294901760
  %v1705 = vsub.f32 %v1438, %v1704
  %v1706 = vand.u32 %v1705, 4294901760
  %1707 = vmatpush.msra.mxu0 %v1706
  %v1708 = vand.u32 %v1437, 4294901760
  %v1709 = vsub.f32 %v1437, %v1708
  %v1710 = vand.u32 %v1709, 4294901760
  %1711 = vmatpush.msra.mxu0 %v1710
  %v1712 = vand.u32 %v1436, 4294901760
  %v1713 = vsub.f32 %v1436, %v1712
  %v1714 = vand.u32 %v1713, 4294901760
  %1715 = vmatpush.msra.mxu0 %v1714
  %v1716 = vand.u32 %v1435, 4294901760
  %v1717 = vsub.f32 %v1435, %v1716
  %v1718 = vand.u32 %v1717, 4294901760
  %1719 = vmatpush.msra.mxu0 %v1718
  %v1720 = vand.u32 %v1434, 4294901760
  %v1721 = vsub.f32 %v1434, %v1720
  %v1722 = vand.u32 %v1721, 4294901760
  %1723 = vmatpush.msra.mxu0 %v1722
  %v1724 = vand.u32 %v1433, 4294901760
  %v1725 = vsub.f32 %v1433, %v1724
  %v1726 = vand.u32 %v1725, 4294901760
  %1727 = vmatpush.msra.mxu0 %v1726
  %v1728 = vand.u32 %v1432, 4294901760
  %v1729 = vsub.f32 %v1432, %v1728
  %v1730 = vand.u32 %v1729, 4294901760
  %1731 = vmatpush.msra.mxu0 %v1730
  %v1732 = vand.u32 %v1431, 4294901760
  %v1733 = vsub.f32 %v1431, %v1732
  %v1734 = vand.u32 %v1733, 4294901760
  %1735 = vmatpush.msra.mxu0 %v1734
  %v1736 = vand.u32 %v1430, 4294901760
  %v1737 = vsub.f32 %v1430, %v1736
  %v1738 = vand.u32 %v1737, 4294901760
  %1739 = vmatpush.msra.mxu0 %v1738
  %v1740 = vand.u32 %v1429, 4294901760
  %v1741 = vsub.f32 %v1429, %v1740
  %v1742 = vand.u32 %v1741, 4294901760
  %1743 = vmatpush.msra.mxu0 %v1742
  %v1744 = vand.u32 %v1427, 4294901760
  %1745 = vmatmul.f32.gmra.mxu0 %v1744
  %v1746 = vpop.f32.mrf.mxu0
  %v1747 = vadd.f32 %v1678, %v1746
  %1748 = vdwg.mxu0
  %v1749 = vand.u32 %v1444, 4294901760
  %1750 = vmatpush.msra.mxu0 %v1749
  %v1751 = vand.u32 %v1443, 4294901760
  %1752 = vmatpush.msra.mxu0 %v1751
  %v1753 = vand.u32 %v1442, 4294901760
  %1754 = vmatpush.msra.mxu0 %v1753
  %v1755 = vand.u32 %v1441, 4294901760
  %1756 = vmatpush.msra.mxu0 %v1755
  %v1757 = vand.u32 %v1440, 4294901760
  %1758 = vmatpush.msra.mxu0 %v1757
  %v1759 = vand.u32 %v1439, 4294901760
  %1760 = vmatpush.msra.mxu0 %v1759
  %v1761 = vand.u32 %v1438, 4294901760
  %1762 = vmatpush.msra.mxu0 %v1761
  %v1763 = vand.u32 %v1437, 4294901760
  %1764 = vmatpush.msra.mxu0 %v1763
  %v1765 = vand.u32 %v1436, 4294901760
  %1766 = vmatpush.msra.mxu0 %v1765
  %v1767 = vand.u32 %v1435, 4294901760
  %1768 = vmatpush.msra.mxu0 %v1767
  %v1769 = vand.u32 %v1434, 4294901760
  %1770 = vmatpush.msra.mxu0 %v1769
  %v1771 = vand.u32 %v1433, 4294901760
  %1772 = vmatpush.msra.mxu0 %v1771
  %v1773 = vand.u32 %v1432, 4294901760
  %1774 = vmatpush.msra.mxu0 %v1773
  %v1775 = vand.u32 %v1431, 4294901760
  %1776 = vmatpush.msra.mxu0 %v1775
  %v1777 = vand.u32 %v1430, 4294901760
  %1778 = vmatpush.msra.mxu0 %v1777
  %v1779 = vand.u32 %v1429, 4294901760
  %1780 = vmatpush.msra.mxu0 %v1779
  %v1781 = vand.u32 %v1427, 4294901760
  %1782 = vmatmul.f32.gmra.mxu0 %v1781
  %v1783 = vpop.f32.mrf.mxu0
  %v1784 = vadd.f32 %v1747, %v1783
  %1785 = vdwg.mxu0
  %1786 = vst [vmem:[#allocation5 + $0x1] sm:$0x7f] %v1784
  %v1787 = vld [vmem:[#allocation5] sm:$0xff]
  %v1788 = vld [vmem:[#allocation5 + $0x8] sm:$0x1]
  %1789 = vrot.lane.b32.xlu0 %v1787, 1
  %v1790 = vpop.permute.xlu0 %1789
  %1791 = vrot.lane.b32.xlu0 %v1788, 1
  %v1792 = vpop.permute.xlu0 %1791
  %1793 = vst [vmem:[#allocation6] sm:$0xff] %v1790
  %1794 = vst [vmem:[#allocation6 + $0x8] sm:$0x1] %v1792
  %1795 = vrot.lane.b32.xlu0 %v1787, 127
  %v1796 = vpop.permute.xlu0 %1795
  %1797 = vrot.lane.b32.xlu0 %v1788, 127
  %v1798 = vpop.permute.xlu0 %1797
  %1799 = vst [vmem:[#allocation7] sm:$0xff] %v1796
  %1800 = vst [vmem:[#allocation7 + $0x8] sm:$0x1] %v1798
  %v1801 = vld [vmem:[#allocation6] sm:$0x7f]
  %v1802 = vld [vmem:[#allocation5] sm:$0x7f]
  %v1803 = vld [vmem:[#allocation7] sm:$0x7f]
  %v1804 = vld [vmem:[%s1 + $0x28] sm:$0x1]
  %v1805 = vperm.slane %v1804, 0
  %v1806 = vmul.f32 %v1805, %v1801
  %v1807 = vld [vmem:[%s1 + $0x29] sm:$0x1]
  %v1808 = vperm.slane %v1807, 0
  %v1809 = vmul.f32 %v1808, %v1802
  %v1810 = vadd.f32 %v1806, %v1809
  %v1811 = vld [vmem:[%s1 + $0x2a] sm:$0x1]
  %v1812 = vperm.slane %v1811, 0
  %v1813 = vmul.f32 %v1812, %v1803
  %v1814 = vadd.f32 %v1810, %v1813
  %v1815 = vld [vmem:[#allocation6 + $0x1] sm:$0x7f]
  %v1816 = vld [vmem:[#allocation5 + $0x1] sm:$0x7f]
  %v1817 = vld [vmem:[#allocation7 + $0x1] sm:$0x7f]
  %v1818 = vld [vmem:[%s1 + $0x2b] sm:$0x1]
  %v1819 = vperm.slane %v1818, 0
  %v1820 = vmul.f32 %v1819, %v1815
  %v1821 = vadd.f32 %v1814, %v1820
  %v1822 = vld [vmem:[%s1 + $0x2c] sm:$0x1]
  %v1823 = vperm.slane %v1822, 0
  %v1824 = vmul.f32 %v1823, %v1816
  %v1825 = vadd.f32 %v1821, %v1824
  %v1826 = vld [vmem:[%s1 + $0x2d] sm:$0x1]
  %v1827 = vperm.slane %v1826, 0
  %v1828 = vmul.f32 %v1827, %v1817
  %v1829 = vadd.f32 %v1825, %v1828
  %v1830 = vld [vmem:[#allocation6 + $0x2] sm:$0x7f]
  %v1831 = vld [vmem:[#allocation5 + $0x2] sm:$0x7f]
  %v1832 = vld [vmem:[#allocation7 + $0x2] sm:$0x7f]
  %v1833 = vld [vmem:[%s1 + $0x2e] sm:$0x1]
  %v1834 = vperm.slane %v1833, 0
  %v1835 = vmul.f32 %v1834, %v1830
  %v1836 = vadd.f32 %v1829, %v1835
  %v1837 = vld [vmem:[%s1 + $0x2f] sm:$0x1]
  %v1838 = vperm.slane %v1837, 0
  %v1839 = vmul.f32 %v1838, %v1831
  %v1840 = vadd.f32 %v1836, %v1839
  %v1841 = vld [vmem:[%s1 + $0x30] sm:$0x1]
  %v1842 = vperm.slane %v1841, 0
  %v1843 = vmul.f32 %v1842, %v1832
  %v1844 = vadd.f32 %v1840, %v1843
  %v1845 = vld [vmem:[%s1 + $0x31] sm:$0x1]
  %v1846 = vperm.slane %v1845, 0
  %v1847 = vadd.f32 %v1844, %v1846
  %v1848 = vmax.f32 %v1847, 0.0
  %v1849 = vld [vmem:[%s6] sm:$0xf]
  %vm1850 = vcmask 56320
  %v1852 = vsel %vm1850, %v1849, 0
  %vm1854 = vcmask 1046528
  %v1856 = vsel %vm1854, %v1848, 0
  %1858 = vmatpush.msra.mxu0 0.0
  %1859 = vmatpush.msra.mxu0 0.0
  %1860 = vmatpush.msra.mxu0 0.0
  %1861 = vmatpush.msra.mxu0 0.0
  %1862 = vmatpush.msra.mxu0 0.0
  %1863 = vmatpush.msra.mxu0 0.0
  %1864 = vmatpush.msra.mxu0 0.0
  %1865 = vmatpush.msra.mxu0 0.0
  %1866 = vmatpush.msra.mxu0 0.0
  %1867 = vmatpush.msra.mxu0 0.0
  %1868 = vmatpush.msra.mxu0 0.0
  %1869 = vmatpush.msra.mxu0 0.0
  %1870 = vmatpush.msra.mxu0 0.0
  %1871 = vmatpush.msra.mxu0 0.0
  %1872 = vmatpush.msra.mxu0 0.0
  %v1873 = vand.u32 %v1856, 4294901760
  %1874 = vmatpush.msra.mxu0 %v1873
  %v1875 = vand.u32 %v1852, 4294901760
  %v1876 = vsub.f32 %v1852, %v1875
  %v1877 = vand.u32 %v1876, 4294901760
  %v1878 = vsub.f32 %v1876, %v1877
  %v1879 = vand.u32 %v1878, 4294901760
  %1880 = vmatmul.f32.gmra.mxu0 %v1879
  %v1881 = vpop.f32.mrf.mxu0
  %v1882 = vadd.f32 0.0, %v1881
  %1883 = vdwg.mxu0
  %1884 = vmatpush.msra.mxu0 0.0
  %1885 = vmatpush.msra.mxu0 0.0
  %1886 = vmatpush.msra.mxu0 0.0
  %1887 = vmatpush.msra.mxu0 0.0
  %1888 = vmatpush.msra.mxu0 0.0
  %1889 = vmatpush.msra.mxu0 0.0
  %1890 = vmatpush.msra.mxu0 0.0
  %1891 = vmatpush.msra.mxu0 0.0
  %1892 = vmatpush.msra.mxu0 0.0
  %1893 = vmatpush.msra.mxu0 0.0
  %1894 = vmatpush.msra.mxu0 0.0
  %1895 = vmatpush.msra.mxu0 0.0
  %1896 = vmatpush.msra.mxu0 0.0
  %1897 = vmatpush.msra.mxu0 0.0
  %1898 = vmatpush.msra.mxu0 0.0
  %v1899 = vand.u32 %v1856, 4294901760
  %v1900 = vsub.f32 %v1856, %v1899
  %v1901 = vand.u32 %v1900, 4294901760
  %v1902 = vsub.f32 %v1900, %v1901
  %v1903 = vand.u32 %v1902, 4294901760
  %1904 = vmatpush.msra.mxu0 %v1903
  %v1905 = vand.u32 %v1852, 4294901760
  %1906 = vmatmul.f32.gmra.mxu0 %v1905
  %v1907 = vpop.f32.mrf.mxu0
  %v1908 = vadd.f32 %v1882, %v1907
  %1909 = vdwg.mxu0
  %1910 = vmatpush.msra.mxu0 0.0
  %1911 = vmatpush.msra.mxu0 0.0
  %1912 = vmatpush.msra.mxu0 0.0
  %1913 = vmatpush.msra.mxu0 0.0
  %1914 = vmatpush.msra.mxu0 0.0
  %1915 = vmatpush.msra.mxu0 0.0
  %1916 = vmatpush.msra.mxu0 0.0
  %1917 = vmatpush.msra.mxu0 0.0
  %1918 = vmatpush.msra.mxu0 0.0
  %1919 = vmatpush.msra.mxu0 0.0
  %1920 = vmatpush.msra.mxu0 0.0
  %1921 = vmatpush.msra.mxu0 0.0
  %1922 = vmatpush.msra.mxu0 0.0
  %1923 = vmatpush.msra.mxu0 0.0
  %1924 = vmatpush.msra.mxu0 0.0
  %v1925 = vand.u32 %v1856, 4294901760
  %v1926 = vsub.f32 %v1856, %v1925
  %1927 = vmatpush.msra.mxu0 %v1926
  %v1928 = vand.u32 %v1852, 4294901760
  %v1929 = vsub.f32 %v1852, %v1928
  %1930 = vmatmul.f32.gmra.mxu0 %v1929
  %v1931 = vpop.f32.mrf.mxu0
  %v1932 = vadd.f32 %v1908, %v1931
  %1933 = vdwg.mxu0
  %1934 = vmatpush.msra.mxu0 0.0
  %1935 = vmatpush.msra.mxu0 0.0
  %1936 = vmatpush.msra.mxu0 0.0
  %1937 = vmatpush.msra.mxu0 0.0
  %1938 = vmatpush.msra.mxu0 0.0
  %1939 = vmatpush.msra.mxu0 0.0
  %1940 = vmatpush.msra.mxu0 0.0
  %1941 = vmatpush.msra.mxu0 0.0
  %1942 = vmatpush.msra.mxu0 0.0
  %1943 = vmatpush.msra.mxu0 0.0
  %1944 = vmatpush.msra.mxu0 0.0
  %1945 = vmatpush.msra.mxu0 0.0
  %1946 = vmatpush.msra.mxu0 0.0
  %1947 = vmatpush.msra.mxu0 0.0
  %1948 = vmatpush.msra.mxu0 0.0
  %v1949 = vand.u32 %v1856, 4294901760
  %1950 = vmatpush.msra.mxu0 %v1949
  %v1951 = vand.u32 %v1852, 4294901760
  %v1952 = vsub.f32 %v1852, %v1951
  %v1953 = vand.u32 %v1952, 4294901760
  %1954 = vmatmul.f32.gmra.mxu0 %v1953
  %v1955 = vpop.f32.mrf.mxu0
  %v1956 = vadd.f32 %v1932, %v1955
  %1957 = vdwg.mxu0
  %1958 = vmatpush.msra.mxu0 0.0
  %1959 = vmatpush.msra.mxu0 0.0
  %1960 = vmatpush.msra.mxu0 0.0
  %1961 = vmatpush.msra.mxu0 0.0
  %1962 = vmatpush.msra.mxu0 0.0
  %1963 = vmatpush.msra.mxu0 0.0
  %1964 = vmatpush.msra.mxu0 0.0
  %1965 = vmatpush.msra.mxu0 0.0
  %1966 = vmatpush.msra.mxu0 0.0
  %1967 = vmatpush.msra.mxu0 0.0
  %1968 = vmatpush.msra.mxu0 0.0
  %1969 = vmatpush.msra.mxu0 0.0
  %1970 = vmatpush.msra.mxu0 0.0
  %1971 = vmatpush.msra.mxu0 0.0
  %1972 = vmatpush.msra.mxu0 0.0
  %v1973 = vand.u32 %v1856, 4294901760
  %v1974 = vsub.f32 %v1856, %v1973
  %v1975 = vand.u32 %v1974, 4294901760
  %1976 = vmatpush.msra.mxu0 %v1975
  %v1977 = vand.u32 %v1852, 4294901760
  %1978 = vmatmul.f32.gmra.mxu0 %v1977
  %v1979 = vpop.f32.mrf.mxu0
  %v1980 = vadd.f32 %v1956, %v1979
  %1981 = vdwg.mxu0
  %1982 = vmatpush.msra.mxu0 0.0
  %1983 = vmatpush.msra.mxu0 0.0
  %1984 = vmatpush.msra.mxu0 0.0
  %1985 = vmatpush.msra.mxu0 0.0
  %1986 = vmatpush.msra.mxu0 0.0
  %1987 = vmatpush.msra.mxu0 0.0
  %1988 = vmatpush.msra.mxu0 0.0
  %1989 = vmatpush.msra.mxu0 0.0
  %1990 = vmatpush.msra.mxu0 0.0
  %1991 = vmatpush.msra.mxu0 0.0
  %1992 = vmatpush.msra.mxu0 0.0
  %1993 = vmatpush.msra.mxu0 0.0
  %1994 = vmatpush.msra.mxu0 0.0
  %1995 = vmatpush.msra.mxu0 0.0
  %1996 = vmatpush.msra.mxu0 0.0
  %v1997 = vand.u32 %v1856, 4294901760
  %1998 = vmatpush.msra.mxu0 %v1997
  %v1999 = vand.u32 %v1852, 4294901760
  %2000 = vmatmul.f32.gmra.mxu0 %v1999
  %v2001 = vpop.f32.mrf.mxu0
  %v2002 = vadd.f32 %v1980, %v2001
  %2003 = vdwg.mxu0
  %v2004 = vld [vmem:[%s7] sm:$0xff]
  %v2005 = vld [vmem:[%s7 + $0x8] sm:$0xff]
  %v2006 = vld [vmem:[%s7 + $0x10] sm:$0xff]
  %v2007 = vld [vmem:[%s7 + $0x18] sm:$0xff]
  %v2008 = vld [vmem:[%s7 + $0x20] sm:$0xff]
  %v2009 = vld [vmem:[%s7 + $0x28] sm:$0xff]
  %v2010 = vld [vmem:[%s7 + $0x30] sm:$0xff]
  %v2011 = vld [vmem:[%s7 + $0x38] sm:$0xff]
  %v2012 = vld [vmem:[%s7 + $0x40] sm:$0xff]
  %v2013 = vld [vmem:[%s7 + $0x48] sm:$0xff]
  %v2014 = vld [vmem:[%s7 + $0x50] sm:$0xff]
  %v2015 = vld [vmem:[%s7 + $0x58] sm:$0xff]
  %v2016 = vld [vmem:[%s7 + $0x60] sm:$0xff]
  %v2017 = vld [vmem:[%s7 + $0x68] sm:$0xff]
  %v2018 = vld [vmem:[%s7 + $0x70] sm:$0xff]
  %v2019 = vld [vmem:[%s7 + $0x78] sm:$0xff]
  %v2020 = vand.u32 %v2019, 4294901760
  %2021 = vmatpush.msra.mxu0 %v2020
  %v2022 = vand.u32 %v2018, 4294901760
  %2023 = vmatpush.msra.mxu0 %v2022
  %v2024 = vand.u32 %v2017, 4294901760
  %2025 = vmatpush.msra.mxu0 %v2024
  %v2026 = vand.u32 %v2016, 4294901760
  %2027 = vmatpush.msra.mxu0 %v2026
  %v2028 = vand.u32 %v2015, 4294901760
  %2029 = vmatpush.msra.mxu0 %v2028
  %v2030 = vand.u32 %v2014, 4294901760
  %2031 = vmatpush.msra.mxu0 %v2030
  %v2032 = vand.u32 %v2013, 4294901760
  %2033 = vmatpush.msra.mxu0 %v2032
  %v2034 = vand.u32 %v2012, 4294901760
  %2035 = vmatpush.msra.mxu0 %v2034
  %v2036 = vand.u32 %v2011, 4294901760
  %2037 = vmatpush.msra.mxu0 %v2036
  %v2038 = vand.u32 %v2010, 4294901760
  %2039 = vmatpush.msra.mxu0 %v2038
  %v2040 = vand.u32 %v2009, 4294901760
  %2041 = vmatpush.msra.mxu0 %v2040
  %v2042 = vand.u32 %v2008, 4294901760
  %2043 = vmatpush.msra.mxu0 %v2042
  %v2044 = vand.u32 %v2007, 4294901760
  %2045 = vmatpush.msra.mxu0 %v2044
  %v2046 = vand.u32 %v2006, 4294901760
  %2047 = vmatpush.msra.mxu0 %v2046
  %v2048 = vand.u32 %v2005, 4294901760
  %2049 = vmatpush.msra.mxu0 %v2048
  %v2050 = vand.u32 %v2004, 4294901760
  %2051 = vmatpush.msra.mxu0 %v2050
  %v2052 = vand.u32 %v2002, 4294901760
  %v2053 = vsub.f32 %v2002, %v2052
  %v2054 = vand.u32 %v2053, 4294901760
  %v2055 = vsub.f32 %v2053, %v2054
  %v2056 = vand.u32 %v2055, 4294901760
  %2057 = vmatmul.f32.gmra.mxu0 %v2056
  %v2058 = vpop.f32.mrf.mxu0
  %v2059 = vadd.f32 0.0, %v2058
  %2060 = vdwg.mxu0
  %v2061 = vand.u32 %v2019, 4294901760
  %v2062 = vsub.f32 %v2019, %v2061
  %v2063 = vand.u32 %v2062, 4294901760
  %v2064 = vsub.f32 %v2062, %v2063
  %v2065 = vand.u32 %v2064, 4294901760
  %2066 = vmatpush.msra.mxu0 %v2065
  %v2067 = vand.u32 %v2018, 4294901760
  %v2068 = vsub.f32 %v2018, %v2067
  %v2069 = vand.u32 %v2068, 4294901760
  %v2070 = vsub.f32 %v2068, %v2069
  %v2071 = vand.u32 %v2070, 4294901760
  %2072 = vmatpush.msra.mxu0 %v2071
  %v2073 = vand.u32 %v2017, 4294901760
  %v2074 = vsub.f32 %v2017, %v2073
  %v2075 = vand.u32 %v2074, 4294901760
  %v2076 = vsub.f32 %v2074, %v2075
  %v2077 = vand.u32 %v2076, 4294901760
  %2078 = vmatpush.msra.mxu0 %v2077
  %v2079 = vand.u32 %v2016, 4294901760
  %v2080 = vsub.f32 %v2016, %v2079
  %v2081 = vand.u32 %v2080, 4294901760
  %v2082 = vsub.f32 %v2080, %v2081
  %v2083 = vand.u32 %v2082, 4294901760
  %2084 = vmatpush.msra.mxu0 %v2083
  %v2085 = vand.u32 %v2015, 4294901760
  %v2086 = vsub.f32 %v2015, %v2085
  %v2087 = vand.u32 %v2086, 4294901760
  %v2088 = vsub.f32 %v2086, %v2087
  %v2089 = vand.u32 %v2088, 4294901760
  %2090 = vmatpush.msra.mxu0 %v2089
  %v2091 = vand.u32 %v2014, 4294901760
  %v2092 = vsub.f32 %v2014, %v2091
  %v2093 = vand.u32 %v2092, 4294901760
  %v2094 = vsub.f32 %v2092, %v2093
  %v2095 = vand.u32 %v2094, 4294901760
  %2096 = vmatpush.msra.mxu0 %v2095
  %v2097 = vand.u32 %v2013, 4294901760
  %v2098 = vsub.f32 %v2013, %v2097
  %v2099 = vand.u32 %v2098, 4294901760
  %v2100 = vsub.f32 %v2098, %v2099
  %v2101 = vand.u32 %v2100, 4294901760
  %2102 = vmatpush.msra.mxu0 %v2101
  %v2103 = vand.u32 %v2012, 4294901760
  %v2104 = vsub.f32 %v2012, %v2103
  %v2105 = vand.u32 %v2104, 4294901760
  %v2106 = vsub.f32 %v2104, %v2105
  %v2107 = vand.u32 %v2106, 4294901760
  %2108 = vmatpush.msra.mxu0 %v2107
  %v2109 = vand.u32 %v2011, 4294901760
  %v2110 = vsub.f32 %v2011, %v2109
  %v2111 = vand.u32 %v2110, 4294901760
  %v2112 = vsub.f32 %v2110, %v2111
  %v2113 = vand.u32 %v2112, 4294901760
  %2114 = vmatpush.msra.mxu0 %v2113
  %v2115 = vand.u32 %v2010, 4294901760
  %v2116 = vsub.f32 %v2010, %v2115
  %v2117 = vand.u32 %v2116, 4294901760
  %v2118 = vsub.f32 %v2116, %v2117
  %v2119 = vand.u32 %v2118, 4294901760
  %2120 = vmatpush.msra.mxu0 %v2119
  %v2121 = vand.u32 %v2009, 4294901760
  %v2122 = vsub.f32 %v2009, %v2121
  %v2123 = vand.u32 %v2122, 4294901760
  %v2124 = vsub.f32 %v2122, %v2123
  %v2125 = vand.u32 %v2124, 4294901760
  %2126 = vmatpush.msra.mxu0 %v2125
  %v2127 = vand.u32 %v2008, 4294901760
  %v2128 = vsub.f32 %v2008, %v2127
  %v2129 = vand.u32 %v2128, 4294901760
  %v2130 = vsub.f32 %v2128, %v2129
  %v2131 = vand.u32 %v2130, 4294901760
  %2132 = vmatpush.msra.mxu0 %v2131
  %v2133 = vand.u32 %v2007, 4294901760
  %v2134 = vsub.f32 %v2007, %v2133
  %v2135 = vand.u32 %v2134, 4294901760
  %v2136 = vsub.f32 %v2134, %v2135
  %v2137 = vand.u32 %v2136, 4294901760
  %2138 = vmatpush.msra.mxu0 %v2137
  %v2139 = vand.u32 %v2006, 4294901760
  %v2140 = vsub.f32 %v2006, %v2139
  %v2141 = vand.u32 %v2140, 4294901760
  %v2142 = vsub.f32 %v2140, %v2141
  %v2143 = vand.u32 %v2142, 4294901760
  %2144 = vmatpush.msra.mxu0 %v2143
  %v2145 = vand.u32 %v2005, 4294901760
  %v2146 = vsub.f32 %v2005, %v2145
  %v2147 = vand.u32 %v2146, 4294901760
  %v2148 = vsub.f32 %v2146, %v2147
  %v2149 = vand.u32 %v2148, 4294901760
  %2150 = vmatpush.msra.mxu0 %v2149
  %v2151 = vand.u32 %v2004, 4294901760
  %v2152 = vsub.f32 %v2004, %v2151
  %v2153 = vand.u32 %v2152, 4294901760
  %v2154 = vsub.f32 %v2152, %v2153
  %v2155 = vand.u32 %v2154, 4294901760
  %2156 = vmatpush.msra.mxu0 %v2155
  %v2157 = vand.u32 %v2002, 4294901760
  %2158 = vmatmul.f32.gmra.mxu0 %v2157
  %v2159 = vpop.f32.mrf.mxu0
  %v2160 = vadd.f32 %v2059, %v2159
  %2161 = vdwg.mxu0
  %v2162 = vand.u32 %v2019, 4294901760
  %v2163 = vsub.f32 %v2019, %v2162
  %2164 = vmatpush.msra.mxu0 %v2163
  %v2165 = vand.u32 %v2018, 4294901760
  %v2166 = vsub.f32 %v2018, %v2165
  %2167 = vmatpush.msra.mxu0 %v2166
  %v2168 = vand.u32 %v2017, 4294901760
  %v2169 = vsub.f32 %v2017, %v2168
  %2170 = vmatpush.msra.mxu0 %v2169
  %v2171 = vand.u32 %v2016, 4294901760
  %v2172 = vsub.f32 %v2016, %v2171
  %2173 = vmatpush.msra.mxu0 %v2172
  %v2174 = vand.u32 %v2015, 4294901760
  %v2175 = vsub.f32 %v2015, %v2174
  %2176 = vmatpush.msra.mxu0 %v2175
  %v2177 = vand.u32 %v2014, 4294901760
  %v2178 = vsub.f32 %v2014, %v2177
  %2179 = vmatpush.msra.mxu0 %v2178
  %v2180 = vand.u32 %v2013, 4294901760
  %v2181 = vsub.f32 %v2013, %v2180
  %2182 = vmatpush.msra.mxu0 %v2181
  %v2183 = vand.u32 %v2012, 4294901760
  %v2184 = vsub.f32 %v2012, %v2183
  %2185 = vmatpush.msra.mxu0 %v2184
  %v2186 = vand.u32 %v2011, 4294901760
  %v2187 = vsub.f32 %v2011, %v2186
  %2188 = vmatpush.msra.mxu0 %v2187
  %v2189 = vand.u32 %v2010, 4294901760
  %v2190 = vsub.f32 %v2010, %v2189
  %2191 = vmatpush.msra.mxu0 %v2190
  %v2192 = vand.u32 %v2009, 4294901760
  %v2193 = vsub.f32 %v2009, %v2192
  %2194 = vmatpush.msra.mxu0 %v2193
  %v2195 = vand.u32 %v2008, 4294901760
  %v2196 = vsub.f32 %v2008, %v2195
  %2197 = vmatpush.msra.mxu0 %v2196
  %v2198 = vand.u32 %v2007, 4294901760
  %v2199 = vsub.f32 %v2007, %v2198
  %2200 = vmatpush.msra.mxu0 %v2199
  %v2201 = vand.u32 %v2006, 4294901760
  %v2202 = vsub.f32 %v2006, %v2201
  %2203 = vmatpush.msra.mxu0 %v2202
  %v2204 = vand.u32 %v2005, 4294901760
  %v2205 = vsub.f32 %v2005, %v2204
  %2206 = vmatpush.msra.mxu0 %v2205
  %v2207 = vand.u32 %v2004, 4294901760
  %v2208 = vsub.f32 %v2004, %v2207
  %2209 = vmatpush.msra.mxu0 %v2208
  %v2210 = vand.u32 %v2002, 4294901760
  %v2211 = vsub.f32 %v2002, %v2210
  %2212 = vmatmul.f32.gmra.mxu0 %v2211
  %v2213 = vpop.f32.mrf.mxu0
  %v2214 = vadd.f32 %v2160, %v2213
  %2215 = vdwg.mxu0
  %v2216 = vand.u32 %v2019, 4294901760
  %2217 = vmatpush.msra.mxu0 %v2216
  %v2218 = vand.u32 %v2018, 4294901760
  %2219 = vmatpush.msra.mxu0 %v2218
  %v2220 = vand.u32 %v2017, 4294901760
  %2221 = vmatpush.msra.mxu0 %v2220
  %v2222 = vand.u32 %v2016, 4294901760
  %2223 = vmatpush.msra.mxu0 %v2222
  %v2224 = vand.u32 %v2015, 4294901760
  %2225 = vmatpush.msra.mxu0 %v2224
  %v2226 = vand.u32 %v2014, 4294901760
  %2227 = vmatpush.msra.mxu0 %v2226
  %v2228 = vand.u32 %v2013, 4294901760
  %2229 = vmatpush.msra.mxu0 %v2228
  %v2230 = vand.u32 %v2012, 4294901760
  %2231 = vmatpush.msra.mxu0 %v2230
  %v2232 = vand.u32 %v2011, 4294901760
  %2233 = vmatpush.msra.mxu0 %v2232
  %v2234 = vand.u32 %v2010, 4294901760
  %2235 = vmatpush.msra.mxu0 %v2234
  %v2236 = vand.u32 %v2009, 4294901760
  %2237 = vmatpush.msra.mxu0 %v2236
  %v2238 = vand.u32 %v2008, 4294901760
  %2239 = vmatpush.msra.mxu0 %v2238
  %v2240 = vand.u32 %v2007, 4294901760
  %2241 = vmatpush.msra.mxu0 %v2240
  %v2242 = vand.u32 %v2006, 4294901760
  %2243 = vmatpush.msra.mxu0 %v2242
  %v2244 = vand.u32 %v2005, 4294901760
  %2245 = vmatpush.msra.mxu0 %v2244
  %v2246 = vand.u32 %v2004, 4294901760
  %2247 = vmatpush.msra.mxu0 %v2246
  %v2248 = vand.u32 %v2002, 4294901760
  %v2249 = vsub.f32 %v2002, %v2248
  %v2250 = vand.u32 %v2249, 4294901760
  %2251 = vmatmul.f32.gmra.mxu0 %v2250
  %v2252 = vpop.f32.mrf.mxu0
  %v2253 = vadd.f32 %v2214, %v2252
  %2254 = vdwg.mxu0
  %v2255 = vand.u32 %v2019, 4294901760
  %v2256 = vsub.f32 %v2019, %v2255
  %v2257 = vand.u32 %v2256, 4294901760
  %2258 = vmatpush.msra.mxu0 %v2257
  %v2259 = vand.u32 %v2018, 4294901760
  %v2260 = vsub.f32 %v2018, %v2259
  %v2261 = vand.u32 %v2260, 4294901760
  %2262 = vmatpush.msra.mxu0 %v2261
  %v2263 = vand.u32 %v2017, 4294901760
  %v2264 = vsub.f32 %v2017, %v2263
  %v2265 = vand.u32 %v2264, 4294901760
  %2266 = vmatpush.msra.mxu0 %v2265
  %v2267 = vand.u32 %v2016, 4294901760
  %v2268 = vsub.f32 %v2016, %v2267
  %v2269 = vand.u32 %v2268, 4294901760
  %2270 = vmatpush.msra.mxu0 %v2269
  %v2271 = vand.u32 %v2015, 4294901760
  %v2272 = vsub.f32 %v2015, %v2271
  %v2273 = vand.u32 %v2272, 4294901760
  %2274 = vmatpush.msra.mxu0 %v2273
  %v2275 = vand.u32 %v2014, 4294901760
  %v2276 = vsub.f32 %v2014, %v2275
  %v2277 = vand.u32 %v2276, 4294901760
  %2278 = vmatpush.msra.mxu0 %v2277
  %v2279 = vand.u32 %v2013, 4294901760
  %v2280 = vsub.f32 %v2013, %v2279
  %v2281 = vand.u32 %v2280, 4294901760
  %2282 = vmatpush.msra.mxu0 %v2281
  %v2283 = vand.u32 %v2012, 4294901760
  %v2284 = vsub.f32 %v2012, %v2283
  %v2285 = vand.u32 %v2284, 4294901760
  %2286 = vmatpush.msra.mxu0 %v2285
  %v2287 = vand.u32 %v2011, 4294901760
  %v2288 = vsub.f32 %v2011, %v2287
  %v2289 = vand.u32 %v2288, 4294901760
  %2290 = vmatpush.msra.mxu0 %v2289
  %v2291 = vand.u32 %v2010, 4294901760
  %v2292 = vsub.f32 %v2010, %v2291
  %v2293 = vand.u32 %v2292, 4294901760
  %2294 = vmatpush.msra.mxu0 %v2293
  %v2295 = vand.u32 %v2009, 4294901760
  %v2296 = vsub.f32 %v2009, %v2295
  %v2297 = vand.u32 %v2296, 4294901760
  %2298 = vmatpush.msra.mxu0 %v2297
  %v2299 = vand.u32 %v2008, 4294901760
  %v2300 = vsub.f32 %v2008, %v2299
  %v2301 = vand.u32 %v2300, 4294901760
  %2302 = vmatpush.msra.mxu0 %v2301
  %v2303 = vand.u32 %v2007, 4294901760
  %v2304 = vsub.f32 %v2007, %v2303
  %v2305 = vand.u32 %v2304, 4294901760
  %2306 = vmatpush.msra.mxu0 %v2305
  %v2307 = vand.u32 %v2006, 4294901760
  %v2308 = vsub.f32 %v2006, %v2307
  %v2309 = vand.u32 %v2308, 4294901760
  %2310 = vmatpush.msra.mxu0 %v2309
  %v2311 = vand.u32 %v2005, 4294901760
  %v2312 = vsub.f32 %v2005, %v2311
  %v2313 = vand.u32 %v2312, 4294901760
  %2314 = vmatpush.msra.mxu0 %v2313
  %v2315 = vand.u32 %v2004, 4294901760
  %v2316 = vsub.f32 %v2004, %v2315
  %v2317 = vand.u32 %v2316, 4294901760
  %2318 = vmatpush.msra.mxu0 %v2317
  %v2319 = vand.u32 %v2002, 4294901760
  %2320 = vmatmul.f32.gmra.mxu0 %v2319
  %v2321 = vpop.f32.mrf.mxu0
  %v2322 = vadd.f32 %v2253, %v2321
  %2323 = vdwg.mxu0
  %v2324 = vand.u32 %v2019, 4294901760
  %2325 = vmatpush.msra.mxu0 %v2324
  %v2326 = vand.u32 %v2018, 4294901760
  %2327 = vmatpush.msra.mxu0 %v2326
  %v2328 = vand.u32 %v2017, 4294901760
  %2329 = vmatpush.msra.mxu0 %v2328
  %v2330 = vand.u32 %v2016, 4294901760
  %2331 = vmatpush.msra.mxu0 %v2330
  %v2332 = vand.u32 %v2015, 4294901760
  %2333 = vmatpush.msra.mxu0 %v2332
  %v2334 = vand.u32 %v2014, 4294901760
  %2335 = vmatpush.msra.mxu0 %v2334
  %v2336 = vand.u32 %v2013, 4294901760
  %2337 = vmatpush.msra.mxu0 %v2336
  %v2338 = vand.u32 %v2012, 4294901760
  %2339 = vmatpush.msra.mxu0 %v2338
  %v2340 = vand.u32 %v2011, 4294901760
  %2341 = vmatpush.msra.mxu0 %v2340
  %v2342 = vand.u32 %v2010, 4294901760
  %2343 = vmatpush.msra.mxu0 %v2342
  %v2344 = vand.u32 %v2009, 4294901760
  %2345 = vmatpush.msra.mxu0 %v2344
  %v2346 = vand.u32 %v2008, 4294901760
  %2347 = vmatpush.msra.mxu0 %v2346
  %v2348 = vand.u32 %v2007, 4294901760
  %2349 = vmatpush.msra.mxu0 %v2348
  %v2350 = vand.u32 %v2006, 4294901760
  %2351 = vmatpush.msra.mxu0 %v2350
  %v2352 = vand.u32 %v2005, 4294901760
  %2353 = vmatpush.msra.mxu0 %v2352
  %v2354 = vand.u32 %v2004, 4294901760
  %2355 = vmatpush.msra.mxu0 %v2354
  %v2356 = vand.u32 %v2002, 4294901760
  %2357 = vmatmul.f32.gmra.mxu0 %v2356
  %v2358 = vpop.f32.mrf.mxu0
  %v2359 = vadd.f32 %v2322, %v2358
  %2360 = vdwg.mxu0
  %2361 = vst [vmem:[%s8] sm:$0xf] %v2359
  // Predicated region
  $region34: #{forward.4} parent=0 // pred_check
    _
  $region35: #{forward.4} parent=0 // pred_check_branch
    %2363 = sbr.rel (0) target = $region37
  $region36: #{forward.4} parent=0 // pred_region
    _
  $region37: #{forward.4} parent=0 // pred_fallthru
    _
  // Predicated region
  $region38: #{forward.4} parent=0 // pred_check
    _
  $region39: #{forward.4} parent=0 // pred_check_branch
    %2365 = sbr.rel (0) target = $region41
  $region40: #{forward.4} parent=0 // pred_region
    _
  $region41: #{forward.4} parent=0 // pred_fallthru
    _

// kernel: forward.3
$region0: #{forward.3}
  #allocation0 [shape = 'u32[]', space=smem, size = 0x4, offset = 0x4, fixed_abs, tag = 'smem constant byte address 0x4 - core index']
  #allocation1 [shape = 'u32[72,128]{1,0:T(1,128)}', space=vmem, size = 0x9000, scoped, tag = 'internal scratch']
  #allocation2 [shape = 'f32[32,128]{1,0:T(8,128)}', space=vmem, size = 0x4000, scoped, tag = 'scratch operand']
  #allocation3 [shape = 'f32[32,128]{1,0:T(8,128)}', space=vmem, size = 0x4000, scoped, tag = 'scratch operand']
  #allocation4 [shape = 'f32[16,128]{1,0:T(8,128)}', space=vmem, size = 0x2000, scoped, tag = 'scratch operand']
  #allocation5 [shape = 'f32[16,128]{1,0:T(8,128)}', space=vmem, size = 0x2000, scoped, tag = 'scratch operand']
  #allocation6 [shape = 'f32[32,128]{1,0:T(8,128)}', space=vmem, size = 0x4000, scoped, tag = 'scratch operand']
  #allocation7 [shape = 'f32[32,128]{1,0:T(8,128)}', space=vmem, size = 0x4000, scoped, tag = 'scratch operand']
  %s0 = inlined_call_operand.vmem [shape: f32[32,128], index: 0, kind: input, shape index: {}]
  %s1 = inlined_call_operand.vmem [shape: f32[50,128], index: 1, kind: input, shape index: {}]
  %s2 = inlined_call_operand.vmem [shape: f32[14,28], index: 2, kind: input, shape index: {}]
  %s3 = inlined_call_operand.vmem [shape: f32[128,128], index: 3, kind: input, shape index: {}]
  %s4 = inlined_call_operand.vmem [shape: f32[7,14], index: 4, kind: input, shape index: {}]
  %s5 = inlined_call_operand.vmem [shape: f32[128,128], index: 5, kind: input, shape index: {}]
  %s6 = inlined_call_operand.vmem [shape: f32[4,7], index: 6, kind: input, shape index: {}]
  %s7 = inlined_call_operand.vmem [shape: f32[128,128], index: 7, kind: input, shape index: {}]
  %s8 = inlined_call_operand.vmem [shape: f32[4,128], index: 8, kind: output, shape index: {}]
  %s9 = sld [smem:[#allocation0]]
  $region42: #{forward.3} parent=0
    _
  %s11 = ssub.s32 1, %s9
  %s12 = scalar_select 0, %s11, %s9
  // Predicated region
  $region2: #{forward.3} parent=0 // pred_check
    _
  $region3: #{forward.3} parent=0 // pred_check_branch
    %14 = sbr.rel (0) target = $region5
  $region4: #{forward.3} parent=0 // pred_region
    _
  $region5: #{forward.3} parent=0 // pred_fallthru
    _
  // Predicated region
  $region6: #{forward.3} parent=0 // pred_check
    _
  $region7: #{forward.3} parent=0 // pred_check_branch
    %16 = sbr.rel (0) target = $region9
  $region8: #{forward.3} parent=0 // pred_region
    _
  $region9: #{forward.3} parent=0 // pred_fallthru
    _
  // Predicated region
  $region10: #{forward.3} parent=0 // pred_check
    _
  $region11: #{forward.3} parent=0 // pred_check_branch
    %18 = sbr.rel (0) target = $region13
  $region12: #{forward.3} parent=0 // pred_region
    _
  $region13: #{forward.3} parent=0 // pred_fallthru
    _
  // Predicated region
  $region14: #{forward.3} parent=0 // pred_check
    _
  $region15: #{forward.3} parent=0 // pred_check_branch
    %20 = sbr.rel (0) target = $region17
  $region16: #{forward.3} parent=0 // pred_region
    _
  $region17: #{forward.3} parent=0 // pred_fallthru
    _
  // Predicated region
  $region18: #{forward.3} parent=0 // pred_check
    _
  $region19: #{forward.3} parent=0 // pred_check_branch
    %22 = sbr.rel (0) target = $region21
  $region20: #{forward.3} parent=0 // pred_region
    _
  $region21: #{forward.3} parent=0 // pred_fallthru
    _
  // Predicated region
  $region22: #{forward.3} parent=0 // pred_check
    _
  $region23: #{forward.3} parent=0 // pred_check_branch
    %24 = sbr.rel (0) target = $region25
  $region24: #{forward.3} parent=0 // pred_region
    _
  $region25: #{forward.3} parent=0 // pred_fallthru
    _
  // Predicated region
  $region26: #{forward.3} parent=0 // pred_check
    _
  $region27: #{forward.3} parent=0 // pred_check_branch
    %26 = sbr.rel (0) target = $region29
  $region28: #{forward.3} parent=0 // pred_region
    _
  $region29: #{forward.3} parent=0 // pred_fallthru
    _
  // Predicated region
  $region30: #{forward.3} parent=0 // pred_check
    _
  $region31: #{forward.3} parent=0 // pred_check_branch
    %28 = sbr.rel (0) target = $region33
  $region32: #{forward.3} parent=0 // pred_region
    _
  $region33: #{forward.3} parent=0 // pred_fallthru
    _
  %v29 = vlaneseq
  %v30 = vand.u32 %v29, 127
  %vm31 = vcmp.lt.s32.totalorder %v30, 0
  %v32 = vsub.s32 0, %v30
  %v33 = vsel %vm31, %v32, %v30
  %v34 = vshrl.u32 %v33, 5
  %v35 = vand.u32 %v33, 31
  %v36 = vsub.s32 0, %v35
  %v37 = vsel %vm31, %v36, %v35
  %vm38 = vcmp.ne.s32.totalorder %v37, 0
  %vm39 = vcmp.lt.s32.totalorder %v37, 0
  %vm40 = vmand %vm39, %vm38
  %v41 = vadd.s32 %v37, 32
  %v42 = vsel %vm40, %v41, %v37
  %vm43 = vcmp.ge.s32.totalorder %v42, 1
  %vm44 = vcmp.le.s32.totalorder %v42, 28
  %vm45 = vmand %vm43, %vm44
  %46 = vst [vmem:[#allocation2] sm:$0x1] 0.0
  %47 = vst [vmem:[#allocation2 + $0x1d] sm:$0x1] 0.0
  %48 = vst [vmem:[#allocation3] sm:$0x1] 0.0
  %49 = vst [vmem:[#allocation3 + $0x1d] sm:$0x1] 0.0
  %50 = vst [vmem:[#allocation4] sm:$0x1] 0.0
  %51 = vst [vmem:[#allocation4 + $0xf] sm:$0x1] 0.0
  %52 = vst [vmem:[#allocation5] sm:$0x1] 0.0
  %53 = vst [vmem:[#allocation5 + $0x8] sm:$0x1] 0.0
  %v54 = vld [vmem:[%s0] sm:$0xff]
  %v55 = vld [vmem:[%s0 + $0x8] sm:$0xff]
  %v56 = vld [vmem:[%s0 + $0x10] sm:$0xff]
  %v57 = vld [vmem:[%s0 + $0x18] sm:$0x3f]
  %58 = vrot.lane.b32.xlu0 %v54, 1
  %v59 = vpop.permute.xlu0 %58
  %60 = vrot.lane.b32.xlu0 %v55, 1
  %v61 = vpop.permute.xlu0 %60
  %62 = vrot.lane.b32.xlu0 %v56, 1
  %v63 = vpop.permute.xlu0 %62
  %64 = vrot.lane.b32.xlu0 %v57, 1
  %v65 = vpop.permute.xlu0 %64
  %66 = vst [vmem:[#allocation6] sm:$0xff] %v59
  %67 = vst [vmem:[#allocation6 + $0x8] sm:$0xff] %v61
  %68 = vst [vmem:[#allocation6 + $0x10] sm:$0xff] %v63
  %69 = vst [vmem:[#allocation6 + $0x18] sm:$0x3f] %v65
  %70 = vrot.lane.b32.xlu0 %v54, 127
  %v71 = vpop.permute.xlu0 %70
  %72 = vrot.lane.b32.xlu0 %v55, 127
  %v73 = vpop.permute.xlu0 %72
  %74 = vrot.lane.b32.xlu0 %v56, 127
  %v75 = vpop.permute.xlu0 %74
  %76 = vrot.lane.b32.xlu0 %v57, 127
  %v77 = vpop.permute.xlu0 %76
  %78 = vst [vmem:[#allocation7] sm:$0xff] %v71
  %79 = vst [vmem:[#allocation7 + $0x8] sm:$0xff] %v73
  %80 = vst [vmem:[#allocation7 + $0x10] sm:$0xff] %v75
  %81 = vst [vmem:[#allocation7 + $0x18] sm:$0x3f] %v77
  %v82 = vld [vmem:[#allocation6] sm:$0xff]
  %v83 = vld [vmem:[#allocation6 + $0x8] sm:$0xff]
  %v84 = vld [vmem:[#allocation6 + $0x10] sm:$0xff]
  %v85 = vld [vmem:[#allocation6 + $0x18] sm:$0xf]
  %v86 = vld [vmem:[%s0] sm:$0xff]
  %v87 = vld [vmem:[%s0 + $0x8] sm:$0xff]
  %v88 = vld [vmem:[%s0 + $0x10] sm:$0xff]
  %v89 = vld [vmem:[%s0 + $0x18] sm:$0xf]
  %v90 = vld [vmem:[#allocation7] sm:$0xff]
  %v91 = vld [vmem:[#allocation7 + $0x8] sm:$0xff]
  %v92 = vld [vmem:[#allocation7 + $0x10] sm:$0xff]
  %v93 = vld [vmem:[#allocation7 + $0x18] sm:$0xf]
  %v94 = vld [vmem:[%s1] sm:$0x1]
  %v95 = vperm.slane %v94, 0
  %v96 = vmul.f32 %v95, %v82
  %v97 = vmul.f32 %v95, %v83
  %v98 = vmul.f32 %v95, %v84
  %v99 = vmul.f32 %v95, %v85
  %v100 = vld [vmem:[%s1 + $0x1] sm:$0x1]
  %v101 = vperm.slane %v100, 0
  %v102 = vmul.f32 %v101, %v86
  %v103 = vmul.f32 %v101, %v87
  %v104 = vmul.f32 %v101, %v88
  %v105 = vmul.f32 %v101, %v89
  %v106 = vadd.f32 %v96, %v102
  %v107 = vadd.f32 %v97, %v103
  %v108 = vadd.f32 %v98, %v104
  %v109 = vadd.f32 %v99, %v105
  %v110 = vld [vmem:[%s1 + $0x2] sm:$0x1]
  %v111 = vperm.slane %v110, 0
  %v112 = vmul.f32 %v111, %v90
  %v113 = vmul.f32 %v111, %v91
  %v114 = vmul.f32 %v111, %v92
  %v115 = vmul.f32 %v111, %v93
  %v116 = vadd.f32 %v106, %v112
  %v117 = vadd.f32 %v107, %v113
  %v118 = vadd.f32 %v108, %v114
  %v119 = vadd.f32 %v109, %v115
  %v120 = vld [vmem:[#allocation6 + $0x1] sm:$0xff]
  %v121 = vld [vmem:[#allocation6 + $0x9] sm:$0xff]
  %v122 = vld [vmem:[#allocation6 + $0x11] sm:$0xff]
  %v123 = vld [vmem:[#allocation6 + $0x19] sm:$0xf]
  %v124 = vld [vmem:[%s0 + $0x1] sm:$0xff]
  %v125 = vld [vmem:[%s0 + $0x9] sm:$0xff]
  %v126 = vld [vmem:[%s0 + $0x11] sm:$0xff]
  %v127 = vld [vmem:[%s0 + $0x19] sm:$0xf]
  %v128 = vld [vmem:[#allocation7 + $0x1] sm:$0xff]
  %v129 = vld [vmem:[#allocation7 + $0x9] sm:$0xff]
  %v130 = vld [vmem:[#allocation7 + $0x11] sm:$0xff]
  %v131 = vld [vmem:[#allocation7 + $0x19] sm:$0xf]
  %v132 = vld [vmem:[%s1 + $0x3] sm:$0x1]
  %v133 = vperm.slane %v132, 0
  %v134 = vmul.f32 %v133, %v120
  %v135 = vmul.f32 %v133, %v121
  %v136 = vmul.f32 %v133, %v122
  %v137 = vmul.f32 %v133, %v123
  %v138 = vadd.f32 %v116, %v134
  %v139 = vadd.f32 %v117, %v135
  %v140 = vadd.f32 %v118, %v136
  %v141 = vadd.f32 %v119, %v137
  %v142 = vld [vmem:[%s1 + $0x4] sm:$0x1]
  %v143 = vperm.slane %v142, 0
  %v144 = vmul.f32 %v143, %v124
  %v145 = vmul.f32 %v143, %v125
  %v146 = vmul.f32 %v143, %v126
  %v147 = vmul.f32 %v143, %v127
  %v148 = vadd.f32 %v138, %v144
  %v149 = vadd.f32 %v139, %v145
  %v150 = vadd.f32 %v140, %v146
  %v151 = vadd.f32 %v141, %v147
  %v152 = vld [vmem:[%s1 + $0x5] sm:$0x1]
  %v153 = vperm.slane %v152, 0
  %v154 = vmul.f32 %v153, %v128
  %v155 = vmul.f32 %v153, %v129
  %v156 = vmul.f32 %v153, %v130
  %v157 = vmul.f32 %v153, %v131
  %v158 = vadd.f32 %v148, %v154
  %v159 = vadd.f32 %v149, %v155
  %v160 = vadd.f32 %v150, %v156
  %v161 = vadd.f32 %v151, %v157
  %v162 = vld [vmem:[#allocation6 + $0x2] sm:$0xff]
  %v163 = vld [vmem:[#allocation6 + $0xa] sm:$0xff]
  %v164 = vld [vmem:[#allocation6 + $0x12] sm:$0xff]
  %v165 = vld [vmem:[#allocation6 + $0x1a] sm:$0xf]
  %v166 = vld [vmem:[%s0 + $0x2] sm:$0xff]
  %v167 = vld [vmem:[%s0 + $0xa] sm:$0xff]
  %v168 = vld [vmem:[%s0 + $0x12] sm:$0xff]
  %v169 = vld [vmem:[%s0 + $0x1a] sm:$0xf]
  %v170 = vld [vmem:[#allocation7 + $0x2] sm:$0xff]
  %v171 = vld [vmem:[#allocation7 + $0xa] sm:$0xff]
  %v172 = vld [vmem:[#allocation7 + $0x12] sm:$0xff]
  %v173 = vld [vmem:[#allocation7 + $0x1a] sm:$0xf]
  %v174 = vld [vmem:[%s1 + $0x6] sm:$0x1]
  %v175 = vperm.slane %v174, 0
  %v176 = vmul.f32 %v175, %v162
  %v177 = vmul.f32 %v175, %v163
  %v178 = vmul.f32 %v175, %v164
  %v179 = vmul.f32 %v175, %v165
  %v180 = vadd.f32 %v158, %v176
  %v181 = vadd.f32 %v159, %v177
  %v182 = vadd.f32 %v160, %v178
  %v183 = vadd.f32 %v161, %v179
  %v184 = vld [vmem:[%s1 + $0x7] sm:$0x1]
  %v185 = vperm.slane %v184, 0
  %v186 = vmul.f32 %v185, %v166
  %v187 = vmul.f32 %v185, %v167
  %v188 = vmul.f32 %v185, %v168
  %v189 = vmul.f32 %v185, %v169
  %v190 = vadd.f32 %v180, %v186
  %v191 = vadd.f32 %v181, %v187
  %v192 = vadd.f32 %v182, %v188
  %v193 = vadd.f32 %v183, %v189
  %v194 = vld [vmem:[%s1 + $0x8] sm:$0x1]
  %v195 = vperm.slane %v194, 0
  %v196 = vmul.f32 %v195, %v170
  %v197 = vmul.f32 %v195, %v171
  %v198 = vmul.f32 %v195, %v172
  %v199 = vmul.f32 %v195, %v173
  %v200 = vadd.f32 %v190, %v196
  %v201 = vadd.f32 %v191, %v197
  %v202 = vadd.f32 %v192, %v198
  %v203 = vadd.f32 %v193, %v199
  %v204 = vld [vmem:[%s1 + $0x9] sm:$0x1]
  %v205 = vperm.slane %v204, 0
  %v206 = vadd.f32 %v200, %v205
  %v207 = vadd.f32 %v201, %v205
  %v208 = vadd.f32 %v202, %v205
  %v209 = vadd.f32 %v203, %v205
  %v210 = vmax.f32 %v206, 0.0
  %v211 = vmax.f32 %v207, 0.0
  %v212 = vmax.f32 %v208, 0.0
  %v213 = vmax.f32 %v209, 0.0
  %v214 = vsel %vm45, 1, 0
  %vm215 = vcmp.eq.s32.totalorder %v214, 1
  %v216 = vsel %vm215, %v210, 0.0
  %v217 = vsel %vm215, %v211, 0.0
  %v218 = vsel %vm215, %v212, 0.0
  %v219 = vsel %vm215, %v213, 0.0
  %220 = vst [vmem:[#allocation2 + $0x1] sm:$0xff] %v216
  %221 = vst [vmem:[#allocation2 + $0x9] sm:$0xff] %v217
  %222 = vst [vmem:[#allocation2 + $0x11] sm:$0xff] %v218
  %223 = vst [vmem:[#allocation2 + $0x19] sm:$0xf] %v219
  %v224 = vld [vmem:[#allocation2] sm:$0xff]
  %v225 = vld [vmem:[#allocation2 + $0x8] sm:$0xff]
  %v226 = vld [vmem:[#allocation2 + $0x10] sm:$0xff]
  %v227 = vld [vmem:[#allocation2 + $0x18] sm:$0x3f]
  %228 = vrot.lane.b32.xlu0 %v224, 1
  %v229 = vpop.permute.xlu0 %228
  %230 = vrot.lane.b32.xlu0 %v225, 1
  %v231 = vpop.permute.xlu0 %230
  %232 = vrot.lane.b32.xlu0 %v226, 1
  %v233 = vpop.permute.xlu0 %232
  %234 = vrot.lane.b32.xlu0 %v227, 1
  %v235 = vpop.permute.xlu0 %234
  %236 = vst [vmem:[#allocation6] sm:$0xff] %v229
  %237 = vst [vmem:[#allocation6 + $0x8] sm:$0xff] %v231
  %238 = vst [vmem:[#allocation6 + $0x10] sm:$0xff] %v233
  %239 = vst [vmem:[#allocation6 + $0x18] sm:$0x3f] %v235
  %240 = vrot.lane.b32.xlu0 %v224, 127
  %v241 = vpop.permute.xlu0 %240
  %242 = vrot.lane.b32.xlu0 %v225, 127
  %v243 = vpop.permute.xlu0 %242
  %244 = vrot.lane.b32.xlu0 %v226, 127
  %v245 = vpop.permute.xlu0 %244
  %246 = vrot.lane.b32.xlu0 %v227, 127
  %v247 = vpop.permute.xlu0 %246
  %248 = vst [vmem:[#allocation7] sm:$0xff] %v241
  %249 = vst [vmem:[#allocation7 + $0x8] sm:$0xff] %v243
  %250 = vst [vmem:[#allocation7 + $0x10] sm:$0xff] %v245
  %251 = vst [vmem:[#allocation7 + $0x18] sm:$0x3f] %v247
  %v252 = vld [vmem:[#allocation6] sm:$0xff]
  %v253 = vld [vmem:[#allocation6 + $0x8] sm:$0xff]
  %v254 = vld [vmem:[#allocation6 + $0x10] sm:$0xff]
  %v255 = vld [vmem:[#allocation6 + $0x18] sm:$0xf]
  %v256 = vld [vmem:[#allocation2] sm:$0xff]
  %v257 = vld [vmem:[#allocation2 + $0x8] sm:$0xff]
  %v258 = vld [vmem:[#allocation2 + $0x10] sm:$0xff]
  %v259 = vld [vmem:[#allocation2 + $0x18] sm:$0xf]
  %v260 = vld [vmem:[#allocation7] sm:$0xff]
  %v261 = vld [vmem:[#allocation7 + $0x8] sm:$0xff]
  %v262 = vld [vmem:[#allocation7 + $0x10] sm:$0xff]
  %v263 = vld [vmem:[#allocation7 + $0x18] sm:$0xf]
  %v264 = vld [vmem:[%s1 + $0xa] sm:$0x1]
  %v265 = vperm.slane %v264, 0
  %v266 = vmul.f32 %v265, %v252
  %v267 = vmul.f32 %v265, %v253
  %v268 = vmul.f32 %v265, %v254
  %v269 = vmul.f32 %v265, %v255
  %v270 = vld [vmem:[%s1 + $0xb] sm:$0x1]
  %v271 = vperm.slane %v270, 0
  %v272 = vmul.f32 %v271, %v256
  %v273 = vmul.f32 %v271, %v257
  %v274 = vmul.f32 %v271, %v258
  %v275 = vmul.f32 %v271, %v259
  %v276 = vadd.f32 %v266, %v272
  %v277 = vadd.f32 %v267, %v273
  %v278 = vadd.f32 %v268, %v274
  %v279 = vadd.f32 %v269, %v275
  %v280 = vld [vmem:[%s1 + $0xc] sm:$0x1]
  %v281 = vperm.slane %v280, 0
  %v282 = vmul.f32 %v281, %v260
  %v283 = vmul.f32 %v281, %v261
  %v284 = vmul.f32 %v281, %v262
  %v285 = vmul.f32 %v281, %v263
  %v286 = vadd.f32 %v276, %v282
  %v287 = vadd.f32 %v277, %v283
  %v288 = vadd.f32 %v278, %v284
  %v289 = vadd.f32 %v279, %v285
  %v290 = vld [vmem:[#allocation6 + $0x1] sm:$0xff]
  %v291 = vld [vmem:[#allocation6 + $0x9] sm:$0xff]
  %v292 = vld [vmem:[#allocation6 + $0x11] sm:$0xff]
  %v293 = vld [vmem:[#allocation6 + $0x19] sm:$0xf]
  %v294 = vld [vmem:[#allocation2 + $0x1] sm:$0xff]
  %v295 = vld [vmem:[#allocation2 + $0x9] sm:$0xff]
  %v296 = vld [vmem:[#allocation2 + $0x11] sm:$0xff]
  %v297 = vld [vmem:[#allocation2 + $0x19] sm:$0xf]
  %v298 = vld [vmem:[#allocation7 + $0x1] sm:$0xff]
  %v299 = vld [vmem:[#allocation7 + $0x9] sm:$0xff]
  %v300 = vld [vmem:[#allocation7 + $0x11] sm:$0xff]
  %v301 = vld [vmem:[#allocation7 + $0x19] sm:$0xf]
  %v302 = vld [vmem:[%s1 + $0xd] sm:$0x1]
  %v303 = vperm.slane %v302, 0
  %v304 = vmul.f32 %v303, %v290
  %v305 = vmul.f32 %v303, %v291
  %v306 = vmul.f32 %v303, %v292
  %v307 = vmul.f32 %v303, %v293
  %v308 = vadd.f32 %v286, %v304
  %v309 = vadd.f32 %v287, %v305
  %v310 = vadd.f32 %v288, %v306
  %v311 = vadd.f32 %v289, %v307
  %v312 = vld [vmem:[%s1 + $0xe] sm:$0x1]
  %v313 = vperm.slane %v312, 0
  %v314 = vmul.f32 %v313, %v294
  %v315 = vmul.f32 %v313, %v295
  %v316 = vmul.f32 %v313, %v296
  %v317 = vmul.f32 %v313, %v297
  %v318 = vadd.f32 %v308, %v314
  %v319 = vadd.f32 %v309, %v315
  %v320 = vadd.f32 %v310, %v316
  %v321 = vadd.f32 %v311, %v317
  %v322 = vld [vmem:[%s1 + $0xf] sm:$0x1]
  %v323 = vperm.slane %v322, 0
  %v324 = vmul.f32 %v323, %v298
  %v325 = vmul.f32 %v323, %v299
  %v326 = vmul.f32 %v323, %v300
  %v327 = vmul.f32 %v323, %v301
  %v328 = vadd.f32 %v318, %v324
  %v329 = vadd.f32 %v319, %v325
  %v330 = vadd.f32 %v320, %v326
  %v331 = vadd.f32 %v321, %v327
  %v332 = vld [vmem:[#allocation6 + $0x2] sm:$0xff]
  %v333 = vld [vmem:[#allocation6 + $0xa] sm:$0xff]
  %v334 = vld [vmem:[#allocation6 + $0x12] sm:$0xff]
  %v335 = vld [vmem:[#allocation6 + $0x1a] sm:$0xf]
  %v336 = vld [vmem:[#allocation2 + $0x2] sm:$0xff]
  %v337 = vld [vmem:[#allocation2 + $0xa] sm:$0xff]
  %v338 = vld [vmem:[#allocation2 + $0x12] sm:$0xff]
  %v339 = vld [vmem:[#allocation2 + $0x1a] sm:$0xf]
  %v340 = vld [vmem:[#allocation7 + $0x2] sm:$0xff]
  %v341 = vld [vmem:[#allocation7 + $0xa] sm:$0xff]
  %v342 = vld [vmem:[#allocation7 + $0x12] sm:$0xff]
  %v343 = vld [vmem:[#allocation7 + $0x1a] sm:$0xf]
  %v344 = vld [vmem:[%s1 + $0x10] sm:$0x1]
  %v345 = vperm.slane %v344, 0
  %v346 = vmul.f32 %v345, %v332
  %v347 = vmul.f32 %v345, %v333
  %v348 = vmul.f32 %v345, %v334
  %v349 = vmul.f32 %v345, %v335
  %v350 = vadd.f32 %v328, %v346
  %v351 = vadd.f32 %v329, %v347
  %v352 = vadd.f32 %v330, %v348
  %v353 = vadd.f32 %v331, %v349
  %v354 = vld [vmem:[%s1 + $0x11] sm:$0x1]
  %v355 = vperm.slane %v354, 0
  %v356 = vmul.f32 %v355, %v336
  %v357 = vmul.f32 %v355, %v337
  %v358 = vmul.f32 %v355, %v338
  %v359 = vmul.f32 %v355, %v339
  %v360 = vadd.f32 %v350, %v356
  %v361 = vadd.f32 %v351, %v357
  %v362 = vadd.f32 %v352, %v358
  %v363 = vadd.f32 %v353, %v359
  %v364 = vld [vmem:[%s1 + $0x12] sm:$0x1]
  %v365 = vperm.slane %v364, 0
  %v366 = vmul.f32 %v365, %v340
  %v367 = vmul.f32 %v365, %v341
  %v368 = vmul.f32 %v365, %v342
  %v369 = vmul.f32 %v365, %v343
  %v370 = vadd.f32 %v360, %v366
  %v371 = vadd.f32 %v361, %v367
  %v372 = vadd.f32 %v362, %v368
  %v373 = vadd.f32 %v363, %v369
  %v374 = vld [vmem:[%s1 + $0x13] sm:$0x1]
  %v375 = vperm.slane %v374, 0
  %v376 = vadd.f32 %v370, %v375
  %v377 = vadd.f32 %v371, %v375
  %v378 = vadd.f32 %v372, %v375
  %v379 = vadd.f32 %v373, %v375
  %v380 = vmax.f32 %v376, 0.0
  %v381 = vmax.f32 %v377, 0.0
  %v382 = vmax.f32 %v378, 0.0
  %v383 = vmax.f32 %v379, 0.0
  %v384 = vsel %vm215, %v380, 0.0
  %v385 = vsel %vm215, %v381, 0.0
  %v386 = vsel %vm215, %v382, 0.0
  %v387 = vsel %vm215, %v383, 0.0
  %388 = vst [vmem:[#allocation3 + $0x1] sm:$0xff] %v384
  %389 = vst [vmem:[#allocation3 + $0x9] sm:$0xff] %v385
  %390 = vst [vmem:[#allocation3 + $0x11] sm:$0xff] %v386
  %391 = vst [vmem:[#allocation3 + $0x19] sm:$0xf] %v387
  %v392 = vld [vmem:[#allocation3] sm:$0xff]
  %v393 = vld [vmem:[#allocation3 + $0x8] sm:$0xff]
  %v394 = vld [vmem:[#allocation3 + $0x10] sm:$0xff]
  %v395 = vld [vmem:[#allocation3 + $0x18] sm:$0x3f]
  %396 = vrot.lane.b32.xlu0 %v392, 1
  %v397 = vpop.permute.xlu0 %396
  %398 = vrot.lane.b32.xlu0 %v393, 1
  %v399 = vpop.permute.xlu0 %398
  %400 = vrot.lane.b32.xlu0 %v394, 1
  %v401 = vpop.permute.xlu0 %400
  %402 = vrot.lane.b32.xlu0 %v395, 1
  %v403 = vpop.permute.xlu0 %402
  %404 = vst [vmem:[#allocation6] sm:$0xff] %v397
  %405 = vst [vmem:[#allocation6 + $0x8] sm:$0xff] %v399
  %406 = vst [vmem:[#allocation6 + $0x10] sm:$0xff] %v401
  %407 = vst [vmem:[#allocation6 + $0x18] sm:$0x3f] %v403
  %408 = vrot.lane.b32.xlu0 %v392, 127
  %v409 = vpop.permute.xlu0 %408
  %410 = vrot.lane.b32.xlu0 %v393, 127
  %v411 = vpop.permute.xlu0 %410
  %412 = vrot.lane.b32.xlu0 %v394, 127
  %v413 = vpop.permute.xlu0 %412
  %414 = vrot.lane.b32.xlu0 %v395, 127
  %v415 = vpop.permute.xlu0 %414
  %416 = vst [vmem:[#allocation7] sm:$0xff] %v409
  %417 = vst [vmem:[#allocation7 + $0x8] sm:$0xff] %v411
  %418 = vst [vmem:[#allocation7 + $0x10] sm:$0xff] %v413
  %419 = vst [vmem:[#allocation7 + $0x18] sm:$0x3f] %v415
  %v420 = vld [vmem:[#allocation6] sm:$0xff]
  %v421 = vld [vmem:[#allocation6 + $0x8] sm:$0xff]
  %v422 = vld [vmem:[#allocation6 + $0x10] sm:$0xff]
  %v423 = vld [vmem:[#allocation6 + $0x18] sm:$0xf]
  %v424 = vld [vmem:[#allocation3] sm:$0xff]
  %v425 = vld [vmem:[#allocation3 + $0x8] sm:$0xff]
  %v426 = vld [vmem:[#allocation3 + $0x10] sm:$0xff]
  %v427 = vld [vmem:[#allocation3 + $0x18] sm:$0xf]
  %v428 = vld [vmem:[#allocation7] sm:$0xff]
  %v429 = vld [vmem:[#allocation7 + $0x8] sm:$0xff]
  %v430 = vld [vmem:[#allocation7 + $0x10] sm:$0xff]
  %v431 = vld [vmem:[#allocation7 + $0x18] sm:$0xf]
  %v432 = vld [vmem:[%s1 + $0x14] sm:$0x1]
  %v433 = vperm.slane %v432, 0
  %v434 = vmul.f32 %v433, %v420
  %v435 = vmul.f32 %v433, %v421
  %v436 = vmul.f32 %v433, %v422
  %v437 = vmul.f32 %v433, %v423
  %v438 = vld [vmem:[%s1 + $0x15] sm:$0x1]
  %v439 = vperm.slane %v438, 0
  %v440 = vmul.f32 %v439, %v424
  %v441 = vmul.f32 %v439, %v425
  %v442 = vmul.f32 %v439, %v426
  %v443 = vmul.f32 %v439, %v427
  %v444 = vadd.f32 %v434, %v440
  %v445 = vadd.f32 %v435, %v441
  %v446 = vadd.f32 %v436, %v442
  %v447 = vadd.f32 %v437, %v443
  %v448 = vld [vmem:[%s1 + $0x16] sm:$0x1]
  %v449 = vperm.slane %v448, 0
  %v450 = vmul.f32 %v449, %v428
  %v451 = vmul.f32 %v449, %v429
  %v452 = vmul.f32 %v449, %v430
  %v453 = vmul.f32 %v449, %v431
  %v454 = vadd.f32 %v444, %v450
  %v455 = vadd.f32 %v445, %v451
  %v456 = vadd.f32 %v446, %v452
  %v457 = vadd.f32 %v447, %v453
  %v458 = vld [vmem:[#allocation6 + $0x1] sm:$0xff]
  %v459 = vld [vmem:[#allocation6 + $0x9] sm:$0xff]
  %v460 = vld [vmem:[#allocation6 + $0x11] sm:$0xff]
  %v461 = vld [vmem:[#allocation6 + $0x19] sm:$0xf]
  %v462 = vld [vmem:[#allocation3 + $0x1] sm:$0xff]
  %v463 = vld [vmem:[#allocation3 + $0x9] sm:$0xff]
  %v464 = vld [vmem:[#allocation3 + $0x11] sm:$0xff]
  %v465 = vld [vmem:[#allocation3 + $0x19] sm:$0xf]
  %v466 = vld [vmem:[#allocation7 + $0x1] sm:$0xff]
  %v467 = vld [vmem:[#allocation7 + $0x9] sm:$0xff]
  %v468 = vld [vmem:[#allocation7 + $0x11] sm:$0xff]
  %v469 = vld [vmem:[#allocation7 + $0x19] sm:$0xf]
  %v470 = vld [vmem:[%s1 + $0x17] sm:$0x1]
  %v471 = vperm.slane %v470, 0
  %v472 = vmul.f32 %v471, %v458
  %v473 = vmul.f32 %v471, %v459
  %v474 = vmul.f32 %v471, %v460
  %v475 = vmul.f32 %v471, %v461
  %v476 = vadd.f32 %v454, %v472
  %v477 = vadd.f32 %v455, %v473
  %v478 = vadd.f32 %v456, %v474
  %v479 = vadd.f32 %v457, %v475
  %v480 = vld [vmem:[%s1 + $0x18] sm:$0x1]
  %v481 = vperm.slane %v480, 0
  %v482 = vmul.f32 %v481, %v462
  %v483 = vmul.f32 %v481, %v463
  %v484 = vmul.f32 %v481, %v464
  %v485 = vmul.f32 %v481, %v465
  %v486 = vadd.f32 %v476, %v482
  %v487 = vadd.f32 %v477, %v483
  %v488 = vadd.f32 %v478, %v484
  %v489 = vadd.f32 %v479, %v485
  %v490 = vld [vmem:[%s1 + $0x19] sm:$0x1]
  %v491 = vperm.slane %v490, 0
  %v492 = vmul.f32 %v491, %v466
  %v493 = vmul.f32 %v491, %v467
  %v494 = vmul.f32 %v491, %v468
  %v495 = vmul.f32 %v491, %v469
  %v496 = vadd.f32 %v486, %v492
  %v497 = vadd.f32 %v487, %v493
  %v498 = vadd.f32 %v488, %v494
  %v499 = vadd.f32 %v489, %v495
  %v500 = vld [vmem:[#allocation6 + $0x2] sm:$0xff]
  %v501 = vld [vmem:[#allocation6 + $0xa] sm:$0xff]
  %v502 = vld [vmem:[#allocation6 + $0x12] sm:$0xff]
  %v503 = vld [vmem:[#allocation6 + $0x1a] sm:$0xf]
  %v504 = vld [vmem:[#allocation3 + $0x2] sm:$0xff]
  %v505 = vld [vmem:[#allocation3 + $0xa] sm:$0xff]
  %v506 = vld [vmem:[#allocation3 + $0x12] sm:$0xff]
  %v507 = vld [vmem:[#allocation3 + $0x1a] sm:$0xf]
  %v508 = vld [vmem:[#allocation7 + $0x2] sm:$0xff]
  %v509 = vld [vmem:[#allocation7 + $0xa] sm:$0xff]
  %v510 = vld [vmem:[#allocation7 + $0x12] sm:$0xff]
  %v511 = vld [vmem:[#allocation7 + $0x1a] sm:$0xf]
  %v512 = vld [vmem:[%s1 + $0x1a] sm:$0x1]
  %v513 = vperm.slane %v512, 0
  %v514 = vmul.f32 %v513, %v500
  %v515 = vmul.f32 %v513, %v501
  %v516 = vmul.f32 %v513, %v502
  %v517 = vmul.f32 %v513, %v503
  %v518 = vadd.f32 %v496, %v514
  %v519 = vadd.f32 %v497, %v515
  %v520 = vadd.f32 %v498, %v516
  %v521 = vadd.f32 %v499, %v517
  %v522 = vld [vmem:[%s1 + $0x1b] sm:$0x1]
  %v523 = vperm.slane %v522, 0
  %v524 = vmul.f32 %v523, %v504
  %v525 = vmul.f32 %v523, %v505
  %v526 = vmul.f32 %v523, %v506
  %v527 = vmul.f32 %v523, %v507
  %v528 = vadd.f32 %v518, %v524
  %v529 = vadd.f32 %v519, %v525
  %v530 = vadd.f32 %v520, %v526
  %v531 = vadd.f32 %v521, %v527
  %v532 = vld [vmem:[%s1 + $0x1c] sm:$0x1]
  %v533 = vperm.slane %v532, 0
  %v534 = vmul.f32 %v533, %v508
  %v535 = vmul.f32 %v533, %v509
  %v536 = vmul.f32 %v533, %v510
  %v537 = vmul.f32 %v533, %v511
  %v538 = vadd.f32 %v528, %v534
  %v539 = vadd.f32 %v529, %v535
  %v540 = vadd.f32 %v530, %v536
  %v541 = vadd.f32 %v531, %v537
  %v542 = vld [vmem:[%s1 + $0x1d] sm:$0x1]
  %v543 = vperm.slane %v542, 0
  %v544 = vadd.f32 %v538, %v543
  %v545 = vadd.f32 %v539, %v543
  %v546 = vadd.f32 %v540, %v543
  %v547 = vadd.f32 %v541, %v543
  %v548 = vmax.f32 %v544, 0.0
  %v549 = vmax.f32 %v545, 0.0
  %v550 = vmax.f32 %v546, 0.0
  %v551 = vmax.f32 %v547, 0.0
  %v552 = vld [vmem:[%s2] sm:$0xff]
  %v553 = vld [vmem:[%s2 + $0x8] sm:$0x3f]
  %vm554 = vcmask 228352
  %v556 = vsel %vm554, %v552, 0
  %v559 = vsel %vm554, %v553, 0
  %vm561 = vcmask 1043456
  %v563 = vsel %vm561, %v551, 0
  %565 = vmatpush.msra.mxu0 0.0
  %566 = vmatpush.msra.mxu0 0.0
  %567 = vmatpush.msra.mxu0 0.0
  %568 = vmatpush.msra.mxu0 0.0
  %569 = vmatpush.msra.mxu0 0.0
  %570 = vmatpush.msra.mxu0 0.0
  %571 = vmatpush.msra.mxu0 0.0
  %572 = vmatpush.msra.mxu0 0.0
  %573 = vmatpush.msra.mxu0 0.0
  %574 = vmatpush.msra.mxu0 0.0
  %575 = vmatpush.msra.mxu0 0.0
  %576 = vmatpush.msra.mxu0 0.0
  %v577 = vand.u32 %v563, 4294901760
  %578 = vmatpush.msra.mxu0 %v577
  %v579 = vand.u32 %v550, 4294901760
  %580 = vmatpush.msra.mxu0 %v579
  %v581 = vand.u32 %v549, 4294901760
  %582 = vmatpush.msra.mxu0 %v581
  %v583 = vand.u32 %v548, 4294901760
  %584 = vmatpush.msra.mxu0 %v583
  %v585 = vand.u32 %v556, 4294901760
  %v586 = vsub.f32 %v556, %v585
  %v587 = vand.u32 %v586, 4294901760
  %v588 = vsub.f32 %v586, %v587
  %v589 = vand.u32 %v588, 4294901760
  %590 = vmatmul.f32.gmra.mxu0 %v589
  %v591 = vpop.f32.mrf.mxu0
  %v592 = vadd.f32 0.0, %v591
  %v593 = vand.u32 %v559, 4294901760
  %v594 = vsub.f32 %v559, %v593
  %v595 = vand.u32 %v594, 4294901760
  %v596 = vsub.f32 %v594, %v595
  %v597 = vand.u32 %v596, 4294901760
  %598 = vmatmul.f32.gmra.mxu0 %v597
  %v599 = vpop.f32.mrf.mxu0
  %v600 = vadd.f32 0.0, %v599
  %601 = vdwg.mxu0
  %602 = vmatpush.msra.mxu0 0.0
  %603 = vmatpush.msra.mxu0 0.0
  %604 = vmatpush.msra.mxu0 0.0
  %605 = vmatpush.msra.mxu0 0.0
  %606 = vmatpush.msra.mxu0 0.0
  %607 = vmatpush.msra.mxu0 0.0
  %608 = vmatpush.msra.mxu0 0.0
  %609 = vmatpush.msra.mxu0 0.0
  %610 = vmatpush.msra.mxu0 0.0
  %611 = vmatpush.msra.mxu0 0.0
  %612 = vmatpush.msra.mxu0 0.0
  %613 = vmatpush.msra.mxu0 0.0
  %v614 = vand.u32 %v563, 4294901760
  %v615 = vsub.f32 %v563, %v614
  %v616 = vand.u32 %v615, 4294901760
  %v617 = vsub.f32 %v615, %v616
  %v618 = vand.u32 %v617, 4294901760
  %619 = vmatpush.msra.mxu0 %v618
  %v620 = vand.u32 %v550, 4294901760
  %v621 = vsub.f32 %v550, %v620
  %v622 = vand.u32 %v621, 4294901760
  %v623 = vsub.f32 %v621, %v622
  %v624 = vand.u32 %v623, 4294901760
  %625 = vmatpush.msra.mxu0 %v624
  %v626 = vand.u32 %v549, 4294901760
  %v627 = vsub.f32 %v549, %v626
  %v628 = vand.u32 %v627, 4294901760
  %v629 = vsub.f32 %v627, %v628
  %v630 = vand.u32 %v629, 4294901760
  %631 = vmatpush.msra.mxu0 %v630
  %v632 = vand.u32 %v548, 4294901760
  %v633 = vsub.f32 %v548, %v632
  %v634 = vand.u32 %v633, 4294901760
  %v635 = vsub.f32 %v633, %v634
  %v636 = vand.u32 %v635, 4294901760
  %637 = vmatpush.msra.mxu0 %v636
  %v638 = vand.u32 %v556, 4294901760
  %639 = vmatmul.f32.gmra.mxu0 %v638
  %v640 = vpop.f32.mrf.mxu0
  %v641 = vadd.f32 %v592, %v640
  %v642 = vand.u32 %v559, 4294901760
  %643 = vmatmul.f32.gmra.mxu0 %v642
  %v644 = vpop.f32.mrf.mxu0
  %v645 = vadd.f32 %v600, %v644
  %646 = vdwg.mxu0
  %647 = vmatpush.msra.mxu0 0.0
  %648 = vmatpush.msra.mxu0 0.0
  %649 = vmatpush.msra.mxu0 0.0
  %650 = vmatpush.msra.mxu0 0.0
  %651 = vmatpush.msra.mxu0 0.0
  %652 = vmatpush.msra.mxu0 0.0
  %653 = vmatpush.msra.mxu0 0.0
  %654 = vmatpush.msra.mxu0 0.0
  %655 = vmatpush.msra.mxu0 0.0
  %656 = vmatpush.msra.mxu0 0.0
  %657 = vmatpush.msra.mxu0 0.0
  %658 = vmatpush.msra.mxu0 0.0
  %v659 = vand.u32 %v563, 4294901760
  %v660 = vsub.f32 %v563, %v659
  %661 = vmatpush.msra.mxu0 %v660
  %v662 = vand.u32 %v550, 4294901760
  %v663 = vsub.f32 %v550, %v662
  %664 = vmatpush.msra.mxu0 %v663
  %v665 = vand.u32 %v549, 4294901760
  %v666 = vsub.f32 %v549, %v665
  %667 = vmatpush.msra.mxu0 %v666
  %v668 = vand.u32 %v548, 4294901760
  %v669 = vsub.f32 %v548, %v668
  %670 = vmatpush.msra.mxu0 %v669
  %v671 = vand.u32 %v556, 4294901760
  %v672 = vsub.f32 %v556, %v671
  %673 = vmatmul.f32.gmra.mxu0 %v672
  %v674 = vpop.f32.mrf.mxu0
  %v675 = vadd.f32 %v641, %v674
  %v676 = vand.u32 %v559, 4294901760
  %v677 = vsub.f32 %v559, %v676
  %678 = vmatmul.f32.gmra.mxu0 %v677
  %v679 = vpop.f32.mrf.mxu0
  %v680 = vadd.f32 %v645, %v679
  %681 = vdwg.mxu0
  %682 = vmatpush.msra.mxu0 0.0
  %683 = vmatpush.msra.mxu0 0.0
  %684 = vmatpush.msra.mxu0 0.0
  %685 = vmatpush.msra.mxu0 0.0
  %686 = vmatpush.msra.mxu0 0.0
  %687 = vmatpush.msra.mxu0 0.0
  %688 = vmatpush.msra.mxu0 0.0
  %689 = vmatpush.msra.mxu0 0.0
  %690 = vmatpush.msra.mxu0 0.0
  %691 = vmatpush.msra.mxu0 0.0
  %692 = vmatpush.msra.mxu0 0.0
  %693 = vmatpush.msra.mxu0 0.0
  %v694 = vand.u32 %v563, 4294901760
  %695 = vmatpush.msra.mxu0 %v694
  %v696 = vand.u32 %v550, 4294901760
  %697 = vmatpush.msra.mxu0 %v696
  %v698 = vand.u32 %v549, 4294901760
  %699 = vmatpush.msra.mxu0 %v698
  %v700 = vand.u32 %v548, 4294901760
  %701 = vmatpush.msra.mxu0 %v700
  %v702 = vand.u32 %v556, 4294901760
  %v703 = vsub.f32 %v556, %v702
  %v704 = vand.u32 %v703, 4294901760
  %705 = vmatmul.f32.gmra.mxu0 %v704
  %v706 = vpop.f32.mrf.mxu0
  %v707 = vadd.f32 %v675, %v706
  %v708 = vand.u32 %v559, 4294901760
  %v709 = vsub.f32 %v559, %v708
  %v710 = vand.u32 %v709, 4294901760
  %711 = vmatmul.f32.gmra.mxu0 %v710
  %v712 = vpop.f32.mrf.mxu0
  %v713 = vadd.f32 %v680, %v712
  %714 = vdwg.mxu0
  %715 = vmatpush.msra.mxu0 0.0
  %716 = vmatpush.msra.mxu0 0.0
  %717 = vmatpush.msra.mxu0 0.0
  %718 = vmatpush.msra.mxu0 0.0
  %719 = vmatpush.msra.mxu0 0.0
  %720 = vmatpush.msra.mxu0 0.0
  %721 = vmatpush.msra.mxu0 0.0
  %722 = vmatpush.msra.mxu0 0.0
  %723 = vmatpush.msra.mxu0 0.0
  %724 = vmatpush.msra.mxu0 0.0
  %725 = vmatpush.msra.mxu0 0.0
  %726 = vmatpush.msra.mxu0 0.0
  %v727 = vand.u32 %v563, 4294901760
  %v728 = vsub.f32 %v563, %v727
  %v729 = vand.u32 %v728, 4294901760
  %730 = vmatpush.msra.mxu0 %v729
  %v731 = vand.u32 %v550, 4294901760
  %v732 = vsub.f32 %v550, %v731
  %v733 = vand.u32 %v732, 4294901760
  %734 = vmatpush.msra.mxu0 %v733
  %v735 = vand.u32 %v549, 4294901760
  %v736 = vsub.f32 %v549, %v735
  %v737 = vand.u32 %v736, 4294901760
  %738 = vmatpush.msra.mxu0 %v737
  %v739 = vand.u32 %v548, 4294901760
  %v740 = vsub.f32 %v548, %v739
  %v741 = vand.u32 %v740, 4294901760
  %742 = vmatpush.msra.mxu0 %v741
  %v743 = vand.u32 %v556, 4294901760
  %744 = vmatmul.f32.gmra.mxu0 %v743
  %v745 = vpop.f32.mrf.mxu0
  %v746 = vadd.f32 %v707, %v745
  %v747 = vand.u32 %v559, 4294901760
  %748 = vmatmul.f32.gmra.mxu0 %v747
  %v749 = vpop.f32.mrf.mxu0
  %v750 = vadd.f32 %v713, %v749
  %751 = vdwg.mxu0
  %752 = vmatpush.msra.mxu0 0.0
  %753 = vmatpush.msra.mxu0 0.0
  %754 = vmatpush.msra.mxu0 0.0
  %755 = vmatpush.msra.mxu0 0.0
  %756 = vmatpush.msra.mxu0 0.0
  %757 = vmatpush.msra.mxu0 0.0
  %758 = vmatpush.msra.mxu0 0.0
  %759 = vmatpush.msra.mxu0 0.0
  %760 = vmatpush.msra.mxu0 0.0
  %761 = vmatpush.msra.mxu0 0.0
  %762 = vmatpush.msra.mxu0 0.0
  %763 = vmatpush.msra.mxu0 0.0
  %v764 = vand.u32 %v563, 4294901760
  %765 = vmatpush.msra.mxu0 %v764
  %v766 = vand.u32 %v550, 4294901760
  %767 = vmatpush.msra.mxu0 %v766
  %v768 = vand.u32 %v549, 4294901760
  %769 = vmatpush.msra.mxu0 %v768
  %v770 = vand.u32 %v548, 4294901760
  %771 = vmatpush.msra.mxu0 %v770
  %v772 = vand.u32 %v556, 4294901760
  %773 = vmatmul.f32.gmra.mxu0 %v772
  %v774 = vpop.f32.mrf.mxu0
  %v775 = vadd.f32 %v746, %v774
  %v776 = vand.u32 %v559, 4294901760
  %777 = vmatmul.f32.gmra.mxu0 %v776
  %v778 = vpop.f32.mrf.mxu0
  %v779 = vadd.f32 %v750, %v778
  %780 = vdwg.mxu0
  %v781 = vld [vmem:[%s3] sm:$0xff]
  %v782 = vld [vmem:[%s3 + $0x8] sm:$0xff]
  %v783 = vld [vmem:[%s3 + $0x10] sm:$0xff]
  %v784 = vld [vmem:[%s3 + $0x18] sm:$0xff]
  %v785 = vld [vmem:[%s3 + $0x20] sm:$0xff]
  %v786 = vld [vmem:[%s3 + $0x28] sm:$0xff]
  %v787 = vld [vmem:[%s3 + $0x30] sm:$0xff]
  %v788 = vld [vmem:[%s3 + $0x38] sm:$0xff]
  %v789 = vld [vmem:[%s3 + $0x40] sm:$0xff]
  %v790 = vld [vmem:[%s3 + $0x48] sm:$0xff]
  %v791 = vld [vmem:[%s3 + $0x50] sm:$0xff]
  %v792 = vld [vmem:[%s3 + $0x58] sm:$0xff]
  %v793 = vld [vmem:[%s3 + $0x60] sm:$0xff]
  %v794 = vld [vmem:[%s3 + $0x68] sm:$0xff]
  %v795 = vld [vmem:[%s3 + $0x70] sm:$0xff]
  %v796 = vld [vmem:[%s3 + $0x78] sm:$0xff]
  %v797 = vand.u32 %v796, 4294901760
  %798 = vmatpush.msra.mxu0 %v797
  %v799 = vand.u32 %v795, 4294901760
  %800 = vmatpush.msra.mxu0 %v799
  %v801 = vand.u32 %v794, 4294901760
  %802 = vmatpush.msra.mxu0 %v801
  %v803 = vand.u32 %v793, 4294901760
  %804 = vmatpush.msra.mxu0 %v803
  %v805 = vand.u32 %v792, 4294901760
  %806 = vmatpush.msra.mxu0 %v805
  %v807 = vand.u32 %v791, 4294901760
  %808 = vmatpush.msra.mxu0 %v807
  %v809 = vand.u32 %v790, 4294901760
  %810 = vmatpush.msra.mxu0 %v809
  %v811 = vand.u32 %v789, 4294901760
  %812 = vmatpush.msra.mxu0 %v811
  %v813 = vand.u32 %v788, 4294901760
  %814 = vmatpush.msra.mxu0 %v813
  %v815 = vand.u32 %v787, 4294901760
  %816 = vmatpush.msra.mxu0 %v815
  %v817 = vand.u32 %v786, 4294901760
  %818 = vmatpush.msra.mxu0 %v817
  %v819 = vand.u32 %v785, 4294901760
  %820 = vmatpush.msra.mxu0 %v819
  %v821 = vand.u32 %v784, 4294901760
  %822 = vmatpush.msra.mxu0 %v821
  %v823 = vand.u32 %v783, 4294901760
  %824 = vmatpush.msra.mxu0 %v823
  %v825 = vand.u32 %v782, 4294901760
  %826 = vmatpush.msra.mxu0 %v825
  %v827 = vand.u32 %v781, 4294901760
  %828 = vmatpush.msra.mxu0 %v827
  %v829 = vand.u32 %v775, 4294901760
  %v830 = vsub.f32 %v775, %v829
  %v831 = vand.u32 %v830, 4294901760
  %v832 = vsub.f32 %v830, %v831
  %v833 = vand.u32 %v832, 4294901760
  %834 = vmatmul.f32.gmra.mxu0 %v833
  %v835 = vpop.f32.mrf.mxu0
  %v836 = vadd.f32 0.0, %v835
  %v837 = vand.u32 %v779, 4294901760
  %v838 = vsub.f32 %v779, %v837
  %v839 = vand.u32 %v838, 4294901760
  %v840 = vsub.f32 %v838, %v839
  %v841 = vand.u32 %v840, 4294901760
  %842 = vmatmul.f32.gmra.mxu0 %v841
  %v843 = vpop.f32.mrf.mxu0
  %v844 = vadd.f32 0.0, %v843
  %845 = vdwg.mxu0
  %v846 = vand.u32 %v796, 4294901760
  %v847 = vsub.f32 %v796, %v846
  %v848 = vand.u32 %v847, 4294901760
  %v849 = vsub.f32 %v847, %v848
  %v850 = vand.u32 %v849, 4294901760
  %851 = vmatpush.msra.mxu0 %v850
  %v852 = vand.u32 %v795, 4294901760
  %v853 = vsub.f32 %v795, %v852
  %v854 = vand.u32 %v853, 4294901760
  %v855 = vsub.f32 %v853, %v854
  %v856 = vand.u32 %v855, 4294901760
  %857 = vmatpush.msra.mxu0 %v856
  %v858 = vand.u32 %v794, 4294901760
  %v859 = vsub.f32 %v794, %v858
  %v860 = vand.u32 %v859, 4294901760
  %v861 = vsub.f32 %v859, %v860
  %v862 = vand.u32 %v861, 4294901760
  %863 = vmatpush.msra.mxu0 %v862
  %v864 = vand.u32 %v793, 4294901760
  %v865 = vsub.f32 %v793, %v864
  %v866 = vand.u32 %v865, 4294901760
  %v867 = vsub.f32 %v865, %v866
  %v868 = vand.u32 %v867, 4294901760
  %869 = vmatpush.msra.mxu0 %v868
  %v870 = vand.u32 %v792, 4294901760
  %v871 = vsub.f32 %v792, %v870
  %v872 = vand.u32 %v871, 4294901760
  %v873 = vsub.f32 %v871, %v872
  %v874 = vand.u32 %v873, 4294901760
  %875 = vmatpush.msra.mxu0 %v874
  %v876 = vand.u32 %v791, 4294901760
  %v877 = vsub.f32 %v791, %v876
  %v878 = vand.u32 %v877, 4294901760
  %v879 = vsub.f32 %v877, %v878
  %v880 = vand.u32 %v879, 4294901760
  %881 = vmatpush.msra.mxu0 %v880
  %v882 = vand.u32 %v790, 4294901760
  %v883 = vsub.f32 %v790, %v882
  %v884 = vand.u32 %v883, 4294901760
  %v885 = vsub.f32 %v883, %v884
  %v886 = vand.u32 %v885, 4294901760
  %887 = vmatpush.msra.mxu0 %v886
  %v888 = vand.u32 %v789, 4294901760
  %v889 = vsub.f32 %v789, %v888
  %v890 = vand.u32 %v889, 4294901760
  %v891 = vsub.f32 %v889, %v890
  %v892 = vand.u32 %v891, 4294901760
  %893 = vmatpush.msra.mxu0 %v892
  %v894 = vand.u32 %v788, 4294901760
  %v895 = vsub.f32 %v788, %v894
  %v896 = vand.u32 %v895, 4294901760
  %v897 = vsub.f32 %v895, %v896
  %v898 = vand.u32 %v897, 4294901760
  %899 = vmatpush.msra.mxu0 %v898
  %v900 = vand.u32 %v787, 4294901760
  %v901 = vsub.f32 %v787, %v900
  %v902 = vand.u32 %v901, 4294901760
  %v903 = vsub.f32 %v901, %v902
  %v904 = vand.u32 %v903, 4294901760
  %905 = vmatpush.msra.mxu0 %v904
  %v906 = vand.u32 %v786, 4294901760
  %v907 = vsub.f32 %v786, %v906
  %v908 = vand.u32 %v907, 4294901760
  %v909 = vsub.f32 %v907, %v908
  %v910 = vand.u32 %v909, 4294901760
  %911 = vmatpush.msra.mxu0 %v910
  %v912 = vand.u32 %v785, 4294901760
  %v913 = vsub.f32 %v785, %v912
  %v914 = vand.u32 %v913, 4294901760
  %v915 = vsub.f32 %v913, %v914
  %v916 = vand.u32 %v915, 4294901760
  %917 = vmatpush.msra.mxu0 %v916
  %v918 = vand.u32 %v784, 4294901760
  %v919 = vsub.f32 %v784, %v918
  %v920 = vand.u32 %v919, 4294901760
  %v921 = vsub.f32 %v919, %v920
  %v922 = vand.u32 %v921, 4294901760
  %923 = vmatpush.msra.mxu0 %v922
  %v924 = vand.u32 %v783, 4294901760
  %v925 = vsub.f32 %v783, %v924
  %v926 = vand.u32 %v925, 4294901760
  %v927 = vsub.f32 %v925, %v926
  %v928 = vand.u32 %v927, 4294901760
  %929 = vmatpush.msra.mxu0 %v928
  %v930 = vand.u32 %v782, 4294901760
  %v931 = vsub.f32 %v782, %v930
  %v932 = vand.u32 %v931, 4294901760
  %v933 = vsub.f32 %v931, %v932
  %v934 = vand.u32 %v933, 4294901760
  %935 = vmatpush.msra.mxu0 %v934
  %v936 = vand.u32 %v781, 4294901760
  %v937 = vsub.f32 %v781, %v936
  %v938 = vand.u32 %v937, 4294901760
  %v939 = vsub.f32 %v937, %v938
  %v940 = vand.u32 %v939, 4294901760
  %941 = vmatpush.msra.mxu0 %v940
  %v942 = vand.u32 %v775, 4294901760
  %943 = vmatmul.f32.gmra.mxu0 %v942
  %v944 = vpop.f32.mrf.mxu0
  %v945 = vadd.f32 %v836, %v944
  %v946 = vand.u32 %v779, 4294901760
  %947 = vmatmul.f32.gmra.mxu0 %v946
  %v948 = vpop.f32.mrf.mxu0
  %v949 = vadd.f32 %v844, %v948
  %950 = vdwg.mxu0
  %v951 = vand.u32 %v796, 4294901760
  %v952 = vsub.f32 %v796, %v951
  %953 = vmatpush.msra.mxu0 %v952
  %v954 = vand.u32 %v795, 4294901760
  %v955 = vsub.f32 %v795, %v954
  %956 = vmatpush.msra.mxu0 %v955
  %v957 = vand.u32 %v794, 4294901760
  %v958 = vsub.f32 %v794, %v957
  %959 = vmatpush.msra.mxu0 %v958
  %v960 = vand.u32 %v793, 4294901760
  %v961 = vsub.f32 %v793, %v960
  %962 = vmatpush.msra.mxu0 %v961
  %v963 = vand.u32 %v792, 4294901760
  %v964 = vsub.f32 %v792, %v963
  %965 = vmatpush.msra.mxu0 %v964
  %v966 = vand.u32 %v791, 4294901760
  %v967 = vsub.f32 %v791, %v966
  %968 = vmatpush.msra.mxu0 %v967
  %v969 = vand.u32 %v790, 4294901760
  %v970 = vsub.f32 %v790, %v969
  %971 = vmatpush.msra.mxu0 %v970
  %v972 = vand.u32 %v789, 4294901760
  %v973 = vsub.f32 %v789, %v972
  %974 = vmatpush.msra.mxu0 %v973
  %v975 = vand.u32 %v788, 4294901760
  %v976 = vsub.f32 %v788, %v975
  %977 = vmatpush.msra.mxu0 %v976
  %v978 = vand.u32 %v787, 4294901760
  %v979 = vsub.f32 %v787, %v978
  %980 = vmatpush.msra.mxu0 %v979
  %v981 = vand.u32 %v786, 4294901760
  %v982 = vsub.f32 %v786, %v981
  %983 = vmatpush.msra.mxu0 %v982
  %v984 = vand.u32 %v785, 4294901760
  %v985 = vsub.f32 %v785, %v984
  %986 = vmatpush.msra.mxu0 %v985
  %v987 = vand.u32 %v784, 4294901760
  %v988 = vsub.f32 %v784, %v987
  %989 = vmatpush.msra.mxu0 %v988
  %v990 = vand.u32 %v783, 4294901760
  %v991 = vsub.f32 %v783, %v990
  %992 = vmatpush.msra.mxu0 %v991
  %v993 = vand.u32 %v782, 4294901760
  %v994 = vsub.f32 %v782, %v993
  %995 = vmatpush.msra.mxu0 %v994
  %v996 = vand.u32 %v781, 4294901760
  %v997 = vsub.f32 %v781, %v996
  %998 = vmatpush.msra.mxu0 %v997
  %v999 = vand.u32 %v775, 4294901760
  %v1000 = vsub.f32 %v775, %v999
  %1001 = vmatmul.f32.gmra.mxu0 %v1000
  %v1002 = vpop.f32.mrf.mxu0
  %v1003 = vadd.f32 %v945, %v1002
  %v1004 = vand.u32 %v779, 4294901760
  %v1005 = vsub.f32 %v779, %v1004
  %1006 = vmatmul.f32.gmra.mxu0 %v1005
  %v1007 = vpop.f32.mrf.mxu0
  %v1008 = vadd.f32 %v949, %v1007
  %1009 = vdwg.mxu0
  %v1010 = vand.u32 %v796, 4294901760
  %1011 = vmatpush.msra.mxu0 %v1010
  %v1012 = vand.u32 %v795, 4294901760
  %1013 = vmatpush.msra.mxu0 %v1012
  %v1014 = vand.u32 %v794, 4294901760
  %1015 = vmatpush.msra.mxu0 %v1014
  %v1016 = vand.u32 %v793, 4294901760
  %1017 = vmatpush.msra.mxu0 %v1016
  %v1018 = vand.u32 %v792, 4294901760
  %1019 = vmatpush.msra.mxu0 %v1018
  %v1020 = vand.u32 %v791, 4294901760
  %1021 = vmatpush.msra.mxu0 %v1020
  %v1022 = vand.u32 %v790, 4294901760
  %1023 = vmatpush.msra.mxu0 %v1022
  %v1024 = vand.u32 %v789, 4294901760
  %1025 = vmatpush.msra.mxu0 %v1024
  %v1026 = vand.u32 %v788, 4294901760
  %1027 = vmatpush.msra.mxu0 %v1026
  %v1028 = vand.u32 %v787, 4294901760
  %1029 = vmatpush.msra.mxu0 %v1028
  %v1030 = vand.u32 %v786, 4294901760
  %1031 = vmatpush.msra.mxu0 %v1030
  %v1032 = vand.u32 %v785, 4294901760
  %1033 = vmatpush.msra.mxu0 %v1032
  %v1034 = vand.u32 %v784, 4294901760
  %1035 = vmatpush.msra.mxu0 %v1034
  %v1036 = vand.u32 %v783, 4294901760
  %1037 = vmatpush.msra.mxu0 %v1036
  %v1038 = vand.u32 %v782, 4294901760
  %1039 = vmatpush.msra.mxu0 %v1038
  %v1040 = vand.u32 %v781, 4294901760
  %1041 = vmatpush.msra.mxu0 %v1040
  %v1042 = vand.u32 %v775, 4294901760
  %v1043 = vsub.f32 %v775, %v1042
  %v1044 = vand.u32 %v1043, 4294901760
  %1045 = vmatmul.f32.gmra.mxu0 %v1044
  %v1046 = vpop.f32.mrf.mxu0
  %v1047 = vadd.f32 %v1003, %v1046
  %v1048 = vand.u32 %v779, 4294901760
  %v1049 = vsub.f32 %v779, %v1048
  %v1050 = vand.u32 %v1049, 4294901760
  %1051 = vmatmul.f32.gmra.mxu0 %v1050
  %v1052 = vpop.f32.mrf.mxu0
  %v1053 = vadd.f32 %v1008, %v1052
  %1054 = vdwg.mxu0
  %v1055 = vand.u32 %v796, 4294901760
  %v1056 = vsub.f32 %v796, %v1055
  %v1057 = vand.u32 %v1056, 4294901760
  %1058 = vmatpush.msra.mxu0 %v1057
  %v1059 = vand.u32 %v795, 4294901760
  %v1060 = vsub.f32 %v795, %v1059
  %v1061 = vand.u32 %v1060, 4294901760
  %1062 = vmatpush.msra.mxu0 %v1061
  %v1063 = vand.u32 %v794, 4294901760
  %v1064 = vsub.f32 %v794, %v1063
  %v1065 = vand.u32 %v1064, 4294901760
  %1066 = vmatpush.msra.mxu0 %v1065
  %v1067 = vand.u32 %v793, 4294901760
  %v1068 = vsub.f32 %v793, %v1067
  %v1069 = vand.u32 %v1068, 4294901760
  %1070 = vmatpush.msra.mxu0 %v1069
  %v1071 = vand.u32 %v792, 4294901760
  %v1072 = vsub.f32 %v792, %v1071
  %v1073 = vand.u32 %v1072, 4294901760
  %1074 = vmatpush.msra.mxu0 %v1073
  %v1075 = vand.u32 %v791, 4294901760
  %v1076 = vsub.f32 %v791, %v1075
  %v1077 = vand.u32 %v1076, 4294901760
  %1078 = vmatpush.msra.mxu0 %v1077
  %v1079 = vand.u32 %v790, 4294901760
  %v1080 = vsub.f32 %v790, %v1079
  %v1081 = vand.u32 %v1080, 4294901760
  %1082 = vmatpush.msra.mxu0 %v1081
  %v1083 = vand.u32 %v789, 4294901760
  %v1084 = vsub.f32 %v789, %v1083
  %v1085 = vand.u32 %v1084, 4294901760
  %1086 = vmatpush.msra.mxu0 %v1085
  %v1087 = vand.u32 %v788, 4294901760
  %v1088 = vsub.f32 %v788, %v1087
  %v1089 = vand.u32 %v1088, 4294901760
  %1090 = vmatpush.msra.mxu0 %v1089
  %v1091 = vand.u32 %v787, 4294901760
  %v1092 = vsub.f32 %v787, %v1091
  %v1093 = vand.u32 %v1092, 4294901760
  %1094 = vmatpush.msra.mxu0 %v1093
  %v1095 = vand.u32 %v786, 4294901760
  %v1096 = vsub.f32 %v786, %v1095
  %v1097 = vand.u32 %v1096, 4294901760
  %1098 = vmatpush.msra.mxu0 %v1097
  %v1099 = vand.u32 %v785, 4294901760
  %v1100 = vsub.f32 %v785, %v1099
  %v1101 = vand.u32 %v1100, 4294901760
  %1102 = vmatpush.msra.mxu0 %v1101
  %v1103 = vand.u32 %v784, 4294901760
  %v1104 = vsub.f32 %v784, %v1103
  %v1105 = vand.u32 %v1104, 4294901760
  %1106 = vmatpush.msra.mxu0 %v1105
  %v1107 = vand.u32 %v783, 4294901760
  %v1108 = vsub.f32 %v783, %v1107
  %v1109 = vand.u32 %v1108, 4294901760
  %1110 = vmatpush.msra.mxu0 %v1109
  %v1111 = vand.u32 %v782, 4294901760
  %v1112 = vsub.f32 %v782, %v1111
  %v1113 = vand.u32 %v1112, 4294901760
  %1114 = vmatpush.msra.mxu0 %v1113
  %v1115 = vand.u32 %v781, 4294901760
  %v1116 = vsub.f32 %v781, %v1115
  %v1117 = vand.u32 %v1116, 4294901760
  %1118 = vmatpush.msra.mxu0 %v1117
  %v1119 = vand.u32 %v775, 4294901760
  %1120 = vmatmul.f32.gmra.mxu0 %v1119
  %v1121 = vpop.f32.mrf.mxu0
  %v1122 = vadd.f32 %v1047, %v1121
  %v1123 = vand.u32 %v779, 4294901760
  %1124 = vmatmul.f32.gmra.mxu0 %v1123
  %v1125 = vpop.f32.mrf.mxu0
  %v1126 = vadd.f32 %v1053, %v1125
  %1127 = vdwg.mxu0
  %v1128 = vand.u32 %v796, 4294901760
  %1129 = vmatpush.msra.mxu0 %v1128
  %v1130 = vand.u32 %v795, 4294901760
  %1131 = vmatpush.msra.mxu0 %v1130
  %v1132 = vand.u32 %v794, 4294901760
  %1133 = vmatpush.msra.mxu0 %v1132
  %v1134 = vand.u32 %v793, 4294901760
  %1135 = vmatpush.msra.mxu0 %v1134
  %v1136 = vand.u32 %v792, 4294901760
  %1137 = vmatpush.msra.mxu0 %v1136
  %v1138 = vand.u32 %v791, 4294901760
  %1139 = vmatpush.msra.mxu0 %v1138
  %v1140 = vand.u32 %v790, 4294901760
  %1141 = vmatpush.msra.mxu0 %v1140
  %v1142 = vand.u32 %v789, 4294901760
  %1143 = vmatpush.msra.mxu0 %v1142
  %v1144 = vand.u32 %v788, 4294901760
  %1145 = vmatpush.msra.mxu0 %v1144
  %v1146 = vand.u32 %v787, 4294901760
  %1147 = vmatpush.msra.mxu0 %v1146
  %v1148 = vand.u32 %v786, 4294901760
  %1149 = vmatpush.msra.mxu0 %v1148
  %v1150 = vand.u32 %v785, 4294901760
  %1151 = vmatpush.msra.mxu0 %v1150
  %v1152 = vand.u32 %v784, 4294901760
  %1153 = vmatpush.msra.mxu0 %v1152
  %v1154 = vand.u32 %v783, 4294901760
  %1155 = vmatpush.msra.mxu0 %v1154
  %v1156 = vand.u32 %v782, 4294901760
  %1157 = vmatpush.msra.mxu0 %v1156
  %v1158 = vand.u32 %v781, 4294901760
  %1159 = vmatpush.msra.mxu0 %v1158
  %v1160 = vand.u32 %v775, 4294901760
  %1161 = vmatmul.f32.gmra.mxu0 %v1160
  %v1162 = vpop.f32.mrf.mxu0
  %v1163 = vadd.f32 %v1122, %v1162
  %v1164 = vand.u32 %v779, 4294901760
  %1165 = vmatmul.f32.gmra.mxu0 %v1164
  %v1166 = vpop.f32.mrf.mxu0
  %v1167 = vadd.f32 %v1126, %v1166
  %1168 = vdwg.mxu0
  %1169 = vst [vmem:[#allocation4 + $0x1] sm:$0xff] %v1163
  %1170 = vst [vmem:[#allocation4 + $0x9] sm:$0x3f] %v1167
  %v1171 = vld [vmem:[#allocation4] sm:$0xff]
  %v1172 = vld [vmem:[#allocation4 + $0x8] sm:$0xff]
  %1173 = vrot.lane.b32.xlu0 %v1171, 1
  %v1174 = vpop.permute.xlu0 %1173
  %1175 = vrot.lane.b32.xlu0 %v1172, 1
  %v1176 = vpop.permute.xlu0 %1175
  %1177 = vst [vmem:[#allocation6] sm:$0xff] %v1174
  %1178 = vst [vmem:[#allocation6 + $0x8] sm:$0xff] %v1176
  %1179 = vrot.lane.b32.xlu0 %v1171, 127
  %v1180 = vpop.permute.xlu0 %1179
  %1181 = vrot.lane.b32.xlu0 %v1172, 127
  %v1182 = vpop.permute.xlu0 %1181
  %1183 = vst [vmem:[#allocation7] sm:$0xff] %v1180
  %1184 = vst [vmem:[#allocation7 + $0x8] sm:$0xff] %v1182
  %v1185 = vld [vmem:[#allocation6] sm:$0xff]
  %v1186 = vld [vmem:[#allocation6 + $0x8] sm:$0x3f]
  %v1187 = vld [vmem:[#allocation4] sm:$0xff]
  %v1188 = vld [vmem:[#allocation4 + $0x8] sm:$0x3f]
  %v1189 = vld [vmem:[#allocation7] sm:$0xff]
  %v1190 = vld [vmem:[#allocation7 + $0x8] sm:$0x3f]
  %v1191 = vld [vmem:[%s1 + $0x1e] sm:$0x1]
  %v1192 = vperm.slane %v1191, 0
  %v1193 = vmul.f32 %v1192, %v1185
  %v1194 = vmul.f32 %v1192, %v1186
  %v1195 = vld [vmem:[%s1 + $0x1f] sm:$0x1]
  %v1196 = vperm.slane %v1195, 0
  %v1197 = vmul.f32 %v1196, %v1187
  %v1198 = vmul.f32 %v1196, %v1188
  %v1199 = vadd.f32 %v1193, %v1197
  %v1200 = vadd.f32 %v1194, %v1198
  %v1201 = vld [vmem:[%s1 + $0x20] sm:$0x1]
  %v1202 = vperm.slane %v1201, 0
  %v1203 = vmul.f32 %v1202, %v1189
  %v1204 = vmul.f32 %v1202, %v1190
  %v1205 = vadd.f32 %v1199, %v1203
  %v1206 = vadd.f32 %v1200, %v1204
  %v1207 = vld [vmem:[#allocation6 + $0x1] sm:$0xff]
  %v1208 = vld [vmem:[#allocation6 + $0x9] sm:$0x3f]
  %v1209 = vld [vmem:[#allocation4 + $0x1] sm:$0xff]
  %v1210 = vld [vmem:[#allocation4 + $0x9] sm:$0x3f]
  %v1211 = vld [vmem:[#allocation7 + $0x1] sm:$0xff]
  %v1212 = vld [vmem:[#allocation7 + $0x9] sm:$0x3f]
  %v1213 = vld [vmem:[%s1 + $0x21] sm:$0x1]
  %v1214 = vperm.slane %v1213, 0
  %v1215 = vmul.f32 %v1214, %v1207
  %v1216 = vmul.f32 %v1214, %v1208
  %v1217 = vadd.f32 %v1205, %v1215
  %v1218 = vadd.f32 %v1206, %v1216
  %v1219 = vld [vmem:[%s1 + $0x22] sm:$0x1]
  %v1220 = vperm.slane %v1219, 0
  %v1221 = vmul.f32 %v1220, %v1209
  %v1222 = vmul.f32 %v1220, %v1210
  %v1223 = vadd.f32 %v1217, %v1221
  %v1224 = vadd.f32 %v1218, %v1222
  %v1225 = vld [vmem:[%s1 + $0x23] sm:$0x1]
  %v1226 = vperm.slane %v1225, 0
  %v1227 = vmul.f32 %v1226, %v1211
  %v1228 = vmul.f32 %v1226, %v1212
  %v1229 = vadd.f32 %v1223, %v1227
  %v1230 = vadd.f32 %v1224, %v1228
  %v1231 = vld [vmem:[#allocation6 + $0x2] sm:$0xff]
  %v1232 = vld [vmem:[#allocation6 + $0xa] sm:$0x3f]
  %v1233 = vld [vmem:[#allocation4 + $0x2] sm:$0xff]
  %v1234 = vld [vmem:[#allocation4 + $0xa] sm:$0x3f]
  %v1235 = vld [vmem:[#allocation7 + $0x2] sm:$0xff]
  %v1236 = vld [vmem:[#allocation7 + $0xa] sm:$0x3f]
  %v1237 = vld [vmem:[%s1 + $0x24] sm:$0x1]
  %v1238 = vperm.slane %v1237, 0
  %v1239 = vmul.f32 %v1238, %v1231
  %v1240 = vmul.f32 %v1238, %v1232
  %v1241 = vadd.f32 %v1229, %v1239
  %v1242 = vadd.f32 %v1230, %v1240
  %v1243 = vld [vmem:[%s1 + $0x25] sm:$0x1]
  %v1244 = vperm.slane %v1243, 0
  %v1245 = vmul.f32 %v1244, %v1233
  %v1246 = vmul.f32 %v1244, %v1234
  %v1247 = vadd.f32 %v1241, %v1245
  %v1248 = vadd.f32 %v1242, %v1246
  %v1249 = vld [vmem:[%s1 + $0x26] sm:$0x1]
  %v1250 = vperm.slane %v1249, 0
  %v1251 = vmul.f32 %v1250, %v1235
  %v1252 = vmul.f32 %v1250, %v1236
  %v1253 = vadd.f32 %v1247, %v1251
  %v1254 = vadd.f32 %v1248, %v1252
  %v1255 = vld [vmem:[%s1 + $0x27] sm:$0x1]
  %v1256 = vperm.slane %v1255, 0
  %v1257 = vadd.f32 %v1253, %v1256
  %v1258 = vadd.f32 %v1254, %v1256
  %v1259 = vmax.f32 %v1257, 0.0
  %v1260 = vmax.f32 %v1258, 0.0
  %v1261 = vld [vmem:[%s4] sm:$0x7f]
  %vm1262 = vcmask 113664
  %v1264 = vsel %vm1262, %v1261, 0
  %vm1266 = vcmask 1045504
  %v1268 = vsel %vm1266, %v1260, 0
  %1270 = vmatpush.msra.mxu0 0.0
  %1271 = vmatpush.msra.mxu0 0.0
  %1272 = vmatpush.msra.mxu0 0.0
  %1273 = vmatpush.msra.mxu0 0.0
  %1274 = vmatpush.msra.mxu0 0.0
  %1275 = vmatpush.msra.mxu0 0.0
  %1276 = vmatpush.msra.mxu0 0.0
  %1277 = vmatpush.msra.mxu0 0.0
  %1278 = vmatpush.msra.mxu0 0.0
  %1279 = vmatpush.msra.mxu0 0.0
  %1280 = vmatpush.msra.mxu0 0.0
  %1281 = vmatpush.msra.mxu0 0.0
  %1282 = vmatpush.msra.mxu0 0.0
  %1283 = vmatpush.msra.mxu0 0.0
  %v1284 = vand.u32 %v1268, 4294901760
  %1285 = vmatpush.msra.mxu0 %v1284
  %v1286 = vand.u32 %v1259, 4294901760
  %1287 = vmatpush.msra.mxu0 %v1286
  %v1288 = vand.u32 %v1264, 4294901760
  %v1289 = vsub.f32 %v1264, %v1288
  %v1290 = vand.u32 %v1289, 4294901760
  %v1291 = vsub.f32 %v1289, %v1290
  %v1292 = vand.u32 %v1291, 4294901760
  %1293 = vmatmul.f32.gmra.mxu0 %v1292
  %v1294 = vpop.f32.mrf.mxu0
  %v1295 = vadd.f32 0.0, %v1294
  %1296 = vdwg.mxu0
  %1297 = vmatpush.msra.mxu0 0.0
  %1298 = vmatpush.msra.mxu0 0.0
  %1299 = vmatpush.msra.mxu0 0.0
  %1300 = vmatpush.msra.mxu0 0.0
  %1301 = vmatpush.msra.mxu0 0.0
  %1302 = vmatpush.msra.mxu0 0.0
  %1303 = vmatpush.msra.mxu0 0.0
  %1304 = vmatpush.msra.mxu0 0.0
  %1305 = vmatpush.msra.mxu0 0.0
  %1306 = vmatpush.msra.mxu0 0.0
  %1307 = vmatpush.msra.mxu0 0.0
  %1308 = vmatpush.msra.mxu0 0.0
  %1309 = vmatpush.msra.mxu0 0.0
  %1310 = vmatpush.msra.mxu0 0.0
  %v1311 = vand.u32 %v1268, 4294901760
  %v1312 = vsub.f32 %v1268, %v1311
  %v1313 = vand.u32 %v1312, 4294901760
  %v1314 = vsub.f32 %v1312, %v1313
  %v1315 = vand.u32 %v1314, 4294901760
  %1316 = vmatpush.msra.mxu0 %v1315
  %v1317 = vand.u32 %v1259, 4294901760
  %v1318 = vsub.f32 %v1259, %v1317
  %v1319 = vand.u32 %v1318, 4294901760
  %v1320 = vsub.f32 %v1318, %v1319
  %v1321 = vand.u32 %v1320, 4294901760
  %1322 = vmatpush.msra.mxu0 %v1321
  %v1323 = vand.u32 %v1264, 4294901760
  %1324 = vmatmul.f32.gmra.mxu0 %v1323
  %v1325 = vpop.f32.mrf.mxu0
  %v1326 = vadd.f32 %v1295, %v1325
  %1327 = vdwg.mxu0
  %1328 = vmatpush.msra.mxu0 0.0
  %1329 = vmatpush.msra.mxu0 0.0
  %1330 = vmatpush.msra.mxu0 0.0
  %1331 = vmatpush.msra.mxu0 0.0
  %1332 = vmatpush.msra.mxu0 0.0
  %1333 = vmatpush.msra.mxu0 0.0
  %1334 = vmatpush.msra.mxu0 0.0
  %1335 = vmatpush.msra.mxu0 0.0
  %1336 = vmatpush.msra.mxu0 0.0
  %1337 = vmatpush.msra.mxu0 0.0
  %1338 = vmatpush.msra.mxu0 0.0
  %1339 = vmatpush.msra.mxu0 0.0
  %1340 = vmatpush.msra.mxu0 0.0
  %1341 = vmatpush.msra.mxu0 0.0
  %v1342 = vand.u32 %v1268, 4294901760
  %v1343 = vsub.f32 %v1268, %v1342
  %1344 = vmatpush.msra.mxu0 %v1343
  %v1345 = vand.u32 %v1259, 4294901760
  %v1346 = vsub.f32 %v1259, %v1345
  %1347 = vmatpush.msra.mxu0 %v1346
  %v1348 = vand.u32 %v1264, 4294901760
  %v1349 = vsub.f32 %v1264, %v1348
  %1350 = vmatmul.f32.gmra.mxu0 %v1349
  %v1351 = vpop.f32.mrf.mxu0
  %v1352 = vadd.f32 %v1326, %v1351
  %1353 = vdwg.mxu0
  %1354 = vmatpush.msra.mxu0 0.0
  %1355 = vmatpush.msra.mxu0 0.0
  %1356 = vmatpush.msra.mxu0 0.0
  %1357 = vmatpush.msra.mxu0 0.0
  %1358 = vmatpush.msra.mxu0 0.0
  %1359 = vmatpush.msra.mxu0 0.0
  %1360 = vmatpush.msra.mxu0 0.0
  %1361 = vmatpush.msra.mxu0 0.0
  %1362 = vmatpush.msra.mxu0 0.0
  %1363 = vmatpush.msra.mxu0 0.0
  %1364 = vmatpush.msra.mxu0 0.0
  %1365 = vmatpush.msra.mxu0 0.0
  %1366 = vmatpush.msra.mxu0 0.0
  %1367 = vmatpush.msra.mxu0 0.0
  %v1368 = vand.u32 %v1268, 4294901760
  %1369 = vmatpush.msra.mxu0 %v1368
  %v1370 = vand.u32 %v1259, 4294901760
  %1371 = vmatpush.msra.mxu0 %v1370
  %v1372 = vand.u32 %v1264, 4294901760
  %v1373 = vsub.f32 %v1264, %v1372
  %v1374 = vand.u32 %v1373, 4294901760
  %1375 = vmatmul.f32.gmra.mxu0 %v1374
  %v1376 = vpop.f32.mrf.mxu0
  %v1377 = vadd.f32 %v1352, %v1376
  %1378 = vdwg.mxu0
  %1379 = vmatpush.msra.mxu0 0.0
  %1380 = vmatpush.msra.mxu0 0.0
  %1381 = vmatpush.msra.mxu0 0.0
  %1382 = vmatpush.msra.mxu0 0.0
  %1383 = vmatpush.msra.mxu0 0.0
  %1384 = vmatpush.msra.mxu0 0.0
  %1385 = vmatpush.msra.mxu0 0.0
  %1386 = vmatpush.msra.mxu0 0.0
  %1387 = vmatpush.msra.mxu0 0.0
  %1388 = vmatpush.msra.mxu0 0.0
  %1389 = vmatpush.msra.mxu0 0.0
  %1390 = vmatpush.msra.mxu0 0.0
  %1391 = vmatpush.msra.mxu0 0.0
  %1392 = vmatpush.msra.mxu0 0.0
  %v1393 = vand.u32 %v1268, 4294901760
  %v1394 = vsub.f32 %v1268, %v1393
  %v1395 = vand.u32 %v1394, 4294901760
  %1396 = vmatpush.msra.mxu0 %v1395
  %v1397 = vand.u32 %v1259, 4294901760
  %v1398 = vsub.f32 %v1259, %v1397
  %v1399 = vand.u32 %v1398, 4294901760
  %1400 = vmatpush.msra.mxu0 %v1399
  %v1401 = vand.u32 %v1264, 4294901760
  %1402 = vmatmul.f32.gmra.mxu0 %v1401
  %v1403 = vpop.f32.mrf.mxu0
  %v1404 = vadd.f32 %v1377, %v1403
  %1405 = vdwg.mxu0
  %1406 = vmatpush.msra.mxu0 0.0
  %1407 = vmatpush.msra.mxu0 0.0
  %1408 = vmatpush.msra.mxu0 0.0
  %1409 = vmatpush.msra.mxu0 0.0
  %1410 = vmatpush.msra.mxu0 0.0
  %1411 = vmatpush.msra.mxu0 0.0
  %1412 = vmatpush.msra.mxu0 0.0
  %1413 = vmatpush.msra.mxu0 0.0
  %1414 = vmatpush.msra.mxu0 0.0
  %1415 = vmatpush.msra.mxu0 0.0
  %1416 = vmatpush.msra.mxu0 0.0
  %1417 = vmatpush.msra.mxu0 0.0
  %1418 = vmatpush.msra.mxu0 0.0
  %1419 = vmatpush.msra.mxu0 0.0
  %v1420 = vand.u32 %v1268, 4294901760
  %1421 = vmatpush.msra.mxu0 %v1420
  %v1422 = vand.u32 %v1259, 4294901760
  %1423 = vmatpush.msra.mxu0 %v1422
  %v1424 = vand.u32 %v1264, 4294901760
  %1425 = vmatmul.f32.gmra.mxu0 %v1424
  %v1426 = vpop.f32.mrf.mxu0
  %v1427 = vadd.f32 %v1404, %v1426
  %1428 = vdwg.mxu0
  %v1429 = vld [vmem:[%s5] sm:$0xff]
  %v1430 = vld [vmem:[%s5 + $0x8] sm:$0xff]
  %v1431 = vld [vmem:[%s5 + $0x10] sm:$0xff]
  %v1432 = vld [vmem:[%s5 + $0x18] sm:$0xff]
  %v1433 = vld [vmem:[%s5 + $0x20] sm:$0xff]
  %v1434 = vld [vmem:[%s5 + $0x28] sm:$0xff]
  %v1435 = vld [vmem:[%s5 + $0x30] sm:$0xff]
  %v1436 = vld [vmem:[%s5 + $0x38] sm:$0xff]
  %v1437 = vld [vmem:[%s5 + $0x40] sm:$0xff]
  %v1438 = vld [vmem:[%s5 + $0x48] sm:$0xff]
  %v1439 = vld [vmem:[%s5 + $0x50] sm:$0xff]
  %v1440 = vld [vmem:[%s5 + $0x58] sm:$0xff]
  %v1441 = vld [vmem:[%s5 + $0x60] sm:$0xff]
  %v1442 = vld [vmem:[%s5 + $0x68] sm:$0xff]
  %v1443 = vld [vmem:[%s5 + $0x70] sm:$0xff]
  %v1444 = vld [vmem:[%s5 + $0x78] sm:$0xff]
  %v1445 = vand.u32 %v1444, 4294901760
  %1446 = vmatpush.msra.mxu0 %v1445
  %v1447 = vand.u32 %v1443, 4294901760
  %1448 = vmatpush.msra.mxu0 %v1447
  %v1449 = vand.u32 %v1442, 4294901760
  %1450 = vmatpush.msra.mxu0 %v1449
  %v1451 = vand.u32 %v1441, 4294901760
  %1452 = vmatpush.msra.mxu0 %v1451
  %v1453 = vand.u32 %v1440, 4294901760
  %1454 = vmatpush.msra.mxu0 %v1453
  %v1455 = vand.u32 %v1439, 4294901760
  %1456 = vmatpush.msra.mxu0 %v1455
  %v1457 = vand.u32 %v1438, 4294901760
  %1458 = vmatpush.msra.mxu0 %v1457
  %v1459 = vand.u32 %v1437, 4294901760
  %1460 = vmatpush.msra.mxu0 %v1459
  %v1461 = vand.u32 %v1436, 4294901760
  %1462 = vmatpush.msra.mxu0 %v1461
  %v1463 = vand.u32 %v1435, 4294901760
  %1464 = vmatpush.msra.mxu0 %v1463
  %v1465 = vand.u32 %v1434, 4294901760
  %1466 = vmatpush.msra.mxu0 %v1465
  %v1467 = vand.u32 %v1433, 4294901760
  %1468 = vmatpush.msra.mxu0 %v1467
  %v1469 = vand.u32 %v1432, 4294901760
  %1470 = vmatpush.msra.mxu0 %v1469
  %v1471 = vand.u32 %v1431, 4294901760
  %1472 = vmatpush.msra.mxu0 %v1471
  %v1473 = vand.u32 %v1430, 4294901760
  %1474 = vmatpush.msra.mxu0 %v1473
  %v1475 = vand.u32 %v1429, 4294901760
  %1476 = vmatpush.msra.mxu0 %v1475
  %v1477 = vand.u32 %v1427, 4294901760
  %v1478 = vsub.f32 %v1427, %v1477
  %v1479 = vand.u32 %v1478, 4294901760
  %v1480 = vsub.f32 %v1478, %v1479
  %v1481 = vand.u32 %v1480, 4294901760
  %1482 = vmatmul.f32.gmra.mxu0 %v1481
  %v1483 = vpop.f32.mrf.mxu0
  %v1484 = vadd.f32 0.0, %v1483
  %1485 = vdwg.mxu0
  %v1486 = vand.u32 %v1444, 4294901760
  %v1487 = vsub.f32 %v1444, %v1486
  %v1488 = vand.u32 %v1487, 4294901760
  %v1489 = vsub.f32 %v1487, %v1488
  %v1490 = vand.u32 %v1489, 4294901760
  %1491 = vmatpush.msra.mxu0 %v1490
  %v1492 = vand.u32 %v1443, 4294901760
  %v1493 = vsub.f32 %v1443, %v1492
  %v1494 = vand.u32 %v1493, 4294901760
  %v1495 = vsub.f32 %v1493, %v1494
  %v1496 = vand.u32 %v1495, 4294901760
  %1497 = vmatpush.msra.mxu0 %v1496
  %v1498 = vand.u32 %v1442, 4294901760
  %v1499 = vsub.f32 %v1442, %v1498
  %v1500 = vand.u32 %v1499, 4294901760
  %v1501 = vsub.f32 %v1499, %v1500
  %v1502 = vand.u32 %v1501, 4294901760
  %1503 = vmatpush.msra.mxu0 %v1502
  %v1504 = vand.u32 %v1441, 4294901760
  %v1505 = vsub.f32 %v1441, %v1504
  %v1506 = vand.u32 %v1505, 4294901760
  %v1507 = vsub.f32 %v1505, %v1506
  %v1508 = vand.u32 %v1507, 4294901760
  %1509 = vmatpush.msra.mxu0 %v1508
  %v1510 = vand.u32 %v1440, 4294901760
  %v1511 = vsub.f32 %v1440, %v1510
  %v1512 = vand.u32 %v1511, 4294901760
  %v1513 = vsub.f32 %v1511, %v1512
  %v1514 = vand.u32 %v1513, 4294901760
  %1515 = vmatpush.msra.mxu0 %v1514
  %v1516 = vand.u32 %v1439, 4294901760
  %v1517 = vsub.f32 %v1439, %v1516
  %v1518 = vand.u32 %v1517, 4294901760
  %v1519 = vsub.f32 %v1517, %v1518
  %v1520 = vand.u32 %v1519, 4294901760
  %1521 = vmatpush.msra.mxu0 %v1520
  %v1522 = vand.u32 %v1438, 4294901760
  %v1523 = vsub.f32 %v1438, %v1522
  %v1524 = vand.u32 %v1523, 4294901760
  %v1525 = vsub.f32 %v1523, %v1524
  %v1526 = vand.u32 %v1525, 4294901760
  %1527 = vmatpush.msra.mxu0 %v1526
  %v1528 = vand.u32 %v1437, 4294901760
  %v1529 = vsub.f32 %v1437, %v1528
  %v1530 = vand.u32 %v1529, 4294901760
  %v1531 = vsub.f32 %v1529, %v1530
  %v1532 = vand.u32 %v1531, 4294901760
  %1533 = vmatpush.msra.mxu0 %v1532
  %v1534 = vand.u32 %v1436, 4294901760
  %v1535 = vsub.f32 %v1436, %v1534
  %v1536 = vand.u32 %v1535, 4294901760
  %v1537 = vsub.f32 %v1535, %v1536
  %v1538 = vand.u32 %v1537, 4294901760
  %1539 = vmatpush.msra.mxu0 %v1538
  %v1540 = vand.u32 %v1435, 4294901760
  %v1541 = vsub.f32 %v1435, %v1540
  %v1542 = vand.u32 %v1541, 4294901760
  %v1543 = vsub.f32 %v1541, %v1542
  %v1544 = vand.u32 %v1543, 4294901760
  %1545 = vmatpush.msra.mxu0 %v1544
  %v1546 = vand.u32 %v1434, 4294901760
  %v1547 = vsub.f32 %v1434, %v1546
  %v1548 = vand.u32 %v1547, 4294901760
  %v1549 = vsub.f32 %v1547, %v1548
  %v1550 = vand.u32 %v1549, 4294901760
  %1551 = vmatpush.msra.mxu0 %v1550
  %v1552 = vand.u32 %v1433, 4294901760
  %v1553 = vsub.f32 %v1433, %v1552
  %v1554 = vand.u32 %v1553, 4294901760
  %v1555 = vsub.f32 %v1553, %v1554
  %v1556 = vand.u32 %v1555, 4294901760
  %1557 = vmatpush.msra.mxu0 %v1556
  %v1558 = vand.u32 %v1432, 4294901760
  %v1559 = vsub.f32 %v1432, %v1558
  %v1560 = vand.u32 %v1559, 4294901760
  %v1561 = vsub.f32 %v1559, %v1560
  %v1562 = vand.u32 %v1561, 4294901760
  %1563 = vmatpush.msra.mxu0 %v1562
  %v1564 = vand.u32 %v1431, 4294901760
  %v1565 = vsub.f32 %v1431, %v1564
  %v1566 = vand.u32 %v1565, 4294901760
  %v1567 = vsub.f32 %v1565, %v1566
  %v1568 = vand.u32 %v1567, 4294901760
  %1569 = vmatpush.msra.mxu0 %v1568
  %v1570 = vand.u32 %v1430, 4294901760
  %v1571 = vsub.f32 %v1430, %v1570
  %v1572 = vand.u32 %v1571, 4294901760
  %v1573 = vsub.f32 %v1571, %v1572
  %v1574 = vand.u32 %v1573, 4294901760
  %1575 = vmatpush.msra.mxu0 %v1574
  %v1576 = vand.u32 %v1429, 4294901760
  %v1577 = vsub.f32 %v1429, %v1576
  %v1578 = vand.u32 %v1577, 4294901760
  %v1579 = vsub.f32 %v1577, %v1578
  %v1580 = vand.u32 %v1579, 4294901760
  %1581 = vmatpush.msra.mxu0 %v1580
  %v1582 = vand.u32 %v1427, 4294901760
  %1583 = vmatmul.f32.gmra.mxu0 %v1582
  %v1584 = vpop.f32.mrf.mxu0
  %v1585 = vadd.f32 %v1484, %v1584
  %1586 = vdwg.mxu0
  %v1587 = vand.u32 %v1444, 4294901760
  %v1588 = vsub.f32 %v1444, %v1587
  %1589 = vmatpush.msra.mxu0 %v1588
  %v1590 = vand.u32 %v1443, 4294901760
  %v1591 = vsub.f32 %v1443, %v1590
  %1592 = vmatpush.msra.mxu0 %v1591
  %v1593 = vand.u32 %v1442, 4294901760
  %v1594 = vsub.f32 %v1442, %v1593
  %1595 = vmatpush.msra.mxu0 %v1594
  %v1596 = vand.u32 %v1441, 4294901760
  %v1597 = vsub.f32 %v1441, %v1596
  %1598 = vmatpush.msra.mxu0 %v1597
  %v1599 = vand.u32 %v1440, 4294901760
  %v1600 = vsub.f32 %v1440, %v1599
  %1601 = vmatpush.msra.mxu0 %v1600
  %v1602 = vand.u32 %v1439, 4294901760
  %v1603 = vsub.f32 %v1439, %v1602
  %1604 = vmatpush.msra.mxu0 %v1603
  %v1605 = vand.u32 %v1438, 4294901760
  %v1606 = vsub.f32 %v1438, %v1605
  %1607 = vmatpush.msra.mxu0 %v1606
  %v1608 = vand.u32 %v1437, 4294901760
  %v1609 = vsub.f32 %v1437, %v1608
  %1610 = vmatpush.msra.mxu0 %v1609
  %v1611 = vand.u32 %v1436, 4294901760
  %v1612 = vsub.f32 %v1436, %v1611
  %1613 = vmatpush.msra.mxu0 %v1612
  %v1614 = vand.u32 %v1435, 4294901760
  %v1615 = vsub.f32 %v1435, %v1614
  %1616 = vmatpush.msra.mxu0 %v1615
  %v1617 = vand.u32 %v1434, 4294901760
  %v1618 = vsub.f32 %v1434, %v1617
  %1619 = vmatpush.msra.mxu0 %v1618
  %v1620 = vand.u32 %v1433, 4294901760
  %v1621 = vsub.f32 %v1433, %v1620
  %1622 = vmatpush.msra.mxu0 %v1621
  %v1623 = vand.u32 %v1432, 4294901760
  %v1624 = vsub.f32 %v1432, %v1623
  %1625 = vmatpush.msra.mxu0 %v1624
  %v1626 = vand.u32 %v1431, 4294901760
  %v1627 = vsub.f32 %v1431, %v1626
  %1628 = vmatpush.msra.mxu0 %v1627
  %v1629 = vand.u32 %v1430, 4294901760
  %v1630 = vsub.f32 %v1430, %v1629
  %1631 = vmatpush.msra.mxu0 %v1630
  %v1632 = vand.u32 %v1429, 4294901760
  %v1633 = vsub.f32 %v1429, %v1632
  %1634 = vmatpush.msra.mxu0 %v1633
  %v1635 = vand.u32 %v1427, 4294901760
  %v1636 = vsub.f32 %v1427, %v1635
  %1637 = vmatmul.f32.gmra.mxu0 %v1636
  %v1638 = vpop.f32.mrf.mxu0
  %v1639 = vadd.f32 %v1585, %v1638
  %1640 = vdwg.mxu0
  %v1641 = vand.u32 %v1444, 4294901760
  %1642 = vmatpush.msra.mxu0 %v1641
  %v1643 = vand.u32 %v1443, 4294901760
  %1644 = vmatpush.msra.mxu0 %v1643
  %v1645 = vand.u32 %v1442, 4294901760
  %1646 = vmatpush.msra.mxu0 %v1645
  %v1647 = vand.u32 %v1441, 4294901760
  %1648 = vmatpush.msra.mxu0 %v1647
  %v1649 = vand.u32 %v1440, 4294901760
  %1650 = vmatpush.msra.mxu0 %v1649
  %v1651 = vand.u32 %v1439, 4294901760
  %1652 = vmatpush.msra.mxu0 %v1651
  %v1653 = vand.u32 %v1438, 4294901760
  %1654 = vmatpush.msra.mxu0 %v1653
  %v1655 = vand.u32 %v1437, 4294901760
  %1656 = vmatpush.msra.mxu0 %v1655
  %v1657 = vand.u32 %v1436, 4294901760
  %1658 = vmatpush.msra.mxu0 %v1657
  %v1659 = vand.u32 %v1435, 4294901760
  %1660 = vmatpush.msra.mxu0 %v1659
  %v1661 = vand.u32 %v1434, 4294901760
  %1662 = vmatpush.msra.mxu0 %v1661
  %v1663 = vand.u32 %v1433, 4294901760
  %1664 = vmatpush.msra.mxu0 %v1663
  %v1665 = vand.u32 %v1432, 4294901760
  %1666 = vmatpush.msra.mxu0 %v1665
  %v1667 = vand.u32 %v1431, 4294901760
  %1668 = vmatpush.msra.mxu0 %v1667
  %v1669 = vand.u32 %v1430, 4294901760
  %1670 = vmatpush.msra.mxu0 %v1669
  %v1671 = vand.u32 %v1429, 4294901760
  %1672 = vmatpush.msra.mxu0 %v1671
  %v1673 = vand.u32 %v1427, 4294901760
  %v1674 = vsub.f32 %v1427, %v1673
  %v1675 = vand.u32 %v1674, 4294901760
  %1676 = vmatmul.f32.gmra.mxu0 %v1675
  %v1677 = vpop.f32.mrf.mxu0
  %v1678 = vadd.f32 %v1639, %v1677
  %1679 = vdwg.mxu0
  %v1680 = vand.u32 %v1444, 4294901760
  %v1681 = vsub.f32 %v1444, %v1680
  %v1682 = vand.u32 %v1681, 4294901760
  %1683 = vmatpush.msra.mxu0 %v1682
  %v1684 = vand.u32 %v1443, 4294901760
  %v1685 = vsub.f32 %v1443, %v1684
  %v1686 = vand.u32 %v1685, 4294901760
  %1687 = vmatpush.msra.mxu0 %v1686
  %v1688 = vand.u32 %v1442, 4294901760
  %v1689 = vsub.f32 %v1442, %v1688
  %v1690 = vand.u32 %v1689, 4294901760
  %1691 = vmatpush.msra.mxu0 %v1690
  %v1692 = vand.u32 %v1441, 4294901760
  %v1693 = vsub.f32 %v1441, %v1692
  %v1694 = vand.u32 %v1693, 4294901760
  %1695 = vmatpush.msra.mxu0 %v1694
  %v1696 = vand.u32 %v1440, 4294901760
  %v1697 = vsub.f32 %v1440, %v1696
  %v1698 = vand.u32 %v1697, 4294901760
  %1699 = vmatpush.msra.mxu0 %v1698
  %v1700 = vand.u32 %v1439, 4294901760
  %v1701 = vsub.f32 %v1439, %v1700
  %v1702 = vand.u32 %v1701, 4294901760
  %1703 = vmatpush.msra.mxu0 %v1702
  %v1704 = vand.u32 %v1438, 4294901760
  %v1705 = vsub.f32 %v1438, %v1704
  %v1706 = vand.u32 %v1705, 4294901760
  %1707 = vmatpush.msra.mxu0 %v1706
  %v1708 = vand.u32 %v1437, 4294901760
  %v1709 = vsub.f32 %v1437, %v1708
  %v1710 = vand.u32 %v1709, 4294901760
  %1711 = vmatpush.msra.mxu0 %v1710
  %v1712 = vand.u32 %v1436, 4294901760
  %v1713 = vsub.f32 %v1436, %v1712
  %v1714 = vand.u32 %v1713, 4294901760
  %1715 = vmatpush.msra.mxu0 %v1714
  %v1716 = vand.u32 %v1435, 4294901760
  %v1717 = vsub.f32 %v1435, %v1716
  %v1718 = vand.u32 %v1717, 4294901760
  %1719 = vmatpush.msra.mxu0 %v1718
  %v1720 = vand.u32 %v1434, 4294901760
  %v1721 = vsub.f32 %v1434, %v1720
  %v1722 = vand.u32 %v1721, 4294901760
  %1723 = vmatpush.msra.mxu0 %v1722
  %v1724 = vand.u32 %v1433, 4294901760
  %v1725 = vsub.f32 %v1433, %v1724
  %v1726 = vand.u32 %v1725, 4294901760
  %1727 = vmatpush.msra.mxu0 %v1726
  %v1728 = vand.u32 %v1432, 4294901760
  %v1729 = vsub.f32 %v1432, %v1728
  %v1730 = vand.u32 %v1729, 4294901760
  %1731 = vmatpush.msra.mxu0 %v1730
  %v1732 = vand.u32 %v1431, 4294901760
  %v1733 = vsub.f32 %v1431, %v1732
  %v1734 = vand.u32 %v1733, 4294901760
  %1735 = vmatpush.msra.mxu0 %v1734
  %v1736 = vand.u32 %v1430, 4294901760
  %v1737 = vsub.f32 %v1430, %v1736
  %v1738 = vand.u32 %v1737, 4294901760
  %1739 = vmatpush.msra.mxu0 %v1738
  %v1740 = vand.u32 %v1429, 4294901760
  %v1741 = vsub.f32 %v1429, %v1740
  %v1742 = vand.u32 %v1741, 4294901760
  %1743 = vmatpush.msra.mxu0 %v1742
  %v1744 = vand.u32 %v1427, 4294901760
  %1745 = vmatmul.f32.gmra.mxu0 %v1744
  %v1746 = vpop.f32.mrf.mxu0
  %v1747 = vadd.f32 %v1678, %v1746
  %1748 = vdwg.mxu0
  %v1749 = vand.u32 %v1444, 4294901760
  %1750 = vmatpush.msra.mxu0 %v1749
  %v1751 = vand.u32 %v1443, 4294901760
  %1752 = vmatpush.msra.mxu0 %v1751
  %v1753 = vand.u32 %v1442, 4294901760
  %1754 = vmatpush.msra.mxu0 %v1753
  %v1755 = vand.u32 %v1441, 4294901760
  %1756 = vmatpush.msra.mxu0 %v1755
  %v1757 = vand.u32 %v1440, 4294901760
  %1758 = vmatpush.msra.mxu0 %v1757
  %v1759 = vand.u32 %v1439, 4294901760
  %1760 = vmatpush.msra.mxu0 %v1759
  %v1761 = vand.u32 %v1438, 4294901760
  %1762 = vmatpush.msra.mxu0 %v1761
  %v1763 = vand.u32 %v1437, 4294901760
  %1764 = vmatpush.msra.mxu0 %v1763
  %v1765 = vand.u32 %v1436, 4294901760
  %1766 = vmatpush.msra.mxu0 %v1765
  %v1767 = vand.u32 %v1435, 4294901760
  %1768 = vmatpush.msra.mxu0 %v1767
  %v1769 = vand.u32 %v1434, 4294901760
  %1770 = vmatpush.msra.mxu0 %v1769
  %v1771 = vand.u32 %v1433, 4294901760
  %1772 = vmatpush.msra.mxu0 %v1771
  %v1773 = vand.u32 %v1432, 4294901760
  %1774 = vmatpush.msra.mxu0 %v1773
  %v1775 = vand.u32 %v1431, 4294901760
  %1776 = vmatpush.msra.mxu0 %v1775
  %v1777 = vand.u32 %v1430, 4294901760
  %1778 = vmatpush.msra.mxu0 %v1777
  %v1779 = vand.u32 %v1429, 4294901760
  %1780 = vmatpush.msra.mxu0 %v1779
  %v1781 = vand.u32 %v1427, 4294901760
  %1782 = vmatmul.f32.gmra.mxu0 %v1781
  %v1783 = vpop.f32.mrf.mxu0
  %v1784 = vadd.f32 %v1747, %v1783
  %1785 = vdwg.mxu0
  %1786 = vst [vmem:[#allocation5 + $0x1] sm:$0x7f] %v1784
  %v1787 = vld [vmem:[#allocation5] sm:$0xff]
  %v1788 = vld [vmem:[#allocation5 + $0x8] sm:$0x1]
  %1789 = vrot.lane.b32.xlu0 %v1787, 1
  %v1790 = vpop.permute.xlu0 %1789
  %1791 = vrot.lane.b32.xlu0 %v1788, 1
  %v1792 = vpop.permute.xlu0 %1791
  %1793 = vst [vmem:[#allocation6] sm:$0xff] %v1790
  %1794 = vst [vmem:[#allocation6 + $0x8] sm:$0x1] %v1792
  %1795 = vrot.lane.b32.xlu0 %v1787, 127
  %v1796 = vpop.permute.xlu0 %1795
  %1797 = vrot.lane.b32.xlu0 %v1788, 127
  %v1798 = vpop.permute.xlu0 %1797
  %1799 = vst [vmem:[#allocation7] sm:$0xff] %v1796
  %1800 = vst [vmem:[#allocation7 + $0x8] sm:$0x1] %v1798
  %v1801 = vld [vmem:[#allocation6] sm:$0x7f]
  %v1802 = vld [vmem:[#allocation5] sm:$0x7f]
  %v1803 = vld [vmem:[#allocation7] sm:$0x7f]
  %v1804 = vld [vmem:[%s1 + $0x28] sm:$0x1]
  %v1805 = vperm.slane %v1804, 0
  %v1806 = vmul.f32 %v1805, %v1801
  %v1807 = vld [vmem:[%s1 + $0x29] sm:$0x1]
  %v1808 = vperm.slane %v1807, 0
  %v1809 = vmul.f32 %v1808, %v1802
  %v1810 = vadd.f32 %v1806, %v1809
  %v1811 = vld [vmem:[%s1 + $0x2a] sm:$0x1]
  %v1812 = vperm.slane %v1811, 0
  %v1813 = vmul.f32 %v1812, %v1803
  %v1814 = vadd.f32 %v1810, %v1813
  %v1815 = vld [vmem:[#allocation6 + $0x1] sm:$0x7f]
  %v1816 = vld [vmem:[#allocation5 + $0x1] sm:$0x7f]
  %v1817 = vld [vmem:[#allocation7 + $0x1] sm:$0x7f]
  %v1818 = vld [vmem:[%s1 + $0x2b] sm:$0x1]
  %v1819 = vperm.slane %v1818, 0
  %v1820 = vmul.f32 %v1819, %v1815
  %v1821 = vadd.f32 %v1814, %v1820
  %v1822 = vld [vmem:[%s1 + $0x2c] sm:$0x1]
  %v1823 = vperm.slane %v1822, 0
  %v1824 = vmul.f32 %v1823, %v1816
  %v1825 = vadd.f32 %v1821, %v1824
  %v1826 = vld [vmem:[%s1 + $0x2d] sm:$0x1]
  %v1827 = vperm.slane %v1826, 0
  %v1828 = vmul.f32 %v1827, %v1817
  %v1829 = vadd.f32 %v1825, %v1828
  %v1830 = vld [vmem:[#allocation6 + $0x2] sm:$0x7f]
  %v1831 = vld [vmem:[#allocation5 + $0x2] sm:$0x7f]
  %v1832 = vld [vmem:[#allocation7 + $0x2] sm:$0x7f]
  %v1833 = vld [vmem:[%s1 + $0x2e] sm:$0x1]
  %v1834 = vperm.slane %v1833, 0
  %v1835 = vmul.f32 %v1834, %v1830
  %v1836 = vadd.f32 %v1829, %v1835
  %v1837 = vld [vmem:[%s1 + $0x2f] sm:$0x1]
  %v1838 = vperm.slane %v1837, 0
  %v1839 = vmul.f32 %v1838, %v1831
  %v1840 = vadd.f32 %v1836, %v1839
  %v1841 = vld [vmem:[%s1 + $0x30] sm:$0x1]
  %v1842 = vperm.slane %v1841, 0
  %v1843 = vmul.f32 %v1842, %v1832
  %v1844 = vadd.f32 %v1840, %v1843
  %v1845 = vld [vmem:[%s1 + $0x31] sm:$0x1]
  %v1846 = vperm.slane %v1845, 0
  %v1847 = vadd.f32 %v1844, %v1846
  %v1848 = vmax.f32 %v1847, 0.0
  %v1849 = vld [vmem:[%s6] sm:$0xf]
  %vm1850 = vcmask 56320
  %v1852 = vsel %vm1850, %v1849, 0
  %vm1854 = vcmask 1046528
  %v1856 = vsel %vm1854, %v1848, 0
  %1858 = vmatpush.msra.mxu0 0.0
  %1859 = vmatpush.msra.mxu0 0.0
  %1860 = vmatpush.msra.mxu0 0.0
  %1861 = vmatpush.msra.mxu0 0.0
  %1862 = vmatpush.msra.mxu0 0.0
  %1863 = vmatpush.msra.mxu0 0.0
  %1864 = vmatpush.msra.mxu0 0.0
  %1865 = vmatpush.msra.mxu0 0.0
  %1866 = vmatpush.msra.mxu0 0.0
  %1867 = vmatpush.msra.mxu0 0.0
  %1868 = vmatpush.msra.mxu0 0.0
  %1869 = vmatpush.msra.mxu0 0.0
  %1870 = vmatpush.msra.mxu0 0.0
  %1871 = vmatpush.msra.mxu0 0.0
  %1872 = vmatpush.msra.mxu0 0.0
  %v1873 = vand.u32 %v1856, 4294901760
  %1874 = vmatpush.msra.mxu0 %v1873
  %v1875 = vand.u32 %v1852, 4294901760
  %v1876 = vsub.f32 %v1852, %v1875
  %v1877 = vand.u32 %v1876, 4294901760
  %v1878 = vsub.f32 %v1876, %v1877
  %v1879 = vand.u32 %v1878, 4294901760
  %1880 = vmatmul.f32.gmra.mxu0 %v1879
  %v1881 = vpop.f32.mrf.mxu0
  %v1882 = vadd.f32 0.0, %v1881
  %1883 = vdwg.mxu0
  %1884 = vmatpush.msra.mxu0 0.0
  %1885 = vmatpush.msra.mxu0 0.0
  %1886 = vmatpush.msra.mxu0 0.0
  %1887 = vmatpush.msra.mxu0 0.0
  %1888 = vmatpush.msra.mxu0 0.0
  %1889 = vmatpush.msra.mxu0 0.0
  %1890 = vmatpush.msra.mxu0 0.0
  %1891 = vmatpush.msra.mxu0 0.0
  %1892 = vmatpush.msra.mxu0 0.0
  %1893 = vmatpush.msra.mxu0 0.0
  %1894 = vmatpush.msra.mxu0 0.0
  %1895 = vmatpush.msra.mxu0 0.0
  %1896 = vmatpush.msra.mxu0 0.0
  %1897 = vmatpush.msra.mxu0 0.0
  %1898 = vmatpush.msra.mxu0 0.0
  %v1899 = vand.u32 %v1856, 4294901760
  %v1900 = vsub.f32 %v1856, %v1899
  %v1901 = vand.u32 %v1900, 4294901760
  %v1902 = vsub.f32 %v1900, %v1901
  %v1903 = vand.u32 %v1902, 4294901760
  %1904 = vmatpush.msra.mxu0 %v1903
  %v1905 = vand.u32 %v1852, 4294901760
  %1906 = vmatmul.f32.gmra.mxu0 %v1905
  %v1907 = vpop.f32.mrf.mxu0
  %v1908 = vadd.f32 %v1882, %v1907
  %1909 = vdwg.mxu0
  %1910 = vmatpush.msra.mxu0 0.0
  %1911 = vmatpush.msra.mxu0 0.0
  %1912 = vmatpush.msra.mxu0 0.0
  %1913 = vmatpush.msra.mxu0 0.0
  %1914 = vmatpush.msra.mxu0 0.0
  %1915 = vmatpush.msra.mxu0 0.0
  %1916 = vmatpush.msra.mxu0 0.0
  %1917 = vmatpush.msra.mxu0 0.0
  %1918 = vmatpush.msra.mxu0 0.0
  %1919 = vmatpush.msra.mxu0 0.0
  %1920 = vmatpush.msra.mxu0 0.0
  %1921 = vmatpush.msra.mxu0 0.0
  %1922 = vmatpush.msra.mxu0 0.0
  %1923 = vmatpush.msra.mxu0 0.0
  %1924 = vmatpush.msra.mxu0 0.0
  %v1925 = vand.u32 %v1856, 4294901760
  %v1926 = vsub.f32 %v1856, %v1925
  %1927 = vmatpush.msra.mxu0 %v1926
  %v1928 = vand.u32 %v1852, 4294901760
  %v1929 = vsub.f32 %v1852, %v1928
  %1930 = vmatmul.f32.gmra.mxu0 %v1929
  %v1931 = vpop.f32.mrf.mxu0
  %v1932 = vadd.f32 %v1908, %v1931
  %1933 = vdwg.mxu0
  %1934 = vmatpush.msra.mxu0 0.0
  %1935 = vmatpush.msra.mxu0 0.0
  %1936 = vmatpush.msra.mxu0 0.0
  %1937 = vmatpush.msra.mxu0 0.0
  %1938 = vmatpush.msra.mxu0 0.0
  %1939 = vmatpush.msra.mxu0 0.0
  %1940 = vmatpush.msra.mxu0 0.0
  %1941 = vmatpush.msra.mxu0 0.0
  %1942 = vmatpush.msra.mxu0 0.0
  %1943 = vmatpush.msra.mxu0 0.0
  %1944 = vmatpush.msra.mxu0 0.0
  %1945 = vmatpush.msra.mxu0 0.0
  %1946 = vmatpush.msra.mxu0 0.0
  %1947 = vmatpush.msra.mxu0 0.0
  %1948 = vmatpush.msra.mxu0 0.0
  %v1949 = vand.u32 %v1856, 4294901760
  %1950 = vmatpush.msra.mxu0 %v1949
  %v1951 = vand.u32 %v1852, 4294901760
  %v1952 = vsub.f32 %v1852, %v1951
  %v1953 = vand.u32 %v1952, 4294901760
  %1954 = vmatmul.f32.gmra.mxu0 %v1953
  %v1955 = vpop.f32.mrf.mxu0
  %v1956 = vadd.f32 %v1932, %v1955
  %1957 = vdwg.mxu0
  %1958 = vmatpush.msra.mxu0 0.0
  %1959 = vmatpush.msra.mxu0 0.0
  %1960 = vmatpush.msra.mxu0 0.0
  %1961 = vmatpush.msra.mxu0 0.0
  %1962 = vmatpush.msra.mxu0 0.0
  %1963 = vmatpush.msra.mxu0 0.0
  %1964 = vmatpush.msra.mxu0 0.0
  %1965 = vmatpush.msra.mxu0 0.0
  %1966 = vmatpush.msra.mxu0 0.0
  %1967 = vmatpush.msra.mxu0 0.0
  %1968 = vmatpush.msra.mxu0 0.0
  %1969 = vmatpush.msra.mxu0 0.0
  %1970 = vmatpush.msra.mxu0 0.0
  %1971 = vmatpush.msra.mxu0 0.0
  %1972 = vmatpush.msra.mxu0 0.0
  %v1973 = vand.u32 %v1856, 4294901760
  %v1974 = vsub.f32 %v1856, %v1973
  %v1975 = vand.u32 %v1974, 4294901760
  %1976 = vmatpush.msra.mxu0 %v1975
  %v1977 = vand.u32 %v1852, 4294901760
  %1978 = vmatmul.f32.gmra.mxu0 %v1977
  %v1979 = vpop.f32.mrf.mxu0
  %v1980 = vadd.f32 %v1956, %v1979
  %1981 = vdwg.mxu0
  %1982 = vmatpush.msra.mxu0 0.0
  %1983 = vmatpush.msra.mxu0 0.0
  %1984 = vmatpush.msra.mxu0 0.0
  %1985 = vmatpush.msra.mxu0 0.0
  %1986 = vmatpush.msra.mxu0 0.0
  %1987 = vmatpush.msra.mxu0 0.0
  %1988 = vmatpush.msra.mxu0 0.0
  %1989 = vmatpush.msra.mxu0 0.0
  %1990 = vmatpush.msra.mxu0 0.0
  %1991 = vmatpush.msra.mxu0 0.0
  %1992 = vmatpush.msra.mxu0 0.0
  %1993 = vmatpush.msra.mxu0 0.0
  %1994 = vmatpush.msra.mxu0 0.0
  %1995 = vmatpush.msra.mxu0 0.0
  %1996 = vmatpush.msra.mxu0 0.0
  %v1997 = vand.u32 %v1856, 4294901760
  %1998 = vmatpush.msra.mxu0 %v1997
  %v1999 = vand.u32 %v1852, 4294901760
  %2000 = vmatmul.f32.gmra.mxu0 %v1999
  %v2001 = vpop.f32.mrf.mxu0
  %v2002 = vadd.f32 %v1980, %v2001
  %2003 = vdwg.mxu0
  %v2004 = vld [vmem:[%s7] sm:$0xff]
  %v2005 = vld [vmem:[%s7 + $0x8] sm:$0xff]
  %v2006 = vld [vmem:[%s7 + $0x10] sm:$0xff]
  %v2007 = vld [vmem:[%s7 + $0x18] sm:$0xff]
  %v2008 = vld [vmem:[%s7 + $0x20] sm:$0xff]
  %v2009 = vld [vmem:[%s7 + $0x28] sm:$0xff]
  %v2010 = vld [vmem:[%s7 + $0x30] sm:$0xff]
  %v2011 = vld [vmem:[%s7 + $0x38] sm:$0xff]
  %v2012 = vld [vmem:[%s7 + $0x40] sm:$0xff]
  %v2013 = vld [vmem:[%s7 + $0x48] sm:$0xff]
  %v2014 = vld [vmem:[%s7 + $0x50] sm:$0xff]
  %v2015 = vld [vmem:[%s7 + $0x58] sm:$0xff]
  %v2016 = vld [vmem:[%s7 + $0x60] sm:$0xff]
  %v2017 = vld [vmem:[%s7 + $0x68] sm:$0xff]
  %v2018 = vld [vmem:[%s7 + $0x70] sm:$0xff]
  %v2019 = vld [vmem:[%s7 + $0x78] sm:$0xff]
  %v2020 = vand.u32 %v2019, 4294901760
  %2021 = vmatpush.msra.mxu0 %v2020
  %v2022 = vand.u32 %v2018, 4294901760
  %2023 = vmatpush.msra.mxu0 %v2022
  %v2024 = vand.u32 %v2017, 4294901760
  %2025 = vmatpush.msra.mxu0 %v2024
  %v2026 = vand.u32 %v2016, 4294901760
  %2027 = vmatpush.msra.mxu0 %v2026
  %v2028 = vand.u32 %v2015, 4294901760
  %2029 = vmatpush.msra.mxu0 %v2028
  %v2030 = vand.u32 %v2014, 4294901760
  %2031 = vmatpush.msra.mxu0 %v2030
  %v2032 = vand.u32 %v2013, 4294901760
  %2033 = vmatpush.msra.mxu0 %v2032
  %v2034 = vand.u32 %v2012, 4294901760
  %2035 = vmatpush.msra.mxu0 %v2034
  %v2036 = vand.u32 %v2011, 4294901760
  %2037 = vmatpush.msra.mxu0 %v2036
  %v2038 = vand.u32 %v2010, 4294901760
  %2039 = vmatpush.msra.mxu0 %v2038
  %v2040 = vand.u32 %v2009, 4294901760
  %2041 = vmatpush.msra.mxu0 %v2040
  %v2042 = vand.u32 %v2008, 4294901760
  %2043 = vmatpush.msra.mxu0 %v2042
  %v2044 = vand.u32 %v2007, 4294901760
  %2045 = vmatpush.msra.mxu0 %v2044
  %v2046 = vand.u32 %v2006, 4294901760
  %2047 = vmatpush.msra.mxu0 %v2046
  %v2048 = vand.u32 %v2005, 4294901760
  %2049 = vmatpush.msra.mxu0 %v2048
  %v2050 = vand.u32 %v2004, 4294901760
  %2051 = vmatpush.msra.mxu0 %v2050
  %v2052 = vand.u32 %v2002, 4294901760
  %v2053 = vsub.f32 %v2002, %v2052
  %v2054 = vand.u32 %v2053, 4294901760
  %v2055 = vsub.f32 %v2053, %v2054
  %v2056 = vand.u32 %v2055, 4294901760
  %2057 = vmatmul.f32.gmra.mxu0 %v2056
  %v2058 = vpop.f32.mrf.mxu0
  %v2059 = vadd.f32 0.0, %v2058
  %2060 = vdwg.mxu0
  %v2061 = vand.u32 %v2019, 4294901760
  %v2062 = vsub.f32 %v2019, %v2061
  %v2063 = vand.u32 %v2062, 4294901760
  %v2064 = vsub.f32 %v2062, %v2063
  %v2065 = vand.u32 %v2064, 4294901760
  %2066 = vmatpush.msra.mxu0 %v2065
  %v2067 = vand.u32 %v2018, 4294901760
  %v2068 = vsub.f32 %v2018, %v2067
  %v2069 = vand.u32 %v2068, 4294901760
  %v2070 = vsub.f32 %v2068, %v2069
  %v2071 = vand.u32 %v2070, 4294901760
  %2072 = vmatpush.msra.mxu0 %v2071
  %v2073 = vand.u32 %v2017, 4294901760
  %v2074 = vsub.f32 %v2017, %v2073
  %v2075 = vand.u32 %v2074, 4294901760
  %v2076 = vsub.f32 %v2074, %v2075
  %v2077 = vand.u32 %v2076, 4294901760
  %2078 = vmatpush.msra.mxu0 %v2077
  %v2079 = vand.u32 %v2016, 4294901760
  %v2080 = vsub.f32 %v2016, %v2079
  %v2081 = vand.u32 %v2080, 4294901760
  %v2082 = vsub.f32 %v2080, %v2081
  %v2083 = vand.u32 %v2082, 4294901760
  %2084 = vmatpush.msra.mxu0 %v2083
  %v2085 = vand.u32 %v2015, 4294901760
  %v2086 = vsub.f32 %v2015, %v2085
  %v2087 = vand.u32 %v2086, 4294901760
  %v2088 = vsub.f32 %v2086, %v2087
  %v2089 = vand.u32 %v2088, 4294901760
  %2090 = vmatpush.msra.mxu0 %v2089
  %v2091 = vand.u32 %v2014, 4294901760
  %v2092 = vsub.f32 %v2014, %v2091
  %v2093 = vand.u32 %v2092, 4294901760
  %v2094 = vsub.f32 %v2092, %v2093
  %v2095 = vand.u32 %v2094, 4294901760
  %2096 = vmatpush.msra.mxu0 %v2095
  %v2097 = vand.u32 %v2013, 4294901760
  %v2098 = vsub.f32 %v2013, %v2097
  %v2099 = vand.u32 %v2098, 4294901760
  %v2100 = vsub.f32 %v2098, %v2099
  %v2101 = vand.u32 %v2100, 4294901760
  %2102 = vmatpush.msra.mxu0 %v2101
  %v2103 = vand.u32 %v2012, 4294901760
  %v2104 = vsub.f32 %v2012, %v2103
  %v2105 = vand.u32 %v2104, 4294901760
  %v2106 = vsub.f32 %v2104, %v2105
  %v2107 = vand.u32 %v2106, 4294901760
  %2108 = vmatpush.msra.mxu0 %v2107
  %v2109 = vand.u32 %v2011, 4294901760
  %v2110 = vsub.f32 %v2011, %v2109
  %v2111 = vand.u32 %v2110, 4294901760
  %v2112 = vsub.f32 %v2110, %v2111
  %v2113 = vand.u32 %v2112, 4294901760
  %2114 = vmatpush.msra.mxu0 %v2113
  %v2115 = vand.u32 %v2010, 4294901760
  %v2116 = vsub.f32 %v2010, %v2115
  %v2117 = vand.u32 %v2116, 4294901760
  %v2118 = vsub.f32 %v2116, %v2117
  %v2119 = vand.u32 %v2118, 4294901760
  %2120 = vmatpush.msra.mxu0 %v2119
  %v2121 = vand.u32 %v2009, 4294901760
  %v2122 = vsub.f32 %v2009, %v2121
  %v2123 = vand.u32 %v2122, 4294901760
  %v2124 = vsub.f32 %v2122, %v2123
  %v2125 = vand.u32 %v2124, 4294901760
  %2126 = vmatpush.msra.mxu0 %v2125
  %v2127 = vand.u32 %v2008, 4294901760
  %v2128 = vsub.f32 %v2008, %v2127
  %v2129 = vand.u32 %v2128, 4294901760
  %v2130 = vsub.f32 %v2128, %v2129
  %v2131 = vand.u32 %v2130, 4294901760
  %2132 = vmatpush.msra.mxu0 %v2131
  %v2133 = vand.u32 %v2007, 4294901760
  %v2134 = vsub.f32 %v2007, %v2133
  %v2135 = vand.u32 %v2134, 4294901760
  %v2136 = vsub.f32 %v2134, %v2135
  %v2137 = vand.u32 %v2136, 4294901760
  %2138 = vmatpush.msra.mxu0 %v2137
  %v2139 = vand.u32 %v2006, 4294901760
  %v2140 = vsub.f32 %v2006, %v2139
  %v2141 = vand.u32 %v2140, 4294901760
  %v2142 = vsub.f32 %v2140, %v2141
  %v2143 = vand.u32 %v2142, 4294901760
  %2144 = vmatpush.msra.mxu0 %v2143
  %v2145 = vand.u32 %v2005, 4294901760
  %v2146 = vsub.f32 %v2005, %v2145
  %v2147 = vand.u32 %v2146, 4294901760
  %v2148 = vsub.f32 %v2146, %v2147
  %v2149 = vand.u32 %v2148, 4294901760
  %2150 = vmatpush.msra.mxu0 %v2149
  %v2151 = vand.u32 %v2004, 4294901760
  %v2152 = vsub.f32 %v2004, %v2151
  %v2153 = vand.u32 %v2152, 4294901760
  %v2154 = vsub.f32 %v2152, %v2153
  %v2155 = vand.u32 %v2154, 4294901760
  %2156 = vmatpush.msra.mxu0 %v2155
  %v2157 = vand.u32 %v2002, 4294901760
  %2158 = vmatmul.f32.gmra.mxu0 %v2157
  %v2159 = vpop.f32.mrf.mxu0
  %v2160 = vadd.f32 %v2059, %v2159
  %2161 = vdwg.mxu0
  %v2162 = vand.u32 %v2019, 4294901760
  %v2163 = vsub.f32 %v2019, %v2162
  %2164 = vmatpush.msra.mxu0 %v2163
  %v2165 = vand.u32 %v2018, 4294901760
  %v2166 = vsub.f32 %v2018, %v2165
  %2167 = vmatpush.msra.mxu0 %v2166
  %v2168 = vand.u32 %v2017, 4294901760
  %v2169 = vsub.f32 %v2017, %v2168
  %2170 = vmatpush.msra.mxu0 %v2169
  %v2171 = vand.u32 %v2016, 4294901760
  %v2172 = vsub.f32 %v2016, %v2171
  %2173 = vmatpush.msra.mxu0 %v2172
  %v2174 = vand.u32 %v2015, 4294901760
  %v2175 = vsub.f32 %v2015, %v2174
  %2176 = vmatpush.msra.mxu0 %v2175
  %v2177 = vand.u32 %v2014, 4294901760
  %v2178 = vsub.f32 %v2014, %v2177
  %2179 = vmatpush.msra.mxu0 %v2178
  %v2180 = vand.u32 %v2013, 4294901760
  %v2181 = vsub.f32 %v2013, %v2180
  %2182 = vmatpush.msra.mxu0 %v2181
  %v2183 = vand.u32 %v2012, 4294901760
  %v2184 = vsub.f32 %v2012, %v2183
  %2185 = vmatpush.msra.mxu0 %v2184
  %v2186 = vand.u32 %v2011, 4294901760
  %v2187 = vsub.f32 %v2011, %v2186
  %2188 = vmatpush.msra.mxu0 %v2187
  %v2189 = vand.u32 %v2010, 4294901760
  %v2190 = vsub.f32 %v2010, %v2189
  %2191 = vmatpush.msra.mxu0 %v2190
  %v2192 = vand.u32 %v2009, 4294901760
  %v2193 = vsub.f32 %v2009, %v2192
  %2194 = vmatpush.msra.mxu0 %v2193
  %v2195 = vand.u32 %v2008, 4294901760
  %v2196 = vsub.f32 %v2008, %v2195
  %2197 = vmatpush.msra.mxu0 %v2196
  %v2198 = vand.u32 %v2007, 4294901760
  %v2199 = vsub.f32 %v2007, %v2198
  %2200 = vmatpush.msra.mxu0 %v2199
  %v2201 = vand.u32 %v2006, 4294901760
  %v2202 = vsub.f32 %v2006, %v2201
  %2203 = vmatpush.msra.mxu0 %v2202
  %v2204 = vand.u32 %v2005, 4294901760
  %v2205 = vsub.f32 %v2005, %v2204
  %2206 = vmatpush.msra.mxu0 %v2205
  %v2207 = vand.u32 %v2004, 4294901760
  %v2208 = vsub.f32 %v2004, %v2207
  %2209 = vmatpush.msra.mxu0 %v2208
  %v2210 = vand.u32 %v2002, 4294901760
  %v2211 = vsub.f32 %v2002, %v2210
  %2212 = vmatmul.f32.gmra.mxu0 %v2211
  %v2213 = vpop.f32.mrf.mxu0
  %v2214 = vadd.f32 %v2160, %v2213
  %2215 = vdwg.mxu0
  %v2216 = vand.u32 %v2019, 4294901760
  %2217 = vmatpush.msra.mxu0 %v2216
  %v2218 = vand.u32 %v2018, 4294901760
  %2219 = vmatpush.msra.mxu0 %v2218
  %v2220 = vand.u32 %v2017, 4294901760
  %2221 = vmatpush.msra.mxu0 %v2220
  %v2222 = vand.u32 %v2016, 4294901760
  %2223 = vmatpush.msra.mxu0 %v2222
  %v2224 = vand.u32 %v2015, 4294901760
  %2225 = vmatpush.msra.mxu0 %v2224
  %v2226 = vand.u32 %v2014, 4294901760
  %2227 = vmatpush.msra.mxu0 %v2226
  %v2228 = vand.u32 %v2013, 4294901760
  %2229 = vmatpush.msra.mxu0 %v2228
  %v2230 = vand.u32 %v2012, 4294901760
  %2231 = vmatpush.msra.mxu0 %v2230
  %v2232 = vand.u32 %v2011, 4294901760
  %2233 = vmatpush.msra.mxu0 %v2232
  %v2234 = vand.u32 %v2010, 4294901760
  %2235 = vmatpush.msra.mxu0 %v2234
  %v2236 = vand.u32 %v2009, 4294901760
  %2237 = vmatpush.msra.mxu0 %v2236
  %v2238 = vand.u32 %v2008, 4294901760
  %2239 = vmatpush.msra.mxu0 %v2238
  %v2240 = vand.u32 %v2007, 4294901760
  %2241 = vmatpush.msra.mxu0 %v2240
  %v2242 = vand.u32 %v2006, 4294901760
  %2243 = vmatpush.msra.mxu0 %v2242
  %v2244 = vand.u32 %v2005, 4294901760
  %2245 = vmatpush.msra.mxu0 %v2244
  %v2246 = vand.u32 %v2004, 4294901760
  %2247 = vmatpush.msra.mxu0 %v2246
  %v2248 = vand.u32 %v2002, 4294901760
  %v2249 = vsub.f32 %v2002, %v2248
  %v2250 = vand.u32 %v2249, 4294901760
  %2251 = vmatmul.f32.gmra.mxu0 %v2250
  %v2252 = vpop.f32.mrf.mxu0
  %v2253 = vadd.f32 %v2214, %v2252
  %2254 = vdwg.mxu0
  %v2255 = vand.u32 %v2019, 4294901760
  %v2256 = vsub.f32 %v2019, %v2255
  %v2257 = vand.u32 %v2256, 4294901760
  %2258 = vmatpush.msra.mxu0 %v2257
  %v2259 = vand.u32 %v2018, 4294901760
  %v2260 = vsub.f32 %v2018, %v2259
  %v2261 = vand.u32 %v2260, 4294901760
  %2262 = vmatpush.msra.mxu0 %v2261
  %v2263 = vand.u32 %v2017, 4294901760
  %v2264 = vsub.f32 %v2017, %v2263
  %v2265 = vand.u32 %v2264, 4294901760
  %2266 = vmatpush.msra.mxu0 %v2265
  %v2267 = vand.u32 %v2016, 4294901760
  %v2268 = vsub.f32 %v2016, %v2267
  %v2269 = vand.u32 %v2268, 4294901760
  %2270 = vmatpush.msra.mxu0 %v2269
  %v2271 = vand.u32 %v2015, 4294901760
  %v2272 = vsub.f32 %v2015, %v2271
  %v2273 = vand.u32 %v2272, 4294901760
  %2274 = vmatpush.msra.mxu0 %v2273
  %v2275 = vand.u32 %v2014, 4294901760
  %v2276 = vsub.f32 %v2014, %v2275
  %v2277 = vand.u32 %v2276, 4294901760
  %2278 = vmatpush.msra.mxu0 %v2277
  %v2279 = vand.u32 %v2013, 4294901760
  %v2280 = vsub.f32 %v2013, %v2279
  %v2281 = vand.u32 %v2280, 4294901760
  %2282 = vmatpush.msra.mxu0 %v2281
  %v2283 = vand.u32 %v2012, 4294901760
  %v2284 = vsub.f32 %v2012, %v2283
  %v2285 = vand.u32 %v2284, 4294901760
  %2286 = vmatpush.msra.mxu0 %v2285
  %v2287 = vand.u32 %v2011, 4294901760
  %v2288 = vsub.f32 %v2011, %v2287
  %v2289 = vand.u32 %v2288, 4294901760
  %2290 = vmatpush.msra.mxu0 %v2289
  %v2291 = vand.u32 %v2010, 4294901760
  %v2292 = vsub.f32 %v2010, %v2291
  %v2293 = vand.u32 %v2292, 4294901760
  %2294 = vmatpush.msra.mxu0 %v2293
  %v2295 = vand.u32 %v2009, 4294901760
  %v2296 = vsub.f32 %v2009, %v2295
  %v2297 = vand.u32 %v2296, 4294901760
  %2298 = vmatpush.msra.mxu0 %v2297
  %v2299 = vand.u32 %v2008, 4294901760
  %v2300 = vsub.f32 %v2008, %v2299
  %v2301 = vand.u32 %v2300, 4294901760
  %2302 = vmatpush.msra.mxu0 %v2301
  %v2303 = vand.u32 %v2007, 4294901760
  %v2304 = vsub.f32 %v2007, %v2303
  %v2305 = vand.u32 %v2304, 4294901760
  %2306 = vmatpush.msra.mxu0 %v2305
  %v2307 = vand.u32 %v2006, 4294901760
  %v2308 = vsub.f32 %v2006, %v2307
  %v2309 = vand.u32 %v2308, 4294901760
  %2310 = vmatpush.msra.mxu0 %v2309
  %v2311 = vand.u32 %v2005, 4294901760
  %v2312 = vsub.f32 %v2005, %v2311
  %v2313 = vand.u32 %v2312, 4294901760
  %2314 = vmatpush.msra.mxu0 %v2313
  %v2315 = vand.u32 %v2004, 4294901760
  %v2316 = vsub.f32 %v2004, %v2315
  %v2317 = vand.u32 %v2316, 4294901760
  %2318 = vmatpush.msra.mxu0 %v2317
  %v2319 = vand.u32 %v2002, 4294901760
  %2320 = vmatmul.f32.gmra.mxu0 %v2319
  %v2321 = vpop.f32.mrf.mxu0
  %v2322 = vadd.f32 %v2253, %v2321
  %2323 = vdwg.mxu0
  %v2324 = vand.u32 %v2019, 4294901760
  %2325 = vmatpush.msra.mxu0 %v2324
  %v2326 = vand.u32 %v2018, 4294901760
  %2327 = vmatpush.msra.mxu0 %v2326
  %v2328 = vand.u32 %v2017, 4294901760
  %2329 = vmatpush.msra.mxu0 %v2328
  %v2330 = vand.u32 %v2016, 4294901760
  %2331 = vmatpush.msra.mxu0 %v2330
  %v2332 = vand.u32 %v2015, 4294901760
  %2333 = vmatpush.msra.mxu0 %v2332
  %v2334 = vand.u32 %v2014, 4294901760
  %2335 = vmatpush.msra.mxu0 %v2334
  %v2336 = vand.u32 %v2013, 4294901760
  %2337 = vmatpush.msra.mxu0 %v2336
  %v2338 = vand.u32 %v2012, 4294901760
  %2339 = vmatpush.msra.mxu0 %v2338
  %v2340 = vand.u32 %v2011, 4294901760
  %2341 = vmatpush.msra.mxu0 %v2340
  %v2342 = vand.u32 %v2010, 4294901760
  %2343 = vmatpush.msra.mxu0 %v2342
  %v2344 = vand.u32 %v2009, 4294901760
  %2345 = vmatpush.msra.mxu0 %v2344
  %v2346 = vand.u32 %v2008, 4294901760
  %2347 = vmatpush.msra.mxu0 %v2346
  %v2348 = vand.u32 %v2007, 4294901760
  %2349 = vmatpush.msra.mxu0 %v2348
  %v2350 = vand.u32 %v2006, 4294901760
  %2351 = vmatpush.msra.mxu0 %v2350
  %v2352 = vand.u32 %v2005, 4294901760
  %2353 = vmatpush.msra.mxu0 %v2352
  %v2354 = vand.u32 %v2004, 4294901760
  %2355 = vmatpush.msra.mxu0 %v2354
  %v2356 = vand.u32 %v2002, 4294901760
  %2357 = vmatmul.f32.gmra.mxu0 %v2356
  %v2358 = vpop.f32.mrf.mxu0
  %v2359 = vadd.f32 %v2322, %v2358
  %2360 = vdwg.mxu0
  %2361 = vst [vmem:[%s8] sm:$0xf] %v2359
  // Predicated region
  $region34: #{forward.3} parent=0 // pred_check
    _
  $region35: #{forward.3} parent=0 // pred_check_branch
    %2363 = sbr.rel (0) target = $region37
  $region36: #{forward.3} parent=0 // pred_region
    _
  $region37: #{forward.3} parent=0 // pred_fallthru
    _
  // Predicated region
  $region38: #{forward.3} parent=0 // pred_check
    _
  $region39: #{forward.3} parent=0 // pred_check_branch
    %2365 = sbr.rel (0) target = $region41
  $region40: #{forward.3} parent=0 // pred_region
    _
  $region41: #{forward.3} parent=0 // pred_fallthru
    _

</llo_original>
